<compile_context>
chip_gen: v7x
topology: tpu7x:2x2x1
jax: 0.10.0
libtpu: 0.0.40
codegen_flags: <defaults>
</compile_context>

<pallas_src>
import functools

import jax
import jax.numpy as jnp
from jax.experimental import pallas as pl
from jax.experimental.pallas import tpu as pltpu

NEG_INF = -1e30
LN_EPS = 1e-5


def _default_vmem_limit():
    try:
        cap = int(pltpu.get_tpu_info().vmem_capacity_bytes)
    except Exception:
        cap = 64 * 1024 * 1024
    # ~3/4 of physical VMEM, capped; 96 MiB on v5e/v6e, 48 MiB on v7x.
    return max(32 * 1024 * 1024, min((cap * 3) // 4, 100 * 1024 * 1024))


VMEM_LIMIT = _default_vmem_limit()


def _pick_tile(dim, target, align):
    """Largest tile <= target that divides `dim` and is a multiple of `align`.
    Falls back to the full dimension (always a legal block size)."""
    if dim <= target:
        return dim
    t = (target // align) * align
    while t >= align:
        if dim % t == 0:
            return t
        t -= align
    return dim


def _pick_bn(N, Lq, target_rows=256, max_rows=512):
    """Batch rows per MHA grid step: prefer the smallest divisor of N whose
    bN*Lq reaches target_rows (MXU fill) while staying VMEM-friendly."""
    divs = [d for d in range(1, N + 1) if N % d == 0 and d * Lq <= max_rows]
    if not divs:
        return 1
    meeting = [d for d in divs if d * Lq >= target_rows]
    return min(meeting) if meeting else max(divs)


# ----------------------------- fused MHA kernels ---------------------------- #

def _attn_core(xq, q, k, v, kpm_row, wo_ref, bo_ref, g_ref, b_ref,
               *, num_heads, causal, eps):
    """Per-head attention accumulated through the out-projection, then
    residual + LayerNorm.  Everything lives in VMEM / vregs."""
    Lq, E = q.shape
    Lk = k.shape[0]
    D = E // num_heads

    bias = None
    if causal:
        row = jax.lax.broadcasted_iota(jnp.int32, (Lq, Lk), 0)
        col = jax.lax.broadcasted_iota(jnp.int32, (Lq, Lk), 1)
        bias = jnp.where(col > row, NEG_INF, 0.0).astype(jnp.float32)
    if kpm_row is not None:                          # (1, Lk) additive bias
        bias = kpm_row if bias is None else bias + kpm_row

    q_bf = q.astype(jnp.bfloat16)
    kT = jnp.transpose(k).astype(jnp.bfloat16)       # one transpose, (E, Lk)
    v_bf = v.astype(jnp.bfloat16)

    o = jnp.zeros((Lq, E), jnp.float32)
    for h in range(num_heads):                       # static unroll; H small
        sl = slice(h * D, (h + 1) * D)
        s = jnp.dot(q_bf[:, sl], kT[sl, :],
                    preferred_element_type=jnp.float32)          # (Lq, Lk)
        if bias is not None:
            s = s + bias
        s = s - jnp.max(s, axis=-1, keepdims=True)
        p = jnp.exp(s)
        p = p * pl.reciprocal(jnp.sum(p, axis=-1, keepdims=True), approx=True)
        oh = jnp.dot(p.astype(jnp.bfloat16), v_bf[:, sl],
                     preferred_element_type=jnp.float32)         # (Lq, D)
        o = o + jnp.dot(oh.astype(jnp.bfloat16), wo_ref[sl, :],
                        preferred_element_type=jnp.float32)      # (Lq, E)
    o = o + bo_ref[...]

    # post-norm residual: LayerNorm(x + attn(x))
    z = xq + o
    mu = jnp.mean(z, axis=-1, keepdims=True)
    var = jnp.mean(jnp.square(z - mu), axis=-1, keepdims=True)
    return (z - mu) * jax.lax.rsqrt(var + eps) * g_ref[...] + b_ref[...]


def _mha_self_kernel(*refs, num_heads, causal, has_kpm, eps):
    if has_kpm:
        (x_ref, kpm_ref, wqkv_ref, bqkv_ref, wo_ref, bo_ref,
         g_ref, b_ref, o_ref) = refs
    else:
        (x_ref, wqkv_ref, bqkv_ref, wo_ref, bo_ref,
         g_ref, b_ref, o_ref) = refs
        kpm_ref = None
    bN, Lq, E = x_ref.shape
    x = x_ref[...].reshape(bN * Lq, E)
    # single fused (bN*Lq, E) x (E, 3E) projection on the MXU
    qkv = jnp.dot(x.astype(jnp.bfloat16), wqkv_ref[...],
                  preferred_element_type=jnp.float32) + bqkv_ref[...]
    for b in range(bN):                              # static; attention per seq
        rs = slice(b * Lq, (b + 1) * Lq)
        kpm = kpm_ref[b] if has_kpm else None
        o_ref[b] = _attn_core(x[rs], qkv[rs, :E], qkv[rs, E:2 * E],
                              qkv[rs, 2 * E:], kpm, wo_ref, bo_ref,
                              g_ref, b_ref,
                              num_heads=num_heads, causal=causal, eps=eps)


def _mha_cross_kernel(xq_ref, xkv_ref, wqkv_ref, bqkv_ref, wo_ref, bo_ref,
                      g_ref, b_ref, o_ref, *, num_heads, eps):
    bN, Lq, E = xq_ref.shape
    Lk = xkv_ref.shape[1]
    xq = xq_ref[...].reshape(bN * Lq, E)
    xkv = xkv_ref[...].reshape(bN * Lk, E).astype(jnp.bfloat16)
    q_all = jnp.dot(xq.astype(jnp.bfloat16), wqkv_ref[:, :E],
                    preferred_element_type=jnp.float32) + bqkv_ref[:, :E]
    kv_all = jnp.dot(xkv, wqkv_ref[:, E:],
                     preferred_element_type=jnp.float32) + bqkv_ref[:, E:]
    for b in range(bN):
        rq = slice(b * Lq, (b + 1) * Lq)
        rk = slice(b * Lk, (b + 1) * Lk)
        o_ref[b] = _attn_core(xq[rq], q_all[rq], kv_all[rk, :E],
                              kv_all[rk, E:], None, wo_ref, bo_ref,
                              g_ref, b_ref,
                              num_heads=num_heads, causal=False, eps=eps)


def fused_mha_ln(xq, xkv, kpm_bias, attn_p, ln_g, ln_b,
                 *, num_heads, causal, self_attn):
    """One pallas_call per MHA block.  Grid over batch groups (megacore-parallel).

    xq: (N, Lq, E), xkv: (N, Lk, E), kpm_bias: (N, Lk) additive f32 bias or None.
    Returns LayerNorm(xq + MHA(xq, xkv, xkv)) as (N, Lq, E) f32."""
    N, Lq, E = xq.shape
    Lk = xkv.shape[1]
    bN = _pick_bn(N, max(Lq, Lk))
    has_kpm = kpm_bias is not None

    weight_specs = [
        pl.BlockSpec((E, 3 * E), lambda n: (0, 0)),      # fused QKV weight
        pl.BlockSpec((1, 3 * E), lambda n: (0, 0)),      # fused QKV bias
        pl.BlockSpec((E, E), lambda n: (0, 0)),          # out-proj weight
        pl.BlockSpec((1, E), lambda n: (0, 0)),          # out-proj bias
        pl.BlockSpec((1, E), lambda n: (0, 0)),          # LN gamma
        pl.BlockSpec((1, E), lambda n: (0, 0)),          # LN beta
    ]
    weight_args = [attn_p["wqkv"], attn_p["bqkv"], attn_p["wo"], attn_p["bo"],
                   ln_g, ln_b]

    if self_attn:
        kern = functools.partial(_mha_self_kernel, num_heads=num_heads,
                                 causal=causal, has_kpm=has_kpm, eps=LN_EPS)
        in_specs = [pl.BlockSpec((bN, Lq, E), lambda n: (n, 0, 0))]
        args = [xq]
        if has_kpm:
            in_specs.append(pl.BlockSpec((bN, 1, Lk), lambda n: (n, 0, 0)))
            args.append(kpm_bias.reshape(N, 1, Lk))
        in_specs += weight_specs
        args += weight_args
    else:
        kern = functools.partial(_mha_cross_kernel, num_heads=num_heads,
                                 eps=LN_EPS)
        in_specs = [pl.BlockSpec((bN, Lq, E), lambda n: (n, 0, 0)),
                    pl.BlockSpec((bN, Lk, E), lambda n: (n, 0, 0))] + weight_specs
        args = [xq, xkv] + weight_args

    return pl.pallas_call(
        kern,
        out_shape=jax.ShapeDtypeStruct((N, Lq, E), jnp.float32),
        grid=(N // bN,),
        in_specs=in_specs,
        out_specs=pl.BlockSpec((bN, Lq, E), lambda n: (n, 0, 0)),
        compiler_params=pltpu.CompilerParams(
            dimension_semantics=("parallel",),
            vmem_limit_bytes=VMEM_LIMIT),
    )(*args)


# ------------------------- fused FFN + LayerNorm ---------------------------- #

def _ffn_ln_kernel(x_ref, w1_ref, b1_ref, w2_ref, b2_ref, g_ref, b_ref, o_ref,
                   *, eps):
    x = x_ref[...]                                                 # (tm, E) f32
    h = jnp.dot(x.astype(jnp.bfloat16), w1_ref[...],
                preferred_element_type=jnp.float32) + b1_ref[...]
    h = jnp.maximum(h, 0.0)
    y = jnp.dot(h.astype(jnp.bfloat16), w2_ref[...],
                preferred_element_type=jnp.float32) + b2_ref[...]
    z = x + y
    mu = jnp.mean(z, axis=-1, keepdims=True)
    var = jnp.mean(jnp.square(z - mu), axis=-1, keepdims=True)
    o_ref[...] = (z - mu) * jax.lax.rsqrt(var + eps) * g_ref[...] + b_ref[...]


def ffn_ln(x2d, w1, b1, w2, b2, g, b):
    M, E = x2d.shape
    F = w1.shape[1]          # already zero-padded to a multiple of 128
    tm = _pick_tile(M, 512, 8)
    kern = functools.partial(_ffn_ln_kernel, eps=LN_EPS)
    return pl.pallas_call(
        kern,
        out_shape=jax.ShapeDtypeStruct((M, E), jnp.float32),
        grid=(M // tm,),
        in_specs=[pl.BlockSpec((tm, E), lambda i: (i, 0)),
                  pl.BlockSpec((E, F), lambda i: (0, 0)),
                  pl.BlockSpec((1, F), lambda i: (0, 0)),
                  pl.BlockSpec((F, E), lambda i: (0, 0)),
                  pl.BlockSpec((1, E), lambda i: (0, 0)),
                  pl.BlockSpec((1, E), lambda i: (0, 0)),
                  pl.BlockSpec((1, E), lambda i: (0, 0))],
        out_specs=pl.BlockSpec((tm, E), lambda i: (i, 0)),
        compiler_params=pltpu.CompilerParams(
            dimension_semantics=("parallel",),
            vmem_limit_bytes=VMEM_LIMIT),
    )(x2d, w1, b1, w2, b2, g, b)


# ------------------------------- plain LayerNorm ----------------------------- #

def _ln_kernel(x_ref, g_ref, b_ref, o_ref, *, eps):
    x = x_ref[...]
    mu = jnp.mean(x, axis=-1, keepdims=True)
    var = jnp.mean(jnp.square(x - mu), axis=-1, keepdims=True)
    y = (x - mu) * jax.lax.rsqrt(var + eps) * g_ref[...] + b_ref[...]
    o_ref[...] = y.astype(o_ref.dtype)


def layernorm(x2d, g, b, out_dtype=jnp.float32):
    """Final stack norm; can emit bf16 directly to halve downstream HBM reads."""
    M, E = x2d.shape
    tm = _pick_tile(M, 512, 8)
    kern = functools.partial(_ln_kernel, eps=LN_EPS)
    return pl.pallas_call(
        kern,
        out_shape=jax.ShapeDtypeStruct((M, E), out_dtype),
        grid=(M // tm,),
        in_specs=[pl.BlockSpec((tm, E), lambda i: (i, 0)),
                  pl.BlockSpec((1, E), lambda i: (0, 0)),
                  pl.BlockSpec((1, E), lambda i: (0, 0))],
        out_specs=pl.BlockSpec((tm, E), lambda i: (i, 0)),
        compiler_params=pltpu.CompilerParams(
            dimension_semantics=("parallel",),
            vmem_limit_bytes=VMEM_LIMIT),
    )(x2d, g, b)


# ------------------------ tiled linear (vocab projection) -------------------- #

def _linear_kernel(x_ref, w_ref, b_ref, o_ref, acc_ref):
    @pl.when(pl.program_id(2) == 0)
    def _():
        acc_ref[...] = jnp.zeros_like(acc_ref)

    acc_ref[...] += jnp.dot(x_ref[...], w_ref[...],
                            preferred_element_type=jnp.float32)

    @pl.when(pl.program_id(2) == pl.num_programs(2) - 1)
    def _():
        o_ref[...] = acc_ref[...] + b_ref[...]


def linear_tiled(x2d_bf16, w_bf16, b_row):
    """y = x @ w + b with a (M, Nout, K) grid, f32 VMEM accumulator and
    K-reduction last.  x is bf16 (halves activation DMA bytes); tm is raised
    toward the full M under a VMEM budget so the weight is streamed ~once."""
    M, K = x2d_bf16.shape
    Nout = w_bf16.shape[1]
    tn = _pick_tile(Nout, 512, 128)
    tk = _pick_tile(K, 512, 128)
    budget = int(VMEM_LIMIT * 0.8)

    def est(tm):
        return (2 * tm * tk * 2        # x tile, bf16, double-buffered
                + 2 * tk * tn * 2      # w tile, bf16, double-buffered
                + 2 * tn * 4           # bias
                + 2 * tm * tn * 4      # out tile, f32, double-buffered
                + tm * tn * 4)         # f32 accumulator

    tm = M
    if est(tm) > budget:
        cands = sorted({t for t in range(8, M, 8) if M % t == 0}, reverse=True)
        tm = next((t for t in cands if est(t) <= budget),
                  _pick_tile(M, 128, 8))

    return pl.pallas_call(
        _linear_kernel,
        out_shape=jax.ShapeDtypeStruct((M, Nout), jnp.float32),
        grid=(M // tm, Nout // tn, K // tk),
        in_specs=[pl.BlockSpec((tm, tk), lambda i, j, k: (i, k)),
                  pl.BlockSpec((tk, tn), lambda i, j, k: (k, j)),
                  pl.BlockSpec((1, tn), lambda i, j, k: (0, j))],
        out_specs=pl.BlockSpec((tm, tn), lambda i, j, k: (i, j)),
        scratch_shapes=[pltpu.VMEM((tm, tn), jnp.float32)],
        compiler_params=pltpu.CompilerParams(
            dimension_semantics=("parallel", "parallel", "arbitrary"),
            vmem_limit_bytes=VMEM_LIMIT),
    )(x2d_bf16, w_bf16, b_row)


# ------------------------------ model forward -------------------------------- #

def transformer_forward(pp, src, trg, *, num_heads, src_pad_idx):
    S, N = src.shape
    T, _ = trg.shape
    E = pp["src_word_emb"].shape[1]

    src_t = src.T                      # (N, S)
    trg_t = trg.T                      # (N, T)

    # embeddings in (batch, seq, embed); dropout == identity (eval)
    # TODO(synk): embedding gathers stay in XLA (no dense-Pallas win here).
    embed_src = pp["src_word_emb"][src_t] + pp["src_pos_emb"][jnp.arange(S)][None, :, :]
    embed_trg = pp["trg_word_emb"][trg_t] + pp["trg_pos_emb"][jnp.arange(T)][None, :, :]

    # key-padding bias is only (N, S); causal mask is built in-kernel.
    kpm_src = jnp.where(src_t == src_pad_idx, NEG_INF, 0.0).astype(jnp.float32)

    # ------------------------------ encoder ------------------------------
    mem = embed_src
    for lp in pp["enc_layers"]:
        mem = fused_mha_ln(mem, mem, kpm_src, lp["self_attn"],
                           lp["ln1_g"], lp["ln1_b"],
                           num_heads=num_heads, causal=False, self_attn=True)
        mem = ffn_ln(mem.reshape(N * S, E), lp["ffn_w1"], lp["ffn_b1"],
                     lp["ffn_w2"], lp["ffn_b2"],
                     lp["ln2_g"], lp["ln2_b"]).reshape(N, S, E)
    # memory only feeds k/v projections (cast to bf16 in-kernel anyway) -> bf16
    mem = layernorm(mem.reshape(N * S, E), pp["enc_norm_g"], pp["enc_norm_b"],
                    out_dtype=jnp.bfloat16).reshape(N, S, E)

    # ------------------------------ decoder ------------------------------
    out = embed_trg
    for lp in pp["dec_layers"]:
        out = fused_mha_ln(out, out, None, lp["self_attn"],
                           lp["ln1_g"], lp["ln1_b"],
                           num_heads=num_heads, causal=True, self_attn=True)
        # memory_key_padding_mask=None in the spec -> no kpm bias here.
        out = fused_mha_ln(out, mem, None, lp["cross_attn"],
                           lp["ln2_g"], lp["ln2_b"],
                           num_heads=num_heads, causal=False, self_attn=False)
        out = ffn_ln(out.reshape(N * T, E), lp["ffn_w1"], lp["ffn_b1"],
                     lp["ffn_w2"], lp["ffn_b2"],
                     lp["ln3_g"], lp["ln3_b"]).reshape(N, T, E)

    # (N,T,E) -> (T,N,E) BEFORE the vocab projection: the (T,N,V) logits then
    # come out in the right order for free (V/E times cheaper than transposing
    # the logits afterwards).
    out_tn = jnp.transpose(out, (1, 0, 2)).reshape(T * N, E)
    out_tn = layernorm(out_tn, pp["dec_norm_g"], pp["dec_norm_b"],
                       out_dtype=jnp.bfloat16)

    logits = linear_tiled(out_tn, pp["fc_out_w"], pp["fc_out_b"])  # (T*N, V)
    V = logits.shape[1]
    return logits.reshape(T, N, V)                                  # (T, N, V)


# ------------------------------- param init ---------------------------------- #

def init_params(key, *, src_vocab, trg_vocab, embed, num_heads, ffn,
                n_enc, n_dec, max_len):
    state = {"key": key}

    def nxt():
        state["key"], sub = jax.random.split(state["key"])
        return sub

    def w(shape, scale=0.05):
        return jax.random.normal(nxt(), shape, jnp.float32) * scale

    def mha():
        return dict(wq=w((embed, embed)), bq=w((embed,)),
                    wk=w((embed, embed)), bk=w((embed,)),
                    wv=w((embed, embed)), bv=w((embed,)),
                    wo=w((embed, embed)), bo=w((embed,)))

    ones = lambda: jnp.ones((embed,), jnp.float32)
    zeros = lambda: jnp.zeros((embed,), jnp.float32)

    def enc():
        return dict(self_attn=mha(),
                    ln1_g=ones(), ln1_b=zeros(),
                    ffn_w1=w((embed, ffn)), ffn_b1=w((ffn,)),
                    ffn_w2=w((ffn, embed)), ffn_b2=w((embed,)),
                    ln2_g=ones(), ln2_b=zeros())

    def dec():
        return dict(self_attn=mha(), cross_attn=mha(),
                    ln1_g=ones(), ln1_b=zeros(),
                    ln2_g=ones(), ln2_b=zeros(),
                    ffn_w1=w((embed, ffn)), ffn_b1=w((ffn,)),
                    ffn_w2=w((ffn, embed)), ffn_b2=w((embed,)),
                    ln3_g=ones(), ln3_b=zeros())

    return dict(
        src_word_emb=w((src_vocab, embed), 0.1),
        src_pos_emb=w((max_len, embed), 0.1),
        trg_word_emb=w((trg_vocab, embed), 0.1),
        trg_pos_emb=w((max_len, embed), 0.1),
        enc_layers=[enc() for _ in range(n_enc)],
        dec_layers=[dec() for _ in range(n_dec)],
        enc_norm_g=ones(), enc_norm_b=zeros(),
        dec_norm_g=ones(), dec_norm_b=zeros(),
        fc_out_w=w((embed, trg_vocab)), fc_out_b=w((trg_vocab,)),
    )


def pack_params(p, *, num_heads):
    """Device layout: fused bf16 QKV weights (1/sqrt(D) folded into q), bf16
    matmul weights, row-shaped f32 biases, FFN hidden zero-padded to 128."""
    E = p["src_word_emb"].shape[1]
    scale = 1.0 / float(E // num_heads) ** 0.5

    def pack_attn(a):
        wqkv = jnp.concatenate([a["wq"] * scale, a["wk"], a["wv"]], axis=1)
        bqkv = jnp.concatenate([a["bq"] * scale, a["bk"], a["bv"]])
        return dict(
            wqkv=wqkv.astype(jnp.bfloat16),
            bqkv=bqkv.reshape(1, 3 * E).astype(jnp.float32),
            wo=a["wo"].astype(jnp.bfloat16),
            bo=a["bo"].reshape(1, E))

    def pack_ffn(w1, b1, w2):
        F = w1.shape[1]
        Fp = ((F + 127) // 128) * 128          # lane-dense hidden dim
        w1p = jnp.pad(w1, ((0, 0), (0, Fp - F))).astype(jnp.bfloat16)
        b1p = jnp.pad(b1, (0, Fp - F)).reshape(1, Fp)
        w2p = jnp.pad(w2, ((0, Fp - F), (0, 0))).astype(jnp.bfloat16)
        return w1p, b1p, w2p

    def pack_common(lp):
        w1p, b1p, w2p = pack_ffn(lp["ffn_w1"], lp["ffn_b1"], lp["ffn_w2"])
        return dict(
            self_attn=pack_attn(lp["self_attn"]),
            ln1_g=lp["ln1_g"].reshape(1, E), ln1_b=lp["ln1_b"].reshape(1, E),
            ffn_w1=w1p, ffn_b1=b1p, ffn_w2=w2p,
            ffn_b2=lp["ffn_b2"].reshape(1, E),
            ln2_g=lp["ln2_g"].reshape(1, E), ln2_b=lp["ln2_b"].reshape(1, E))

    def pack_enc(lp):
        return pack_common(lp)

    def pack_dec(lp):
        d = pack_common(lp)
        d["cross_attn"] = pack_attn(lp["cross_attn"])
        d["ln3_g"] = lp["ln3_g"].reshape(1, E)
        d["ln3_b"] = lp["ln3_b"].reshape(1, E)
        return d

    return dict(
        src_word_emb=p["src_word_emb"], src_pos_emb=p["src_pos_emb"],
        trg_word_emb=p["trg_word_emb"], trg_pos_emb=p["trg_pos_emb"],
        enc_layers=[pack_enc(lp) for lp in p["enc_layers"]],
        dec_layers=[pack_dec(lp) for lp in p["dec_layers"]],
        enc_norm_g=p["enc_norm_g"].reshape(1, E),
        enc_norm_b=p["enc_norm_b"].reshape(1, E),
        dec_norm_g=p["dec_norm_g"].reshape(1, E),
        dec_norm_b=p["dec_norm_b"].reshape(1, E),
        fc_out_w=p["fc_out_w"].astype(jnp.bfloat16),
        fc_out_b=p["fc_out_b"].reshape(1, -1),
    )


# ----------------------------------- main ------------------------------------ #

if __name__ == "__main__":
    # Small config consistent with the module (original: 512 / 8 heads / 6+6).
    # E=128 keeps the lane dimension dense (multiple of 128).
    EMBED = 128
    HEADS = 4
    FFN = 4              # forward_expansion is passed directly as dim_feedforward
    N_ENC, N_DEC = 2, 2
    MAX_LEN = 16
    SRC_VOCAB, TRG_VOCAB = 24, 24
    SRC_PAD_IDX = 1
    S_SRC, S_TRG, BATCH = 8, 8, 2

    root = jax.random.PRNGKey(0)
    pkey, skey, tkey = jax.random.split(root, 3)

    raw_params = init_params(pkey, src_vocab=SRC_VOCAB, trg_vocab=TRG_VOCAB,
                             embed=EMBED, num_heads=HEADS, ffn=FFN,
                             n_enc=N_ENC, n_dec=N_DEC, max_len=MAX_LEN)
    params = pack_params(raw_params, num_heads=HEADS)

    src = jax.random.randint(skey, (S_SRC, BATCH), 2, SRC_VOCAB, dtype=jnp.int32)
    src = src.at[-2:, 1].set(SRC_PAD_IDX)   # some padding in the second sequence
    trg = jax.random.randint(tkey, (S_TRG, BATCH), 2, TRG_VOCAB, dtype=jnp.int32)

    fwd = jax.jit(functools.partial(transformer_forward,
                                    num_heads=HEADS, src_pad_idx=SRC_PAD_IDX))
    out = fwd(params, src, trg)
    out = jax.block_until_ready(out)

    assert out.shape == (S_TRG, BATCH, TRG_VOCAB), out.shape
    assert bool(jnp.all(jnp.isfinite(out)))
    print("KERNEL_OK")
</pallas_src>

<mosaic_0001>
module attributes {stable_mosaic.version = 11 : i64} {
  func.func @_ffn_ln_kernel(%arg0: i32, %arg1: memref<16x128xf32, #tpu.memory_space<vmem>>, %arg2: memref<128x128xbf16, #tpu.memory_space<vmem>>, %arg3: memref<1x128xf32, #tpu.memory_space<vmem>>, %arg4: memref<128x128xbf16, #tpu.memory_space<vmem>>, %arg5: memref<1x128xf32, #tpu.memory_space<vmem>>, %arg6: memref<1x128xf32, #tpu.memory_space<vmem>>, %arg7: memref<1x128xf32, #tpu.memory_space<vmem>>, %arg8: memref<16x128xf32, #tpu.memory_space<vmem>>) attributes {dimension_semantics = [#tpu.dimension_semantics<parallel>], iteration_bounds = array<i64: 1>, scalar_prefetch = 0 : i64, scratch_operands = 0 : i64, tpu.core_type = #tpu.core_type<tc>, window_params = [{transform_indices = @transform_0, window_bounds = array<i64: 16, 128>}, {pipeline_mode = #tpu.pipeline_mode<synchronous>, transform_indices = @transform_1, window_bounds = array<i64: 128, 128>}, {pipeline_mode = #tpu.pipeline_mode<synchronous>, transform_indices = @transform_2, window_bounds = array<i64: 1, 128>}, {pipeline_mode = #tpu.pipeline_mode<synchronous>, transform_indices = @transform_3, window_bounds = array<i64: 128, 128>}, {pipeline_mode = #tpu.pipeline_mode<synchronous>, transform_indices = @transform_4, window_bounds = array<i64: 1, 128>}, {pipeline_mode = #tpu.pipeline_mode<synchronous>, transform_indices = @transform_5, window_bounds = array<i64: 1, 128>}, {pipeline_mode = #tpu.pipeline_mode<synchronous>, transform_indices = @transform_6, window_bounds = array<i64: 1, 128>}, {transform_indices = @transform_7, window_bounds = array<i64: 16, 128>}]} {
    %c0 = arith.constant 0 : index
    %c0_0 = arith.constant 0 : index
    %0 = vector.load %arg1[%c0, %c0_0] : memref<16x128xf32, #tpu.memory_space<vmem>>, vector<16x128xf32>
    %1 = arith.truncf %0 : vector<16x128xf32> to vector<16x128xbf16>
    %c0_1 = arith.constant 0 : index
    %c0_2 = arith.constant 0 : index
    %2 = vector.load %arg2[%c0_1, %c0_2] : memref<128x128xbf16, #tpu.memory_space<vmem>>, vector<128x128xbf16>
    %cst = arith.constant dense<0.000000e+00> : vector<16x128xf32>
    %3 = tpu.matmul %1, %2, %cst {dimension_numbers = #tpu.dot_dimension_numbers<[1], [0], [0], [1], [0, 0, 1, 1], [], []>} : vector<16x128xbf16>, vector<128x128xbf16>, vector<16x128xf32> -> vector<16x128xf32>
    %c0_3 = arith.constant 0 : index
    %c0_4 = arith.constant 0 : index
    %4 = vector.load %arg3[%c0_3, %c0_4] : memref<1x128xf32, #tpu.memory_space<vmem>>, vector<1x128xf32>
    %5 = vector.broadcast %4 : vector<1x128xf32> to vector<16x128xf32>
    %6 = arith.addf %3, %5 : vector<16x128xf32>
    %cst_5 = arith.constant 0.000000e+00 : f32
    %7 = vector.broadcast %cst_5 : f32 to vector<16x128xf32>
    %8 = arith.maximumf %6, %7 : vector<16x128xf32>
    %9 = arith.truncf %8 : vector<16x128xf32> to vector<16x128xbf16>
    %c0_6 = arith.constant 0 : index
    %c0_7 = arith.constant 0 : index
    %10 = vector.load %arg4[%c0_6, %c0_7] : memref<128x128xbf16, #tpu.memory_space<vmem>>, vector<128x128xbf16>
    %cst_8 = arith.constant dense<0.000000e+00> : vector<16x128xf32>
    %11 = tpu.matmul %9, %10, %cst_8 {dimension_numbers = #tpu.dot_dimension_numbers<[1], [0], [0], [1], [0, 0, 1, 1], [], []>} : vector<16x128xbf16>, vector<128x128xbf16>, vector<16x128xf32> -> vector<16x128xf32>
    %c0_9 = arith.constant 0 : index
    %c0_10 = arith.constant 0 : index
    %12 = vector.load %arg5[%c0_9, %c0_10] : memref<1x128xf32, #tpu.memory_space<vmem>>, vector<1x128xf32>
    %13 = vector.broadcast %12 : vector<1x128xf32> to vector<16x128xf32>
    %14 = arith.addf %11, %13 : vector<16x128xf32>
    %15 = arith.addf %0, %14 : vector<16x128xf32>
    %cst_11 = arith.constant dense<0.000000e+00> : vector<16xf32>
    %16 = vector.multi_reduction <add>, %15, %cst_11 [1] : vector<16x128xf32> to vector<16xf32>
    %17 = vector.shape_cast %16 : vector<16xf32> to vector<16x1xf32>
    %cst_12 = arith.constant 1.280000e+02 : f32
    %18 = vector.broadcast %cst_12 : f32 to vector<16x1xf32>
    %19 = arith.divf %17, %18 : vector<16x1xf32>
    %20 = vector.broadcast %19 : vector<16x1xf32> to vector<16x128xf32>
    %21 = arith.subf %15, %20 : vector<16x128xf32>
    %22 = arith.mulf %21, %21 : vector<16x128xf32>
    %cst_13 = arith.constant dense<0.000000e+00> : vector<16xf32>
    %23 = vector.multi_reduction <add>, %22, %cst_13 [1] : vector<16x128xf32> to vector<16xf32>
    %24 = vector.shape_cast %23 : vector<16xf32> to vector<16x1xf32>
    %cst_14 = arith.constant 1.280000e+02 : f32
    %25 = vector.broadcast %cst_14 : f32 to vector<16x1xf32>
    %26 = arith.divf %24, %25 : vector<16x1xf32>
    %27 = vector.broadcast %19 : vector<16x1xf32> to vector<16x128xf32>
    %28 = arith.subf %15, %27 : vector<16x128xf32>
    %cst_15 = arith.constant 9.99999974E-6 : f32
    %29 = vector.broadcast %cst_15 : f32 to vector<16x1xf32>
    %30 = arith.addf %26, %29 : vector<16x1xf32>
    %31 = math.rsqrt %30 : vector<16x1xf32>
    %32 = vector.broadcast %31 : vector<16x1xf32> to vector<16x128xf32>
    %33 = arith.mulf %28, %32 : vector<16x128xf32>
    %c0_16 = arith.constant 0 : index
    %c0_17 = arith.constant 0 : index
    %34 = vector.load %arg6[%c0_16, %c0_17] : memref<1x128xf32, #tpu.memory_space<vmem>>, vector<1x128xf32>
    %35 = vector.broadcast %34 : vector<1x128xf32> to vector<16x128xf32>
    %36 = arith.mulf %33, %35 : vector<16x128xf32>
    %c0_18 = arith.constant 0 : index
    %c0_19 = arith.constant 0 : index
    %37 = vector.load %arg7[%c0_18, %c0_19] : memref<1x128xf32, #tpu.memory_space<vmem>>, vector<1x128xf32>
    %38 = vector.broadcast %37 : vector<1x128xf32> to vector<16x128xf32>
    %39 = arith.addf %36, %38 : vector<16x128xf32>
    %c0_20 = arith.constant 0 : index
    %c0_21 = arith.constant 0 : index
    %40 = vector.load %arg8[%c0_20, %c0_21] : memref<16x128xf32, #tpu.memory_space<vmem>>, vector<16x128xf32>
    tpu.vector_store %arg8[%c0_20, %c0_21], %39 {strides = array<i32>} : memref<16x128xf32, #tpu.memory_space<vmem>>, vector<16x128xf32>,
    return
  }
  func.func @transform_0(%arg0: i32) -> (i32, i32) {
    %c0_i32 = arith.constant 0 : i32
    %c0_i32_0 = arith.constant 0 : i32
    return %arg0, %c0_i32 : i32, i32
  }
  func.func @transform_1(%arg0: i32) -> (i32, i32) {
    %c0_i32 = arith.constant 0 : i32
    %c0_i32_0 = arith.constant 0 : i32
    %c0_i32_1 = arith.constant 0 : i32
    return %c0_i32, %c0_i32_0 : i32, i32
  }
  func.func @transform_2(%arg0: i32) -> (i32, i32) {
    %c0_i32 = arith.constant 0 : i32
    %c0_i32_0 = arith.constant 0 : i32
    %c0_i32_1 = arith.constant 0 : i32
    return %c0_i32, %c0_i32_0 : i32, i32
  }
  func.func @transform_3(%arg0: i32) -> (i32, i32) {
    %c0_i32 = arith.constant 0 : i32
    %c0_i32_0 = arith.constant 0 : i32
    %c0_i32_1 = arith.constant 0 : i32
    return %c0_i32, %c0_i32_0 : i32, i32
  }
  func.func @transform_4(%arg0: i32) -> (i32, i32) {
    %c0_i32 = arith.constant 0 : i32
    %c0_i32_0 = arith.constant 0 : i32
    %c0_i32_1 = arith.constant 0 : i32
    return %c0_i32, %c0_i32_0 : i32, i32
  }
  func.func @transform_5(%arg0: i32) -> (i32, i32) {
    %c0_i32 = arith.constant 0 : i32
    %c0_i32_0 = arith.constant 0 : i32
    %c0_i32_1 = arith.constant 0 : i32
    return %c0_i32, %c0_i32_0 : i32, i32
  }
  func.func @transform_6(%arg0: i32) -> (i32, i32) {
    %c0_i32 = arith.constant 0 : i32
    %c0_i32_0 = arith.constant 0 : i32
    %c0_i32_1 = arith.constant 0 : i32
    return %c0_i32, %c0_i32_0 : i32, i32
  }
  func.func @transform_7(%arg0: i32) -> (i32, i32) {
    %c0_i32 = arith.constant 0 : i32
    %c0_i32_0 = arith.constant 0 : i32
    return %arg0, %c0_i32 : i32, i32
  }
}

module attributes {stable_mosaic.version = 11 : i64} {
  func.func @_ln_kernel(%arg0: i32, %arg1: memref<16x128xf32, #tpu.memory_space<vmem>>, %arg2: memref<1x128xf32, #tpu.memory_space<vmem>>, %arg3: memref<1x128xf32, #tpu.memory_space<vmem>>, %arg4: memref<16x128xbf16, #tpu.memory_space<vmem>>) attributes {dimension_semantics = [#tpu.dimension_semantics<parallel>], iteration_bounds = array<i64: 1>, scalar_prefetch = 0 : i64, scratch_operands = 0 : i64, tpu.core_type = #tpu.core_type<tc>, window_params = [{transform_indices = @transform_0, window_bounds = array<i64: 16, 128>}, {pipeline_mode = #tpu.pipeline_mode<synchronous>, transform_indices = @transform_1, window_bounds = array<i64: 1, 128>}, {pipeline_mode = #tpu.pipeline_mode<synchronous>, transform_indices = @transform_2, window_bounds = array<i64: 1, 128>}, {transform_indices = @transform_3, window_bounds = array<i64: 16, 128>}]} {
    %c0 = arith.constant 0 : index
    %c0_0 = arith.constant 0 : index
    %0 = vector.load %arg1[%c0, %c0_0] : memref<16x128xf32, #tpu.memory_space<vmem>>, vector<16x128xf32>
    %cst = arith.constant dense<0.000000e+00> : vector<16xf32>
    %1 = vector.multi_reduction <add>, %0, %cst [1] : vector<16x128xf32> to vector<16xf32>
    %2 = vector.shape_cast %1 : vector<16xf32> to vector<16x1xf32>
    %cst_1 = arith.constant 1.280000e+02 : f32
    %3 = vector.broadcast %cst_1 : f32 to vector<16x1xf32>
    %4 = arith.divf %2, %3 : vector<16x1xf32>
    %5 = vector.broadcast %4 : vector<16x1xf32> to vector<16x128xf32>
    %6 = arith.subf %0, %5 : vector<16x128xf32>
    %7 = arith.mulf %6, %6 : vector<16x128xf32>
    %cst_2 = arith.constant dense<0.000000e+00> : vector<16xf32>
    %8 = vector.multi_reduction <add>, %7, %cst_2 [1] : vector<16x128xf32> to vector<16xf32>
    %9 = vector.shape_cast %8 : vector<16xf32> to vector<16x1xf32>
    %cst_3 = arith.constant 1.280000e+02 : f32
    %10 = vector.broadcast %cst_3 : f32 to vector<16x1xf32>
    %11 = arith.divf %9, %10 : vector<16x1xf32>
    %12 = vector.broadcast %4 : vector<16x1xf32> to vector<16x128xf32>
    %13 = arith.subf %0, %12 : vector<16x128xf32>
    %cst_4 = arith.constant 9.99999974E-6 : f32
    %14 = vector.broadcast %cst_4 : f32 to vector<16x1xf32>
    %15 = arith.addf %11, %14 : vector<16x1xf32>
    %16 = math.rsqrt %15 : vector<16x1xf32>
    %17 = vector.broadcast %16 : vector<16x1xf32> to vector<16x128xf32>
    %18 = arith.mulf %13, %17 : vector<16x128xf32>
    %c0_5 = arith.constant 0 : index
    %c0_6 = arith.constant 0 : index
    %19 = vector.load %arg2[%c0_5, %c0_6] : memref<1x128xf32, #tpu.memory_space<vmem>>, vector<1x128xf32>
    %20 = vector.broadcast %19 : vector<1x128xf32> to vector<16x128xf32>
    %21 = arith.mulf %18, %20 : vector<16x128xf32>
    %c0_7 = arith.constant 0 : index
    %c0_8 = arith.constant 0 : index
    %22 = vector.load %arg3[%c0_7, %c0_8] : memref<1x128xf32, #tpu.memory_space<vmem>>, vector<1x128xf32>
    %23 = vector.broadcast %22 : vector<1x128xf32> to vector<16x128xf32>
    %24 = arith.addf %21, %23 : vector<16x128xf32>
    %25 = arith.truncf %24 : vector<16x128xf32> to vector<16x128xbf16>
    %c0_9 = arith.constant 0 : index
    %c0_10 = arith.constant 0 : index
    %26 = vector.load %arg4[%c0_9, %c0_10] : memref<16x128xbf16, #tpu.memory_space<vmem>>, vector<16x128xbf16>
    tpu.vector_store %arg4[%c0_9, %c0_10], %25 {strides = array<i32>} : memref<16x128xbf16, #tpu.memory_space<vmem>>, vector<16x128xbf16>,
    return
  }
  func.func @transform_0(%arg0: i32) -> (i32, i32) {
    %c0_i32 = arith.constant 0 : i32
    %c0_i32_0 = arith.constant 0 : i32
    return %arg0, %c0_i32 : i32, i32
  }
  func.func @transform_1(%arg0: i32) -> (i32, i32) {
    %c0_i32 = arith.constant 0 : i32
    %c0_i32_0 = arith.constant 0 : i32
    %c0_i32_1 = arith.constant 0 : i32
    return %c0_i32, %c0_i32_0 : i32, i32
  }
  func.func @transform_2(%arg0: i32) -> (i32, i32) {
    %c0_i32 = arith.constant 0 : i32
    %c0_i32_0 = arith.constant 0 : i32
    %c0_i32_1 = arith.constant 0 : i32
    return %c0_i32, %c0_i32_0 : i32, i32
  }
  func.func @transform_3(%arg0: i32) -> (i32, i32) {
    %c0_i32 = arith.constant 0 : i32
    %c0_i32_0 = arith.constant 0 : i32
    return %arg0, %c0_i32 : i32, i32
  }
}

module attributes {stable_mosaic.version = 11 : i64} {
  func.func @_mha_self_kernel(%arg0: i32, %arg1: memref<2x8x128xf32, #tpu.memory_space<vmem>>, %arg2: memref<2x1x8xf32, #tpu.memory_space<vmem>>, %arg3: memref<128x384xbf16, #tpu.memory_space<vmem>>, %arg4: memref<1x384xf32, #tpu.memory_space<vmem>>, %arg5: memref<128x128xbf16, #tpu.memory_space<vmem>>, %arg6: memref<1x128xf32, #tpu.memory_space<vmem>>, %arg7: memref<1x128xf32, #tpu.memory_space<vmem>>, %arg8: memref<1x128xf32, #tpu.memory_space<vmem>>, %arg9: memref<2x8x128xf32, #tpu.memory_space<vmem>>) attributes {dimension_semantics = [#tpu.dimension_semantics<parallel>], iteration_bounds = array<i64: 1>, scalar_prefetch = 0 : i64, scratch_operands = 0 : i64, tpu.core_type = #tpu.core_type<tc>, window_params = [{transform_indices = @transform_0, window_bounds = array<i64: 2, 8, 128>}, {transform_indices = @transform_1, window_bounds = array<i64: 2, 1, 8>}, {pipeline_mode = #tpu.pipeline_mode<synchronous>, transform_indices = @transform_2, window_bounds = array<i64: 128, 384>}, {pipeline_mode = #tpu.pipeline_mode<synchronous>, transform_indices = @transform_3, window_bounds = array<i64: 1, 384>}, {pipeline_mode = #tpu.pipeline_mode<synchronous>, transform_indices = @transform_4, window_bounds = array<i64: 128, 128>}, {pipeline_mode = #tpu.pipeline_mode<synchronous>, transform_indices = @transform_5, window_bounds = array<i64: 1, 128>}, {pipeline_mode = #tpu.pipeline_mode<synchronous>, transform_indices = @transform_6, window_bounds = array<i64: 1, 128>}, {pipeline_mode = #tpu.pipeline_mode<synchronous>, transform_indices = @transform_7, window_bounds = array<i64: 1, 128>}, {transform_indices = @transform_8, window_bounds = array<i64: 2, 8, 128>}]} {
    %c0 = arith.constant 0 : index
    %c0_0 = arith.constant 0 : index
    %c0_1 = arith.constant 0 : index
    %0 = vector.load %arg1[%c0, %c0_0, %c0_1] : memref<2x8x128xf32, #tpu.memory_space<vmem>>, vector<2x8x128xf32>
    %1 = vector.shape_cast %0 : vector<2x8x128xf32> to vector<16x128xf32>
    %2 = arith.truncf %1 : vector<16x128xf32> to vector<16x128xbf16>
    %c0_2 = arith.constant 0 : index
    %c0_3 = arith.constant 0 : index
    %3 = vector.load %arg3[%c0_2, %c0_3] : memref<128x384xbf16, #tpu.memory_space<vmem>>, vector<128x384xbf16>
    %cst = arith.constant dense<0.000000e+00> : vector<16x384xf32>
    %4 = tpu.matmul %2, %3, %cst {dimension_numbers = #tpu.dot_dimension_numbers<[1], [0], [0], [1], [0, 0, 1, 1], [], []>} : vector<16x128xbf16>, vector<128x384xbf16>, vector<16x384xf32> -> vector<16x384xf32>
    %c0_4 = arith.constant 0 : index
    %c0_5 = arith.constant 0 : index
    %5 = vector.load %arg4[%c0_4, %c0_5] : memref<1x384xf32, #tpu.memory_space<vmem>>, vector<1x384xf32>
    %6 = vector.broadcast %5 : vector<1x384xf32> to vector<16x384xf32>
    %7 = arith.addf %4, %6 : vector<16x384xf32>
    %c0_6 = arith.constant 0 : index
    %c0_7 = arith.constant 0 : index
    %c0_8 = arith.constant 0 : index
    %8 = vector.load %arg2[%c0_6, %c0_7, %c0_8] : memref<2x1x8xf32, #tpu.memory_space<vmem>>, vector<1x1x8xf32>
    %9 = vector.shape_cast %8 : vector<1x1x8xf32> to vector<1x8xf32>
    %10 = vector.extract_strided_slice %1 {offsets = [0, 0], sizes = [8, 128], strides = [1, 1]} : vector<16x128xf32> to vector<8x128xf32>
    %11 = vector.extract_strided_slice %7 {offsets = [0, 0], sizes = [8, 128], strides = [1, 1]} : vector<16x384xf32> to vector<8x128xf32>
    %12 = vector.extract_strided_slice %7 {offsets = [0, 128], sizes = [8, 128], strides = [1, 1]} : vector<16x384xf32> to vector<8x128xf32>
    %13 = vector.extract_strided_slice %7 {offsets = [0, 256], sizes = [8, 128], strides = [1, 1]} : vector<16x384xf32> to vector<8x128xf32>
    %14 = arith.truncf %11 : vector<8x128xf32> to vector<8x128xbf16>
    %15 = tpu.transpose %12, [1, 0] : vector<8x128xf32> -> vector<128x8xf32>
    %16 = arith.truncf %15 : vector<128x8xf32> to vector<128x8xbf16>
    %17 = arith.truncf %13 : vector<8x128xf32> to vector<8x128xbf16>
    %cst_9 = arith.constant 0.000000e+00 : f32
    %18 = vector.broadcast %cst_9 : f32 to vector<8x128xf32>
    %19 = vector.extract_strided_slice %14 {offsets = [0, 0], sizes = [8, 32], strides = [1, 1]} : vector<8x128xbf16> to vector<8x32xbf16>
    %20 = vector.extract_strided_slice %16 {offsets = [0, 0], sizes = [32, 8], strides = [1, 1]} : vector<128x8xbf16> to vector<32x8xbf16>
    %cst_10 = arith.constant dense<0.000000e+00> : vector<8x8xf32>
    %21 = tpu.matmul %19, %20, %cst_10 {dimension_numbers = #tpu.dot_dimension_numbers<[1], [0], [0], [1], [0, 0, 1, 1], [], []>} : vector<8x32xbf16>, vector<32x8xbf16>, vector<8x8xf32> -> vector<8x8xf32>
    %22 = vector.broadcast %9 : vector<1x8xf32> to vector<8x8xf32>
    %23 = arith.addf %21, %22 : vector<8x8xf32>
    %cst_11 = arith.constant dense<0xFF800000> : vector<8xf32>
    %24 = vector.multi_reduction <maximumf>, %23, %cst_11 [1] : vector<8x8xf32> to vector<8xf32>
    %25 = vector.shape_cast %24 : vector<8xf32> to vector<8x1xf32>
    %26 = vector.broadcast %25 : vector<8x1xf32> to vector<8x8xf32>
    %27 = arith.subf %23, %26 : vector<8x8xf32>
    %28 = math.exp %27 : vector<8x8xf32>
    %cst_12 = arith.constant dense<0.000000e+00> : vector<8xf32>
    %29 = vector.multi_reduction <add>, %28, %cst_12 [1] : vector<8x8xf32> to vector<8xf32>
    %30 = vector.shape_cast %29 : vector<8xf32> to vector<8x1xf32>
    %31 = tpu.reciprocal %30 {approx = true} : vector<8x1xf32> -> vector<8x1xf32>
    %32 = vector.broadcast %31 : vector<8x1xf32> to vector<8x8xf32>
    %33 = arith.mulf %28, %32 : vector<8x8xf32>
    %34 = arith.truncf %33 : vector<8x8xf32> to vector<8x8xbf16>
    %35 = vector.extract_strided_slice %17 {offsets = [0, 0], sizes = [8, 32], strides = [1, 1]} : vector<8x128xbf16> to vector<8x32xbf16>
    %cst_13 = arith.constant dense<0.000000e+00> : vector<8x32xf32>
    %36 = tpu.matmul %34, %35, %cst_13 {dimension_numbers = #tpu.dot_dimension_numbers<[1], [0], [0], [1], [0, 0, 1, 1], [], []>} : vector<8x8xbf16>, vector<8x32xbf16>, vector<8x32xf32> -> vector<8x32xf32>
    %37 = arith.truncf %36 : vector<8x32xf32> to vector<8x32xbf16>
    %c0_14 = arith.constant 0 : index
    %c0_15 = arith.constant 0 : index
    %38 = vector.load %arg5[%c0_14, %c0_15] : memref<128x128xbf16, #tpu.memory_space<vmem>>, vector<32x128xbf16>
    %cst_16 = arith.constant dense<0.000000e+00> : vector<8x128xf32>
    %39 = tpu.matmul %37, %38, %cst_16 {dimension_numbers = #tpu.dot_dimension_numbers<[1], [0], [0], [1], [0, 0, 1, 1], [], []>} : vector<8x32xbf16>, vector<32x128xbf16>, vector<8x128xf32> -> vector<8x128xf32>
    %40 = arith.addf %18, %39 : vector<8x128xf32>
    %41 = vector.extract_strided_slice %14 {offsets = [0, 32], sizes = [8, 32], strides = [1, 1]} : vector<8x128xbf16> to vector<8x32xbf16>
    %42 = vector.extract_strided_slice %16 {offsets = [32, 0], sizes = [32, 8], strides = [1, 1]} : vector<128x8xbf16> to vector<32x8xbf16>
    %cst_17 = arith.constant dense<0.000000e+00> : vector<8x8xf32>
    %43 = tpu.matmul %41, %42, %cst_17 {dimension_numbers = #tpu.dot_dimension_numbers<[1], [0], [0], [1], [0, 0, 1, 1], [], []>} : vector<8x32xbf16>, vector<32x8xbf16>, vector<8x8xf32> -> vector<8x8xf32>
    %44 = vector.broadcast %9 : vector<1x8xf32> to vector<8x8xf32>
    %45 = arith.addf %43, %44 : vector<8x8xf32>
    %cst_18 = arith.constant dense<0xFF800000> : vector<8xf32>
    %46 = vector.multi_reduction <maximumf>, %45, %cst_18 [1] : vector<8x8xf32> to vector<8xf32>
    %47 = vector.shape_cast %46 : vector<8xf32> to vector<8x1xf32>
    %48 = vector.broadcast %47 : vector<8x1xf32> to vector<8x8xf32>
    %49 = arith.subf %45, %48 : vector<8x8xf32>
    %50 = math.exp %49 : vector<8x8xf32>
    %cst_19 = arith.constant dense<0.000000e+00> : vector<8xf32>
    %51 = vector.multi_reduction <add>, %50, %cst_19 [1] : vector<8x8xf32> to vector<8xf32>
    %52 = vector.shape_cast %51 : vector<8xf32> to vector<8x1xf32>
    %53 = tpu.reciprocal %52 {approx = true} : vector<8x1xf32> -> vector<8x1xf32>
    %54 = vector.broadcast %53 : vector<8x1xf32> to vector<8x8xf32>
    %55 = arith.mulf %50, %54 : vector<8x8xf32>
    %56 = arith.truncf %55 : vector<8x8xf32> to vector<8x8xbf16>
    %57 = vector.extract_strided_slice %17 {offsets = [0, 32], sizes = [8, 32], strides = [1, 1]} : vector<8x128xbf16> to vector<8x32xbf16>
    %cst_20 = arith.constant dense<0.000000e+00> : vector<8x32xf32>
    %58 = tpu.matmul %56, %57, %cst_20 {dimension_numbers = #tpu.dot_dimension_numbers<[1], [0], [0], [1], [0, 0, 1, 1], [], []>} : vector<8x8xbf16>, vector<8x32xbf16>, vector<8x32xf32> -> vector<8x32xf32>
    %59 = arith.truncf %58 : vector<8x32xf32> to vector<8x32xbf16>
    %c32 = arith.constant 32 : index
    %c0_21 = arith.constant 0 : index
    %60 = vector.load %arg5[%c32, %c0_21] : memref<128x128xbf16, #tpu.memory_space<vmem>>, vector<32x128xbf16>
    %cst_22 = arith.constant dense<0.000000e+00> : vector<8x128xf32>
    %61 = tpu.matmul %59, %60, %cst_22 {dimension_numbers = #tpu.dot_dimension_numbers<[1], [0], [0], [1], [0, 0, 1, 1], [], []>} : vector<8x32xbf16>, vector<32x128xbf16>, vector<8x128xf32> -> vector<8x128xf32>
    %62 = arith.addf %40, %61 : vector<8x128xf32>
    %63 = vector.extract_strided_slice %14 {offsets = [0, 64], sizes = [8, 32], strides = [1, 1]} : vector<8x128xbf16> to vector<8x32xbf16>
    %64 = vector.extract_strided_slice %16 {offsets = [64, 0], sizes = [32, 8], strides = [1, 1]} : vector<128x8xbf16> to vector<32x8xbf16>
    %cst_23 = arith.constant dense<0.000000e+00> : vector<8x8xf32>
    %65 = tpu.matmul %63, %64, %cst_23 {dimension_numbers = #tpu.dot_dimension_numbers<[1], [0], [0], [1], [0, 0, 1, 1], [], []>} : vector<8x32xbf16>, vector<32x8xbf16>, vector<8x8xf32> -> vector<8x8xf32>
    %66 = vector.broadcast %9 : vector<1x8xf32> to vector<8x8xf32>
    %67 = arith.addf %65, %66 : vector<8x8xf32>
    %cst_24 = arith.constant dense<0xFF800000> : vector<8xf32>
    %68 = vector.multi_reduction <maximumf>, %67, %cst_24 [1] : vector<8x8xf32> to vector<8xf32>
    %69 = vector.shape_cast %68 : vector<8xf32> to vector<8x1xf32>
    %70 = vector.broadcast %69 : vector<8x1xf32> to vector<8x8xf32>
    %71 = arith.subf %67, %70 : vector<8x8xf32>
    %72 = math.exp %71 : vector<8x8xf32>
    %cst_25 = arith.constant dense<0.000000e+00> : vector<8xf32>
    %73 = vector.multi_reduction <add>, %72, %cst_25 [1] : vector<8x8xf32> to vector<8xf32>
    %74 = vector.shape_cast %73 : vector<8xf32> to vector<8x1xf32>
    %75 = tpu.reciprocal %74 {approx = true} : vector<8x1xf32> -> vector<8x1xf32>
    %76 = vector.broadcast %75 : vector<8x1xf32> to vector<8x8xf32>
    %77 = arith.mulf %72, %76 : vector<8x8xf32>
    %78 = arith.truncf %77 : vector<8x8xf32> to vector<8x8xbf16>
    %79 = vector.extract_strided_slice %17 {offsets = [0, 64], sizes = [8, 32], strides = [1, 1]} : vector<8x128xbf16> to vector<8x32xbf16>
    %cst_26 = arith.constant dense<0.000000e+00> : vector<8x32xf32>
    %80 = tpu.matmul %78, %79, %cst_26 {dimension_numbers = #tpu.dot_dimension_numbers<[1], [0], [0], [1], [0, 0, 1, 1], [], []>} : vector<8x8xbf16>, vector<8x32xbf16>, vector<8x32xf32> -> vector<8x32xf32>
    %81 = arith.truncf %80 : vector<8x32xf32> to vector<8x32xbf16>
    %c64 = arith.constant 64 : index
    %c0_27 = arith.constant 0 : index
    %82 = vector.load %arg5[%c64, %c0_27] : memref<128x128xbf16, #tpu.memory_space<vmem>>, vector<32x128xbf16>
    %cst_28 = arith.constant dense<0.000000e+00> : vector<8x128xf32>
    %83 = tpu.matmul %81, %82, %cst_28 {dimension_numbers = #tpu.dot_dimension_numbers<[1], [0], [0], [1], [0, 0, 1, 1], [], []>} : vector<8x32xbf16>, vector<32x128xbf16>, vector<8x128xf32> -> vector<8x128xf32>
    %84 = arith.addf %62, %83 : vector<8x128xf32>
    %85 = vector.extract_strided_slice %14 {offsets = [0, 96], sizes = [8, 32], strides = [1, 1]} : vector<8x128xbf16> to vector<8x32xbf16>
    %86 = vector.extract_strided_slice %16 {offsets = [96, 0], sizes = [32, 8], strides = [1, 1]} : vector<128x8xbf16> to vector<32x8xbf16>
    %cst_29 = arith.constant dense<0.000000e+00> : vector<8x8xf32>
    %87 = tpu.matmul %85, %86, %cst_29 {dimension_numbers = #tpu.dot_dimension_numbers<[1], [0], [0], [1], [0, 0, 1, 1], [], []>} : vector<8x32xbf16>, vector<32x8xbf16>, vector<8x8xf32> -> vector<8x8xf32>
    %88 = vector.broadcast %9 : vector<1x8xf32> to vector<8x8xf32>
    %89 = arith.addf %87, %88 : vector<8x8xf32>
    %cst_30 = arith.constant dense<0xFF800000> : vector<8xf32>
    %90 = vector.multi_reduction <maximumf>, %89, %cst_30 [1] : vector<8x8xf32> to vector<8xf32>
    %91 = vector.shape_cast %90 : vector<8xf32> to vector<8x1xf32>
    %92 = vector.broadcast %91 : vector<8x1xf32> to vector<8x8xf32>
    %93 = arith.subf %89, %92 : vector<8x8xf32>
    %94 = math.exp %93 : vector<8x8xf32>
    %cst_31 = arith.constant dense<0.000000e+00> : vector<8xf32>
    %95 = vector.multi_reduction <add>, %94, %cst_31 [1] : vector<8x8xf32> to vector<8xf32>
    %96 = vector.shape_cast %95 : vector<8xf32> to vector<8x1xf32>
    %97 = tpu.reciprocal %96 {approx = true} : vector<8x1xf32> -> vector<8x1xf32>
    %98 = vector.broadcast %97 : vector<8x1xf32> to vector<8x8xf32>
    %99 = arith.mulf %94, %98 : vector<8x8xf32>
    %100 = arith.truncf %99 : vector<8x8xf32> to vector<8x8xbf16>
    %101 = vector.extract_strided_slice %17 {offsets = [0, 96], sizes = [8, 32], strides = [1, 1]} : vector<8x128xbf16> to vector<8x32xbf16>
    %cst_32 = arith.constant dense<0.000000e+00> : vector<8x32xf32>
    %102 = tpu.matmul %100, %101, %cst_32 {dimension_numbers = #tpu.dot_dimension_numbers<[1], [0], [0], [1], [0, 0, 1, 1], [], []>} : vector<8x8xbf16>, vector<8x32xbf16>, vector<8x32xf32> -> vector<8x32xf32>
    %103 = arith.truncf %102 : vector<8x32xf32> to vector<8x32xbf16>
    %c96 = arith.constant 96 : index
    %c0_33 = arith.constant 0 : index
    %104 = vector.load %arg5[%c96, %c0_33] : memref<128x128xbf16, #tpu.memory_space<vmem>>, vector<32x128xbf16>
    %cst_34 = arith.constant dense<0.000000e+00> : vector<8x128xf32>
    %105 = tpu.matmul %103, %104, %cst_34 {dimension_numbers = #tpu.dot_dimension_numbers<[1], [0], [0], [1], [0, 0, 1, 1], [], []>} : vector<8x32xbf16>, vector<32x128xbf16>, vector<8x128xf32> -> vector<8x128xf32>
    %106 = arith.addf %84, %105 : vector<8x128xf32>
    %c0_35 = arith.constant 0 : index
    %c0_36 = arith.constant 0 : index
    %107 = vector.load %arg6[%c0_35, %c0_36] : memref<1x128xf32, #tpu.memory_space<vmem>>, vector<1x128xf32>
    %108 = vector.broadcast %107 : vector<1x128xf32> to vector<8x128xf32>
    %109 = arith.addf %106, %108 : vector<8x128xf32>
    %110 = arith.addf %10, %109 : vector<8x128xf32>
    %cst_37 = arith.constant dense<0.000000e+00> : vector<8xf32>
    %111 = vector.multi_reduction <add>, %110, %cst_37 [1] : vector<8x128xf32> to vector<8xf32>
    %112 = vector.shape_cast %111 : vector<8xf32> to vector<8x1xf32>
    %cst_38 = arith.constant 1.280000e+02 : f32
    %113 = vector.broadcast %cst_38 : f32 to vector<8x1xf32>
    %114 = arith.divf %112, %113 : vector<8x1xf32>
    %115 = vector.broadcast %114 : vector<8x1xf32> to vector<8x128xf32>
    %116 = arith.subf %110, %115 : vector<8x128xf32>
    %117 = arith.mulf %116, %116 : vector<8x128xf32>
    %cst_39 = arith.constant dense<0.000000e+00> : vector<8xf32>
    %118 = vector.multi_reduction <add>, %117, %cst_39 [1] : vector<8x128xf32> to vector<8xf32>
    %119 = vector.shape_cast %118 : vector<8xf32> to vector<8x1xf32>
    %cst_40 = arith.constant 1.280000e+02 : f32
    %120 = vector.broadcast %cst_40 : f32 to vector<8x1xf32>
    %121 = arith.divf %119, %120 : vector<8x1xf32>
    %122 = vector.broadcast %114 : vector<8x1xf32> to vector<8x128xf32>
    %123 = arith.subf %110, %122 : vector<8x128xf32>
    %cst_41 = arith.constant 9.99999974E-6 : f32
    %124 = vector.broadcast %cst_41 : f32 to vector<8x1xf32>
    %125 = arith.addf %121, %124 : vector<8x1xf32>
    %126 = math.rsqrt %125 : vector<8x1xf32>
    %127 = vector.broadcast %126 : vector<8x1xf32> to vector<8x128xf32>
    %128 = arith.mulf %123, %127 : vector<8x128xf32>
    %c0_42 = arith.constant 0 : index
    %c0_43 = arith.constant 0 : index
    %129 = vector.load %arg7[%c0_42, %c0_43] : memref<1x128xf32, #tpu.memory_space<vmem>>, vector<1x128xf32>
    %130 = vector.broadcast %129 : vector<1x128xf32> to vector<8x128xf32>
    %131 = arith.mulf %128, %130 : vector<8x128xf32>
    %c0_44 = arith.constant 0 : index
    %c0_45 = arith.constant 0 : index
    %132 = vector.load %arg8[%c0_44, %c0_45] : memref<1x128xf32, #tpu.memory_space<vmem>>, vector<1x128xf32>
    %133 = vector.broadcast %132 : vector<1x128xf32> to vector<8x128xf32>
    %134 = arith.addf %131, %133 : vector<8x128xf32>
    %c0_46 = arith.constant 0 : index
    %c0_47 = arith.constant 0 : index
    %c0_48 = arith.constant 0 : index
    %135 = vector.load %arg9[%c0_46, %c0_47, %c0_48] : memref<2x8x128xf32, #tpu.memory_space<vmem>>, vector<1x8x128xf32>
    %136 = vector.shape_cast %135 : vector<1x8x128xf32> to vector<8x128xf32>
    %137 = vector.shape_cast %134 : vector<8x128xf32> to vector<1x8x128xf32>
    tpu.vector_store %arg9[%c0_46, %c0_47, %c0_48], %137 {strides = array<i32>} : memref<2x8x128xf32, #tpu.memory_space<vmem>>, vector<1x8x128xf32>,
    %c1 = arith.constant 1 : index
    %c0_49 = arith.constant 0 : index
    %c0_50 = arith.constant 0 : index
    %138 = vector.load %arg2[%c1, %c0_49, %c0_50] : memref<2x1x8xf32, #tpu.memory_space<vmem>>, vector<1x1x8xf32>
    %139 = vector.shape_cast %138 : vector<1x1x8xf32> to vector<1x8xf32>
    %140 = vector.extract_strided_slice %1 {offsets = [8, 0], sizes = [8, 128], strides = [1, 1]} : vector<16x128xf32> to vector<8x128xf32>
    %141 = vector.extract_strided_slice %7 {offsets = [8, 0], sizes = [8, 128], strides = [1, 1]} : vector<16x384xf32> to vector<8x128xf32>
    %142 = vector.extract_strided_slice %7 {offsets = [8, 128], sizes = [8, 128], strides = [1, 1]} : vector<16x384xf32> to vector<8x128xf32>
    %143 = vector.extract_strided_slice %7 {offsets = [8, 256], sizes = [8, 128], strides = [1, 1]} : vector<16x384xf32> to vector<8x128xf32>
    %144 = arith.truncf %141 : vector<8x128xf32> to vector<8x128xbf16>
    %145 = tpu.transpose %142, [1, 0] : vector<8x128xf32> -> vector<128x8xf32>
    %146 = arith.truncf %145 : vector<128x8xf32> to vector<128x8xbf16>
    %147 = arith.truncf %143 : vector<8x128xf32> to vector<8x128xbf16>
    %cst_51 = arith.constant 0.000000e+00 : f32
    %148 = vector.broadcast %cst_51 : f32 to vector<8x128xf32>
    %149 = vector.extract_strided_slice %144 {offsets = [0, 0], sizes = [8, 32], strides = [1, 1]} : vector<8x128xbf16> to vector<8x32xbf16>
    %150 = vector.extract_strided_slice %146 {offsets = [0, 0], sizes = [32, 8], strides = [1, 1]} : vector<128x8xbf16> to vector<32x8xbf16>
    %cst_52 = arith.constant dense<0.000000e+00> : vector<8x8xf32>
    %151 = tpu.matmul %149, %150, %cst_52 {dimension_numbers = #tpu.dot_dimension_numbers<[1], [0], [0], [1], [0, 0, 1, 1], [], []>} : vector<8x32xbf16>, vector<32x8xbf16>, vector<8x8xf32> -> vector<8x8xf32>
    %152 = vector.broadcast %139 : vector<1x8xf32> to vector<8x8xf32>
    %153 = arith.addf %151, %152 : vector<8x8xf32>
    %cst_53 = arith.constant dense<0xFF800000> : vector<8xf32>
    %154 = vector.multi_reduction <maximumf>, %153, %cst_53 [1] : vector<8x8xf32> to vector<8xf32>
    %155 = vector.shape_cast %154 : vector<8xf32> to vector<8x1xf32>
    %156 = vector.broadcast %155 : vector<8x1xf32> to vector<8x8xf32>
    %157 = arith.subf %153, %156 : vector<8x8xf32>
    %158 = math.exp %157 : vector<8x8xf32>
    %cst_54 = arith.constant dense<0.000000e+00> : vector<8xf32>
    %159 = vector.multi_reduction <add>, %158, %cst_54 [1] : vector<8x8xf32> to vector<8xf32>
    %160 = vector.shape_cast %159 : vector<8xf32> to vector<8x1xf32>
    %161 = tpu.reciprocal %160 {approx = true} : vector<8x1xf32> -> vector<8x1xf32>
    %162 = vector.broadcast %161 : vector<8x1xf32> to vector<8x8xf32>
    %163 = arith.mulf %158, %162 : vector<8x8xf32>
    %164 = arith.truncf %163 : vector<8x8xf32> to vector<8x8xbf16>
    %165 = vector.extract_strided_slice %147 {offsets = [0, 0], sizes = [8, 32], strides = [1, 1]} : vector<8x128xbf16> to vector<8x32xbf16>
    %cst_55 = arith.constant dense<0.000000e+00> : vector<8x32xf32>
    %166 = tpu.matmul %164, %165, %cst_55 {dimension_numbers = #tpu.dot_dimension_numbers<[1], [0], [0], [1], [0, 0, 1, 1], [], []>} : vector<8x8xbf16>, vector<8x32xbf16>, vector<8x32xf32> -> vector<8x32xf32>
    %167 = arith.truncf %166 : vector<8x32xf32> to vector<8x32xbf16>
    %c0_56 = arith.constant 0 : index
    %c0_57 = arith.constant 0 : index
    %168 = vector.load %arg5[%c0_56, %c0_57] : memref<128x128xbf16, #tpu.memory_space<vmem>>, vector<32x128xbf16>
    %cst_58 = arith.constant dense<0.000000e+00> : vector<8x128xf32>
    %169 = tpu.matmul %167, %168, %cst_58 {dimension_numbers = #tpu.dot_dimension_numbers<[1], [0], [0], [1], [0, 0, 1, 1], [], []>} : vector<8x32xbf16>, vector<32x128xbf16>, vector<8x128xf32> -> vector<8x128xf32>
    %170 = arith.addf %148, %169 : vector<8x128xf32>
    %171 = vector.extract_strided_slice %144 {offsets = [0, 32], sizes = [8, 32], strides = [1, 1]} : vector<8x128xbf16> to vector<8x32xbf16>
    %172 = vector.extract_strided_slice %146 {offsets = [32, 0], sizes = [32, 8], strides = [1, 1]} : vector<128x8xbf16> to vector<32x8xbf16>
    %cst_59 = arith.constant dense<0.000000e+00> : vector<8x8xf32>
    %173 = tpu.matmul %171, %172, %cst_59 {dimension_numbers = #tpu.dot_dimension_numbers<[1], [0], [0], [1], [0, 0, 1, 1], [], []>} : vector<8x32xbf16>, vector<32x8xbf16>, vector<8x8xf32> -> vector<8x8xf32>
    %174 = vector.broadcast %139 : vector<1x8xf32> to vector<8x8xf32>
    %175 = arith.addf %173, %174 : vector<8x8xf32>
    %cst_60 = arith.constant dense<0xFF800000> : vector<8xf32>
    %176 = vector.multi_reduction <maximumf>, %175, %cst_60 [1] : vector<8x8xf32> to vector<8xf32>
    %177 = vector.shape_cast %176 : vector<8xf32> to vector<8x1xf32>
    %178 = vector.broadcast %177 : vector<8x1xf32> to vector<8x8xf32>
    %179 = arith.subf %175, %178 : vector<8x8xf32>
    %180 = math.exp %179 : vector<8x8xf32>
    %cst_61 = arith.constant dense<0.000000e+00> : vector<8xf32>
    %181 = vector.multi_reduction <add>, %180, %cst_61 [1] : vector<8x8xf32> to vector<8xf32>
    %182 = vector.shape_cast %181 : vector<8xf32> to vector<8x1xf32>
    %183 = tpu.reciprocal %182 {approx = true} : vector<8x1xf32> -> vector<8x1xf32>
    %184 = vector.broadcast %183 : vector<8x1xf32> to vector<8x8xf32>
    %185 = arith.mulf %180, %184 : vector<8x8xf32>
    %186 = arith.truncf %185 : vector<8x8xf32> to vector<8x8xbf16>
    %187 = vector.extract_strided_slice %147 {offsets = [0, 32], sizes = [8, 32], strides = [1, 1]} : vector<8x128xbf16> to vector<8x32xbf16>
    %cst_62 = arith.constant dense<0.000000e+00> : vector<8x32xf32>
    %188 = tpu.matmul %186, %187, %cst_62 {dimension_numbers = #tpu.dot_dimension_numbers<[1], [0], [0], [1], [0, 0, 1, 1], [], []>} : vector<8x8xbf16>, vector<8x32xbf16>, vector<8x32xf32> -> vector<8x32xf32>
    %189 = arith.truncf %188 : vector<8x32xf32> to vector<8x32xbf16>
    %c32_63 = arith.constant 32 : index
    %c0_64 = arith.constant 0 : index
    %190 = vector.load %arg5[%c32_63, %c0_64] : memref<128x128xbf16, #tpu.memory_space<vmem>>, vector<32x128xbf16>
    %cst_65 = arith.constant dense<0.000000e+00> : vector<8x128xf32>
    %191 = tpu.matmul %189, %190, %cst_65 {dimension_numbers = #tpu.dot_dimension_numbers<[1], [0], [0], [1], [0, 0, 1, 1], [], []>} : vector<8x32xbf16>, vector<32x128xbf16>, vector<8x128xf32> -> vector<8x128xf32>
    %192 = arith.addf %170, %191 : vector<8x128xf32>
    %193 = vector.extract_strided_slice %144 {offsets = [0, 64], sizes = [8, 32], strides = [1, 1]} : vector<8x128xbf16> to vector<8x32xbf16>
    %194 = vector.extract_strided_slice %146 {offsets = [64, 0], sizes = [32, 8], strides = [1, 1]} : vector<128x8xbf16> to vector<32x8xbf16>
    %cst_66 = arith.constant dense<0.000000e+00> : vector<8x8xf32>
    %195 = tpu.matmul %193, %194, %cst_66 {dimension_numbers = #tpu.dot_dimension_numbers<[1], [0], [0], [1], [0, 0, 1, 1], [], []>} : vector<8x32xbf16>, vector<32x8xbf16>, vector<8x8xf32> -> vector<8x8xf32>
    %196 = vector.broadcast %139 : vector<1x8xf32> to vector<8x8xf32>
    %197 = arith.addf %195, %196 : vector<8x8xf32>
    %cst_67 = arith.constant dense<0xFF800000> : vector<8xf32>
    %198 = vector.multi_reduction <maximumf>, %197, %cst_67 [1] : vector<8x8xf32> to vector<8xf32>
    %199 = vector.shape_cast %198 : vector<8xf32> to vector<8x1xf32>
    %200 = vector.broadcast %199 : vector<8x1xf32> to vector<8x8xf32>
    %201 = arith.subf %197, %200 : vector<8x8xf32>
    %202 = math.exp %201 : vector<8x8xf32>
    %cst_68 = arith.constant dense<0.000000e+00> : vector<8xf32>
    %203 = vector.multi_reduction <add>, %202, %cst_68 [1] : vector<8x8xf32> to vector<8xf32>
    %204 = vector.shape_cast %203 : vector<8xf32> to vector<8x1xf32>
    %205 = tpu.reciprocal %204 {approx = true} : vector<8x1xf32> -> vector<8x1xf32>
    %206 = vector.broadcast %205 : vector<8x1xf32> to vector<8x8xf32>
    %207 = arith.mulf %202, %206 : vector<8x8xf32>
    %208 = arith.truncf %207 : vector<8x8xf32> to vector<8x8xbf16>
    %209 = vector.extract_strided_slice %147 {offsets = [0, 64], sizes = [8, 32], strides = [1, 1]} : vector<8x128xbf16> to vector<8x32xbf16>
    %cst_69 = arith.constant dense<0.000000e+00> : vector<8x32xf32>
    %210 = tpu.matmul %208, %209, %cst_69 {dimension_numbers = #tpu.dot_dimension_numbers<[1], [0], [0], [1], [0, 0, 1, 1], [], []>} : vector<8x8xbf16>, vector<8x32xbf16>, vector<8x32xf32> -> vector<8x32xf32>
    %211 = arith.truncf %210 : vector<8x32xf32> to vector<8x32xbf16>
    %c64_70 = arith.constant 64 : index
    %c0_71 = arith.constant 0 : index
    %212 = vector.load %arg5[%c64_70, %c0_71] : memref<128x128xbf16, #tpu.memory_space<vmem>>, vector<32x128xbf16>
    %cst_72 = arith.constant dense<0.000000e+00> : vector<8x128xf32>
    %213 = tpu.matmul %211, %212, %cst_72 {dimension_numbers = #tpu.dot_dimension_numbers<[1], [0], [0], [1], [0, 0, 1, 1], [], []>} : vector<8x32xbf16>, vector<32x128xbf16>, vector<8x128xf32> -> vector<8x128xf32>
    %214 = arith.addf %192, %213 : vector<8x128xf32>
    %215 = vector.extract_strided_slice %144 {offsets = [0, 96], sizes = [8, 32], strides = [1, 1]} : vector<8x128xbf16> to vector<8x32xbf16>
    %216 = vector.extract_strided_slice %146 {offsets = [96, 0], sizes = [32, 8], strides = [1, 1]} : vector<128x8xbf16> to vector<32x8xbf16>
    %cst_73 = arith.constant dense<0.000000e+00> : vector<8x8xf32>
    %217 = tpu.matmul %215, %216, %cst_73 {dimension_numbers = #tpu.dot_dimension_numbers<[1], [0], [0], [1], [0, 0, 1, 1], [], []>} : vector<8x32xbf16>, vector<32x8xbf16>, vector<8x8xf32> -> vector<8x8xf32>
    %218 = vector.broadcast %139 : vector<1x8xf32> to vector<8x8xf32>
    %219 = arith.addf %217, %218 : vector<8x8xf32>
    %cst_74 = arith.constant dense<0xFF800000> : vector<8xf32>
    %220 = vector.multi_reduction <maximumf>, %219, %cst_74 [1] : vector<8x8xf32> to vector<8xf32>
    %221 = vector.shape_cast %220 : vector<8xf32> to vector<8x1xf32>
    %222 = vector.broadcast %221 : vector<8x1xf32> to vector<8x8xf32>
    %223 = arith.subf %219, %222 : vector<8x8xf32>
    %224 = math.exp %223 : vector<8x8xf32>
    %cst_75 = arith.constant dense<0.000000e+00> : vector<8xf32>
    %225 = vector.multi_reduction <add>, %224, %cst_75 [1] : vector<8x8xf32> to vector<8xf32>
    %226 = vector.shape_cast %225 : vector<8xf32> to vector<8x1xf32>
    %227 = tpu.reciprocal %226 {approx = true} : vector<8x1xf32> -> vector<8x1xf32>
    %228 = vector.broadcast %227 : vector<8x1xf32> to vector<8x8xf32>
    %229 = arith.mulf %224, %228 : vector<8x8xf32>
    %230 = arith.truncf %229 : vector<8x8xf32> to vector<8x8xbf16>
    %231 = vector.extract_strided_slice %147 {offsets = [0, 96], sizes = [8, 32], strides = [1, 1]} : vector<8x128xbf16> to vector<8x32xbf16>
    %cst_76 = arith.constant dense<0.000000e+00> : vector<8x32xf32>
    %232 = tpu.matmul %230, %231, %cst_76 {dimension_numbers = #tpu.dot_dimension_numbers<[1], [0], [0], [1], [0, 0, 1, 1], [], []>} : vector<8x8xbf16>, vector<8x32xbf16>, vector<8x32xf32> -> vector<8x32xf32>
    %233 = arith.truncf %232 : vector<8x32xf32> to vector<8x32xbf16>
    %c96_77 = arith.constant 96 : index
    %c0_78 = arith.constant 0 : index
    %234 = vector.load %arg5[%c96_77, %c0_78] : memref<128x128xbf16, #tpu.memory_space<vmem>>, vector<32x128xbf16>
    %cst_79 = arith.constant dense<0.000000e+00> : vector<8x128xf32>
    %235 = tpu.matmul %233, %234, %cst_79 {dimension_numbers = #tpu.dot_dimension_numbers<[1], [0], [0], [1], [0, 0, 1, 1], [], []>} : vector<8x32xbf16>, vector<32x128xbf16>, vector<8x128xf32> -> vector<8x128xf32>
    %236 = arith.addf %214, %235 : vector<8x128xf32>
    %c0_80 = arith.constant 0 : index
    %c0_81 = arith.constant 0 : index
    %237 = vector.load %arg6[%c0_80, %c0_81] : memref<1x128xf32, #tpu.memory_space<vmem>>, vector<1x128xf32>
    %238 = vector.broadcast %237 : vector<1x128xf32> to vector<8x128xf32>
    %239 = arith.addf %236, %238 : vector<8x128xf32>
    %240 = arith.addf %140, %239 : vector<8x128xf32>
    %cst_82 = arith.constant dense<0.000000e+00> : vector<8xf32>
    %241 = vector.multi_reduction <add>, %240, %cst_82 [1] : vector<8x128xf32> to vector<8xf32>
    %242 = vector.shape_cast %241 : vector<8xf32> to vector<8x1xf32>
    %cst_83 = arith.constant 1.280000e+02 : f32
    %243 = vector.broadcast %cst_83 : f32 to vector<8x1xf32>
    %244 = arith.divf %242, %243 : vector<8x1xf32>
    %245 = vector.broadcast %244 : vector<8x1xf32> to vector<8x128xf32>
    %246 = arith.subf %240, %245 : vector<8x128xf32>
    %247 = arith.mulf %246, %246 : vector<8x128xf32>
    %cst_84 = arith.constant dense<0.000000e+00> : vector<8xf32>
    %248 = vector.multi_reduction <add>, %247, %cst_84 [1] : vector<8x128xf32> to vector<8xf32>
    %249 = vector.shape_cast %248 : vector<8xf32> to vector<8x1xf32>
    %cst_85 = arith.constant 1.280000e+02 : f32
    %250 = vector.broadcast %cst_85 : f32 to vector<8x1xf32>
    %251 = arith.divf %249, %250 : vector<8x1xf32>
    %252 = vector.broadcast %244 : vector<8x1xf32> to vector<8x128xf32>
    %253 = arith.subf %240, %252 : vector<8x128xf32>
    %cst_86 = arith.constant 9.99999974E-6 : f32
    %254 = vector.broadcast %cst_86 : f32 to vector<8x1xf32>
    %255 = arith.addf %251, %254 : vector<8x1xf32>
    %256 = math.rsqrt %255 : vector<8x1xf32>
    %257 = vector.broadcast %256 : vector<8x1xf32> to vector<8x128xf32>
    %258 = arith.mulf %253, %257 : vector<8x128xf32>
    %c0_87 = arith.constant 0 : index
    %c0_88 = arith.constant 0 : index
    %259 = vector.load %arg7[%c0_87, %c0_88] : memref<1x128xf32, #tpu.memory_space<vmem>>, vector<1x128xf32>
    %260 = vector.broadcast %259 : vector<1x128xf32> to vector<8x128xf32>
    %261 = arith.mulf %258, %260 : vector<8x128xf32>
    %c0_89 = arith.constant 0 : index
    %c0_90 = arith.constant 0 : index
    %262 = vector.load %arg8[%c0_89, %c0_90] : memref<1x128xf32, #tpu.memory_space<vmem>>, vector<1x128xf32>
    %263 = vector.broadcast %262 : vector<1x128xf32> to vector<8x128xf32>
    %264 = arith.addf %261, %263 : vector<8x128xf32>
    %c1_91 = arith.constant 1 : index
    %c0_92 = arith.constant 0 : index
    %c0_93 = arith.constant 0 : index
    %265 = vector.load %arg9[%c1_91, %c0_92, %c0_93] : memref<2x8x128xf32, #tpu.memory_space<vmem>>, vector<1x8x128xf32>
    %266 = vector.shape_cast %265 : vector<1x8x128xf32> to vector<8x128xf32>
    %267 = vector.shape_cast %264 : vector<8x128xf32> to vector<1x8x128xf32>
    tpu.vector_store %arg9[%c1_91, %c0_92, %c0_93], %267 {strides = array<i32>} : memref<2x8x128xf32, #tpu.memory_space<vmem>>, vector<1x8x128xf32>,
    return
  }
  func.func @transform_0(%arg0: i32) -> (i32, i32, i32) {
    %c0_i32 = arith.constant 0 : i32
    %c0_i32_0 = arith.constant 0 : i32
    %c0_i32_1 = arith.constant 0 : i32
    return %arg0, %c0_i32, %c0_i32_0 : i32, i32, i32
  }
  func.func @transform_1(%arg0: i32) -> (i32, i32, i32) {
    %c0_i32 = arith.constant 0 : i32
    %c0_i32_0 = arith.constant 0 : i32
    %c0_i32_1 = arith.constant 0 : i32
    return %arg0, %c0_i32, %c0_i32_0 : i32, i32, i32
  }
  func.func @transform_2(%arg0: i32) -> (i32, i32) {
    %c0_i32 = arith.constant 0 : i32
    %c0_i32_0 = arith.constant 0 : i32
    %c0_i32_1 = arith.constant 0 : i32
    return %c0_i32, %c0_i32_0 : i32, i32
  }
  func.func @transform_3(%arg0: i32) -> (i32, i32) {
    %c0_i32 = arith.constant 0 : i32
    %c0_i32_0 = arith.constant 0 : i32
    %c0_i32_1 = arith.constant 0 : i32
    return %c0_i32, %c0_i32_0 : i32, i32
  }
  func.func @transform_4(%arg0: i32) -> (i32, i32) {
    %c0_i32 = arith.constant 0 : i32
    %c0_i32_0 = arith.constant 0 : i32
    %c0_i32_1 = arith.constant 0 : i32
    return %c0_i32, %c0_i32_0 : i32, i32
  }
  func.func @transform_5(%arg0: i32) -> (i32, i32) {
    %c0_i32 = arith.constant 0 : i32
    %c0_i32_0 = arith.constant 0 : i32
    %c0_i32_1 = arith.constant 0 : i32
    return %c0_i32, %c0_i32_0 : i32, i32
  }
  func.func @transform_6(%arg0: i32) -> (i32, i32) {
    %c0_i32 = arith.constant 0 : i32
    %c0_i32_0 = arith.constant 0 : i32
    %c0_i32_1 = arith.constant 0 : i32
    return %c0_i32, %c0_i32_0 : i32, i32
  }
  func.func @transform_7(%arg0: i32) -> (i32, i32) {
    %c0_i32 = arith.constant 0 : i32
    %c0_i32_0 = arith.constant 0 : i32
    %c0_i32_1 = arith.constant 0 : i32
    return %c0_i32, %c0_i32_0 : i32, i32
  }
  func.func @transform_8(%arg0: i32) -> (i32, i32, i32) {
    %c0_i32 = arith.constant 0 : i32
    %c0_i32_0 = arith.constant 0 : i32
    %c0_i32_1 = arith.constant 0 : i32
    return %arg0, %c0_i32, %c0_i32_0 : i32, i32, i32
  }
}

module attributes {stable_mosaic.version = 11 : i64} {
  func.func @_mha_self_kernel(%arg0: i32, %arg1: memref<2x8x128xf32, #tpu.memory_space<vmem>>, %arg2: memref<128x384xbf16, #tpu.memory_space<vmem>>, %arg3: memref<1x384xf32, #tpu.memory_space<vmem>>, %arg4: memref<128x128xbf16, #tpu.memory_space<vmem>>, %arg5: memref<1x128xf32, #tpu.memory_space<vmem>>, %arg6: memref<1x128xf32, #tpu.memory_space<vmem>>, %arg7: memref<1x128xf32, #tpu.memory_space<vmem>>, %arg8: memref<2x8x128xf32, #tpu.memory_space<vmem>>) attributes {dimension_semantics = [#tpu.dimension_semantics<parallel>], iteration_bounds = array<i64: 1>, scalar_prefetch = 0 : i64, scratch_operands = 0 : i64, tpu.core_type = #tpu.core_type<tc>, window_params = [{transform_indices = @transform_0, window_bounds = array<i64: 2, 8, 128>}, {pipeline_mode = #tpu.pipeline_mode<synchronous>, transform_indices = @transform_1, window_bounds = array<i64: 128, 384>}, {pipeline_mode = #tpu.pipeline_mode<synchronous>, transform_indices = @transform_2, window_bounds = array<i64: 1, 384>}, {pipeline_mode = #tpu.pipeline_mode<synchronous>, transform_indices = @transform_3, window_bounds = array<i64: 128, 128>}, {pipeline_mode = #tpu.pipeline_mode<synchronous>, transform_indices = @transform_4, window_bounds = array<i64: 1, 128>}, {pipeline_mode = #tpu.pipeline_mode<synchronous>, transform_indices = @transform_5, window_bounds = array<i64: 1, 128>}, {pipeline_mode = #tpu.pipeline_mode<synchronous>, transform_indices = @transform_6, window_bounds = array<i64: 1, 128>}, {transform_indices = @transform_7, window_bounds = array<i64: 2, 8, 128>}]} {
    %c0 = arith.constant 0 : index
    %c0_0 = arith.constant 0 : index
    %c0_1 = arith.constant 0 : index
    %0 = vector.load %arg1[%c0, %c0_0, %c0_1] : memref<2x8x128xf32, #tpu.memory_space<vmem>>, vector<2x8x128xf32>
    %1 = vector.shape_cast %0 : vector<2x8x128xf32> to vector<16x128xf32>
    %2 = arith.truncf %1 : vector<16x128xf32> to vector<16x128xbf16>
    %c0_2 = arith.constant 0 : index
    %c0_3 = arith.constant 0 : index
    %3 = vector.load %arg2[%c0_2, %c0_3] : memref<128x384xbf16, #tpu.memory_space<vmem>>, vector<128x384xbf16>
    %cst = arith.constant dense<0.000000e+00> : vector<16x384xf32>
    %4 = tpu.matmul %2, %3, %cst {dimension_numbers = #tpu.dot_dimension_numbers<[1], [0], [0], [1], [0, 0, 1, 1], [], []>} : vector<16x128xbf16>, vector<128x384xbf16>, vector<16x384xf32> -> vector<16x384xf32>
    %c0_4 = arith.constant 0 : index
    %c0_5 = arith.constant 0 : index
    %5 = vector.load %arg3[%c0_4, %c0_5] : memref<1x384xf32, #tpu.memory_space<vmem>>, vector<1x384xf32>
    %6 = vector.broadcast %5 : vector<1x384xf32> to vector<16x384xf32>
    %7 = arith.addf %4, %6 : vector<16x384xf32>
    %8 = vector.extract_strided_slice %1 {offsets = [0, 0], sizes = [8, 128], strides = [1, 1]} : vector<16x128xf32> to vector<8x128xf32>
    %9 = vector.extract_strided_slice %7 {offsets = [0, 0], sizes = [8, 128], strides = [1, 1]} : vector<16x384xf32> to vector<8x128xf32>
    %10 = vector.extract_strided_slice %7 {offsets = [0, 128], sizes = [8, 128], strides = [1, 1]} : vector<16x384xf32> to vector<8x128xf32>
    %11 = vector.extract_strided_slice %7 {offsets = [0, 256], sizes = [8, 128], strides = [1, 1]} : vector<16x384xf32> to vector<8x128xf32>
    %12 = tpu.iota {dimensions = array<i32: 0>} : vector<8x8xi32>
    %13 = tpu.iota {dimensions = array<i32: 1>} : vector<8x8xi32>
    %14 = arith.cmpi sgt, %13, %12 : vector<8x8xi32>
    %cst_6 = arith.constant -1.000000e+30 : f32
    %cst_7 = arith.constant 0.000000e+00 : f32
    %15 = vector.broadcast %cst_6 : f32 to vector<8x8xf32>
    %16 = vector.broadcast %cst_7 : f32 to vector<8x8xf32>
    %17 = arith.select %14, %15, %16 : vector<8x8xi1>, vector<8x8xf32>
    %18 = arith.truncf %9 : vector<8x128xf32> to vector<8x128xbf16>
    %19 = tpu.transpose %10, [1, 0] : vector<8x128xf32> -> vector<128x8xf32>
    %20 = arith.truncf %19 : vector<128x8xf32> to vector<128x8xbf16>
    %21 = arith.truncf %11 : vector<8x128xf32> to vector<8x128xbf16>
    %cst_8 = arith.constant 0.000000e+00 : f32
    %22 = vector.broadcast %cst_8 : f32 to vector<8x128xf32>
    %23 = vector.extract_strided_slice %18 {offsets = [0, 0], sizes = [8, 32], strides = [1, 1]} : vector<8x128xbf16> to vector<8x32xbf16>
    %24 = vector.extract_strided_slice %20 {offsets = [0, 0], sizes = [32, 8], strides = [1, 1]} : vector<128x8xbf16> to vector<32x8xbf16>
    %cst_9 = arith.constant dense<0.000000e+00> : vector<8x8xf32>
    %25 = tpu.matmul %23, %24, %cst_9 {dimension_numbers = #tpu.dot_dimension_numbers<[1], [0], [0], [1], [0, 0, 1, 1], [], []>} : vector<8x32xbf16>, vector<32x8xbf16>, vector<8x8xf32> -> vector<8x8xf32>
    %26 = arith.addf %25, %17 : vector<8x8xf32>
    %cst_10 = arith.constant dense<0xFF800000> : vector<8xf32>
    %27 = vector.multi_reduction <maximumf>, %26, %cst_10 [1] : vector<8x8xf32> to vector<8xf32>
    %28 = vector.shape_cast %27 : vector<8xf32> to vector<8x1xf32>
    %29 = vector.broadcast %28 : vector<8x1xf32> to vector<8x8xf32>
    %30 = arith.subf %26, %29 : vector<8x8xf32>
    %31 = math.exp %30 : vector<8x8xf32>
    %cst_11 = arith.constant dense<0.000000e+00> : vector<8xf32>
    %32 = vector.multi_reduction <add>, %31, %cst_11 [1] : vector<8x8xf32> to vector<8xf32>
    %33 = vector.shape_cast %32 : vector<8xf32> to vector<8x1xf32>
    %34 = tpu.reciprocal %33 {approx = true} : vector<8x1xf32> -> vector<8x1xf32>
    %35 = vector.broadcast %34 : vector<8x1xf32> to vector<8x8xf32>
    %36 = arith.mulf %31, %35 : vector<8x8xf32>
    %37 = arith.truncf %36 : vector<8x8xf32> to vector<8x8xbf16>
    %38 = vector.extract_strided_slice %21 {offsets = [0, 0], sizes = [8, 32], strides = [1, 1]} : vector<8x128xbf16> to vector<8x32xbf16>
    %cst_12 = arith.constant dense<0.000000e+00> : vector<8x32xf32>
    %39 = tpu.matmul %37, %38, %cst_12 {dimension_numbers = #tpu.dot_dimension_numbers<[1], [0], [0], [1], [0, 0, 1, 1], [], []>} : vector<8x8xbf16>, vector<8x32xbf16>, vector<8x32xf32> -> vector<8x32xf32>
    %40 = arith.truncf %39 : vector<8x32xf32> to vector<8x32xbf16>
    %c0_13 = arith.constant 0 : index
    %c0_14 = arith.constant 0 : index
    %41 = vector.load %arg4[%c0_13, %c0_14] : memref<128x128xbf16, #tpu.memory_space<vmem>>, vector<32x128xbf16>
    %cst_15 = arith.constant dense<0.000000e+00> : vector<8x128xf32>
    %42 = tpu.matmul %40, %41, %cst_15 {dimension_numbers = #tpu.dot_dimension_numbers<[1], [0], [0], [1], [0, 0, 1, 1], [], []>} : vector<8x32xbf16>, vector<32x128xbf16>, vector<8x128xf32> -> vector<8x128xf32>
    %43 = arith.addf %22, %42 : vector<8x128xf32>
    %44 = vector.extract_strided_slice %18 {offsets = [0, 32], sizes = [8, 32], strides = [1, 1]} : vector<8x128xbf16> to vector<8x32xbf16>
    %45 = vector.extract_strided_slice %20 {offsets = [32, 0], sizes = [32, 8], strides = [1, 1]} : vector<128x8xbf16> to vector<32x8xbf16>
    %cst_16 = arith.constant dense<0.000000e+00> : vector<8x8xf32>
    %46 = tpu.matmul %44, %45, %cst_16 {dimension_numbers = #tpu.dot_dimension_numbers<[1], [0], [0], [1], [0, 0, 1, 1], [], []>} : vector<8x32xbf16>, vector<32x8xbf16>, vector<8x8xf32> -> vector<8x8xf32>
    %47 = arith.addf %46, %17 : vector<8x8xf32>
    %cst_17 = arith.constant dense<0xFF800000> : vector<8xf32>
    %48 = vector.multi_reduction <maximumf>, %47, %cst_17 [1] : vector<8x8xf32> to vector<8xf32>
    %49 = vector.shape_cast %48 : vector<8xf32> to vector<8x1xf32>
    %50 = vector.broadcast %49 : vector<8x1xf32> to vector<8x8xf32>
    %51 = arith.subf %47, %50 : vector<8x8xf32>
    %52 = math.exp %51 : vector<8x8xf32>
    %cst_18 = arith.constant dense<0.000000e+00> : vector<8xf32>
    %53 = vector.multi_reduction <add>, %52, %cst_18 [1] : vector<8x8xf32> to vector<8xf32>
    %54 = vector.shape_cast %53 : vector<8xf32> to vector<8x1xf32>
    %55 = tpu.reciprocal %54 {approx = true} : vector<8x1xf32> -> vector<8x1xf32>
    %56 = vector.broadcast %55 : vector<8x1xf32> to vector<8x8xf32>
    %57 = arith.mulf %52, %56 : vector<8x8xf32>
    %58 = arith.truncf %57 : vector<8x8xf32> to vector<8x8xbf16>
    %59 = vector.extract_strided_slice %21 {offsets = [0, 32], sizes = [8, 32], strides = [1, 1]} : vector<8x128xbf16> to vector<8x32xbf16>
    %cst_19 = arith.constant dense<0.000000e+00> : vector<8x32xf32>
    %60 = tpu.matmul %58, %59, %cst_19 {dimension_numbers = #tpu.dot_dimension_numbers<[1], [0], [0], [1], [0, 0, 1, 1], [], []>} : vector<8x8xbf16>, vector<8x32xbf16>, vector<8x32xf32> -> vector<8x32xf32>
    %61 = arith.truncf %60 : vector<8x32xf32> to vector<8x32xbf16>
    %c32 = arith.constant 32 : index
    %c0_20 = arith.constant 0 : index
    %62 = vector.load %arg4[%c32, %c0_20] : memref<128x128xbf16, #tpu.memory_space<vmem>>, vector<32x128xbf16>
    %cst_21 = arith.constant dense<0.000000e+00> : vector<8x128xf32>
    %63 = tpu.matmul %61, %62, %cst_21 {dimension_numbers = #tpu.dot_dimension_numbers<[1], [0], [0], [1], [0, 0, 1, 1], [], []>} : vector<8x32xbf16>, vector<32x128xbf16>, vector<8x128xf32> -> vector<8x128xf32>
    %64 = arith.addf %43, %63 : vector<8x128xf32>
    %65 = vector.extract_strided_slice %18 {offsets = [0, 64], sizes = [8, 32], strides = [1, 1]} : vector<8x128xbf16> to vector<8x32xbf16>
    %66 = vector.extract_strided_slice %20 {offsets = [64, 0], sizes = [32, 8], strides = [1, 1]} : vector<128x8xbf16> to vector<32x8xbf16>
    %cst_22 = arith.constant dense<0.000000e+00> : vector<8x8xf32>
    %67 = tpu.matmul %65, %66, %cst_22 {dimension_numbers = #tpu.dot_dimension_numbers<[1], [0], [0], [1], [0, 0, 1, 1], [], []>} : vector<8x32xbf16>, vector<32x8xbf16>, vector<8x8xf32> -> vector<8x8xf32>
    %68 = arith.addf %67, %17 : vector<8x8xf32>
    %cst_23 = arith.constant dense<0xFF800000> : vector<8xf32>
    %69 = vector.multi_reduction <maximumf>, %68, %cst_23 [1] : vector<8x8xf32> to vector<8xf32>
    %70 = vector.shape_cast %69 : vector<8xf32> to vector<8x1xf32>
    %71 = vector.broadcast %70 : vector<8x1xf32> to vector<8x8xf32>
    %72 = arith.subf %68, %71 : vector<8x8xf32>
    %73 = math.exp %72 : vector<8x8xf32>
    %cst_24 = arith.constant dense<0.000000e+00> : vector<8xf32>
    %74 = vector.multi_reduction <add>, %73, %cst_24 [1] : vector<8x8xf32> to vector<8xf32>
    %75 = vector.shape_cast %74 : vector<8xf32> to vector<8x1xf32>
    %76 = tpu.reciprocal %75 {approx = true} : vector<8x1xf32> -> vector<8x1xf32>
    %77 = vector.broadcast %76 : vector<8x1xf32> to vector<8x8xf32>
    %78 = arith.mulf %73, %77 : vector<8x8xf32>
    %79 = arith.truncf %78 : vector<8x8xf32> to vector<8x8xbf16>
    %80 = vector.extract_strided_slice %21 {offsets = [0, 64], sizes = [8, 32], strides = [1, 1]} : vector<8x128xbf16> to vector<8x32xbf16>
    %cst_25 = arith.constant dense<0.000000e+00> : vector<8x32xf32>
    %81 = tpu.matmul %79, %80, %cst_25 {dimension_numbers = #tpu.dot_dimension_numbers<[1], [0], [0], [1], [0, 0, 1, 1], [], []>} : vector<8x8xbf16>, vector<8x32xbf16>, vector<8x32xf32> -> vector<8x32xf32>
    %82 = arith.truncf %81 : vector<8x32xf32> to vector<8x32xbf16>
    %c64 = arith.constant 64 : index
    %c0_26 = arith.constant 0 : index
    %83 = vector.load %arg4[%c64, %c0_26] : memref<128x128xbf16, #tpu.memory_space<vmem>>, vector<32x128xbf16>
    %cst_27 = arith.constant dense<0.000000e+00> : vector<8x128xf32>
    %84 = tpu.matmul %82, %83, %cst_27 {dimension_numbers = #tpu.dot_dimension_numbers<[1], [0], [0], [1], [0, 0, 1, 1], [], []>} : vector<8x32xbf16>, vector<32x128xbf16>, vector<8x128xf32> -> vector<8x128xf32>
    %85 = arith.addf %64, %84 : vector<8x128xf32>
    %86 = vector.extract_strided_slice %18 {offsets = [0, 96], sizes = [8, 32], strides = [1, 1]} : vector<8x128xbf16> to vector<8x32xbf16>
    %87 = vector.extract_strided_slice %20 {offsets = [96, 0], sizes = [32, 8], strides = [1, 1]} : vector<128x8xbf16> to vector<32x8xbf16>
    %cst_28 = arith.constant dense<0.000000e+00> : vector<8x8xf32>
    %88 = tpu.matmul %86, %87, %cst_28 {dimension_numbers = #tpu.dot_dimension_numbers<[1], [0], [0], [1], [0, 0, 1, 1], [], []>} : vector<8x32xbf16>, vector<32x8xbf16>, vector<8x8xf32> -> vector<8x8xf32>
    %89 = arith.addf %88, %17 : vector<8x8xf32>
    %cst_29 = arith.constant dense<0xFF800000> : vector<8xf32>
    %90 = vector.multi_reduction <maximumf>, %89, %cst_29 [1] : vector<8x8xf32> to vector<8xf32>
    %91 = vector.shape_cast %90 : vector<8xf32> to vector<8x1xf32>
    %92 = vector.broadcast %91 : vector<8x1xf32> to vector<8x8xf32>
    %93 = arith.subf %89, %92 : vector<8x8xf32>
    %94 = math.exp %93 : vector<8x8xf32>
    %cst_30 = arith.constant dense<0.000000e+00> : vector<8xf32>
    %95 = vector.multi_reduction <add>, %94, %cst_30 [1] : vector<8x8xf32> to vector<8xf32>
    %96 = vector.shape_cast %95 : vector<8xf32> to vector<8x1xf32>
    %97 = tpu.reciprocal %96 {approx = true} : vector<8x1xf32> -> vector<8x1xf32>
    %98 = vector.broadcast %97 : vector<8x1xf32> to vector<8x8xf32>
    %99 = arith.mulf %94, %98 : vector<8x8xf32>
    %100 = arith.truncf %99 : vector<8x8xf32> to vector<8x8xbf16>
    %101 = vector.extract_strided_slice %21 {offsets = [0, 96], sizes = [8, 32], strides = [1, 1]} : vector<8x128xbf16> to vector<8x32xbf16>
    %cst_31 = arith.constant dense<0.000000e+00> : vector<8x32xf32>
    %102 = tpu.matmul %100, %101, %cst_31 {dimension_numbers = #tpu.dot_dimension_numbers<[1], [0], [0], [1], [0, 0, 1, 1], [], []>} : vector<8x8xbf16>, vector<8x32xbf16>, vector<8x32xf32> -> vector<8x32xf32>
    %103 = arith.truncf %102 : vector<8x32xf32> to vector<8x32xbf16>
    %c96 = arith.constant 96 : index
    %c0_32 = arith.constant 0 : index
    %104 = vector.load %arg4[%c96, %c0_32] : memref<128x128xbf16, #tpu.memory_space<vmem>>, vector<32x128xbf16>
    %cst_33 = arith.constant dense<0.000000e+00> : vector<8x128xf32>
    %105 = tpu.matmul %103, %104, %cst_33 {dimension_numbers = #tpu.dot_dimension_numbers<[1], [0], [0], [1], [0, 0, 1, 1], [], []>} : vector<8x32xbf16>, vector<32x128xbf16>, vector<8x128xf32> -> vector<8x128xf32>
    %106 = arith.addf %85, %105 : vector<8x128xf32>
    %c0_34 = arith.constant 0 : index
    %c0_35 = arith.constant 0 : index
    %107 = vector.load %arg5[%c0_34, %c0_35] : memref<1x128xf32, #tpu.memory_space<vmem>>, vector<1x128xf32>
    %108 = vector.broadcast %107 : vector<1x128xf32> to vector<8x128xf32>
    %109 = arith.addf %106, %108 : vector<8x128xf32>
    %110 = arith.addf %8, %109 : vector<8x128xf32>
    %cst_36 = arith.constant dense<0.000000e+00> : vector<8xf32>
    %111 = vector.multi_reduction <add>, %110, %cst_36 [1] : vector<8x128xf32> to vector<8xf32>
    %112 = vector.shape_cast %111 : vector<8xf32> to vector<8x1xf32>
    %cst_37 = arith.constant 1.280000e+02 : f32
    %113 = vector.broadcast %cst_37 : f32 to vector<8x1xf32>
    %114 = arith.divf %112, %113 : vector<8x1xf32>
    %115 = vector.broadcast %114 : vector<8x1xf32> to vector<8x128xf32>
    %116 = arith.subf %110, %115 : vector<8x128xf32>
    %117 = arith.mulf %116, %116 : vector<8x128xf32>
    %cst_38 = arith.constant dense<0.000000e+00> : vector<8xf32>
    %118 = vector.multi_reduction <add>, %117, %cst_38 [1] : vector<8x128xf32> to vector<8xf32>
    %119 = vector.shape_cast %118 : vector<8xf32> to vector<8x1xf32>
    %cst_39 = arith.constant 1.280000e+02 : f32
    %120 = vector.broadcast %cst_39 : f32 to vector<8x1xf32>
    %121 = arith.divf %119, %120 : vector<8x1xf32>
    %122 = vector.broadcast %114 : vector<8x1xf32> to vector<8x128xf32>
    %123 = arith.subf %110, %122 : vector<8x128xf32>
    %cst_40 = arith.constant 9.99999974E-6 : f32
    %124 = vector.broadcast %cst_40 : f32 to vector<8x1xf32>
    %125 = arith.addf %121, %124 : vector<8x1xf32>
    %126 = math.rsqrt %125 : vector<8x1xf32>
    %127 = vector.broadcast %126 : vector<8x1xf32> to vector<8x128xf32>
    %128 = arith.mulf %123, %127 : vector<8x128xf32>
    %c0_41 = arith.constant 0 : index
    %c0_42 = arith.constant 0 : index
    %129 = vector.load %arg6[%c0_41, %c0_42] : memref<1x128xf32, #tpu.memory_space<vmem>>, vector<1x128xf32>
    %130 = vector.broadcast %129 : vector<1x128xf32> to vector<8x128xf32>
    %131 = arith.mulf %128, %130 : vector<8x128xf32>
    %c0_43 = arith.constant 0 : index
    %c0_44 = arith.constant 0 : index
    %132 = vector.load %arg7[%c0_43, %c0_44] : memref<1x128xf32, #tpu.memory_space<vmem>>, vector<1x128xf32>
    %133 = vector.broadcast %132 : vector<1x128xf32> to vector<8x128xf32>
    %134 = arith.addf %131, %133 : vector<8x128xf32>
    %c0_45 = arith.constant 0 : index
    %c0_46 = arith.constant 0 : index
    %c0_47 = arith.constant 0 : index
    %135 = vector.load %arg8[%c0_45, %c0_46, %c0_47] : memref<2x8x128xf32, #tpu.memory_space<vmem>>, vector<1x8x128xf32>
    %136 = vector.shape_cast %135 : vector<1x8x128xf32> to vector<8x128xf32>
    %137 = vector.shape_cast %134 : vector<8x128xf32> to vector<1x8x128xf32>
    tpu.vector_store %arg8[%c0_45, %c0_46, %c0_47], %137 {strides = array<i32>} : memref<2x8x128xf32, #tpu.memory_space<vmem>>, vector<1x8x128xf32>,
    %138 = vector.extract_strided_slice %1 {offsets = [8, 0], sizes = [8, 128], strides = [1, 1]} : vector<16x128xf32> to vector<8x128xf32>
    %139 = vector.extract_strided_slice %7 {offsets = [8, 0], sizes = [8, 128], strides = [1, 1]} : vector<16x384xf32> to vector<8x128xf32>
    %140 = vector.extract_strided_slice %7 {offsets = [8, 128], sizes = [8, 128], strides = [1, 1]} : vector<16x384xf32> to vector<8x128xf32>
    %141 = vector.extract_strided_slice %7 {offsets = [8, 256], sizes = [8, 128], strides = [1, 1]} : vector<16x384xf32> to vector<8x128xf32>
    %142 = tpu.iota {dimensions = array<i32: 0>} : vector<8x8xi32>
    %143 = tpu.iota {dimensions = array<i32: 1>} : vector<8x8xi32>
    %144 = arith.cmpi sgt, %143, %142 : vector<8x8xi32>
    %cst_48 = arith.constant -1.000000e+30 : f32
    %cst_49 = arith.constant 0.000000e+00 : f32
    %145 = vector.broadcast %cst_48 : f32 to vector<8x8xf32>
    %146 = vector.broadcast %cst_49 : f32 to vector<8x8xf32>
    %147 = arith.select %144, %145, %146 : vector<8x8xi1>, vector<8x8xf32>
    %148 = arith.truncf %139 : vector<8x128xf32> to vector<8x128xbf16>
    %149 = tpu.transpose %140, [1, 0] : vector<8x128xf32> -> vector<128x8xf32>
    %150 = arith.truncf %149 : vector<128x8xf32> to vector<128x8xbf16>
    %151 = arith.truncf %141 : vector<8x128xf32> to vector<8x128xbf16>
    %cst_50 = arith.constant 0.000000e+00 : f32
    %152 = vector.broadcast %cst_50 : f32 to vector<8x128xf32>
    %153 = vector.extract_strided_slice %148 {offsets = [0, 0], sizes = [8, 32], strides = [1, 1]} : vector<8x128xbf16> to vector<8x32xbf16>
    %154 = vector.extract_strided_slice %150 {offsets = [0, 0], sizes = [32, 8], strides = [1, 1]} : vector<128x8xbf16> to vector<32x8xbf16>
    %cst_51 = arith.constant dense<0.000000e+00> : vector<8x8xf32>
    %155 = tpu.matmul %153, %154, %cst_51 {dimension_numbers = #tpu.dot_dimension_numbers<[1], [0], [0], [1], [0, 0, 1, 1], [], []>} : vector<8x32xbf16>, vector<32x8xbf16>, vector<8x8xf32> -> vector<8x8xf32>
    %156 = arith.addf %155, %147 : vector<8x8xf32>
    %cst_52 = arith.constant dense<0xFF800000> : vector<8xf32>
    %157 = vector.multi_reduction <maximumf>, %156, %cst_52 [1] : vector<8x8xf32> to vector<8xf32>
    %158 = vector.shape_cast %157 : vector<8xf32> to vector<8x1xf32>
    %159 = vector.broadcast %158 : vector<8x1xf32> to vector<8x8xf32>
    %160 = arith.subf %156, %159 : vector<8x8xf32>
    %161 = math.exp %160 : vector<8x8xf32>
    %cst_53 = arith.constant dense<0.000000e+00> : vector<8xf32>
    %162 = vector.multi_reduction <add>, %161, %cst_53 [1] : vector<8x8xf32> to vector<8xf32>
    %163 = vector.shape_cast %162 : vector<8xf32> to vector<8x1xf32>
    %164 = tpu.reciprocal %163 {approx = true} : vector<8x1xf32> -> vector<8x1xf32>
    %165 = vector.broadcast %164 : vector<8x1xf32> to vector<8x8xf32>
    %166 = arith.mulf %161, %165 : vector<8x8xf32>
    %167 = arith.truncf %166 : vector<8x8xf32> to vector<8x8xbf16>
    %168 = vector.extract_strided_slice %151 {offsets = [0, 0], sizes = [8, 32], strides = [1, 1]} : vector<8x128xbf16> to vector<8x32xbf16>
    %cst_54 = arith.constant dense<0.000000e+00> : vector<8x32xf32>
    %169 = tpu.matmul %167, %168, %cst_54 {dimension_numbers = #tpu.dot_dimension_numbers<[1], [0], [0], [1], [0, 0, 1, 1], [], []>} : vector<8x8xbf16>, vector<8x32xbf16>, vector<8x32xf32> -> vector<8x32xf32>
    %170 = arith.truncf %169 : vector<8x32xf32> to vector<8x32xbf16>
    %c0_55 = arith.constant 0 : index
    %c0_56 = arith.constant 0 : index
    %171 = vector.load %arg4[%c0_55, %c0_56] : memref<128x128xbf16, #tpu.memory_space<vmem>>, vector<32x128xbf16>
    %cst_57 = arith.constant dense<0.000000e+00> : vector<8x128xf32>
    %172 = tpu.matmul %170, %171, %cst_57 {dimension_numbers = #tpu.dot_dimension_numbers<[1], [0], [0], [1], [0, 0, 1, 1], [], []>} : vector<8x32xbf16>, vector<32x128xbf16>, vector<8x128xf32> -> vector<8x128xf32>
    %173 = arith.addf %152, %172 : vector<8x128xf32>
    %174 = vector.extract_strided_slice %148 {offsets = [0, 32], sizes = [8, 32], strides = [1, 1]} : vector<8x128xbf16> to vector<8x32xbf16>
    %175 = vector.extract_strided_slice %150 {offsets = [32, 0], sizes = [32, 8], strides = [1, 1]} : vector<128x8xbf16> to vector<32x8xbf16>
    %cst_58 = arith.constant dense<0.000000e+00> : vector<8x8xf32>
    %176 = tpu.matmul %174, %175, %cst_58 {dimension_numbers = #tpu.dot_dimension_numbers<[1], [0], [0], [1], [0, 0, 1, 1], [], []>} : vector<8x32xbf16>, vector<32x8xbf16>, vector<8x8xf32> -> vector<8x8xf32>
    %177 = arith.addf %176, %147 : vector<8x8xf32>
    %cst_59 = arith.constant dense<0xFF800000> : vector<8xf32>
    %178 = vector.multi_reduction <maximumf>, %177, %cst_59 [1] : vector<8x8xf32> to vector<8xf32>
    %179 = vector.shape_cast %178 : vector<8xf32> to vector<8x1xf32>
    %180 = vector.broadcast %179 : vector<8x1xf32> to vector<8x8xf32>
    %181 = arith.subf %177, %180 : vector<8x8xf32>
    %182 = math.exp %181 : vector<8x8xf32>
    %cst_60 = arith.constant dense<0.000000e+00> : vector<8xf32>
    %183 = vector.multi_reduction <add>, %182, %cst_60 [1] : vector<8x8xf32> to vector<8xf32>
    %184 = vector.shape_cast %183 : vector<8xf32> to vector<8x1xf32>
    %185 = tpu.reciprocal %184 {approx = true} : vector<8x1xf32> -> vector<8x1xf32>
    %186 = vector.broadcast %185 : vector<8x1xf32> to vector<8x8xf32>
    %187 = arith.mulf %182, %186 : vector<8x8xf32>
    %188 = arith.truncf %187 : vector<8x8xf32> to vector<8x8xbf16>
    %189 = vector.extract_strided_slice %151 {offsets = [0, 32], sizes = [8, 32], strides = [1, 1]} : vector<8x128xbf16> to vector<8x32xbf16>
    %cst_61 = arith.constant dense<0.000000e+00> : vector<8x32xf32>
    %190 = tpu.matmul %188, %189, %cst_61 {dimension_numbers = #tpu.dot_dimension_numbers<[1], [0], [0], [1], [0, 0, 1, 1], [], []>} : vector<8x8xbf16>, vector<8x32xbf16>, vector<8x32xf32> -> vector<8x32xf32>
    %191 = arith.truncf %190 : vector<8x32xf32> to vector<8x32xbf16>
    %c32_62 = arith.constant 32 : index
    %c0_63 = arith.constant 0 : index
    %192 = vector.load %arg4[%c32_62, %c0_63] : memref<128x128xbf16, #tpu.memory_space<vmem>>, vector<32x128xbf16>
    %cst_64 = arith.constant dense<0.000000e+00> : vector<8x128xf32>
    %193 = tpu.matmul %191, %192, %cst_64 {dimension_numbers = #tpu.dot_dimension_numbers<[1], [0], [0], [1], [0, 0, 1, 1], [], []>} : vector<8x32xbf16>, vector<32x128xbf16>, vector<8x128xf32> -> vector<8x128xf32>
    %194 = arith.addf %173, %193 : vector<8x128xf32>
    %195 = vector.extract_strided_slice %148 {offsets = [0, 64], sizes = [8, 32], strides = [1, 1]} : vector<8x128xbf16> to vector<8x32xbf16>
    %196 = vector.extract_strided_slice %150 {offsets = [64, 0], sizes = [32, 8], strides = [1, 1]} : vector<128x8xbf16> to vector<32x8xbf16>
    %cst_65 = arith.constant dense<0.000000e+00> : vector<8x8xf32>
    %197 = tpu.matmul %195, %196, %cst_65 {dimension_numbers = #tpu.dot_dimension_numbers<[1], [0], [0], [1], [0, 0, 1, 1], [], []>} : vector<8x32xbf16>, vector<32x8xbf16>, vector<8x8xf32> -> vector<8x8xf32>
    %198 = arith.addf %197, %147 : vector<8x8xf32>
    %cst_66 = arith.constant dense<0xFF800000> : vector<8xf32>
    %199 = vector.multi_reduction <maximumf>, %198, %cst_66 [1] : vector<8x8xf32> to vector<8xf32>
    %200 = vector.shape_cast %199 : vector<8xf32> to vector<8x1xf32>
    %201 = vector.broadcast %200 : vector<8x1xf32> to vector<8x8xf32>
    %202 = arith.subf %198, %201 : vector<8x8xf32>
    %203 = math.exp %202 : vector<8x8xf32>
    %cst_67 = arith.constant dense<0.000000e+00> : vector<8xf32>
    %204 = vector.multi_reduction <add>, %203, %cst_67 [1] : vector<8x8xf32> to vector<8xf32>
    %205 = vector.shape_cast %204 : vector<8xf32> to vector<8x1xf32>
    %206 = tpu.reciprocal %205 {approx = true} : vector<8x1xf32> -> vector<8x1xf32>
    %207 = vector.broadcast %206 : vector<8x1xf32> to vector<8x8xf32>
    %208 = arith.mulf %203, %207 : vector<8x8xf32>
    %209 = arith.truncf %208 : vector<8x8xf32> to vector<8x8xbf16>
    %210 = vector.extract_strided_slice %151 {offsets = [0, 64], sizes = [8, 32], strides = [1, 1]} : vector<8x128xbf16> to vector<8x32xbf16>
    %cst_68 = arith.constant dense<0.000000e+00> : vector<8x32xf32>
    %211 = tpu.matmul %209, %210, %cst_68 {dimension_numbers = #tpu.dot_dimension_numbers<[1], [0], [0], [1], [0, 0, 1, 1], [], []>} : vector<8x8xbf16>, vector<8x32xbf16>, vector<8x32xf32> -> vector<8x32xf32>
    %212 = arith.truncf %211 : vector<8x32xf32> to vector<8x32xbf16>
    %c64_69 = arith.constant 64 : index
    %c0_70 = arith.constant 0 : index
    %213 = vector.load %arg4[%c64_69, %c0_70] : memref<128x128xbf16, #tpu.memory_space<vmem>>, vector<32x128xbf16>
    %cst_71 = arith.constant dense<0.000000e+00> : vector<8x128xf32>
    %214 = tpu.matmul %212, %213, %cst_71 {dimension_numbers = #tpu.dot_dimension_numbers<[1], [0], [0], [1], [0, 0, 1, 1], [], []>} : vector<8x32xbf16>, vector<32x128xbf16>, vector<8x128xf32> -> vector<8x128xf32>
    %215 = arith.addf %194, %214 : vector<8x128xf32>
    %216 = vector.extract_strided_slice %148 {offsets = [0, 96], sizes = [8, 32], strides = [1, 1]} : vector<8x128xbf16> to vector<8x32xbf16>
    %217 = vector.extract_strided_slice %150 {offsets = [96, 0], sizes = [32, 8], strides = [1, 1]} : vector<128x8xbf16> to vector<32x8xbf16>
    %cst_72 = arith.constant dense<0.000000e+00> : vector<8x8xf32>
    %218 = tpu.matmul %216, %217, %cst_72 {dimension_numbers = #tpu.dot_dimension_numbers<[1], [0], [0], [1], [0, 0, 1, 1], [], []>} : vector<8x32xbf16>, vector<32x8xbf16>, vector<8x8xf32> -> vector<8x8xf32>
    %219 = arith.addf %218, %147 : vector<8x8xf32>
    %cst_73 = arith.constant dense<0xFF800000> : vector<8xf32>
    %220 = vector.multi_reduction <maximumf>, %219, %cst_73 [1] : vector<8x8xf32> to vector<8xf32>
    %221 = vector.shape_cast %220 : vector<8xf32> to vector<8x1xf32>
    %222 = vector.broadcast %221 : vector<8x1xf32> to vector<8x8xf32>
    %223 = arith.subf %219, %222 : vector<8x8xf32>
    %224 = math.exp %223 : vector<8x8xf32>
    %cst_74 = arith.constant dense<0.000000e+00> : vector<8xf32>
    %225 = vector.multi_reduction <add>, %224, %cst_74 [1] : vector<8x8xf32> to vector<8xf32>
    %226 = vector.shape_cast %225 : vector<8xf32> to vector<8x1xf32>
    %227 = tpu.reciprocal %226 {approx = true} : vector<8x1xf32> -> vector<8x1xf32>
    %228 = vector.broadcast %227 : vector<8x1xf32> to vector<8x8xf32>
    %229 = arith.mulf %224, %228 : vector<8x8xf32>
    %230 = arith.truncf %229 : vector<8x8xf32> to vector<8x8xbf16>
    %231 = vector.extract_strided_slice %151 {offsets = [0, 96], sizes = [8, 32], strides = [1, 1]} : vector<8x128xbf16> to vector<8x32xbf16>
    %cst_75 = arith.constant dense<0.000000e+00> : vector<8x32xf32>
    %232 = tpu.matmul %230, %231, %cst_75 {dimension_numbers = #tpu.dot_dimension_numbers<[1], [0], [0], [1], [0, 0, 1, 1], [], []>} : vector<8x8xbf16>, vector<8x32xbf16>, vector<8x32xf32> -> vector<8x32xf32>
    %233 = arith.truncf %232 : vector<8x32xf32> to vector<8x32xbf16>
    %c96_76 = arith.constant 96 : index
    %c0_77 = arith.constant 0 : index
    %234 = vector.load %arg4[%c96_76, %c0_77] : memref<128x128xbf16, #tpu.memory_space<vmem>>, vector<32x128xbf16>
    %cst_78 = arith.constant dense<0.000000e+00> : vector<8x128xf32>
    %235 = tpu.matmul %233, %234, %cst_78 {dimension_numbers = #tpu.dot_dimension_numbers<[1], [0], [0], [1], [0, 0, 1, 1], [], []>} : vector<8x32xbf16>, vector<32x128xbf16>, vector<8x128xf32> -> vector<8x128xf32>
    %236 = arith.addf %215, %235 : vector<8x128xf32>
    %c0_79 = arith.constant 0 : index
    %c0_80 = arith.constant 0 : index
    %237 = vector.load %arg5[%c0_79, %c0_80] : memref<1x128xf32, #tpu.memory_space<vmem>>, vector<1x128xf32>
    %238 = vector.broadcast %237 : vector<1x128xf32> to vector<8x128xf32>
    %239 = arith.addf %236, %238 : vector<8x128xf32>
    %240 = arith.addf %138, %239 : vector<8x128xf32>
    %cst_81 = arith.constant dense<0.000000e+00> : vector<8xf32>
    %241 = vector.multi_reduction <add>, %240, %cst_81 [1] : vector<8x128xf32> to vector<8xf32>
    %242 = vector.shape_cast %241 : vector<8xf32> to vector<8x1xf32>
    %cst_82 = arith.constant 1.280000e+02 : f32
    %243 = vector.broadcast %cst_82 : f32 to vector<8x1xf32>
    %244 = arith.divf %242, %243 : vector<8x1xf32>
    %245 = vector.broadcast %244 : vector<8x1xf32> to vector<8x128xf32>
    %246 = arith.subf %240, %245 : vector<8x128xf32>
    %247 = arith.mulf %246, %246 : vector<8x128xf32>
    %cst_83 = arith.constant dense<0.000000e+00> : vector<8xf32>
    %248 = vector.multi_reduction <add>, %247, %cst_83 [1] : vector<8x128xf32> to vector<8xf32>
    %249 = vector.shape_cast %248 : vector<8xf32> to vector<8x1xf32>
    %cst_84 = arith.constant 1.280000e+02 : f32
    %250 = vector.broadcast %cst_84 : f32 to vector<8x1xf32>
    %251 = arith.divf %249, %250 : vector<8x1xf32>
    %252 = vector.broadcast %244 : vector<8x1xf32> to vector<8x128xf32>
    %253 = arith.subf %240, %252 : vector<8x128xf32>
    %cst_85 = arith.constant 9.99999974E-6 : f32
    %254 = vector.broadcast %cst_85 : f32 to vector<8x1xf32>
    %255 = arith.addf %251, %254 : vector<8x1xf32>
    %256 = math.rsqrt %255 : vector<8x1xf32>
    %257 = vector.broadcast %256 : vector<8x1xf32> to vector<8x128xf32>
    %258 = arith.mulf %253, %257 : vector<8x128xf32>
    %c0_86 = arith.constant 0 : index
    %c0_87 = arith.constant 0 : index
    %259 = vector.load %arg6[%c0_86, %c0_87] : memref<1x128xf32, #tpu.memory_space<vmem>>, vector<1x128xf32>
    %260 = vector.broadcast %259 : vector<1x128xf32> to vector<8x128xf32>
    %261 = arith.mulf %258, %260 : vector<8x128xf32>
    %c0_88 = arith.constant 0 : index
    %c0_89 = arith.constant 0 : index
    %262 = vector.load %arg7[%c0_88, %c0_89] : memref<1x128xf32, #tpu.memory_space<vmem>>, vector<1x128xf32>
    %263 = vector.broadcast %262 : vector<1x128xf32> to vector<8x128xf32>
    %264 = arith.addf %261, %263 : vector<8x128xf32>
    %c1 = arith.constant 1 : index
    %c0_90 = arith.constant 0 : index
    %c0_91 = arith.constant 0 : index
    %265 = vector.load %arg8[%c1, %c0_90, %c0_91] : memref<2x8x128xf32, #tpu.memory_space<vmem>>, vector<1x8x128xf32>
    %266 = vector.shape_cast %265 : vector<1x8x128xf32> to vector<8x128xf32>
    %267 = vector.shape_cast %264 : vector<8x128xf32> to vector<1x8x128xf32>
    tpu.vector_store %arg8[%c1, %c0_90, %c0_91], %267 {strides = array<i32>} : memref<2x8x128xf32, #tpu.memory_space<vmem>>, vector<1x8x128xf32>,
    return
  }
  func.func @transform_0(%arg0: i32) -> (i32, i32, i32) {
    %c0_i32 = arith.constant 0 : i32
    %c0_i32_0 = arith.constant 0 : i32
    %c0_i32_1 = arith.constant 0 : i32
    return %arg0, %c0_i32, %c0_i32_0 : i32, i32, i32
  }
  func.func @transform_1(%arg0: i32) -> (i32, i32) {
    %c0_i32 = arith.constant 0 : i32
    %c0_i32_0 = arith.constant 0 : i32
    %c0_i32_1 = arith.constant 0 : i32
    return %c0_i32, %c0_i32_0 : i32, i32
  }
  func.func @transform_2(%arg0: i32) -> (i32, i32) {
    %c0_i32 = arith.constant 0 : i32
    %c0_i32_0 = arith.constant 0 : i32
    %c0_i32_1 = arith.constant 0 : i32
    return %c0_i32, %c0_i32_0 : i32, i32
  }
  func.func @transform_3(%arg0: i32) -> (i32, i32) {
    %c0_i32 = arith.constant 0 : i32
    %c0_i32_0 = arith.constant 0 : i32
    %c0_i32_1 = arith.constant 0 : i32
    return %c0_i32, %c0_i32_0 : i32, i32
  }
  func.func @transform_4(%arg0: i32) -> (i32, i32) {
    %c0_i32 = arith.constant 0 : i32
    %c0_i32_0 = arith.constant 0 : i32
    %c0_i32_1 = arith.constant 0 : i32
    return %c0_i32, %c0_i32_0 : i32, i32
  }
  func.func @transform_5(%arg0: i32) -> (i32, i32) {
    %c0_i32 = arith.constant 0 : i32
    %c0_i32_0 = arith.constant 0 : i32
    %c0_i32_1 = arith.constant 0 : i32
    return %c0_i32, %c0_i32_0 : i32, i32
  }
  func.func @transform_6(%arg0: i32) -> (i32, i32) {
    %c0_i32 = arith.constant 0 : i32
    %c0_i32_0 = arith.constant 0 : i32
    %c0_i32_1 = arith.constant 0 : i32
    return %c0_i32, %c0_i32_0 : i32, i32
  }
  func.func @transform_7(%arg0: i32) -> (i32, i32, i32) {
    %c0_i32 = arith.constant 0 : i32
    %c0_i32_0 = arith.constant 0 : i32
    %c0_i32_1 = arith.constant 0 : i32
    return %arg0, %c0_i32, %c0_i32_0 : i32, i32, i32
  }
}

module attributes {stable_mosaic.version = 11 : i64} {
  func.func @_mha_cross_kernel(%arg0: i32, %arg1: memref<2x8x128xf32, #tpu.memory_space<vmem>>, %arg2: memref<2x8x128xbf16, #tpu.memory_space<vmem>>, %arg3: memref<128x384xbf16, #tpu.memory_space<vmem>>, %arg4: memref<1x384xf32, #tpu.memory_space<vmem>>, %arg5: memref<128x128xbf16, #tpu.memory_space<vmem>>, %arg6: memref<1x128xf32, #tpu.memory_space<vmem>>, %arg7: memref<1x128xf32, #tpu.memory_space<vmem>>, %arg8: memref<1x128xf32, #tpu.memory_space<vmem>>, %arg9: memref<2x8x128xf32, #tpu.memory_space<vmem>>) attributes {dimension_semantics = [#tpu.dimension_semantics<parallel>], iteration_bounds = array<i64: 1>, scalar_prefetch = 0 : i64, scratch_operands = 0 : i64, tpu.core_type = #tpu.core_type<tc>, window_params = [{transform_indices = @transform_0, window_bounds = array<i64: 2, 8, 128>}, {transform_indices = @transform_1, window_bounds = array<i64: 2, 8, 128>}, {pipeline_mode = #tpu.pipeline_mode<synchronous>, transform_indices = @transform_2, window_bounds = array<i64: 128, 384>}, {pipeline_mode = #tpu.pipeline_mode<synchronous>, transform_indices = @transform_3, window_bounds = array<i64: 1, 384>}, {pipeline_mode = #tpu.pipeline_mode<synchronous>, transform_indices = @transform_4, window_bounds = array<i64: 128, 128>}, {pipeline_mode = #tpu.pipeline_mode<synchronous>, transform_indices = @transform_5, window_bounds = array<i64: 1, 128>}, {pipeline_mode = #tpu.pipeline_mode<synchronous>, transform_indices = @transform_6, window_bounds = array<i64: 1, 128>}, {pipeline_mode = #tpu.pipeline_mode<synchronous>, transform_indices = @transform_7, window_bounds = array<i64: 1, 128>}, {transform_indices = @transform_8, window_bounds = array<i64: 2, 8, 128>}]} {
    %c0 = arith.constant 0 : index
    %c0_0 = arith.constant 0 : index
    %c0_1 = arith.constant 0 : index
    %0 = vector.load %arg1[%c0, %c0_0, %c0_1] : memref<2x8x128xf32, #tpu.memory_space<vmem>>, vector<2x8x128xf32>
    %1 = vector.shape_cast %0 : vector<2x8x128xf32> to vector<16x128xf32>
    %c0_2 = arith.constant 0 : index
    %c0_3 = arith.constant 0 : index
    %c0_4 = arith.constant 0 : index
    %2 = vector.load %arg2[%c0_2, %c0_3, %c0_4] : memref<2x8x128xbf16, #tpu.memory_space<vmem>>, vector<2x8x128xbf16>
    %3 = vector.shape_cast %2 : vector<2x8x128xbf16> to vector<16x128xbf16>
    %4 = arith.truncf %1 : vector<16x128xf32> to vector<16x128xbf16>
    %c0_5 = arith.constant 0 : index
    %c0_6 = arith.constant 0 : index
    %5 = vector.load %arg3[%c0_5, %c0_6] : memref<128x384xbf16, #tpu.memory_space<vmem>>, vector<128x128xbf16>
    %cst = arith.constant dense<0.000000e+00> : vector<16x128xf32>
    %6 = tpu.matmul %4, %5, %cst {dimension_numbers = #tpu.dot_dimension_numbers<[1], [0], [0], [1], [0, 0, 1, 1], [], []>} : vector<16x128xbf16>, vector<128x128xbf16>, vector<16x128xf32> -> vector<16x128xf32>
    %c0_7 = arith.constant 0 : index
    %c0_8 = arith.constant 0 : index
    %7 = vector.load %arg4[%c0_7, %c0_8] : memref<1x384xf32, #tpu.memory_space<vmem>>, vector<1x128xf32>
    %8 = vector.broadcast %7 : vector<1x128xf32> to vector<16x128xf32>
    %9 = arith.addf %6, %8 : vector<16x128xf32>
    %c0_9 = arith.constant 0 : index
    %c128 = arith.constant 128 : index
    %10 = vector.load %arg3[%c0_9, %c128] : memref<128x384xbf16, #tpu.memory_space<vmem>>, vector<128x256xbf16>
    %cst_10 = arith.constant dense<0.000000e+00> : vector<16x256xf32>
    %11 = tpu.matmul %3, %10, %cst_10 {dimension_numbers = #tpu.dot_dimension_numbers<[1], [0], [0], [1], [0, 0, 1, 1], [], []>} : vector<16x128xbf16>, vector<128x256xbf16>, vector<16x256xf32> -> vector<16x256xf32>
    %c0_11 = arith.constant 0 : index
    %c128_12 = arith.constant 128 : index
    %12 = vector.load %arg4[%c0_11, %c128_12] : memref<1x384xf32, #tpu.memory_space<vmem>>, vector<1x256xf32>
    %13 = vector.broadcast %12 : vector<1x256xf32> to vector<16x256xf32>
    %14 = arith.addf %11, %13 : vector<16x256xf32>
    %15 = vector.extract_strided_slice %1 {offsets = [0, 0], sizes = [8, 128], strides = [1, 1]} : vector<16x128xf32> to vector<8x128xf32>
    %16 = vector.extract_strided_slice %9 {offsets = [0, 0], sizes = [8, 128], strides = [1, 1]} : vector<16x128xf32> to vector<8x128xf32>
    %17 = vector.extract_strided_slice %14 {offsets = [0, 0], sizes = [8, 128], strides = [1, 1]} : vector<16x256xf32> to vector<8x128xf32>
    %18 = vector.extract_strided_slice %14 {offsets = [0, 128], sizes = [8, 128], strides = [1, 1]} : vector<16x256xf32> to vector<8x128xf32>
    %19 = arith.truncf %16 : vector<8x128xf32> to vector<8x128xbf16>
    %20 = tpu.transpose %17, [1, 0] : vector<8x128xf32> -> vector<128x8xf32>
    %21 = arith.truncf %20 : vector<128x8xf32> to vector<128x8xbf16>
    %22 = arith.truncf %18 : vector<8x128xf32> to vector<8x128xbf16>
    %cst_13 = arith.constant 0.000000e+00 : f32
    %23 = vector.broadcast %cst_13 : f32 to vector<8x128xf32>
    %24 = vector.extract_strided_slice %19 {offsets = [0, 0], sizes = [8, 32], strides = [1, 1]} : vector<8x128xbf16> to vector<8x32xbf16>
    %25 = vector.extract_strided_slice %21 {offsets = [0, 0], sizes = [32, 8], strides = [1, 1]} : vector<128x8xbf16> to vector<32x8xbf16>
    %cst_14 = arith.constant dense<0.000000e+00> : vector<8x8xf32>
    %26 = tpu.matmul %24, %25, %cst_14 {dimension_numbers = #tpu.dot_dimension_numbers<[1], [0], [0], [1], [0, 0, 1, 1], [], []>} : vector<8x32xbf16>, vector<32x8xbf16>, vector<8x8xf32> -> vector<8x8xf32>
    %cst_15 = arith.constant dense<0xFF800000> : vector<8xf32>
    %27 = vector.multi_reduction <maximumf>, %26, %cst_15 [1] : vector<8x8xf32> to vector<8xf32>
    %28 = vector.shape_cast %27 : vector<8xf32> to vector<8x1xf32>
    %29 = vector.broadcast %28 : vector<8x1xf32> to vector<8x8xf32>
    %30 = arith.subf %26, %29 : vector<8x8xf32>
    %31 = math.exp %30 : vector<8x8xf32>
    %cst_16 = arith.constant dense<0.000000e+00> : vector<8xf32>
    %32 = vector.multi_reduction <add>, %31, %cst_16 [1] : vector<8x8xf32> to vector<8xf32>
    %33 = vector.shape_cast %32 : vector<8xf32> to vector<8x1xf32>
    %34 = tpu.reciprocal %33 {approx = true} : vector<8x1xf32> -> vector<8x1xf32>
    %35 = vector.broadcast %34 : vector<8x1xf32> to vector<8x8xf32>
    %36 = arith.mulf %31, %35 : vector<8x8xf32>
    %37 = arith.truncf %36 : vector<8x8xf32> to vector<8x8xbf16>
    %38 = vector.extract_strided_slice %22 {offsets = [0, 0], sizes = [8, 32], strides = [1, 1]} : vector<8x128xbf16> to vector<8x32xbf16>
    %cst_17 = arith.constant dense<0.000000e+00> : vector<8x32xf32>
    %39 = tpu.matmul %37, %38, %cst_17 {dimension_numbers = #tpu.dot_dimension_numbers<[1], [0], [0], [1], [0, 0, 1, 1], [], []>} : vector<8x8xbf16>, vector<8x32xbf16>, vector<8x32xf32> -> vector<8x32xf32>
    %40 = arith.truncf %39 : vector<8x32xf32> to vector<8x32xbf16>
    %c0_18 = arith.constant 0 : index
    %c0_19 = arith.constant 0 : index
    %41 = vector.load %arg5[%c0_18, %c0_19] : memref<128x128xbf16, #tpu.memory_space<vmem>>, vector<32x128xbf16>
    %cst_20 = arith.constant dense<0.000000e+00> : vector<8x128xf32>
    %42 = tpu.matmul %40, %41, %cst_20 {dimension_numbers = #tpu.dot_dimension_numbers<[1], [0], [0], [1], [0, 0, 1, 1], [], []>} : vector<8x32xbf16>, vector<32x128xbf16>, vector<8x128xf32> -> vector<8x128xf32>
    %43 = arith.addf %23, %42 : vector<8x128xf32>
    %44 = vector.extract_strided_slice %19 {offsets = [0, 32], sizes = [8, 32], strides = [1, 1]} : vector<8x128xbf16> to vector<8x32xbf16>
    %45 = vector.extract_strided_slice %21 {offsets = [32, 0], sizes = [32, 8], strides = [1, 1]} : vector<128x8xbf16> to vector<32x8xbf16>
    %cst_21 = arith.constant dense<0.000000e+00> : vector<8x8xf32>
    %46 = tpu.matmul %44, %45, %cst_21 {dimension_numbers = #tpu.dot_dimension_numbers<[1], [0], [0], [1], [0, 0, 1, 1], [], []>} : vector<8x32xbf16>, vector<32x8xbf16>, vector<8x8xf32> -> vector<8x8xf32>
    %cst_22 = arith.constant dense<0xFF800000> : vector<8xf32>
    %47 = vector.multi_reduction <maximumf>, %46, %cst_22 [1] : vector<8x8xf32> to vector<8xf32>
    %48 = vector.shape_cast %47 : vector<8xf32> to vector<8x1xf32>
    %49 = vector.broadcast %48 : vector<8x1xf32> to vector<8x8xf32>
    %50 = arith.subf %46, %49 : vector<8x8xf32>
    %51 = math.exp %50 : vector<8x8xf32>
    %cst_23 = arith.constant dense<0.000000e+00> : vector<8xf32>
    %52 = vector.multi_reduction <add>, %51, %cst_23 [1] : vector<8x8xf32> to vector<8xf32>
    %53 = vector.shape_cast %52 : vector<8xf32> to vector<8x1xf32>
    %54 = tpu.reciprocal %53 {approx = true} : vector<8x1xf32> -> vector<8x1xf32>
    %55 = vector.broadcast %54 : vector<8x1xf32> to vector<8x8xf32>
    %56 = arith.mulf %51, %55 : vector<8x8xf32>
    %57 = arith.truncf %56 : vector<8x8xf32> to vector<8x8xbf16>
    %58 = vector.extract_strided_slice %22 {offsets = [0, 32], sizes = [8, 32], strides = [1, 1]} : vector<8x128xbf16> to vector<8x32xbf16>
    %cst_24 = arith.constant dense<0.000000e+00> : vector<8x32xf32>
    %59 = tpu.matmul %57, %58, %cst_24 {dimension_numbers = #tpu.dot_dimension_numbers<[1], [0], [0], [1], [0, 0, 1, 1], [], []>} : vector<8x8xbf16>, vector<8x32xbf16>, vector<8x32xf32> -> vector<8x32xf32>
    %60 = arith.truncf %59 : vector<8x32xf32> to vector<8x32xbf16>
    %c32 = arith.constant 32 : index
    %c0_25 = arith.constant 0 : index
    %61 = vector.load %arg5[%c32, %c0_25] : memref<128x128xbf16, #tpu.memory_space<vmem>>, vector<32x128xbf16>
    %cst_26 = arith.constant dense<0.000000e+00> : vector<8x128xf32>
    %62 = tpu.matmul %60, %61, %cst_26 {dimension_numbers = #tpu.dot_dimension_numbers<[1], [0], [0], [1], [0, 0, 1, 1], [], []>} : vector<8x32xbf16>, vector<32x128xbf16>, vector<8x128xf32> -> vector<8x128xf32>
    %63 = arith.addf %43, %62 : vector<8x128xf32>
    %64 = vector.extract_strided_slice %19 {offsets = [0, 64], sizes = [8, 32], strides = [1, 1]} : vector<8x128xbf16> to vector<8x32xbf16>
    %65 = vector.extract_strided_slice %21 {offsets = [64, 0], sizes = [32, 8], strides = [1, 1]} : vector<128x8xbf16> to vector<32x8xbf16>
    %cst_27 = arith.constant dense<0.000000e+00> : vector<8x8xf32>
    %66 = tpu.matmul %64, %65, %cst_27 {dimension_numbers = #tpu.dot_dimension_numbers<[1], [0], [0], [1], [0, 0, 1, 1], [], []>} : vector<8x32xbf16>, vector<32x8xbf16>, vector<8x8xf32> -> vector<8x8xf32>
    %cst_28 = arith.constant dense<0xFF800000> : vector<8xf32>
    %67 = vector.multi_reduction <maximumf>, %66, %cst_28 [1] : vector<8x8xf32> to vector<8xf32>
    %68 = vector.shape_cast %67 : vector<8xf32> to vector<8x1xf32>
    %69 = vector.broadcast %68 : vector<8x1xf32> to vector<8x8xf32>
    %70 = arith.subf %66, %69 : vector<8x8xf32>
    %71 = math.exp %70 : vector<8x8xf32>
    %cst_29 = arith.constant dense<0.000000e+00> : vector<8xf32>
    %72 = vector.multi_reduction <add>, %71, %cst_29 [1] : vector<8x8xf32> to vector<8xf32>
    %73 = vector.shape_cast %72 : vector<8xf32> to vector<8x1xf32>
    %74 = tpu.reciprocal %73 {approx = true} : vector<8x1xf32> -> vector<8x1xf32>
    %75 = vector.broadcast %74 : vector<8x1xf32> to vector<8x8xf32>
    %76 = arith.mulf %71, %75 : vector<8x8xf32>
    %77 = arith.truncf %76 : vector<8x8xf32> to vector<8x8xbf16>
    %78 = vector.extract_strided_slice %22 {offsets = [0, 64], sizes = [8, 32], strides = [1, 1]} : vector<8x128xbf16> to vector<8x32xbf16>
    %cst_30 = arith.constant dense<0.000000e+00> : vector<8x32xf32>
    %79 = tpu.matmul %77, %78, %cst_30 {dimension_numbers = #tpu.dot_dimension_numbers<[1], [0], [0], [1], [0, 0, 1, 1], [], []>} : vector<8x8xbf16>, vector<8x32xbf16>, vector<8x32xf32> -> vector<8x32xf32>
    %80 = arith.truncf %79 : vector<8x32xf32> to vector<8x32xbf16>
    %c64 = arith.constant 64 : index
    %c0_31 = arith.constant 0 : index
    %81 = vector.load %arg5[%c64, %c0_31] : memref<128x128xbf16, #tpu.memory_space<vmem>>, vector<32x128xbf16>
    %cst_32 = arith.constant dense<0.000000e+00> : vector<8x128xf32>
    %82 = tpu.matmul %80, %81, %cst_32 {dimension_numbers = #tpu.dot_dimension_numbers<[1], [0], [0], [1], [0, 0, 1, 1], [], []>} : vector<8x32xbf16>, vector<32x128xbf16>, vector<8x128xf32> -> vector<8x128xf32>
    %83 = arith.addf %63, %82 : vector<8x128xf32>
    %84 = vector.extract_strided_slice %19 {offsets = [0, 96], sizes = [8, 32], strides = [1, 1]} : vector<8x128xbf16> to vector<8x32xbf16>
    %85 = vector.extract_strided_slice %21 {offsets = [96, 0], sizes = [32, 8], strides = [1, 1]} : vector<128x8xbf16> to vector<32x8xbf16>
    %cst_33 = arith.constant dense<0.000000e+00> : vector<8x8xf32>
    %86 = tpu.matmul %84, %85, %cst_33 {dimension_numbers = #tpu.dot_dimension_numbers<[1], [0], [0], [1], [0, 0, 1, 1], [], []>} : vector<8x32xbf16>, vector<32x8xbf16>, vector<8x8xf32> -> vector<8x8xf32>
    %cst_34 = arith.constant dense<0xFF800000> : vector<8xf32>
    %87 = vector.multi_reduction <maximumf>, %86, %cst_34 [1] : vector<8x8xf32> to vector<8xf32>
    %88 = vector.shape_cast %87 : vector<8xf32> to vector<8x1xf32>
    %89 = vector.broadcast %88 : vector<8x1xf32> to vector<8x8xf32>
    %90 = arith.subf %86, %89 : vector<8x8xf32>
    %91 = math.exp %90 : vector<8x8xf32>
    %cst_35 = arith.constant dense<0.000000e+00> : vector<8xf32>
    %92 = vector.multi_reduction <add>, %91, %cst_35 [1] : vector<8x8xf32> to vector<8xf32>
    %93 = vector.shape_cast %92 : vector<8xf32> to vector<8x1xf32>
    %94 = tpu.reciprocal %93 {approx = true} : vector<8x1xf32> -> vector<8x1xf32>
    %95 = vector.broadcast %94 : vector<8x1xf32> to vector<8x8xf32>
    %96 = arith.mulf %91, %95 : vector<8x8xf32>
    %97 = arith.truncf %96 : vector<8x8xf32> to vector<8x8xbf16>
    %98 = vector.extract_strided_slice %22 {offsets = [0, 96], sizes = [8, 32], strides = [1, 1]} : vector<8x128xbf16> to vector<8x32xbf16>
    %cst_36 = arith.constant dense<0.000000e+00> : vector<8x32xf32>
    %99 = tpu.matmul %97, %98, %cst_36 {dimension_numbers = #tpu.dot_dimension_numbers<[1], [0], [0], [1], [0, 0, 1, 1], [], []>} : vector<8x8xbf16>, vector<8x32xbf16>, vector<8x32xf32> -> vector<8x32xf32>
    %100 = arith.truncf %99 : vector<8x32xf32> to vector<8x32xbf16>
    %c96 = arith.constant 96 : index
    %c0_37 = arith.constant 0 : index
    %101 = vector.load %arg5[%c96, %c0_37] : memref<128x128xbf16, #tpu.memory_space<vmem>>, vector<32x128xbf16>
    %cst_38 = arith.constant dense<0.000000e+00> : vector<8x128xf32>
    %102 = tpu.matmul %100, %101, %cst_38 {dimension_numbers = #tpu.dot_dimension_numbers<[1], [0], [0], [1], [0, 0, 1, 1], [], []>} : vector<8x32xbf16>, vector<32x128xbf16>, vector<8x128xf32> -> vector<8x128xf32>
    %103 = arith.addf %83, %102 : vector<8x128xf32>
    %c0_39 = arith.constant 0 : index
    %c0_40 = arith.constant 0 : index
    %104 = vector.load %arg6[%c0_39, %c0_40] : memref<1x128xf32, #tpu.memory_space<vmem>>, vector<1x128xf32>
    %105 = vector.broadcast %104 : vector<1x128xf32> to vector<8x128xf32>
    %106 = arith.addf %103, %105 : vector<8x128xf32>
    %107 = arith.addf %15, %106 : vector<8x128xf32>
    %cst_41 = arith.constant dense<0.000000e+00> : vector<8xf32>
    %108 = vector.multi_reduction <add>, %107, %cst_41 [1] : vector<8x128xf32> to vector<8xf32>
    %109 = vector.shape_cast %108 : vector<8xf32> to vector<8x1xf32>
    %cst_42 = arith.constant 1.280000e+02 : f32
    %110 = vector.broadcast %cst_42 : f32 to vector<8x1xf32>
    %111 = arith.divf %109, %110 : vector<8x1xf32>
    %112 = vector.broadcast %111 : vector<8x1xf32> to vector<8x128xf32>
    %113 = arith.subf %107, %112 : vector<8x128xf32>
    %114 = arith.mulf %113, %113 : vector<8x128xf32>
    %cst_43 = arith.constant dense<0.000000e+00> : vector<8xf32>
    %115 = vector.multi_reduction <add>, %114, %cst_43 [1] : vector<8x128xf32> to vector<8xf32>
    %116 = vector.shape_cast %115 : vector<8xf32> to vector<8x1xf32>
    %cst_44 = arith.constant 1.280000e+02 : f32
    %117 = vector.broadcast %cst_44 : f32 to vector<8x1xf32>
    %118 = arith.divf %116, %117 : vector<8x1xf32>
    %119 = vector.broadcast %111 : vector<8x1xf32> to vector<8x128xf32>
    %120 = arith.subf %107, %119 : vector<8x128xf32>
    %cst_45 = arith.constant 9.99999974E-6 : f32
    %121 = vector.broadcast %cst_45 : f32 to vector<8x1xf32>
    %122 = arith.addf %118, %121 : vector<8x1xf32>
    %123 = math.rsqrt %122 : vector<8x1xf32>
    %124 = vector.broadcast %123 : vector<8x1xf32> to vector<8x128xf32>
    %125 = arith.mulf %120, %124 : vector<8x128xf32>
    %c0_46 = arith.constant 0 : index
    %c0_47 = arith.constant 0 : index
    %126 = vector.load %arg7[%c0_46, %c0_47] : memref<1x128xf32, #tpu.memory_space<vmem>>, vector<1x128xf32>
    %127 = vector.broadcast %126 : vector<1x128xf32> to vector<8x128xf32>
    %128 = arith.mulf %125, %127 : vector<8x128xf32>
    %c0_48 = arith.constant 0 : index
    %c0_49 = arith.constant 0 : index
    %129 = vector.load %arg8[%c0_48, %c0_49] : memref<1x128xf32, #tpu.memory_space<vmem>>, vector<1x128xf32>
    %130 = vector.broadcast %129 : vector<1x128xf32> to vector<8x128xf32>
    %131 = arith.addf %128, %130 : vector<8x128xf32>
    %c0_50 = arith.constant 0 : index
    %c0_51 = arith.constant 0 : index
    %c0_52 = arith.constant 0 : index
    %132 = vector.load %arg9[%c0_50, %c0_51, %c0_52] : memref<2x8x128xf32, #tpu.memory_space<vmem>>, vector<1x8x128xf32>
    %133 = vector.shape_cast %132 : vector<1x8x128xf32> to vector<8x128xf32>
    %134 = vector.shape_cast %131 : vector<8x128xf32> to vector<1x8x128xf32>
    tpu.vector_store %arg9[%c0_50, %c0_51, %c0_52], %134 {strides = array<i32>} : memref<2x8x128xf32, #tpu.memory_space<vmem>>, vector<1x8x128xf32>,
    %135 = vector.extract_strided_slice %1 {offsets = [8, 0], sizes = [8, 128], strides = [1, 1]} : vector<16x128xf32> to vector<8x128xf32>
    %136 = vector.extract_strided_slice %9 {offsets = [8, 0], sizes = [8, 128], strides = [1, 1]} : vector<16x128xf32> to vector<8x128xf32>
    %137 = vector.extract_strided_slice %14 {offsets = [8, 0], sizes = [8, 128], strides = [1, 1]} : vector<16x256xf32> to vector<8x128xf32>
    %138 = vector.extract_strided_slice %14 {offsets = [8, 128], sizes = [8, 128], strides = [1, 1]} : vector<16x256xf32> to vector<8x128xf32>
    %139 = arith.truncf %136 : vector<8x128xf32> to vector<8x128xbf16>
    %140 = tpu.transpose %137, [1, 0] : vector<8x128xf32> -> vector<128x8xf32>
    %141 = arith.truncf %140 : vector<128x8xf32> to vector<128x8xbf16>
    %142 = arith.truncf %138 : vector<8x128xf32> to vector<8x128xbf16>
    %cst_53 = arith.constant 0.000000e+00 : f32
    %143 = vector.broadcast %cst_53 : f32 to vector<8x128xf32>
    %144 = vector.extract_strided_slice %139 {offsets = [0, 0], sizes = [8, 32], strides = [1, 1]} : vector<8x128xbf16> to vector<8x32xbf16>
    %145 = vector.extract_strided_slice %141 {offsets = [0, 0], sizes = [32, 8], strides = [1, 1]} : vector<128x8xbf16> to vector<32x8xbf16>
    %cst_54 = arith.constant dense<0.000000e+00> : vector<8x8xf32>
    %146 = tpu.matmul %144, %145, %cst_54 {dimension_numbers = #tpu.dot_dimension_numbers<[1], [0], [0], [1], [0, 0, 1, 1], [], []>} : vector<8x32xbf16>, vector<32x8xbf16>, vector<8x8xf32> -> vector<8x8xf32>
    %cst_55 = arith.constant dense<0xFF800000> : vector<8xf32>
    %147 = vector.multi_reduction <maximumf>, %146, %cst_55 [1] : vector<8x8xf32> to vector<8xf32>
    %148 = vector.shape_cast %147 : vector<8xf32> to vector<8x1xf32>
    %149 = vector.broadcast %148 : vector<8x1xf32> to vector<8x8xf32>
    %150 = arith.subf %146, %149 : vector<8x8xf32>
    %151 = math.exp %150 : vector<8x8xf32>
    %cst_56 = arith.constant dense<0.000000e+00> : vector<8xf32>
    %152 = vector.multi_reduction <add>, %151, %cst_56 [1] : vector<8x8xf32> to vector<8xf32>
    %153 = vector.shape_cast %152 : vector<8xf32> to vector<8x1xf32>
    %154 = tpu.reciprocal %153 {approx = true} : vector<8x1xf32> -> vector<8x1xf32>
    %155 = vector.broadcast %154 : vector<8x1xf32> to vector<8x8xf32>
    %156 = arith.mulf %151, %155 : vector<8x8xf32>
    %157 = arith.truncf %156 : vector<8x8xf32> to vector<8x8xbf16>
    %158 = vector.extract_strided_slice %142 {offsets = [0, 0], sizes = [8, 32], strides = [1, 1]} : vector<8x128xbf16> to vector<8x32xbf16>
    %cst_57 = arith.constant dense<0.000000e+00> : vector<8x32xf32>
    %159 = tpu.matmul %157, %158, %cst_57 {dimension_numbers = #tpu.dot_dimension_numbers<[1], [0], [0], [1], [0, 0, 1, 1], [], []>} : vector<8x8xbf16>, vector<8x32xbf16>, vector<8x32xf32> -> vector<8x32xf32>
    %160 = arith.truncf %159 : vector<8x32xf32> to vector<8x32xbf16>
    %c0_58 = arith.constant 0 : index
    %c0_59 = arith.constant 0 : index
    %161 = vector.load %arg5[%c0_58, %c0_59] : memref<128x128xbf16, #tpu.memory_space<vmem>>, vector<32x128xbf16>
    %cst_60 = arith.constant dense<0.000000e+00> : vector<8x128xf32>
    %162 = tpu.matmul %160, %161, %cst_60 {dimension_numbers = #tpu.dot_dimension_numbers<[1], [0], [0], [1], [0, 0, 1, 1], [], []>} : vector<8x32xbf16>, vector<32x128xbf16>, vector<8x128xf32> -> vector<8x128xf32>
    %163 = arith.addf %143, %162 : vector<8x128xf32>
    %164 = vector.extract_strided_slice %139 {offsets = [0, 32], sizes = [8, 32], strides = [1, 1]} : vector<8x128xbf16> to vector<8x32xbf16>
    %165 = vector.extract_strided_slice %141 {offsets = [32, 0], sizes = [32, 8], strides = [1, 1]} : vector<128x8xbf16> to vector<32x8xbf16>
    %cst_61 = arith.constant dense<0.000000e+00> : vector<8x8xf32>
    %166 = tpu.matmul %164, %165, %cst_61 {dimension_numbers = #tpu.dot_dimension_numbers<[1], [0], [0], [1], [0, 0, 1, 1], [], []>} : vector<8x32xbf16>, vector<32x8xbf16>, vector<8x8xf32> -> vector<8x8xf32>
    %cst_62 = arith.constant dense<0xFF800000> : vector<8xf32>
    %167 = vector.multi_reduction <maximumf>, %166, %cst_62 [1] : vector<8x8xf32> to vector<8xf32>
    %168 = vector.shape_cast %167 : vector<8xf32> to vector<8x1xf32>
    %169 = vector.broadcast %168 : vector<8x1xf32> to vector<8x8xf32>
    %170 = arith.subf %166, %169 : vector<8x8xf32>
    %171 = math.exp %170 : vector<8x8xf32>
    %cst_63 = arith.constant dense<0.000000e+00> : vector<8xf32>
    %172 = vector.multi_reduction <add>, %171, %cst_63 [1] : vector<8x8xf32> to vector<8xf32>
    %173 = vector.shape_cast %172 : vector<8xf32> to vector<8x1xf32>
    %174 = tpu.reciprocal %173 {approx = true} : vector<8x1xf32> -> vector<8x1xf32>
    %175 = vector.broadcast %174 : vector<8x1xf32> to vector<8x8xf32>
    %176 = arith.mulf %171, %175 : vector<8x8xf32>
    %177 = arith.truncf %176 : vector<8x8xf32> to vector<8x8xbf16>
    %178 = vector.extract_strided_slice %142 {offsets = [0, 32], sizes = [8, 32], strides = [1, 1]} : vector<8x128xbf16> to vector<8x32xbf16>
    %cst_64 = arith.constant dense<0.000000e+00> : vector<8x32xf32>
    %179 = tpu.matmul %177, %178, %cst_64 {dimension_numbers = #tpu.dot_dimension_numbers<[1], [0], [0], [1], [0, 0, 1, 1], [], []>} : vector<8x8xbf16>, vector<8x32xbf16>, vector<8x32xf32> -> vector<8x32xf32>
    %180 = arith.truncf %179 : vector<8x32xf32> to vector<8x32xbf16>
    %c32_65 = arith.constant 32 : index
    %c0_66 = arith.constant 0 : index
    %181 = vector.load %arg5[%c32_65, %c0_66] : memref<128x128xbf16, #tpu.memory_space<vmem>>, vector<32x128xbf16>
    %cst_67 = arith.constant dense<0.000000e+00> : vector<8x128xf32>
    %182 = tpu.matmul %180, %181, %cst_67 {dimension_numbers = #tpu.dot_dimension_numbers<[1], [0], [0], [1], [0, 0, 1, 1], [], []>} : vector<8x32xbf16>, vector<32x128xbf16>, vector<8x128xf32> -> vector<8x128xf32>
    %183 = arith.addf %163, %182 : vector<8x128xf32>
    %184 = vector.extract_strided_slice %139 {offsets = [0, 64], sizes = [8, 32], strides = [1, 1]} : vector<8x128xbf16> to vector<8x32xbf16>
    %185 = vector.extract_strided_slice %141 {offsets = [64, 0], sizes = [32, 8], strides = [1, 1]} : vector<128x8xbf16> to vector<32x8xbf16>
    %cst_68 = arith.constant dense<0.000000e+00> : vector<8x8xf32>
    %186 = tpu.matmul %184, %185, %cst_68 {dimension_numbers = #tpu.dot_dimension_numbers<[1], [0], [0], [1], [0, 0, 1, 1], [], []>} : vector<8x32xbf16>, vector<32x8xbf16>, vector<8x8xf32> -> vector<8x8xf32>
    %cst_69 = arith.constant dense<0xFF800000> : vector<8xf32>
    %187 = vector.multi_reduction <maximumf>, %186, %cst_69 [1] : vector<8x8xf32> to vector<8xf32>
    %188 = vector.shape_cast %187 : vector<8xf32> to vector<8x1xf32>
    %189 = vector.broadcast %188 : vector<8x1xf32> to vector<8x8xf32>
    %190 = arith.subf %186, %189 : vector<8x8xf32>
    %191 = math.exp %190 : vector<8x8xf32>
    %cst_70 = arith.constant dense<0.000000e+00> : vector<8xf32>
    %192 = vector.multi_reduction <add>, %191, %cst_70 [1] : vector<8x8xf32> to vector<8xf32>
    %193 = vector.shape_cast %192 : vector<8xf32> to vector<8x1xf32>
    %194 = tpu.reciprocal %193 {approx = true} : vector<8x1xf32> -> vector<8x1xf32>
    %195 = vector.broadcast %194 : vector<8x1xf32> to vector<8x8xf32>
    %196 = arith.mulf %191, %195 : vector<8x8xf32>
    %197 = arith.truncf %196 : vector<8x8xf32> to vector<8x8xbf16>
    %198 = vector.extract_strided_slice %142 {offsets = [0, 64], sizes = [8, 32], strides = [1, 1]} : vector<8x128xbf16> to vector<8x32xbf16>
    %cst_71 = arith.constant dense<0.000000e+00> : vector<8x32xf32>
    %199 = tpu.matmul %197, %198, %cst_71 {dimension_numbers = #tpu.dot_dimension_numbers<[1], [0], [0], [1], [0, 0, 1, 1], [], []>} : vector<8x8xbf16>, vector<8x32xbf16>, vector<8x32xf32> -> vector<8x32xf32>
    %200 = arith.truncf %199 : vector<8x32xf32> to vector<8x32xbf16>
    %c64_72 = arith.constant 64 : index
    %c0_73 = arith.constant 0 : index
    %201 = vector.load %arg5[%c64_72, %c0_73] : memref<128x128xbf16, #tpu.memory_space<vmem>>, vector<32x128xbf16>
    %cst_74 = arith.constant dense<0.000000e+00> : vector<8x128xf32>
    %202 = tpu.matmul %200, %201, %cst_74 {dimension_numbers = #tpu.dot_dimension_numbers<[1], [0], [0], [1], [0, 0, 1, 1], [], []>} : vector<8x32xbf16>, vector<32x128xbf16>, vector<8x128xf32> -> vector<8x128xf32>
    %203 = arith.addf %183, %202 : vector<8x128xf32>
    %204 = vector.extract_strided_slice %139 {offsets = [0, 96], sizes = [8, 32], strides = [1, 1]} : vector<8x128xbf16> to vector<8x32xbf16>
    %205 = vector.extract_strided_slice %141 {offsets = [96, 0], sizes = [32, 8], strides = [1, 1]} : vector<128x8xbf16> to vector<32x8xbf16>
    %cst_75 = arith.constant dense<0.000000e+00> : vector<8x8xf32>
    %206 = tpu.matmul %204, %205, %cst_75 {dimension_numbers = #tpu.dot_dimension_numbers<[1], [0], [0], [1], [0, 0, 1, 1], [], []>} : vector<8x32xbf16>, vector<32x8xbf16>, vector<8x8xf32> -> vector<8x8xf32>
    %cst_76 = arith.constant dense<0xFF800000> : vector<8xf32>
    %207 = vector.multi_reduction <maximumf>, %206, %cst_76 [1] : vector<8x8xf32> to vector<8xf32>
    %208 = vector.shape_cast %207 : vector<8xf32> to vector<8x1xf32>
    %209 = vector.broadcast %208 : vector<8x1xf32> to vector<8x8xf32>
    %210 = arith.subf %206, %209 : vector<8x8xf32>
    %211 = math.exp %210 : vector<8x8xf32>
    %cst_77 = arith.constant dense<0.000000e+00> : vector<8xf32>
    %212 = vector.multi_reduction <add>, %211, %cst_77 [1] : vector<8x8xf32> to vector<8xf32>
    %213 = vector.shape_cast %212 : vector<8xf32> to vector<8x1xf32>
    %214 = tpu.reciprocal %213 {approx = true} : vector<8x1xf32> -> vector<8x1xf32>
    %215 = vector.broadcast %214 : vector<8x1xf32> to vector<8x8xf32>
    %216 = arith.mulf %211, %215 : vector<8x8xf32>
    %217 = arith.truncf %216 : vector<8x8xf32> to vector<8x8xbf16>
    %218 = vector.extract_strided_slice %142 {offsets = [0, 96], sizes = [8, 32], strides = [1, 1]} : vector<8x128xbf16> to vector<8x32xbf16>
    %cst_78 = arith.constant dense<0.000000e+00> : vector<8x32xf32>
    %219 = tpu.matmul %217, %218, %cst_78 {dimension_numbers = #tpu.dot_dimension_numbers<[1], [0], [0], [1], [0, 0, 1, 1], [], []>} : vector<8x8xbf16>, vector<8x32xbf16>, vector<8x32xf32> -> vector<8x32xf32>
    %220 = arith.truncf %219 : vector<8x32xf32> to vector<8x32xbf16>
    %c96_79 = arith.constant 96 : index
    %c0_80 = arith.constant 0 : index
    %221 = vector.load %arg5[%c96_79, %c0_80] : memref<128x128xbf16, #tpu.memory_space<vmem>>, vector<32x128xbf16>
    %cst_81 = arith.constant dense<0.000000e+00> : vector<8x128xf32>
    %222 = tpu.matmul %220, %221, %cst_81 {dimension_numbers = #tpu.dot_dimension_numbers<[1], [0], [0], [1], [0, 0, 1, 1], [], []>} : vector<8x32xbf16>, vector<32x128xbf16>, vector<8x128xf32> -> vector<8x128xf32>
    %223 = arith.addf %203, %222 : vector<8x128xf32>
    %c0_82 = arith.constant 0 : index
    %c0_83 = arith.constant 0 : index
    %224 = vector.load %arg6[%c0_82, %c0_83] : memref<1x128xf32, #tpu.memory_space<vmem>>, vector<1x128xf32>
    %225 = vector.broadcast %224 : vector<1x128xf32> to vector<8x128xf32>
    %226 = arith.addf %223, %225 : vector<8x128xf32>
    %227 = arith.addf %135, %226 : vector<8x128xf32>
    %cst_84 = arith.constant dense<0.000000e+00> : vector<8xf32>
    %228 = vector.multi_reduction <add>, %227, %cst_84 [1] : vector<8x128xf32> to vector<8xf32>
    %229 = vector.shape_cast %228 : vector<8xf32> to vector<8x1xf32>
    %cst_85 = arith.constant 1.280000e+02 : f32
    %230 = vector.broadcast %cst_85 : f32 to vector<8x1xf32>
    %231 = arith.divf %229, %230 : vector<8x1xf32>
    %232 = vector.broadcast %231 : vector<8x1xf32> to vector<8x128xf32>
    %233 = arith.subf %227, %232 : vector<8x128xf32>
    %234 = arith.mulf %233, %233 : vector<8x128xf32>
    %cst_86 = arith.constant dense<0.000000e+00> : vector<8xf32>
    %235 = vector.multi_reduction <add>, %234, %cst_86 [1] : vector<8x128xf32> to vector<8xf32>
    %236 = vector.shape_cast %235 : vector<8xf32> to vector<8x1xf32>
    %cst_87 = arith.constant 1.280000e+02 : f32
    %237 = vector.broadcast %cst_87 : f32 to vector<8x1xf32>
    %238 = arith.divf %236, %237 : vector<8x1xf32>
    %239 = vector.broadcast %231 : vector<8x1xf32> to vector<8x128xf32>
    %240 = arith.subf %227, %239 : vector<8x128xf32>
    %cst_88 = arith.constant 9.99999974E-6 : f32
    %241 = vector.broadcast %cst_88 : f32 to vector<8x1xf32>
    %242 = arith.addf %238, %241 : vector<8x1xf32>
    %243 = math.rsqrt %242 : vector<8x1xf32>
    %244 = vector.broadcast %243 : vector<8x1xf32> to vector<8x128xf32>
    %245 = arith.mulf %240, %244 : vector<8x128xf32>
    %c0_89 = arith.constant 0 : index
    %c0_90 = arith.constant 0 : index
    %246 = vector.load %arg7[%c0_89, %c0_90] : memref<1x128xf32, #tpu.memory_space<vmem>>, vector<1x128xf32>
    %247 = vector.broadcast %246 : vector<1x128xf32> to vector<8x128xf32>
    %248 = arith.mulf %245, %247 : vector<8x128xf32>
    %c0_91 = arith.constant 0 : index
    %c0_92 = arith.constant 0 : index
    %249 = vector.load %arg8[%c0_91, %c0_92] : memref<1x128xf32, #tpu.memory_space<vmem>>, vector<1x128xf32>
    %250 = vector.broadcast %249 : vector<1x128xf32> to vector<8x128xf32>
    %251 = arith.addf %248, %250 : vector<8x128xf32>
    %c1 = arith.constant 1 : index
    %c0_93 = arith.constant 0 : index
    %c0_94 = arith.constant 0 : index
    %252 = vector.load %arg9[%c1, %c0_93, %c0_94] : memref<2x8x128xf32, #tpu.memory_space<vmem>>, vector<1x8x128xf32>
    %253 = vector.shape_cast %252 : vector<1x8x128xf32> to vector<8x128xf32>
    %254 = vector.shape_cast %251 : vector<8x128xf32> to vector<1x8x128xf32>
    tpu.vector_store %arg9[%c1, %c0_93, %c0_94], %254 {strides = array<i32>} : memref<2x8x128xf32, #tpu.memory_space<vmem>>, vector<1x8x128xf32>,
    return
  }
  func.func @transform_0(%arg0: i32) -> (i32, i32, i32) {
    %c0_i32 = arith.constant 0 : i32
    %c0_i32_0 = arith.constant 0 : i32
    %c0_i32_1 = arith.constant 0 : i32
    return %arg0, %c0_i32, %c0_i32_0 : i32, i32, i32
  }
  func.func @transform_1(%arg0: i32) -> (i32, i32, i32) {
    %c0_i32 = arith.constant 0 : i32
    %c0_i32_0 = arith.constant 0 : i32
    %c0_i32_1 = arith.constant 0 : i32
    return %arg0, %c0_i32, %c0_i32_0 : i32, i32, i32
  }
  func.func @transform_2(%arg0: i32) -> (i32, i32) {
    %c0_i32 = arith.constant 0 : i32
    %c0_i32_0 = arith.constant 0 : i32
    %c0_i32_1 = arith.constant 0 : i32
    return %c0_i32, %c0_i32_0 : i32, i32
  }
  func.func @transform_3(%arg0: i32) -> (i32, i32) {
    %c0_i32 = arith.constant 0 : i32
    %c0_i32_0 = arith.constant 0 : i32
    %c0_i32_1 = arith.constant 0 : i32
    return %c0_i32, %c0_i32_0 : i32, i32
  }
  func.func @transform_4(%arg0: i32) -> (i32, i32) {
    %c0_i32 = arith.constant 0 : i32
    %c0_i32_0 = arith.constant 0 : i32
    %c0_i32_1 = arith.constant 0 : i32
    return %c0_i32, %c0_i32_0 : i32, i32
  }
  func.func @transform_5(%arg0: i32) -> (i32, i32) {
    %c0_i32 = arith.constant 0 : i32
    %c0_i32_0 = arith.constant 0 : i32
    %c0_i32_1 = arith.constant 0 : i32
    return %c0_i32, %c0_i32_0 : i32, i32
  }
  func.func @transform_6(%arg0: i32) -> (i32, i32) {
    %c0_i32 = arith.constant 0 : i32
    %c0_i32_0 = arith.constant 0 : i32
    %c0_i32_1 = arith.constant 0 : i32
    return %c0_i32, %c0_i32_0 : i32, i32
  }
  func.func @transform_7(%arg0: i32) -> (i32, i32) {
    %c0_i32 = arith.constant 0 : i32
    %c0_i32_0 = arith.constant 0 : i32
    %c0_i32_1 = arith.constant 0 : i32
    return %c0_i32, %c0_i32_0 : i32, i32
  }
  func.func @transform_8(%arg0: i32) -> (i32, i32, i32) {
    %c0_i32 = arith.constant 0 : i32
    %c0_i32_0 = arith.constant 0 : i32
    %c0_i32_1 = arith.constant 0 : i32
    return %arg0, %c0_i32, %c0_i32_0 : i32, i32, i32
  }
}

module attributes {stable_mosaic.version = 11 : i64} {
  func.func @_linear_kernel(%arg0: i32, %arg1: i32, %arg2: i32, %arg3: memref<16x128xbf16, #tpu.memory_space<vmem>>, %arg4: memref<128x24xbf16, #tpu.memory_space<vmem>>, %arg5: memref<1x24xf32, #tpu.memory_space<vmem>>, %arg6: memref<16x24xf32, #tpu.memory_space<vmem>>, %arg7: memref<16x24xf32, #tpu.memory_space<vmem>>) attributes {dimension_semantics = [#tpu.dimension_semantics<parallel>, #tpu.dimension_semantics<parallel>, #tpu.dimension_semantics<arbitrary>], iteration_bounds = array<i64: 1, 1, 1>, scalar_prefetch = 0 : i64, scratch_operands = 1 : i64, tpu.core_type = #tpu.core_type<tc>, window_params = [{transform_indices = @transform_0, window_bounds = array<i64: 16, 128>}, {transform_indices = @transform_1, window_bounds = array<i64: 128, 24>}, {transform_indices = @transform_2, window_bounds = array<i64: 1, 24>}, {transform_indices = @transform_3, window_bounds = array<i64: 16, 24>}]} {
    %c0_i32 = arith.constant 0 : i32
    %0 = arith.cmpi eq, %arg2, %c0_i32 : i32
    %1 = arith.extui %0 : i1 to i32
    %c0_i32_0 = arith.constant 0 : i32
    %2 = arith.cmpi ne, %1, %c0_i32_0 : i32
    scf.if %2 {
      %cst_10 = arith.constant 0.000000e+00 : f32
      %12 = vector.broadcast %cst_10 : f32 to vector<16x24xf32>
      %c0_11 = arith.constant 0 : index
      %c0_12 = arith.constant 0 : index
      %13 = vector.load %arg7[%c0_11, %c0_12] : memref<16x24xf32, #tpu.memory_space<vmem>>, vector<16x24xf32>
      tpu.vector_store %arg7[%c0_11, %c0_12], %12 {strides = array<i32>} : memref<16x24xf32, #tpu.memory_space<vmem>>, vector<16x24xf32>,
    } else {
    }
    %c0 = arith.constant 0 : index
    %c0_1 = arith.constant 0 : index
    %3 = vector.load %arg7[%c0, %c0_1] : memref<16x24xf32, #tpu.memory_space<vmem>>, vector<16x24xf32>
    %c0_2 = arith.constant 0 : index
    %c0_3 = arith.constant 0 : index
    %4 = vector.load %arg3[%c0_2, %c0_3] : memref<16x128xbf16, #tpu.memory_space<vmem>>, vector<16x128xbf16>
    %c0_4 = arith.constant 0 : index
    %c0_5 = arith.constant 0 : index
    %5 = vector.load %arg4[%c0_4, %c0_5] : memref<128x24xbf16, #tpu.memory_space<vmem>>, vector<128x24xbf16>
    %cst = arith.constant dense<0.000000e+00> : vector<16x24xf32>
    %6 = tpu.matmul %4, %5, %cst {dimension_numbers = #tpu.dot_dimension_numbers<[1], [0], [0], [1], [0, 0, 1, 1], [], []>} : vector<16x128xbf16>, vector<128x24xbf16>, vector<16x24xf32> -> vector<16x24xf32>
    %7 = arith.addf %3, %6 : vector<16x24xf32>
    %c0_6 = arith.constant 0 : index
    %c0_7 = arith.constant 0 : index
    %8 = vector.load %arg7[%c0_6, %c0_7] : memref<16x24xf32, #tpu.memory_space<vmem>>, vector<16x24xf32>
    tpu.vector_store %arg7[%c0_6, %c0_7], %7 {strides = array<i32>} : memref<16x24xf32, #tpu.memory_space<vmem>>, vector<16x24xf32>,
    %c0_i32_8 = arith.constant 0 : i32
    %9 = arith.cmpi eq, %arg2, %c0_i32_8 : i32
    %10 = arith.extui %9 : i1 to i32
    %c0_i32_9 = arith.constant 0 : i32
    %11 = arith.cmpi ne, %10, %c0_i32_9 : i32
    scf.if %11 {
      %c0_10 = arith.constant 0 : index
      %c0_11 = arith.constant 0 : index
      %12 = vector.load %arg7[%c0_10, %c0_11] : memref<16x24xf32, #tpu.memory_space<vmem>>, vector<16x24xf32>
      %c0_12 = arith.constant 0 : index
      %c0_13 = arith.constant 0 : index
      %13 = vector.load %arg5[%c0_12, %c0_13] : memref<1x24xf32, #tpu.memory_space<vmem>>, vector<1x24xf32>
      %14 = vector.broadcast %13 : vector<1x24xf32> to vector<16x24xf32>
      %15 = arith.addf %12, %14 : vector<16x24xf32>
      %c0_14 = arith.constant 0 : index
      %c0_15 = arith.constant 0 : index
      %16 = vector.load %arg6[%c0_14, %c0_15] : memref<16x24xf32, #tpu.memory_space<vmem>>, vector<16x24xf32>
      tpu.vector_store %arg6[%c0_14, %c0_15], %15 {strides = array<i32>} : memref<16x24xf32, #tpu.memory_space<vmem>>, vector<16x24xf32>,
    } else {
    }
    return
  }
  func.func @transform_0(%arg0: i32, %arg1: i32, %arg2: i32) -> (i32, i32) {
    %c0_i32 = arith.constant 0 : i32
    return %arg0, %arg2 : i32, i32
  }
  func.func @transform_1(%arg0: i32, %arg1: i32, %arg2: i32) -> (i32, i32) {
    %c0_i32 = arith.constant 0 : i32
    return %arg2, %arg1 : i32, i32
  }
  func.func @transform_2(%arg0: i32, %arg1: i32, %arg2: i32) -> (i32, i32) {
    %c0_i32 = arith.constant 0 : i32
    %c0_i32_0 = arith.constant 0 : i32
    return %c0_i32, %arg1 : i32, i32
  }
  func.func @transform_3(%arg0: i32, %arg1: i32, %arg2: i32) -> (i32, i32) {
    %c0_i32 = arith.constant 0 : i32
    return %arg0, %arg1 : i32, i32
  }
}

</mosaic_0001>

<llo_original>
// kernel: transformer_forward.17
$region0: #{transformer_forward.17}
  #allocation0 [shape = 'u32[]', space=smem, size = 0x4, offset = 0x4, fixed_abs, tag = 'smem constant byte address 0x4 - core index']
  #allocation1 [shape = 'u32[144,128]{1,0:T(1,128)}', space=vmem, size = 0x12000, scoped, tag = 'internal scratch']
  %s0 = inlined_call_operand.vmem [shape: f32[16,128], index: 0, kind: input, shape index: {}]
  %s1 = inlined_call_operand.vmem [shape: f32[1,128], index: 1, kind: input, shape index: {}]
  %s2 = inlined_call_operand.vmem [shape: f32[1,128], index: 2, kind: input, shape index: {}]
  %s3 = inlined_call_operand.vmem [shape: bf16[16,128], index: 3, kind: output, shape index: {}]
  %s4 = sld [smem:[#allocation0]]
  $region22: #{transformer_forward.17} parent=0
    _
  %s6 = ssub.s32 1, %s4
  %s7 = scalar_select 0, %s6, %s4
  // Predicated region
  $region2: #{transformer_forward.17} parent=0 // pred_check
    _
  $region3: #{transformer_forward.17} parent=0 // pred_check_branch
    %9 = sbr.rel (0) target = $region5
  $region4: #{transformer_forward.17} parent=0 // pred_region
    _
  $region5: #{transformer_forward.17} parent=0 // pred_fallthru
    _
  // Predicated region
  $region6: #{transformer_forward.17} parent=0 // pred_check
    _
  $region7: #{transformer_forward.17} parent=0 // pred_check_branch
    %11 = sbr.rel (0) target = $region9
  $region8: #{transformer_forward.17} parent=0 // pred_region
    _
  $region9: #{transformer_forward.17} parent=0 // pred_fallthru
    _
  // Predicated region
  $region10: #{transformer_forward.17} parent=0 // pred_check
    _
  $region11: #{transformer_forward.17} parent=0 // pred_check_branch
    %13 = sbr.rel (0) target = $region13
  $region12: #{transformer_forward.17} parent=0 // pred_region
    _
  $region13: #{transformer_forward.17} parent=0 // pred_fallthru
    _
  %v14 = vld [vmem:[%s0] sm:$0xff]
  %v15 = vld [vmem:[%s0 + $0x8] sm:$0xff]
  %16 = vadd.xlane.f32.xlu0 %v14
  %v17 = vpop.xlane.xlu0 %16
  %18 = vadd.xlane.f32.xlu0 %v15
  %v19 = vpop.xlane.xlu0 %18
  %v20 = vrcp.pop 128.0
  %v21 = vmul.f32 %v17, %v20
  %v22 = vmul.f32 %v19, %v20
  %v23 = vsub.f32 %v14, %v21
  %v24 = vsub.f32 %v15, %v22
  %v25 = vmul.f32 %v23, %v23
  %v26 = vmul.f32 %v24, %v24
  %27 = vadd.xlane.f32.xlu0 %v25
  %v28 = vpop.xlane.xlu0 %27
  %29 = vadd.xlane.f32.xlu0 %v26
  %v30 = vpop.xlane.xlu0 %29
  %v31 = vmul.f32 %v28, %v20
  %v32 = vmul.f32 %v30, %v20
  %v33 = vadd.f32 %v31, 1e-05
  %v34 = vadd.f32 %v32, 1e-05
  %v35 = vrsqrt.pop %v33
  %v36 = vrsqrt.pop %v34
  %v37 = vmul.f32 %v23, %v35
  %v38 = vmul.f32 %v24, %v36
  %v39 = vld [vmem:[%s1] sm:$0x1]
  %v41 = vlaneseq
  %v42 = vshrl.u32 %v41, 7
  %v43 = vsub.s32 0, %v42
  %v44 = vrot.slane %v39, %v43
  %v46 = vmul.f32 %v37, %v44
  %v47 = vmul.f32 %v38, %v44
  %v48 = vld [vmem:[%s2] sm:$0x1]
  %v50 = vlaneseq
  %v51 = vshrl.u32 %v50, 7
  %v52 = vsub.s32 0, %v51
  %v53 = vrot.slane %v48, %v52
  %v55 = vadd.f32 %v46, %v53
  %v56 = vadd.f32 %v47, %v53
  %v57 = vpack.c.bf16 %v56, %v55
  %v59 = vunpack.c.l.b16 %v57
  %v60 = vunpack.c.h.b16 %v57
  %v61 = vpack.c.b16 %v59, %v59
  %v62 = vpack.c.b16 %v60, %v60
  %65 = vst [vmem:[%s3] sm:$0xf] %v61
  %66 = vst [vmem:[%s3 + $0x4] sm:$0xf] %v62
  // Predicated region
  $region14: #{transformer_forward.17} parent=0 // pred_check
    _
  $region15: #{transformer_forward.17} parent=0 // pred_check_branch
    %68 = sbr.rel (0) target = $region17
  $region16: #{transformer_forward.17} parent=0 // pred_region
    _
  $region17: #{transformer_forward.17} parent=0 // pred_fallthru
    _
  // Predicated region
  $region18: #{transformer_forward.17} parent=0 // pred_check
    _
  $region19: #{transformer_forward.17} parent=0 // pred_check_branch
    %70 = sbr.rel (0) target = $region21
  $region20: #{transformer_forward.17} parent=0 // pred_region
    _
  $region21: #{transformer_forward.17} parent=0 // pred_fallthru
    _

// kernel: transformer_forward.14
$region0: #{transformer_forward.14}
  #allocation0 [shape = 'u32[]', space=smem, size = 0x4, offset = 0x4, fixed_abs, tag = 'smem constant byte address 0x4 - core index']
  #allocation1 [shape = 'u32[144,128]{1,0:T(1,128)}', space=vmem, size = 0x12000, scoped, tag = 'internal scratch']
  %s0 = inlined_call_operand.vmem [shape: f32[16,128], index: 0, kind: input, shape index: {}]
  %s1 = inlined_call_operand.vmem [shape: bf16[128,128], index: 1, kind: input, shape index: {}]
  %s2 = inlined_call_operand.vmem [shape: f32[1,128], index: 2, kind: input, shape index: {}]
  %s3 = inlined_call_operand.vmem [shape: bf16[128,128], index: 3, kind: input, shape index: {}]
  %s4 = inlined_call_operand.vmem [shape: f32[1,128], index: 4, kind: input, shape index: {}]
  %s5 = inlined_call_operand.vmem [shape: f32[1,128], index: 5, kind: input, shape index: {}]
  %s6 = inlined_call_operand.vmem [shape: f32[1,128], index: 6, kind: input, shape index: {}]
  %s7 = inlined_call_operand.vmem [shape: f32[16,128], index: 7, kind: output, shape index: {}]
  %s8 = sld [smem:[#allocation0]]
  $region38: #{transformer_forward.14} parent=0
    _
  %s10 = ssub.s32 1, %s8
  %s11 = scalar_select 0, %s10, %s8
  // Predicated region
  $region2: #{transformer_forward.14} parent=0 // pred_check
    _
  $region3: #{transformer_forward.14} parent=0 // pred_check_branch
    %13 = sbr.rel (0) target = $region5
  $region4: #{transformer_forward.14} parent=0 // pred_region
    _
  $region5: #{transformer_forward.14} parent=0 // pred_fallthru
    _
  // Predicated region
  $region6: #{transformer_forward.14} parent=0 // pred_check
    _
  $region7: #{transformer_forward.14} parent=0 // pred_check_branch
    %15 = sbr.rel (0) target = $region9
  $region8: #{transformer_forward.14} parent=0 // pred_region
    _
  $region9: #{transformer_forward.14} parent=0 // pred_fallthru
    _
  // Predicated region
  $region10: #{transformer_forward.14} parent=0 // pred_check
    _
  $region11: #{transformer_forward.14} parent=0 // pred_check_branch
    %17 = sbr.rel (0) target = $region13
  $region12: #{transformer_forward.14} parent=0 // pred_region
    _
  $region13: #{transformer_forward.14} parent=0 // pred_fallthru
    _
  // Predicated region
  $region14: #{transformer_forward.14} parent=0 // pred_check
    _
  $region15: #{transformer_forward.14} parent=0 // pred_check_branch
    %19 = sbr.rel (0) target = $region17
  $region16: #{transformer_forward.14} parent=0 // pred_region
    _
  $region17: #{transformer_forward.14} parent=0 // pred_fallthru
    _
  // Predicated region
  $region18: #{transformer_forward.14} parent=0 // pred_check
    _
  $region19: #{transformer_forward.14} parent=0 // pred_check_branch
    %21 = sbr.rel (0) target = $region21
  $region20: #{transformer_forward.14} parent=0 // pred_region
    _
  $region21: #{transformer_forward.14} parent=0 // pred_fallthru
    _
  // Predicated region
  $region22: #{transformer_forward.14} parent=0 // pred_check
    _
  $region23: #{transformer_forward.14} parent=0 // pred_check_branch
    %23 = sbr.rel (0) target = $region25
  $region24: #{transformer_forward.14} parent=0 // pred_region
    _
  $region25: #{transformer_forward.14} parent=0 // pred_fallthru
    _
  // Predicated region
  $region26: #{transformer_forward.14} parent=0 // pred_check
    _
  $region27: #{transformer_forward.14} parent=0 // pred_check_branch
    %25 = sbr.rel (0) target = $region29
  $region28: #{transformer_forward.14} parent=0 // pred_region
    _
  $region29: #{transformer_forward.14} parent=0 // pred_fallthru
    _
  %v27 = vld [vmem:[%s0] sm:$0xff]
  %v28 = vld [vmem:[%s0 + $0x8] sm:$0xff]
  %v29 = vpack.c.bf16 %v28, %v27
  %v30 = vld [vmem:[%s1] sm:$0xf]
  %v31 = vld [vmem:[%s1 + $0x4] sm:$0xf]
  %v32 = vld [vmem:[%s1 + $0x8] sm:$0xf]
  %v33 = vld [vmem:[%s1 + $0xc] sm:$0xf]
  %v34 = vld [vmem:[%s1 + $0x10] sm:$0xf]
  %v35 = vld [vmem:[%s1 + $0x14] sm:$0xf]
  %v36 = vld [vmem:[%s1 + $0x18] sm:$0xf]
  %v37 = vld [vmem:[%s1 + $0x1c] sm:$0xf]
  %v38 = vld [vmem:[%s1 + $0x20] sm:$0xf]
  %v39 = vld [vmem:[%s1 + $0x24] sm:$0xf]
  %v40 = vld [vmem:[%s1 + $0x28] sm:$0xf]
  %v41 = vld [vmem:[%s1 + $0x2c] sm:$0xf]
  %v42 = vld [vmem:[%s1 + $0x30] sm:$0xf]
  %v43 = vld [vmem:[%s1 + $0x34] sm:$0xf]
  %v44 = vld [vmem:[%s1 + $0x38] sm:$0xf]
  %v45 = vld [vmem:[%s1 + $0x3c] sm:$0xf]
  %v46 = vld [vmem:[%s2] sm:$0x1]
  %v48 = vlaneseq
  %v49 = vshrl.u32 %v48, 7
  %v50 = vsub.s32 0, %v49
  %v51 = vrot.slane %v46, %v50
  %v69 = vunpack.c.l.b16 %v30
  %v70 = vunpack.c.l.b16 %v31
  %v71 = vunpack.c.l.b16 %v32
  %v72 = vunpack.c.l.b16 %v33
  %v73 = vunpack.c.l.b16 %v34
  %v74 = vunpack.c.l.b16 %v35
  %v75 = vunpack.c.l.b16 %v36
  %v76 = vunpack.c.l.b16 %v37
  %v77 = vunpack.c.l.b16 %v38
  %v78 = vunpack.c.l.b16 %v39
  %v79 = vunpack.c.l.b16 %v40
  %v80 = vunpack.c.l.b16 %v41
  %v81 = vunpack.c.l.b16 %v42
  %v82 = vunpack.c.l.b16 %v43
  %v83 = vunpack.c.l.b16 %v44
  %v84 = vunpack.c.l.b16 %v45
  %v85 = vpack.c.b16 %v70, %v69
  %v86 = vpack.c.b16 %v72, %v71
  %v87 = vpack.c.b16 %v74, %v73
  %v88 = vpack.c.b16 %v76, %v75
  %v89 = vpack.c.b16 %v78, %v77
  %v90 = vpack.c.b16 %v80, %v79
  %v91 = vpack.c.b16 %v82, %v81
  %v92 = vpack.c.b16 %v84, %v83
  %101 = vmatprep.subr.bf16.mxu0 0
  %102 = vmatpush1.bf16.msra.mxu0 %v85
  %103 = vmatprep.subr.bf16.mxu0 0
  %104 = vmatpush1.bf16.msra.mxu0 %v86
  %105 = vmatprep.subr.bf16.mxu0 0
  %106 = vmatpush1.bf16.msra.mxu0 %v87
  %107 = vmatprep.subr.bf16.mxu0 0
  %108 = vmatpush1.bf16.msra.mxu0 %v88
  %109 = vmatprep.subr.bf16.mxu0 0
  %110 = vmatpush1.bf16.msra.mxu0 %v89
  %111 = vmatprep.subr.bf16.mxu0 0
  %112 = vmatpush1.bf16.msra.mxu0 %v90
  %113 = vmatprep.subr.bf16.mxu0 0
  %114 = vmatpush1.bf16.msra.mxu0 %v91
  %115 = vmatprep.subr.bf16.mxu0 0
  %116 = vmatpush1.bf16.msra.mxu0 %v92
  %117 = vmatprep.subr.bf16.mxu0 0
  %118 = vmatpush1.bf16.msra.mxu0 0
  %119 = vmatprep.subr.bf16.mxu0 0
  %120 = vmatpush1.bf16.msra.mxu0 0
  %121 = vmatprep.subr.bf16.mxu0 0
  %122 = vmatpush1.bf16.msra.mxu0 0
  %123 = vmatprep.subr.bf16.mxu0 0
  %124 = vmatpush1.bf16.msra.mxu0 0
  %125 = vmatprep.subr.bf16.mxu0 0
  %126 = vmatpush1.bf16.msra.mxu0 0
  %127 = vmatprep.subr.bf16.mxu0 0
  %128 = vmatpush1.bf16.msra.mxu0 0
  %129 = vmatprep.subr.bf16.mxu0 0
  %130 = vmatpush1.bf16.msra.mxu0 0
  %131 = vmatprep.subr.bf16.mxu0 0
  %132 = vmatpush1.bf16.msra.mxu0 0
  %133 = vmatprep.mubr.bf16.mxu0 0
  %134 = vmatmul.mubr.bf16.gmra.mrb[0].mxu0 %v29
  %v135 = vpop.f32.mrb[0].mxu0
  %v136 = vadd.f32 %v51, %v135
  %v137 = vpop.f32.mrb[0].mxu0
  %v138 = vpop.f32.mrb[0].mxu0
  %v139 = vadd.f32 %v51, %v138
  %v140 = vpop.f32.mrb[0].mxu0
  %141 = vdwg.mxu0
  %v142 = vmax.f32 %v136, 0.0
  %v143 = vmax.f32 %v139, 0.0
  %v144 = vpack.c.bf16 %v143, %v142
  %v145 = vld [vmem:[%s3] sm:$0xf]
  %v146 = vld [vmem:[%s3 + $0x4] sm:$0xf]
  %v147 = vld [vmem:[%s3 + $0x8] sm:$0xf]
  %v148 = vld [vmem:[%s3 + $0xc] sm:$0xf]
  %v149 = vld [vmem:[%s3 + $0x10] sm:$0xf]
  %v150 = vld [vmem:[%s3 + $0x14] sm:$0xf]
  %v151 = vld [vmem:[%s3 + $0x18] sm:$0xf]
  %v152 = vld [vmem:[%s3 + $0x1c] sm:$0xf]
  %v153 = vld [vmem:[%s3 + $0x20] sm:$0xf]
  %v154 = vld [vmem:[%s3 + $0x24] sm:$0xf]
  %v155 = vld [vmem:[%s3 + $0x28] sm:$0xf]
  %v156 = vld [vmem:[%s3 + $0x2c] sm:$0xf]
  %v157 = vld [vmem:[%s3 + $0x30] sm:$0xf]
  %v158 = vld [vmem:[%s3 + $0x34] sm:$0xf]
  %v159 = vld [vmem:[%s3 + $0x38] sm:$0xf]
  %v160 = vld [vmem:[%s3 + $0x3c] sm:$0xf]
  %v161 = vld [vmem:[%s4] sm:$0x1]
  %v163 = vlaneseq
  %v164 = vshrl.u32 %v163, 7
  %v165 = vsub.s32 0, %v164
  %v166 = vrot.slane %v161, %v165
  %v184 = vunpack.c.l.b16 %v145
  %v185 = vunpack.c.l.b16 %v146
  %v186 = vunpack.c.l.b16 %v147
  %v187 = vunpack.c.l.b16 %v148
  %v188 = vunpack.c.l.b16 %v149
  %v189 = vunpack.c.l.b16 %v150
  %v190 = vunpack.c.l.b16 %v151
  %v191 = vunpack.c.l.b16 %v152
  %v192 = vunpack.c.l.b16 %v153
  %v193 = vunpack.c.l.b16 %v154
  %v194 = vunpack.c.l.b16 %v155
  %v195 = vunpack.c.l.b16 %v156
  %v196 = vunpack.c.l.b16 %v157
  %v197 = vunpack.c.l.b16 %v158
  %v198 = vunpack.c.l.b16 %v159
  %v199 = vunpack.c.l.b16 %v160
  %v200 = vpack.c.b16 %v185, %v184
  %v201 = vpack.c.b16 %v187, %v186
  %v202 = vpack.c.b16 %v189, %v188
  %v203 = vpack.c.b16 %v191, %v190
  %v204 = vpack.c.b16 %v193, %v192
  %v205 = vpack.c.b16 %v195, %v194
  %v206 = vpack.c.b16 %v197, %v196
  %v207 = vpack.c.b16 %v199, %v198
  %216 = vmatprep.subr.bf16.mxu0 0
  %217 = vmatpush1.bf16.msra.mxu0 %v200
  %218 = vmatprep.subr.bf16.mxu0 0
  %219 = vmatpush1.bf16.msra.mxu0 %v201
  %220 = vmatprep.subr.bf16.mxu0 0
  %221 = vmatpush1.bf16.msra.mxu0 %v202
  %222 = vmatprep.subr.bf16.mxu0 0
  %223 = vmatpush1.bf16.msra.mxu0 %v203
  %224 = vmatprep.subr.bf16.mxu0 0
  %225 = vmatpush1.bf16.msra.mxu0 %v204
  %226 = vmatprep.subr.bf16.mxu0 0
  %227 = vmatpush1.bf16.msra.mxu0 %v205
  %228 = vmatprep.subr.bf16.mxu0 0
  %229 = vmatpush1.bf16.msra.mxu0 %v206
  %230 = vmatprep.subr.bf16.mxu0 0
  %231 = vmatpush1.bf16.msra.mxu0 %v207
  %232 = vmatprep.subr.bf16.mxu0 0
  %233 = vmatpush1.bf16.msra.mxu0 0
  %234 = vmatprep.subr.bf16.mxu0 0
  %235 = vmatpush1.bf16.msra.mxu0 0
  %236 = vmatprep.subr.bf16.mxu0 0
  %237 = vmatpush1.bf16.msra.mxu0 0
  %238 = vmatprep.subr.bf16.mxu0 0
  %239 = vmatpush1.bf16.msra.mxu0 0
  %240 = vmatprep.subr.bf16.mxu0 0
  %241 = vmatpush1.bf16.msra.mxu0 0
  %242 = vmatprep.subr.bf16.mxu0 0
  %243 = vmatpush1.bf16.msra.mxu0 0
  %244 = vmatprep.subr.bf16.mxu0 0
  %245 = vmatpush1.bf16.msra.mxu0 0
  %246 = vmatprep.subr.bf16.mxu0 0
  %247 = vmatpush1.bf16.msra.mxu0 0
  %248 = vmatprep.mubr.bf16.mxu0 0
  %249 = vmatmul.mubr.bf16.gmra.mrb[0].mxu0 %v144
  %v250 = vpop.f32.mrb[0].mxu0
  %v251 = vadd.f32 %v166, %v250
  %v252 = vpop.f32.mrb[0].mxu0
  %v253 = vpop.f32.mrb[0].mxu0
  %v254 = vadd.f32 %v166, %v253
  %v255 = vpop.f32.mrb[0].mxu0
  %256 = vdwg.mxu0
  %v257 = vadd.f32 %v27, %v251
  %v258 = vadd.f32 %v28, %v254
  %259 = vadd.xlane.f32.xlu0 %v257
  %v260 = vpop.xlane.xlu0 %259
  %261 = vadd.xlane.f32.xlu0 %v258
  %v262 = vpop.xlane.xlu0 %261
  %v263 = vrcp.pop 128.0
  %v264 = vmul.f32 %v260, %v263
  %v265 = vmul.f32 %v262, %v263
  %v266 = vsub.f32 %v257, %v264
  %v267 = vsub.f32 %v258, %v265
  %v268 = vmul.f32 %v266, %v266
  %v269 = vmul.f32 %v267, %v267
  %270 = vadd.xlane.f32.xlu0 %v268
  %v271 = vpop.xlane.xlu0 %270
  %272 = vadd.xlane.f32.xlu0 %v269
  %v273 = vpop.xlane.xlu0 %272
  %v274 = vmul.f32 %v271, %v263
  %v275 = vmul.f32 %v273, %v263
  %v276 = vadd.f32 %v274, 1e-05
  %v277 = vadd.f32 %v275, 1e-05
  %v278 = vrsqrt.pop %v276
  %v279 = vrsqrt.pop %v277
  %v280 = vmul.f32 %v266, %v278
  %v281 = vmul.f32 %v267, %v279
  %v282 = vld [vmem:[%s5] sm:$0x1]
  %v284 = vlaneseq
  %v285 = vshrl.u32 %v284, 7
  %v286 = vsub.s32 0, %v285
  %v287 = vrot.slane %v282, %v286
  %v289 = vmul.f32 %v280, %v287
  %v290 = vmul.f32 %v281, %v287
  %v291 = vld [vmem:[%s6] sm:$0x1]
  %v293 = vlaneseq
  %v294 = vshrl.u32 %v293, 7
  %v295 = vsub.s32 0, %v294
  %v296 = vrot.slane %v291, %v295
  %v298 = vadd.f32 %v289, %v296
  %v299 = vadd.f32 %v290, %v296
  %300 = vst [vmem:[%s7] sm:$0xff] %v298
  %301 = vst [vmem:[%s7 + $0x8] sm:$0xff] %v299
  // Predicated region
  $region30: #{transformer_forward.14} parent=0 // pred_check
    _
  $region31: #{transformer_forward.14} parent=0 // pred_check_branch
    %303 = sbr.rel (0) target = $region33
  $region32: #{transformer_forward.14} parent=0 // pred_region
    _
  $region33: #{transformer_forward.14} parent=0 // pred_fallthru
    _
  // Predicated region
  $region34: #{transformer_forward.14} parent=0 // pred_check
    _
  $region35: #{transformer_forward.14} parent=0 // pred_check_branch
    %305 = sbr.rel (0) target = $region37
  $region36: #{transformer_forward.14} parent=0 // pred_region
    _
  $region37: #{transformer_forward.14} parent=0 // pred_fallthru
    _

// kernel: transformer_forward.18
$region0: #{transformer_forward.18}
  #allocation0 [shape = 'u32[]', space=smem, size = 0x4, offset = 0x4, fixed_abs, tag = 'smem constant byte address 0x4 - core index']
  #allocation1 [shape = 'u32[144,128]{1,0:T(1,128)}', space=vmem, size = 0x12000, scoped, tag = 'internal scratch']
  %s0 = inlined_call_operand.vmem [shape: f32[2,8,128], index: 0, kind: input, shape index: {}]
  %s1 = inlined_call_operand.vmem [shape: bf16[128,384], index: 1, kind: input, shape index: {}]
  %s2 = inlined_call_operand.vmem [shape: f32[1,384], index: 2, kind: input, shape index: {}]
  %s3 = inlined_call_operand.vmem [shape: bf16[128,128], index: 3, kind: input, shape index: {}]
  %s4 = inlined_call_operand.vmem [shape: f32[1,128], index: 4, kind: input, shape index: {}]
  %s5 = inlined_call_operand.vmem [shape: f32[1,128], index: 5, kind: input, shape index: {}]
  %s6 = inlined_call_operand.vmem [shape: f32[1,128], index: 6, kind: input, shape index: {}]
  %s7 = inlined_call_operand.vmem [shape: f32[2,8,128], index: 7, kind: output, shape index: {}]
  %s8 = sld [smem:[#allocation0]]
  $region38: #{transformer_forward.18} parent=0
    _
  %s10 = ssub.s32 1, %s8
  %s11 = scalar_select 0, %s10, %s8
  // Predicated region
  $region2: #{transformer_forward.18} parent=0 // pred_check
    _
  $region3: #{transformer_forward.18} parent=0 // pred_check_branch
    %13 = sbr.rel (0) target = $region5
  $region4: #{transformer_forward.18} parent=0 // pred_region
    _
  $region5: #{transformer_forward.18} parent=0 // pred_fallthru
    _
  // Predicated region
  $region6: #{transformer_forward.18} parent=0 // pred_check
    _
  $region7: #{transformer_forward.18} parent=0 // pred_check_branch
    %15 = sbr.rel (0) target = $region9
  $region8: #{transformer_forward.18} parent=0 // pred_region
    _
  $region9: #{transformer_forward.18} parent=0 // pred_fallthru
    _
  // Predicated region
  $region10: #{transformer_forward.18} parent=0 // pred_check
    _
  $region11: #{transformer_forward.18} parent=0 // pred_check_branch
    %17 = sbr.rel (0) target = $region13
  $region12: #{transformer_forward.18} parent=0 // pred_region
    _
  $region13: #{transformer_forward.18} parent=0 // pred_fallthru
    _
  // Predicated region
  $region14: #{transformer_forward.18} parent=0 // pred_check
    _
  $region15: #{transformer_forward.18} parent=0 // pred_check_branch
    %19 = sbr.rel (0) target = $region17
  $region16: #{transformer_forward.18} parent=0 // pred_region
    _
  $region17: #{transformer_forward.18} parent=0 // pred_fallthru
    _
  // Predicated region
  $region18: #{transformer_forward.18} parent=0 // pred_check
    _
  $region19: #{transformer_forward.18} parent=0 // pred_check_branch
    %21 = sbr.rel (0) target = $region21
  $region20: #{transformer_forward.18} parent=0 // pred_region
    _
  $region21: #{transformer_forward.18} parent=0 // pred_fallthru
    _
  // Predicated region
  $region22: #{transformer_forward.18} parent=0 // pred_check
    _
  $region23: #{transformer_forward.18} parent=0 // pred_check_branch
    %23 = sbr.rel (0) target = $region25
  $region24: #{transformer_forward.18} parent=0 // pred_region
    _
  $region25: #{transformer_forward.18} parent=0 // pred_fallthru
    _
  // Predicated region
  $region26: #{transformer_forward.18} parent=0 // pred_check
    _
  $region27: #{transformer_forward.18} parent=0 // pred_check_branch
    %25 = sbr.rel (0) target = $region29
  $region28: #{transformer_forward.18} parent=0 // pred_region
    _
  $region29: #{transformer_forward.18} parent=0 // pred_fallthru
    _
  %v27 = vld [vmem:[%s0] sm:$0xff]
  %v28 = vld [vmem:[%s0 + $0x8] sm:$0xff]
  %v29 = vpack.c.bf16 %v28, %v27
  %v30 = vld [vmem:[%s1] sm:$0xff]
  %v31 = vld [vmem:[%s1 + $0x8] sm:$0xf]
  %v32 = vld [vmem:[%s1 + $0xc] sm:$0xff]
  %v33 = vld [vmem:[%s1 + $0x14] sm:$0xf]
  %v34 = vld [vmem:[%s1 + $0x18] sm:$0xff]
  %v35 = vld [vmem:[%s1 + $0x20] sm:$0xf]
  %v36 = vld [vmem:[%s1 + $0x24] sm:$0xff]
  %v37 = vld [vmem:[%s1 + $0x2c] sm:$0xf]
  %v38 = vld [vmem:[%s1 + $0x30] sm:$0xff]
  %v39 = vld [vmem:[%s1 + $0x38] sm:$0xf]
  %v40 = vld [vmem:[%s1 + $0x3c] sm:$0xff]
  %v41 = vld [vmem:[%s1 + $0x44] sm:$0xf]
  %v42 = vld [vmem:[%s1 + $0x48] sm:$0xff]
  %v43 = vld [vmem:[%s1 + $0x50] sm:$0xf]
  %v44 = vld [vmem:[%s1 + $0x54] sm:$0xff]
  %v45 = vld [vmem:[%s1 + $0x5c] sm:$0xf]
  %v46 = vld [vmem:[%s1 + $0x60] sm:$0xff]
  %v47 = vld [vmem:[%s1 + $0x68] sm:$0xf]
  %v48 = vld [vmem:[%s1 + $0x6c] sm:$0xff]
  %v49 = vld [vmem:[%s1 + $0x74] sm:$0xf]
  %v50 = vld [vmem:[%s1 + $0x78] sm:$0xff]
  %v51 = vld [vmem:[%s1 + $0x80] sm:$0xf]
  %v52 = vld [vmem:[%s1 + $0x84] sm:$0xff]
  %v53 = vld [vmem:[%s1 + $0x8c] sm:$0xf]
  %v54 = vld [vmem:[%s1 + $0x90] sm:$0xff]
  %v55 = vld [vmem:[%s1 + $0x98] sm:$0xf]
  %v56 = vld [vmem:[%s1 + $0x9c] sm:$0xff]
  %v57 = vld [vmem:[%s1 + $0xa4] sm:$0xf]
  %v58 = vld [vmem:[%s1 + $0xa8] sm:$0xff]
  %v59 = vld [vmem:[%s1 + $0xb0] sm:$0xf]
  %v60 = vld [vmem:[%s1 + $0xb4] sm:$0xff]
  %v61 = vld [vmem:[%s1 + $0xbc] sm:$0xf]
  %v62 = vld [vmem:[%s2] sm:$0x7]
  %v64 = vlaneseq
  %v65 = vshrl.u32 %v64, 7
  %v66 = vsub.s32 0, %v65
  %v67 = vrot.slane %v62, %v66
  %v68 = vlaneseq
  %v69 = vshrl.u32 %v68, 7
  %v70 = vsub.s32 1, %v69
  %v71 = vrot.slane %v62, %v70
  %v72 = vlaneseq
  %v73 = vshrl.u32 %v72, 7
  %v74 = vsub.s32 2, %v73
  %v75 = vrot.slane %v62, %v74
  %v111 = vunpack.c.l.b16 %v30
  %v112 = vunpack.c.h.b16 %v30
  %v113 = vunpack.c.l.b16 %v31
  %v114 = vunpack.c.l.b16 %v32
  %v115 = vunpack.c.h.b16 %v32
  %v116 = vunpack.c.l.b16 %v33
  %v117 = vunpack.c.l.b16 %v34
  %v118 = vunpack.c.h.b16 %v34
  %v119 = vunpack.c.l.b16 %v35
  %v120 = vunpack.c.l.b16 %v36
  %v121 = vunpack.c.h.b16 %v36
  %v122 = vunpack.c.l.b16 %v37
  %v123 = vunpack.c.l.b16 %v38
  %v124 = vunpack.c.h.b16 %v38
  %v125 = vunpack.c.l.b16 %v39
  %v126 = vunpack.c.l.b16 %v40
  %v127 = vunpack.c.h.b16 %v40
  %v128 = vunpack.c.l.b16 %v41
  %v129 = vunpack.c.l.b16 %v42
  %v130 = vunpack.c.h.b16 %v42
  %v131 = vunpack.c.l.b16 %v43
  %v132 = vunpack.c.l.b16 %v44
  %v133 = vunpack.c.h.b16 %v44
  %v134 = vunpack.c.l.b16 %v45
  %v135 = vunpack.c.l.b16 %v46
  %v136 = vunpack.c.h.b16 %v46
  %v137 = vunpack.c.l.b16 %v47
  %v138 = vunpack.c.l.b16 %v48
  %v139 = vunpack.c.h.b16 %v48
  %v140 = vunpack.c.l.b16 %v49
  %v141 = vunpack.c.l.b16 %v50
  %v142 = vunpack.c.h.b16 %v50
  %v143 = vunpack.c.l.b16 %v51
  %v144 = vunpack.c.l.b16 %v52
  %v145 = vunpack.c.h.b16 %v52
  %v146 = vunpack.c.l.b16 %v53
  %v147 = vunpack.c.l.b16 %v54
  %v148 = vunpack.c.h.b16 %v54
  %v149 = vunpack.c.l.b16 %v55
  %v150 = vunpack.c.l.b16 %v56
  %v151 = vunpack.c.h.b16 %v56
  %v152 = vunpack.c.l.b16 %v57
  %v153 = vunpack.c.l.b16 %v58
  %v154 = vunpack.c.h.b16 %v58
  %v155 = vunpack.c.l.b16 %v59
  %v156 = vunpack.c.l.b16 %v60
  %v157 = vunpack.c.h.b16 %v60
  %v158 = vunpack.c.l.b16 %v61
  %v159 = vpack.c.b16 %v114, %v111
  %v160 = vpack.c.b16 %v115, %v112
  %v161 = vpack.c.b16 %v116, %v113
  %v162 = vpack.c.b16 %v120, %v117
  %v163 = vpack.c.b16 %v121, %v118
  %v164 = vpack.c.b16 %v122, %v119
  %v165 = vpack.c.b16 %v126, %v123
  %v166 = vpack.c.b16 %v127, %v124
  %v167 = vpack.c.b16 %v128, %v125
  %v168 = vpack.c.b16 %v132, %v129
  %v169 = vpack.c.b16 %v133, %v130
  %v170 = vpack.c.b16 %v134, %v131
  %v171 = vpack.c.b16 %v138, %v135
  %v172 = vpack.c.b16 %v139, %v136
  %v173 = vpack.c.b16 %v140, %v137
  %v174 = vpack.c.b16 %v144, %v141
  %v175 = vpack.c.b16 %v145, %v142
  %v176 = vpack.c.b16 %v146, %v143
  %v177 = vpack.c.b16 %v150, %v147
  %v178 = vpack.c.b16 %v151, %v148
  %v179 = vpack.c.b16 %v152, %v149
  %v180 = vpack.c.b16 %v156, %v153
  %v181 = vpack.c.b16 %v157, %v154
  %v182 = vpack.c.b16 %v158, %v155
  %207 = vmatprep.subr.bf16.mxu0 %v160
  %208 = vmatpush1.bf16.msra.mxu0 %v159
  %209 = vmatprep.subr.bf16.mxu0 %v163
  %210 = vmatpush1.bf16.msra.mxu0 %v162
  %211 = vmatprep.subr.bf16.mxu0 %v166
  %212 = vmatpush1.bf16.msra.mxu0 %v165
  %213 = vmatprep.subr.bf16.mxu0 %v169
  %214 = vmatpush1.bf16.msra.mxu0 %v168
  %215 = vmatprep.subr.bf16.mxu0 %v172
  %216 = vmatpush1.bf16.msra.mxu0 %v171
  %217 = vmatprep.subr.bf16.mxu0 %v175
  %218 = vmatpush1.bf16.msra.mxu0 %v174
  %219 = vmatprep.subr.bf16.mxu0 %v178
  %220 = vmatpush1.bf16.msra.mxu0 %v177
  %221 = vmatprep.subr.bf16.mxu0 %v181
  %222 = vmatpush1.bf16.msra.mxu0 %v180
  %223 = vmatprep.subr.bf16.mxu0 0
  %224 = vmatpush1.bf16.msra.mxu0 0
  %225 = vmatprep.subr.bf16.mxu0 0
  %226 = vmatpush1.bf16.msra.mxu0 0
  %227 = vmatprep.subr.bf16.mxu0 0
  %228 = vmatpush1.bf16.msra.mxu0 0
  %229 = vmatprep.subr.bf16.mxu0 0
  %230 = vmatpush1.bf16.msra.mxu0 0
  %231 = vmatprep.subr.bf16.mxu0 0
  %232 = vmatpush1.bf16.msra.mxu0 0
  %233 = vmatprep.subr.bf16.mxu0 0
  %234 = vmatpush1.bf16.msra.mxu0 0
  %235 = vmatprep.subr.bf16.mxu0 0
  %236 = vmatpush1.bf16.msra.mxu0 0
  %237 = vmatprep.subr.bf16.mxu0 0
  %238 = vmatpush1.bf16.msra.mxu0 0
  %239 = vmatprep.mubr.bf16.mxu0 0
  %240 = vmatmul.mubr.bf16.gmra.mrb[0].mxu0 %v29
  %v241 = vpop.f32.mrb[0].mxu0
  %v242 = vadd.f32 %v67, %v241
  %v243 = vpop.f32.mrb[0].mxu0
  %v244 = vadd.f32 %v71, %v243
  %v245 = vpop.f32.mrb[0].mxu0
  %v246 = vadd.f32 %v67, %v245
  %v247 = vpop.f32.mrb[0].mxu0
  %v248 = vadd.f32 %v71, %v247
  %249 = vdwg.mxu0
  %250 = vmatprep.subr.bf16.mxu0 0
  %251 = vmatpush1.bf16.msra.mxu0 %v161
  %252 = vmatprep.subr.bf16.mxu0 0
  %253 = vmatpush1.bf16.msra.mxu0 %v164
  %254 = vmatprep.subr.bf16.mxu0 0
  %255 = vmatpush1.bf16.msra.mxu0 %v167
  %256 = vmatprep.subr.bf16.mxu0 0
  %257 = vmatpush1.bf16.msra.mxu0 %v170
  %258 = vmatprep.subr.bf16.mxu0 0
  %259 = vmatpush1.bf16.msra.mxu0 %v173
  %260 = vmatprep.subr.bf16.mxu0 0
  %261 = vmatpush1.bf16.msra.mxu0 %v176
  %262 = vmatprep.subr.bf16.mxu0 0
  %263 = vmatpush1.bf16.msra.mxu0 %v179
  %264 = vmatprep.subr.bf16.mxu0 0
  %265 = vmatpush1.bf16.msra.mxu0 %v182
  %266 = vmatprep.subr.bf16.mxu0 0
  %267 = vmatpush1.bf16.msra.mxu0 0
  %268 = vmatprep.subr.bf16.mxu0 0
  %269 = vmatpush1.bf16.msra.mxu0 0
  %270 = vmatprep.subr.bf16.mxu0 0
  %271 = vmatpush1.bf16.msra.mxu0 0
  %272 = vmatprep.subr.bf16.mxu0 0
  %273 = vmatpush1.bf16.msra.mxu0 0
  %274 = vmatprep.subr.bf16.mxu0 0
  %275 = vmatpush1.bf16.msra.mxu0 0
  %276 = vmatprep.subr.bf16.mxu0 0
  %277 = vmatpush1.bf16.msra.mxu0 0
  %278 = vmatprep.subr.bf16.mxu0 0
  %279 = vmatpush1.bf16.msra.mxu0 0
  %280 = vmatprep.subr.bf16.mxu0 0
  %281 = vmatpush1.bf16.msra.mxu0 0
  %282 = vmatprep.mubr.bf16.mxu0 0
  %283 = vmatmul.mubr.bf16.gmra.mrb[0].mxu0 %v29
  %v284 = vpop.f32.mrb[0].mxu0
  %v285 = vadd.f32 %v75, %v284
  %v286 = vpop.f32.mrb[0].mxu0
  %v287 = vpop.f32.mrb[0].mxu0
  %v288 = vadd.f32 %v75, %v287
  %v289 = vpop.f32.mrb[0].mxu0
  %290 = vdwg.mxu0
  %v291 = vlaneseq
  %v292 = vshrl.u32 %v291, 7
  %v293 = vlaneseq
  %v294 = vand.u32 %v293, 127
  %vm295 = vcmp.gt.s32.totalorder %v294, %v292
  %v296 = vsel %vm295, -1e+30, 0.0
  %v297 = vpack.c.bf16 %v242, %v242
  %298 = vxpose.xlu0.b32.start [1/16] %v244, 128
  %299 = vxpose.xlu0.b32.cont [2/16] 0.0, 128
  %300 = vxpose.xlu0.b32.cont [3/16] 0.0, 128
  %301 = vxpose.xlu0.b32.cont [4/16] 0.0, 128
  %302 = vxpose.xlu0.b32.cont [5/16] 0.0, 128
  %303 = vxpose.xlu0.b32.cont [6/16] 0.0, 128
  %304 = vxpose.xlu0.b32.cont [7/16] 0.0, 128
  %305 = vxpose.xlu0.b32.cont [8/16] 0.0, 128
  %306 = vxpose.xlu0.b32.cont [9/16] 0.0, 128
  %307 = vxpose.xlu0.b32.cont [10/16] 0.0, 128
  %308 = vxpose.xlu0.b32.cont [11/16] 0.0, 128
  %309 = vxpose.xlu0.b32.cont [12/16] 0.0, 128
  %310 = vxpose.xlu0.b32.cont [13/16] 0.0, 128
  %311 = vxpose.xlu0.b32.cont [14/16] 0.0, 128
  %312 = vxpose.xlu0.b32.cont [15/16] 0.0, 128
  %313 = vxpose.xlu0.b32.end [16/16] 0.0, 128
  %v314 = vpop.trf.xlu0
  %v315 = vpop.trf.xlu0
  %v316 = vpop.trf.xlu0
  %v317 = vpop.trf.xlu0
  %v318 = vpop.trf.xlu0
  %v319 = vpop.trf.xlu0
  %v320 = vpop.trf.xlu0
  %v321 = vpop.trf.xlu0
  %v322 = vpop.trf.xlu0
  %v323 = vpop.trf.xlu0
  %v324 = vpop.trf.xlu0
  %v325 = vpop.trf.xlu0
  %v326 = vpop.trf.xlu0
  %v327 = vpop.trf.xlu0
  %v328 = vpop.trf.xlu0
  %v329 = vpop.trf.xlu0
  %v330 = vpack.c.bf16 %v315, %v314
  %v331 = vpack.c.bf16 %v317, %v316
  %v332 = vpack.c.bf16 %v319, %v318
  %v333 = vpack.c.bf16 %v321, %v320
  %v334 = vpack.c.bf16 %v323, %v322
  %v335 = vpack.c.bf16 %v325, %v324
  %v336 = vpack.c.bf16 %v327, %v326
  %v337 = vpack.c.bf16 %v329, %v328
  %v338 = vpack.c.bf16 %v285, %v285
  %vm339 = vcmask 261120
  %v341 = vsel %vm339, %v297, 0
  %343 = vmatprep.subr.bf16.mxu0 0
  %344 = vmatpush1.bf16.msra.mxu0 %v330
  %345 = vmatprep.subr.bf16.mxu0 0
  %346 = vmatpush1.bf16.msra.mxu0 %v331
  %347 = vmatprep.subr.bf16.mxu0 0
  %348 = vmatpush1.bf16.msra.mxu0 0
  %349 = vmatprep.subr.bf16.mxu0 0
  %350 = vmatpush1.bf16.msra.mxu0 0
  %351 = vmatprep.subr.bf16.mxu0 0
  %352 = vmatpush1.bf16.msra.mxu0 0
  %353 = vmatprep.subr.bf16.mxu0 0
  %354 = vmatpush1.bf16.msra.mxu0 0
  %355 = vmatprep.subr.bf16.mxu0 0
  %356 = vmatpush1.bf16.msra.mxu0 0
  %357 = vmatprep.subr.bf16.mxu0 0
  %358 = vmatpush1.bf16.msra.mxu0 0
  %359 = vmatprep.subr.bf16.mxu0 0
  %360 = vmatpush1.bf16.msra.mxu0 0
  %361 = vmatprep.subr.bf16.mxu0 0
  %362 = vmatpush1.bf16.msra.mxu0 0
  %363 = vmatprep.subr.bf16.mxu0 0
  %364 = vmatpush1.bf16.msra.mxu0 0
  %365 = vmatprep.subr.bf16.mxu0 0
  %366 = vmatpush1.bf16.msra.mxu0 0
  %367 = vmatprep.subr.bf16.mxu0 0
  %368 = vmatpush1.bf16.msra.mxu0 0
  %369 = vmatprep.subr.bf16.mxu0 0
  %370 = vmatpush1.bf16.msra.mxu0 0
  %371 = vmatprep.subr.bf16.mxu0 0
  %372 = vmatpush1.bf16.msra.mxu0 0
  %373 = vmatprep.subr.bf16.mxu0 0
  %374 = vmatpush1.bf16.msra.mxu0 0
  %375 = vmatprep.mubr.bf16.mxu0 0
  %376 = vmatmul.mubr.bf16.gmra.mrb[0].mxu0 %v341
  %v377 = vpop.f32.mrb[0].mxu0
  %v378 = vadd.f32 %v296, %v377
  %v379 = vpop.f32.mrb[0].mxu0
  %v380 = vpop.f32.mrb[0].mxu0
  %v381 = vpop.f32.mrb[0].mxu0
  %382 = vdwg.mxu0
  %vm383 = vcmask 64512
  %v384 = vsel %vm383, %v378, -inf
  %385 = vmax.xlane.f32.xlu0 %v384
  %v386 = vpop.xlane.xlu0 %385
  %v387 = vsub.f32 %v378, %v386
  %v388 = vmul.f32 %v387, 1.442695
  %v389 = vpow.pop %v388
  %v390 = vsel %vm383, %v389, 0.0
  %391 = vadd.xlane.f32.xlu0 %v390
  %v392 = vpop.xlane.xlu0 %391
  %v393 = vrcp.pop %v392
  %v394 = vmul.f32 %v389, %v393
  %v395 = vpack.c.bf16 %v394, %v394
  %v397 = vsel %vm383, %v395, 0
  %vm399 = vcmask 1043456
  %v401 = vsel %vm399, %v338, 0
  %403 = vmatprep.subr.bf16.mxu0 0
  %404 = vmatpush1.bf16.msra.mxu0 %v401
  %405 = vmatprep.subr.bf16.mxu0 0
  %406 = vmatpush1.bf16.msra.mxu0 0
  %407 = vmatprep.subr.bf16.mxu0 0
  %408 = vmatpush1.bf16.msra.mxu0 0
  %409 = vmatprep.subr.bf16.mxu0 0
  %410 = vmatpush1.bf16.msra.mxu0 0
  %411 = vmatprep.subr.bf16.mxu0 0
  %412 = vmatpush1.bf16.msra.mxu0 0
  %413 = vmatprep.subr.bf16.mxu0 0
  %414 = vmatpush1.bf16.msra.mxu0 0
  %415 = vmatprep.subr.bf16.mxu0 0
  %416 = vmatpush1.bf16.msra.mxu0 0
  %417 = vmatprep.subr.bf16.mxu0 0
  %418 = vmatpush1.bf16.msra.mxu0 0
  %419 = vmatprep.subr.bf16.mxu0 0
  %420 = vmatpush1.bf16.msra.mxu0 0
  %421 = vmatprep.subr.bf16.mxu0 0
  %422 = vmatpush1.bf16.msra.mxu0 0
  %423 = vmatprep.subr.bf16.mxu0 0
  %424 = vmatpush1.bf16.msra.mxu0 0
  %425 = vmatprep.subr.bf16.mxu0 0
  %426 = vmatpush1.bf16.msra.mxu0 0
  %427 = vmatprep.subr.bf16.mxu0 0
  %428 = vmatpush1.bf16.msra.mxu0 0
  %429 = vmatprep.subr.bf16.mxu0 0
  %430 = vmatpush1.bf16.msra.mxu0 0
  %431 = vmatprep.subr.bf16.mxu0 0
  %432 = vmatpush1.bf16.msra.mxu0 0
  %433 = vmatprep.subr.bf16.mxu0 0
  %434 = vmatpush1.bf16.msra.mxu0 0
  %435 = vmatprep.mubr.bf16.mxu0 0
  %436 = vmatmul.mubr.bf16.gmra.mrb[0].mxu0 %v397
  %v437 = vpop.f32.mrb[0].mxu0
  %v438 = vadd.f32 0.0, %v437
  %v439 = vpop.f32.mrb[0].mxu0
  %v440 = vpop.f32.mrb[0].mxu0
  %v441 = vpop.f32.mrb[0].mxu0
  %442 = vdwg.mxu0
  %v443 = vpack.c.bf16 %v438, %v438
  %v444 = vld [vmem:[%s3] sm:$0xf]
  %v445 = vld [vmem:[%s3 + $0x4] sm:$0xf]
  %v446 = vld [vmem:[%s3 + $0x8] sm:$0xf]
  %v447 = vld [vmem:[%s3 + $0xc] sm:$0xf]
  %449 = vrot.lane.b32.xlu0 %v297, 96
  %v450 = vpop.permute.xlu0 %449
  %v452 = vsel %vm339, %v450, 0
  %454 = vmatprep.subr.bf16.mxu0 0
  %455 = vmatpush1.bf16.msra.mxu0 %v332
  %456 = vmatprep.subr.bf16.mxu0 0
  %457 = vmatpush1.bf16.msra.mxu0 %v333
  %458 = vmatprep.subr.bf16.mxu0 0
  %459 = vmatpush1.bf16.msra.mxu0 0
  %460 = vmatprep.subr.bf16.mxu0 0
  %461 = vmatpush1.bf16.msra.mxu0 0
  %462 = vmatprep.subr.bf16.mxu0 0
  %463 = vmatpush1.bf16.msra.mxu0 0
  %464 = vmatprep.subr.bf16.mxu0 0
  %465 = vmatpush1.bf16.msra.mxu0 0
  %466 = vmatprep.subr.bf16.mxu0 0
  %467 = vmatpush1.bf16.msra.mxu0 0
  %468 = vmatprep.subr.bf16.mxu0 0
  %469 = vmatpush1.bf16.msra.mxu0 0
  %470 = vmatprep.subr.bf16.mxu0 0
  %471 = vmatpush1.bf16.msra.mxu0 0
  %472 = vmatprep.subr.bf16.mxu0 0
  %473 = vmatpush1.bf16.msra.mxu0 0
  %474 = vmatprep.subr.bf16.mxu0 0
  %475 = vmatpush1.bf16.msra.mxu0 0
  %476 = vmatprep.subr.bf16.mxu0 0
  %477 = vmatpush1.bf16.msra.mxu0 0
  %478 = vmatprep.subr.bf16.mxu0 0
  %479 = vmatpush1.bf16.msra.mxu0 0
  %480 = vmatprep.subr.bf16.mxu0 0
  %481 = vmatpush1.bf16.msra.mxu0 0
  %482 = vmatprep.subr.bf16.mxu0 0
  %483 = vmatpush1.bf16.msra.mxu0 0
  %484 = vmatprep.subr.bf16.mxu0 0
  %485 = vmatpush1.bf16.msra.mxu0 0
  %486 = vmatprep.mubr.bf16.mxu0 0
  %487 = vmatmul.mubr.bf16.gmra.mrb[0].mxu0 %v452
  %v488 = vpop.f32.mrb[0].mxu0
  %v489 = vadd.f32 %v296, %v488
  %v490 = vpop.f32.mrb[0].mxu0
  %v491 = vpop.f32.mrb[0].mxu0
  %v492 = vpop.f32.mrb[0].mxu0
  %493 = vdwg.mxu0
  %v494 = vsel %vm383, %v489, -inf
  %495 = vmax.xlane.f32.xlu0 %v494
  %v496 = vpop.xlane.xlu0 %495
  %v497 = vsub.f32 %v489, %v496
  %v498 = vmul.f32 %v497, 1.442695
  %v499 = vpow.pop %v498
  %v500 = vsel %vm383, %v499, 0.0
  %501 = vadd.xlane.f32.xlu0 %v500
  %v502 = vpop.xlane.xlu0 %501
  %v503 = vrcp.pop %v502
  %v504 = vmul.f32 %v499, %v503
  %v505 = vpack.c.bf16 %v504, %v504
  %507 = vrot.lane.b32.xlu0 %v338, 96
  %v508 = vpop.permute.xlu0 %507
  %v510 = vsel %vm383, %v505, 0
  %v513 = vsel %vm399, %v508, 0
  %515 = vmatprep.subr.bf16.mxu0 0
  %516 = vmatpush1.bf16.msra.mxu0 %v513
  %517 = vmatprep.subr.bf16.mxu0 0
  %518 = vmatpush1.bf16.msra.mxu0 0
  %519 = vmatprep.subr.bf16.mxu0 0
  %520 = vmatpush1.bf16.msra.mxu0 0
  %521 = vmatprep.subr.bf16.mxu0 0
  %522 = vmatpush1.bf16.msra.mxu0 0
  %523 = vmatprep.subr.bf16.mxu0 0
  %524 = vmatpush1.bf16.msra.mxu0 0
  %525 = vmatprep.subr.bf16.mxu0 0
  %526 = vmatpush1.bf16.msra.mxu0 0
  %527 = vmatprep.subr.bf16.mxu0 0
  %528 = vmatpush1.bf16.msra.mxu0 0
  %529 = vmatprep.subr.bf16.mxu0 0
  %530 = vmatpush1.bf16.msra.mxu0 0
  %531 = vmatprep.subr.bf16.mxu0 0
  %532 = vmatpush1.bf16.msra.mxu0 0
  %533 = vmatprep.subr.bf16.mxu0 0
  %534 = vmatpush1.bf16.msra.mxu0 0
  %535 = vmatprep.subr.bf16.mxu0 0
  %536 = vmatpush1.bf16.msra.mxu0 0
  %537 = vmatprep.subr.bf16.mxu0 0
  %538 = vmatpush1.bf16.msra.mxu0 0
  %539 = vmatprep.subr.bf16.mxu0 0
  %540 = vmatpush1.bf16.msra.mxu0 0
  %541 = vmatprep.subr.bf16.mxu0 0
  %542 = vmatpush1.bf16.msra.mxu0 0
  %543 = vmatprep.subr.bf16.mxu0 0
  %544 = vmatpush1.bf16.msra.mxu0 0
  %545 = vmatprep.subr.bf16.mxu0 0
  %546 = vmatpush1.bf16.msra.mxu0 0
  %547 = vmatprep.mubr.bf16.mxu0 0
  %548 = vmatmul.mubr.bf16.gmra.mrb[0].mxu0 %v510
  %v549 = vpop.f32.mrb[0].mxu0
  %v550 = vadd.f32 0.0, %v549
  %v551 = vpop.f32.mrb[0].mxu0
  %v552 = vpop.f32.mrb[0].mxu0
  %v553 = vpop.f32.mrb[0].mxu0
  %554 = vdwg.mxu0
  %v555 = vpack.c.bf16 %v550, %v550
  %v556 = vld [vmem:[%s3 + $0x10] sm:$0xf]
  %v557 = vld [vmem:[%s3 + $0x14] sm:$0xf]
  %v558 = vld [vmem:[%s3 + $0x18] sm:$0xf]
  %v559 = vld [vmem:[%s3 + $0x1c] sm:$0xf]
  %v564 = vunpack.c.l.b16 %v556
  %v565 = vunpack.c.l.b16 %v557
  %v566 = vunpack.c.l.b16 %v558
  %v567 = vunpack.c.l.b16 %v559
  %v568 = vpack.c.b16 %v565, %v564
  %v569 = vpack.c.b16 %v567, %v566
  %v573 = vsel %vm339, %v555, 0
  %575 = vmatprep.subr.bf16.mxu0 0
  %576 = vmatpush1.bf16.msra.mxu0 %v568
  %577 = vmatprep.subr.bf16.mxu0 0
  %578 = vmatpush1.bf16.msra.mxu0 %v569
  %579 = vmatprep.subr.bf16.mxu0 0
  %580 = vmatpush1.bf16.msra.mxu0 0
  %581 = vmatprep.subr.bf16.mxu0 0
  %582 = vmatpush1.bf16.msra.mxu0 0
  %583 = vmatprep.subr.bf16.mxu0 0
  %584 = vmatpush1.bf16.msra.mxu0 0
  %585 = vmatprep.subr.bf16.mxu0 0
  %586 = vmatpush1.bf16.msra.mxu0 0
  %587 = vmatprep.subr.bf16.mxu0 0
  %588 = vmatpush1.bf16.msra.mxu0 0
  %589 = vmatprep.subr.bf16.mxu0 0
  %590 = vmatpush1.bf16.msra.mxu0 0
  %591 = vmatprep.subr.bf16.mxu0 0
  %592 = vmatpush1.bf16.msra.mxu0 0
  %593 = vmatprep.subr.bf16.mxu0 0
  %594 = vmatpush1.bf16.msra.mxu0 0
  %595 = vmatprep.subr.bf16.mxu0 0
  %596 = vmatpush1.bf16.msra.mxu0 0
  %597 = vmatprep.subr.bf16.mxu0 0
  %598 = vmatpush1.bf16.msra.mxu0 0
  %599 = vmatprep.subr.bf16.mxu0 0
  %600 = vmatpush1.bf16.msra.mxu0 0
  %601 = vmatprep.subr.bf16.mxu0 0
  %602 = vmatpush1.bf16.msra.mxu0 0
  %603 = vmatprep.subr.bf16.mxu0 0
  %604 = vmatpush1.bf16.msra.mxu0 0
  %605 = vmatprep.subr.bf16.mxu0 0
  %606 = vmatpush1.bf16.msra.mxu0 0
  %607 = vmatprep.mubr.bf16.mxu0 0
  %608 = vmatmul.mubr.bf16.gmra.mrb[0].mxu0 %v573
  %v609 = vpop.f32.mrb[0].mxu0
  %v610 = vadd.f32 0.0, %v609
  %v611 = vpop.f32.mrb[0].mxu0
  %v612 = vpop.f32.mrb[0].mxu0
  %v613 = vpop.f32.mrb[0].mxu0
  %614 = vdwg.mxu0
  %v619 = vunpack.c.l.b16 %v444
  %v620 = vunpack.c.l.b16 %v445
  %v621 = vunpack.c.l.b16 %v446
  %v622 = vunpack.c.l.b16 %v447
  %v623 = vpack.c.b16 %v620, %v619
  %v624 = vpack.c.b16 %v622, %v621
  %v628 = vsel %vm339, %v443, 0
  %630 = vmatprep.subr.bf16.mxu0 0
  %631 = vmatpush1.bf16.msra.mxu0 %v623
  %632 = vmatprep.subr.bf16.mxu0 0
  %633 = vmatpush1.bf16.msra.mxu0 %v624
  %634 = vmatprep.subr.bf16.mxu0 0
  %635 = vmatpush1.bf16.msra.mxu0 0
  %636 = vmatprep.subr.bf16.mxu0 0
  %637 = vmatpush1.bf16.msra.mxu0 0
  %638 = vmatprep.subr.bf16.mxu0 0
  %639 = vmatpush1.bf16.msra.mxu0 0
  %640 = vmatprep.subr.bf16.mxu0 0
  %641 = vmatpush1.bf16.msra.mxu0 0
  %642 = vmatprep.subr.bf16.mxu0 0
  %643 = vmatpush1.bf16.msra.mxu0 0
  %644 = vmatprep.subr.bf16.mxu0 0
  %645 = vmatpush1.bf16.msra.mxu0 0
  %646 = vmatprep.subr.bf16.mxu0 0
  %647 = vmatpush1.bf16.msra.mxu0 0
  %648 = vmatprep.subr.bf16.mxu0 0
  %649 = vmatpush1.bf16.msra.mxu0 0
  %650 = vmatprep.subr.bf16.mxu0 0
  %651 = vmatpush1.bf16.msra.mxu0 0
  %652 = vmatprep.subr.bf16.mxu0 0
  %653 = vmatpush1.bf16.msra.mxu0 0
  %654 = vmatprep.subr.bf16.mxu0 0
  %655 = vmatpush1.bf16.msra.mxu0 0
  %656 = vmatprep.subr.bf16.mxu0 0
  %657 = vmatpush1.bf16.msra.mxu0 0
  %658 = vmatprep.subr.bf16.mxu0 0
  %659 = vmatpush1.bf16.msra.mxu0 0
  %660 = vmatprep.subr.bf16.mxu0 0
  %661 = vmatpush1.bf16.msra.mxu0 0
  %662 = vmatprep.mubr.bf16.mxu0 0
  %663 = vmatmul.mubr.bf16.gmra.mrb[0].mxu0 %v628
  %v664 = vpop.f32.mrb[0].mxu0
  %v665 = vadd.f32 %v610, %v664
  %v666 = vpop.f32.mrb[0].mxu0
  %v667 = vpop.f32.mrb[0].mxu0
  %v668 = vpop.f32.mrb[0].mxu0
  %669 = vdwg.mxu0
  %670 = vrot.lane.b32.xlu0 %v297, 64
  %v671 = vpop.permute.xlu0 %670
  %v673 = vsel %vm339, %v671, 0
  %675 = vmatprep.subr.bf16.mxu0 0
  %676 = vmatpush1.bf16.msra.mxu0 %v334
  %677 = vmatprep.subr.bf16.mxu0 0
  %678 = vmatpush1.bf16.msra.mxu0 %v335
  %679 = vmatprep.subr.bf16.mxu0 0
  %680 = vmatpush1.bf16.msra.mxu0 0
  %681 = vmatprep.subr.bf16.mxu0 0
  %682 = vmatpush1.bf16.msra.mxu0 0
  %683 = vmatprep.subr.bf16.mxu0 0
  %684 = vmatpush1.bf16.msra.mxu0 0
  %685 = vmatprep.subr.bf16.mxu0 0
  %686 = vmatpush1.bf16.msra.mxu0 0
  %687 = vmatprep.subr.bf16.mxu0 0
  %688 = vmatpush1.bf16.msra.mxu0 0
  %689 = vmatprep.subr.bf16.mxu0 0
  %690 = vmatpush1.bf16.msra.mxu0 0
  %691 = vmatprep.subr.bf16.mxu0 0
  %692 = vmatpush1.bf16.msra.mxu0 0
  %693 = vmatprep.subr.bf16.mxu0 0
  %694 = vmatpush1.bf16.msra.mxu0 0
  %695 = vmatprep.subr.bf16.mxu0 0
  %696 = vmatpush1.bf16.msra.mxu0 0
  %697 = vmatprep.subr.bf16.mxu0 0
  %698 = vmatpush1.bf16.msra.mxu0 0
  %699 = vmatprep.subr.bf16.mxu0 0
  %700 = vmatpush1.bf16.msra.mxu0 0
  %701 = vmatprep.subr.bf16.mxu0 0
  %702 = vmatpush1.bf16.msra.mxu0 0
  %703 = vmatprep.subr.bf16.mxu0 0
  %704 = vmatpush1.bf16.msra.mxu0 0
  %705 = vmatprep.subr.bf16.mxu0 0
  %706 = vmatpush1.bf16.msra.mxu0 0
  %707 = vmatprep.mubr.bf16.mxu0 0
  %708 = vmatmul.mubr.bf16.gmra.mrb[0].mxu0 %v673
  %v709 = vpop.f32.mrb[0].mxu0
  %v710 = vadd.f32 %v296, %v709
  %v711 = vpop.f32.mrb[0].mxu0
  %v712 = vpop.f32.mrb[0].mxu0
  %v713 = vpop.f32.mrb[0].mxu0
  %714 = vdwg.mxu0
  %v715 = vsel %vm383, %v710, -inf
  %716 = vmax.xlane.f32.xlu0 %v715
  %v717 = vpop.xlane.xlu0 %716
  %v718 = vsub.f32 %v710, %v717
  %v719 = vmul.f32 %v718, 1.442695
  %v720 = vpow.pop %v719
  %v721 = vsel %vm383, %v720, 0.0
  %722 = vadd.xlane.f32.xlu0 %v721
  %v723 = vpop.xlane.xlu0 %722
  %v724 = vrcp.pop %v723
  %v725 = vmul.f32 %v720, %v724
  %v726 = vpack.c.bf16 %v725, %v725
  %727 = vrot.lane.b32.xlu0 %v338, 64
  %v728 = vpop.permute.xlu0 %727
  %v730 = vsel %vm383, %v726, 0
  %v733 = vsel %vm399, %v728, 0
  %735 = vmatprep.subr.bf16.mxu0 0
  %736 = vmatpush1.bf16.msra.mxu0 %v733
  %737 = vmatprep.subr.bf16.mxu0 0
  %738 = vmatpush1.bf16.msra.mxu0 0
  %739 = vmatprep.subr.bf16.mxu0 0
  %740 = vmatpush1.bf16.msra.mxu0 0
  %741 = vmatprep.subr.bf16.mxu0 0
  %742 = vmatpush1.bf16.msra.mxu0 0
  %743 = vmatprep.subr.bf16.mxu0 0
  %744 = vmatpush1.bf16.msra.mxu0 0
  %745 = vmatprep.subr.bf16.mxu0 0
  %746 = vmatpush1.bf16.msra.mxu0 0
  %747 = vmatprep.subr.bf16.mxu0 0
  %748 = vmatpush1.bf16.msra.mxu0 0
  %749 = vmatprep.subr.bf16.mxu0 0
  %750 = vmatpush1.bf16.msra.mxu0 0
  %751 = vmatprep.subr.bf16.mxu0 0
  %752 = vmatpush1.bf16.msra.mxu0 0
  %753 = vmatprep.subr.bf16.mxu0 0
  %754 = vmatpush1.bf16.msra.mxu0 0
  %755 = vmatprep.subr.bf16.mxu0 0
  %756 = vmatpush1.bf16.msra.mxu0 0
  %757 = vmatprep.subr.bf16.mxu0 0
  %758 = vmatpush1.bf16.msra.mxu0 0
  %759 = vmatprep.subr.bf16.mxu0 0
  %760 = vmatpush1.bf16.msra.mxu0 0
  %761 = vmatprep.subr.bf16.mxu0 0
  %762 = vmatpush1.bf16.msra.mxu0 0
  %763 = vmatprep.subr.bf16.mxu0 0
  %764 = vmatpush1.bf16.msra.mxu0 0
  %765 = vmatprep.subr.bf16.mxu0 0
  %766 = vmatpush1.bf16.msra.mxu0 0
  %767 = vmatprep.mubr.bf16.mxu0 0
  %768 = vmatmul.mubr.bf16.gmra.mrb[0].mxu0 %v730
  %v769 = vpop.f32.mrb[0].mxu0
  %v770 = vadd.f32 0.0, %v769
  %v771 = vpop.f32.mrb[0].mxu0
  %v772 = vpop.f32.mrb[0].mxu0
  %v773 = vpop.f32.mrb[0].mxu0
  %774 = vdwg.mxu0
  %v775 = vpack.c.bf16 %v770, %v770
  %v776 = vld [vmem:[%s3 + $0x20] sm:$0xf]
  %v777 = vld [vmem:[%s3 + $0x24] sm:$0xf]
  %v778 = vld [vmem:[%s3 + $0x28] sm:$0xf]
  %v779 = vld [vmem:[%s3 + $0x2c] sm:$0xf]
  %v784 = vunpack.c.l.b16 %v776
  %v785 = vunpack.c.l.b16 %v777
  %v786 = vunpack.c.l.b16 %v778
  %v787 = vunpack.c.l.b16 %v779
  %v788 = vpack.c.b16 %v785, %v784
  %v789 = vpack.c.b16 %v787, %v786
  %v793 = vsel %vm339, %v775, 0
  %795 = vmatprep.subr.bf16.mxu0 0
  %796 = vmatpush1.bf16.msra.mxu0 %v788
  %797 = vmatprep.subr.bf16.mxu0 0
  %798 = vmatpush1.bf16.msra.mxu0 %v789
  %799 = vmatprep.subr.bf16.mxu0 0
  %800 = vmatpush1.bf16.msra.mxu0 0
  %801 = vmatprep.subr.bf16.mxu0 0
  %802 = vmatpush1.bf16.msra.mxu0 0
  %803 = vmatprep.subr.bf16.mxu0 0
  %804 = vmatpush1.bf16.msra.mxu0 0
  %805 = vmatprep.subr.bf16.mxu0 0
  %806 = vmatpush1.bf16.msra.mxu0 0
  %807 = vmatprep.subr.bf16.mxu0 0
  %808 = vmatpush1.bf16.msra.mxu0 0
  %809 = vmatprep.subr.bf16.mxu0 0
  %810 = vmatpush1.bf16.msra.mxu0 0
  %811 = vmatprep.subr.bf16.mxu0 0
  %812 = vmatpush1.bf16.msra.mxu0 0
  %813 = vmatprep.subr.bf16.mxu0 0
  %814 = vmatpush1.bf16.msra.mxu0 0
  %815 = vmatprep.subr.bf16.mxu0 0
  %816 = vmatpush1.bf16.msra.mxu0 0
  %817 = vmatprep.subr.bf16.mxu0 0
  %818 = vmatpush1.bf16.msra.mxu0 0
  %819 = vmatprep.subr.bf16.mxu0 0
  %820 = vmatpush1.bf16.msra.mxu0 0
  %821 = vmatprep.subr.bf16.mxu0 0
  %822 = vmatpush1.bf16.msra.mxu0 0
  %823 = vmatprep.subr.bf16.mxu0 0
  %824 = vmatpush1.bf16.msra.mxu0 0
  %825 = vmatprep.subr.bf16.mxu0 0
  %826 = vmatpush1.bf16.msra.mxu0 0
  %827 = vmatprep.mubr.bf16.mxu0 0
  %828 = vmatmul.mubr.bf16.gmra.mrb[0].mxu0 %v793
  %v829 = vpop.f32.mrb[0].mxu0
  %v830 = vadd.f32 0.0, %v829
  %v831 = vpop.f32.mrb[0].mxu0
  %v832 = vpop.f32.mrb[0].mxu0
  %v833 = vpop.f32.mrb[0].mxu0
  %834 = vdwg.mxu0
  %v835 = vadd.f32 %v665, %v830
  %836 = vrot.lane.b32.xlu0 %v297, 32
  %v837 = vpop.permute.xlu0 %836
  %v839 = vsel %vm339, %v837, 0
  %841 = vmatprep.subr.bf16.mxu0 0
  %842 = vmatpush1.bf16.msra.mxu0 %v336
  %843 = vmatprep.subr.bf16.mxu0 0
  %844 = vmatpush1.bf16.msra.mxu0 %v337
  %845 = vmatprep.subr.bf16.mxu0 0
  %846 = vmatpush1.bf16.msra.mxu0 0
  %847 = vmatprep.subr.bf16.mxu0 0
  %848 = vmatpush1.bf16.msra.mxu0 0
  %849 = vmatprep.subr.bf16.mxu0 0
  %850 = vmatpush1.bf16.msra.mxu0 0
  %851 = vmatprep.subr.bf16.mxu0 0
  %852 = vmatpush1.bf16.msra.mxu0 0
  %853 = vmatprep.subr.bf16.mxu0 0
  %854 = vmatpush1.bf16.msra.mxu0 0
  %855 = vmatprep.subr.bf16.mxu0 0
  %856 = vmatpush1.bf16.msra.mxu0 0
  %857 = vmatprep.subr.bf16.mxu0 0
  %858 = vmatpush1.bf16.msra.mxu0 0
  %859 = vmatprep.subr.bf16.mxu0 0
  %860 = vmatpush1.bf16.msra.mxu0 0
  %861 = vmatprep.subr.bf16.mxu0 0
  %862 = vmatpush1.bf16.msra.mxu0 0
  %863 = vmatprep.subr.bf16.mxu0 0
  %864 = vmatpush1.bf16.msra.mxu0 0
  %865 = vmatprep.subr.bf16.mxu0 0
  %866 = vmatpush1.bf16.msra.mxu0 0
  %867 = vmatprep.subr.bf16.mxu0 0
  %868 = vmatpush1.bf16.msra.mxu0 0
  %869 = vmatprep.subr.bf16.mxu0 0
  %870 = vmatpush1.bf16.msra.mxu0 0
  %871 = vmatprep.subr.bf16.mxu0 0
  %872 = vmatpush1.bf16.msra.mxu0 0
  %873 = vmatprep.mubr.bf16.mxu0 0
  %874 = vmatmul.mubr.bf16.gmra.mrb[0].mxu0 %v839
  %v875 = vpop.f32.mrb[0].mxu0
  %v876 = vadd.f32 %v296, %v875
  %v877 = vpop.f32.mrb[0].mxu0
  %v878 = vpop.f32.mrb[0].mxu0
  %v879 = vpop.f32.mrb[0].mxu0
  %880 = vdwg.mxu0
  %v881 = vsel %vm383, %v876, -inf
  %882 = vmax.xlane.f32.xlu0 %v881
  %v883 = vpop.xlane.xlu0 %882
  %v884 = vsub.f32 %v876, %v883
  %v885 = vmul.f32 %v884, 1.442695
  %v886 = vpow.pop %v885
  %v887 = vsel %vm383, %v886, 0.0
  %888 = vadd.xlane.f32.xlu0 %v887
  %v889 = vpop.xlane.xlu0 %888
  %v890 = vrcp.pop %v889
  %v891 = vmul.f32 %v886, %v890
  %v892 = vpack.c.bf16 %v891, %v891
  %893 = vrot.lane.b32.xlu0 %v338, 32
  %v894 = vpop.permute.xlu0 %893
  %v896 = vsel %vm383, %v892, 0
  %v899 = vsel %vm399, %v894, 0
  %901 = vmatprep.subr.bf16.mxu0 0
  %902 = vmatpush1.bf16.msra.mxu0 %v899
  %903 = vmatprep.subr.bf16.mxu0 0
  %904 = vmatpush1.bf16.msra.mxu0 0
  %905 = vmatprep.subr.bf16.mxu0 0
  %906 = vmatpush1.bf16.msra.mxu0 0
  %907 = vmatprep.subr.bf16.mxu0 0
  %908 = vmatpush1.bf16.msra.mxu0 0
  %909 = vmatprep.subr.bf16.mxu0 0
  %910 = vmatpush1.bf16.msra.mxu0 0
  %911 = vmatprep.subr.bf16.mxu0 0
  %912 = vmatpush1.bf16.msra.mxu0 0
  %913 = vmatprep.subr.bf16.mxu0 0
  %914 = vmatpush1.bf16.msra.mxu0 0
  %915 = vmatprep.subr.bf16.mxu0 0
  %916 = vmatpush1.bf16.msra.mxu0 0
  %917 = vmatprep.subr.bf16.mxu0 0
  %918 = vmatpush1.bf16.msra.mxu0 0
  %919 = vmatprep.subr.bf16.mxu0 0
  %920 = vmatpush1.bf16.msra.mxu0 0
  %921 = vmatprep.subr.bf16.mxu0 0
  %922 = vmatpush1.bf16.msra.mxu0 0
  %923 = vmatprep.subr.bf16.mxu0 0
  %924 = vmatpush1.bf16.msra.mxu0 0
  %925 = vmatprep.subr.bf16.mxu0 0
  %926 = vmatpush1.bf16.msra.mxu0 0
  %927 = vmatprep.subr.bf16.mxu0 0
  %928 = vmatpush1.bf16.msra.mxu0 0
  %929 = vmatprep.subr.bf16.mxu0 0
  %930 = vmatpush1.bf16.msra.mxu0 0
  %931 = vmatprep.subr.bf16.mxu0 0
  %932 = vmatpush1.bf16.msra.mxu0 0
  %933 = vmatprep.mubr.bf16.mxu0 0
  %934 = vmatmul.mubr.bf16.gmra.mrb[0].mxu0 %v896
  %v935 = vpop.f32.mrb[0].mxu0
  %v936 = vadd.f32 0.0, %v935
  %v937 = vpop.f32.mrb[0].mxu0
  %v938 = vpop.f32.mrb[0].mxu0
  %v939 = vpop.f32.mrb[0].mxu0
  %940 = vdwg.mxu0
  %v941 = vpack.c.bf16 %v936, %v936
  %v942 = vld [vmem:[%s3 + $0x30] sm:$0xf]
  %v943 = vld [vmem:[%s3 + $0x34] sm:$0xf]
  %v944 = vld [vmem:[%s3 + $0x38] sm:$0xf]
  %v945 = vld [vmem:[%s3 + $0x3c] sm:$0xf]
  %v950 = vunpack.c.l.b16 %v942
  %v951 = vunpack.c.l.b16 %v943
  %v952 = vunpack.c.l.b16 %v944
  %v953 = vunpack.c.l.b16 %v945
  %v954 = vpack.c.b16 %v951, %v950
  %v955 = vpack.c.b16 %v953, %v952
  %v959 = vsel %vm339, %v941, 0
  %961 = vmatprep.subr.bf16.mxu0 0
  %962 = vmatpush1.bf16.msra.mxu0 %v954
  %963 = vmatprep.subr.bf16.mxu0 0
  %964 = vmatpush1.bf16.msra.mxu0 %v955
  %965 = vmatprep.subr.bf16.mxu0 0
  %966 = vmatpush1.bf16.msra.mxu0 0
  %967 = vmatprep.subr.bf16.mxu0 0
  %968 = vmatpush1.bf16.msra.mxu0 0
  %969 = vmatprep.subr.bf16.mxu0 0
  %970 = vmatpush1.bf16.msra.mxu0 0
  %971 = vmatprep.subr.bf16.mxu0 0
  %972 = vmatpush1.bf16.msra.mxu0 0
  %973 = vmatprep.subr.bf16.mxu0 0
  %974 = vmatpush1.bf16.msra.mxu0 0
  %975 = vmatprep.subr.bf16.mxu0 0
  %976 = vmatpush1.bf16.msra.mxu0 0
  %977 = vmatprep.subr.bf16.mxu0 0
  %978 = vmatpush1.bf16.msra.mxu0 0
  %979 = vmatprep.subr.bf16.mxu0 0
  %980 = vmatpush1.bf16.msra.mxu0 0
  %981 = vmatprep.subr.bf16.mxu0 0
  %982 = vmatpush1.bf16.msra.mxu0 0
  %983 = vmatprep.subr.bf16.mxu0 0
  %984 = vmatpush1.bf16.msra.mxu0 0
  %985 = vmatprep.subr.bf16.mxu0 0
  %986 = vmatpush1.bf16.msra.mxu0 0
  %987 = vmatprep.subr.bf16.mxu0 0
  %988 = vmatpush1.bf16.msra.mxu0 0
  %989 = vmatprep.subr.bf16.mxu0 0
  %990 = vmatpush1.bf16.msra.mxu0 0
  %991 = vmatprep.subr.bf16.mxu0 0
  %992 = vmatpush1.bf16.msra.mxu0 0
  %993 = vmatprep.mubr.bf16.mxu0 0
  %994 = vmatmul.mubr.bf16.gmra.mrb[0].mxu0 %v959
  %v995 = vpop.f32.mrb[0].mxu0
  %v996 = vadd.f32 0.0, %v995
  %v997 = vpop.f32.mrb[0].mxu0
  %v998 = vpop.f32.mrb[0].mxu0
  %v999 = vpop.f32.mrb[0].mxu0
  %1000 = vdwg.mxu0
  %v1001 = vadd.f32 %v835, %v996
  %v1002 = vld [vmem:[%s4] sm:$0x1]
  %v1004 = vlaneseq
  %v1005 = vshrl.u32 %v1004, 7
  %v1006 = vsub.s32 0, %v1005
  %v1007 = vrot.slane %v1002, %v1006
  %v1009 = vadd.f32 %v1001, %v1007
  %v1010 = vadd.f32 %v27, %v1009
  %1011 = vadd.xlane.f32.xlu0 %v1010
  %v1012 = vpop.xlane.xlu0 %1011
  %v1013 = vrcp.pop 128.0
  %v1014 = vmul.f32 %v1012, %v1013
  %v1015 = vsub.f32 %v1010, %v1014
  %v1016 = vmul.f32 %v1015, %v1015
  %1017 = vadd.xlane.f32.xlu0 %v1016
  %v1018 = vpop.xlane.xlu0 %1017
  %v1019 = vmul.f32 %v1018, %v1013
  %v1020 = vadd.f32 %v1019, 1e-05
  %v1021 = vrsqrt.pop %v1020
  %v1022 = vmul.f32 %v1015, %v1021
  %v1023 = vld [vmem:[%s5] sm:$0x1]
  %v1025 = vlaneseq
  %v1026 = vshrl.u32 %v1025, 7
  %v1027 = vsub.s32 0, %v1026
  %v1028 = vrot.slane %v1023, %v1027
  %v1030 = vmul.f32 %v1022, %v1028
  %v1031 = vld [vmem:[%s6] sm:$0x1]
  %v1033 = vlaneseq
  %v1034 = vshrl.u32 %v1033, 7
  %v1035 = vsub.s32 0, %v1034
  %v1036 = vrot.slane %v1031, %v1035
  %v1038 = vadd.f32 %v1030, %v1036
  %1039 = vst [vmem:[%s7] sm:$0xff] %v1038
  %v1040 = vpack.c.bf16 %v246, %v246
  %1041 = vxpose.xlu0.b32.start [1/16] %v248, 128
  %1042 = vxpose.xlu0.b32.cont [2/16] 0.0, 128
  %1043 = vxpose.xlu0.b32.cont [3/16] 0.0, 128
  %1044 = vxpose.xlu0.b32.cont [4/16] 0.0, 128
  %1045 = vxpose.xlu0.b32.cont [5/16] 0.0, 128
  %1046 = vxpose.xlu0.b32.cont [6/16] 0.0, 128
  %1047 = vxpose.xlu0.b32.cont [7/16] 0.0, 128
  %1048 = vxpose.xlu0.b32.cont [8/16] 0.0, 128
  %1049 = vxpose.xlu0.b32.cont [9/16] 0.0, 128
  %1050 = vxpose.xlu0.b32.cont [10/16] 0.0, 128
  %1051 = vxpose.xlu0.b32.cont [11/16] 0.0, 128
  %1052 = vxpose.xlu0.b32.cont [12/16] 0.0, 128
  %1053 = vxpose.xlu0.b32.cont [13/16] 0.0, 128
  %1054 = vxpose.xlu0.b32.cont [14/16] 0.0, 128
  %1055 = vxpose.xlu0.b32.cont [15/16] 0.0, 128
  %1056 = vxpose.xlu0.b32.end [16/16] 0.0, 128
  %v1057 = vpop.trf.xlu0
  %v1058 = vpop.trf.xlu0
  %v1059 = vpop.trf.xlu0
  %v1060 = vpop.trf.xlu0
  %v1061 = vpop.trf.xlu0
  %v1062 = vpop.trf.xlu0
  %v1063 = vpop.trf.xlu0
  %v1064 = vpop.trf.xlu0
  %v1065 = vpop.trf.xlu0
  %v1066 = vpop.trf.xlu0
  %v1067 = vpop.trf.xlu0
  %v1068 = vpop.trf.xlu0
  %v1069 = vpop.trf.xlu0
  %v1070 = vpop.trf.xlu0
  %v1071 = vpop.trf.xlu0
  %v1072 = vpop.trf.xlu0
  %v1073 = vpack.c.bf16 %v1058, %v1057
  %v1074 = vpack.c.bf16 %v1060, %v1059
  %v1075 = vpack.c.bf16 %v1062, %v1061
  %v1076 = vpack.c.bf16 %v1064, %v1063
  %v1077 = vpack.c.bf16 %v1066, %v1065
  %v1078 = vpack.c.bf16 %v1068, %v1067
  %v1079 = vpack.c.bf16 %v1070, %v1069
  %v1080 = vpack.c.bf16 %v1072, %v1071
  %v1081 = vpack.c.bf16 %v288, %v288
  %v1083 = vsel %vm339, %v1040, 0
  %1085 = vmatprep.subr.bf16.mxu0 0
  %1086 = vmatpush1.bf16.msra.mxu0 %v1073
  %1087 = vmatprep.subr.bf16.mxu0 0
  %1088 = vmatpush1.bf16.msra.mxu0 %v1074
  %1089 = vmatprep.subr.bf16.mxu0 0
  %1090 = vmatpush1.bf16.msra.mxu0 0
  %1091 = vmatprep.subr.bf16.mxu0 0
  %1092 = vmatpush1.bf16.msra.mxu0 0
  %1093 = vmatprep.subr.bf16.mxu0 0
  %1094 = vmatpush1.bf16.msra.mxu0 0
  %1095 = vmatprep.subr.bf16.mxu0 0
  %1096 = vmatpush1.bf16.msra.mxu0 0
  %1097 = vmatprep.subr.bf16.mxu0 0
  %1098 = vmatpush1.bf16.msra.mxu0 0
  %1099 = vmatprep.subr.bf16.mxu0 0
  %1100 = vmatpush1.bf16.msra.mxu0 0
  %1101 = vmatprep.subr.bf16.mxu0 0
  %1102 = vmatpush1.bf16.msra.mxu0 0
  %1103 = vmatprep.subr.bf16.mxu0 0
  %1104 = vmatpush1.bf16.msra.mxu0 0
  %1105 = vmatprep.subr.bf16.mxu0 0
  %1106 = vmatpush1.bf16.msra.mxu0 0
  %1107 = vmatprep.subr.bf16.mxu0 0
  %1108 = vmatpush1.bf16.msra.mxu0 0
  %1109 = vmatprep.subr.bf16.mxu0 0
  %1110 = vmatpush1.bf16.msra.mxu0 0
  %1111 = vmatprep.subr.bf16.mxu0 0
  %1112 = vmatpush1.bf16.msra.mxu0 0
  %1113 = vmatprep.subr.bf16.mxu0 0
  %1114 = vmatpush1.bf16.msra.mxu0 0
  %1115 = vmatprep.subr.bf16.mxu0 0
  %1116 = vmatpush1.bf16.msra.mxu0 0
  %1117 = vmatprep.mubr.bf16.mxu0 0
  %1118 = vmatmul.mubr.bf16.gmra.mrb[0].mxu0 %v1083
  %v1119 = vpop.f32.mrb[0].mxu0
  %v1120 = vadd.f32 %v296, %v1119
  %v1121 = vpop.f32.mrb[0].mxu0
  %v1122 = vpop.f32.mrb[0].mxu0
  %v1123 = vpop.f32.mrb[0].mxu0
  %1124 = vdwg.mxu0
  %v1125 = vsel %vm383, %v1120, -inf
  %1126 = vmax.xlane.f32.xlu0 %v1125
  %v1127 = vpop.xlane.xlu0 %1126
  %v1128 = vsub.f32 %v1120, %v1127
  %v1129 = vmul.f32 %v1128, 1.442695
  %v1130 = vpow.pop %v1129
  %v1131 = vsel %vm383, %v1130, 0.0
  %1132 = vadd.xlane.f32.xlu0 %v1131
  %v1133 = vpop.xlane.xlu0 %1132
  %v1134 = vrcp.pop %v1133
  %v1135 = vmul.f32 %v1130, %v1134
  %v1136 = vpack.c.bf16 %v1135, %v1135
  %v1138 = vsel %vm383, %v1136, 0
  %v1141 = vsel %vm399, %v1081, 0
  %1143 = vmatprep.subr.bf16.mxu0 0
  %1144 = vmatpush1.bf16.msra.mxu0 %v1141
  %1145 = vmatprep.subr.bf16.mxu0 0
  %1146 = vmatpush1.bf16.msra.mxu0 0
  %1147 = vmatprep.subr.bf16.mxu0 0
  %1148 = vmatpush1.bf16.msra.mxu0 0
  %1149 = vmatprep.subr.bf16.mxu0 0
  %1150 = vmatpush1.bf16.msra.mxu0 0
  %1151 = vmatprep.subr.bf16.mxu0 0
  %1152 = vmatpush1.bf16.msra.mxu0 0
  %1153 = vmatprep.subr.bf16.mxu0 0
  %1154 = vmatpush1.bf16.msra.mxu0 0
  %1155 = vmatprep.subr.bf16.mxu0 0
  %1156 = vmatpush1.bf16.msra.mxu0 0
  %1157 = vmatprep.subr.bf16.mxu0 0
  %1158 = vmatpush1.bf16.msra.mxu0 0
  %1159 = vmatprep.subr.bf16.mxu0 0
  %1160 = vmatpush1.bf16.msra.mxu0 0
  %1161 = vmatprep.subr.bf16.mxu0 0
  %1162 = vmatpush1.bf16.msra.mxu0 0
  %1163 = vmatprep.subr.bf16.mxu0 0
  %1164 = vmatpush1.bf16.msra.mxu0 0
  %1165 = vmatprep.subr.bf16.mxu0 0
  %1166 = vmatpush1.bf16.msra.mxu0 0
  %1167 = vmatprep.subr.bf16.mxu0 0
  %1168 = vmatpush1.bf16.msra.mxu0 0
  %1169 = vmatprep.subr.bf16.mxu0 0
  %1170 = vmatpush1.bf16.msra.mxu0 0
  %1171 = vmatprep.subr.bf16.mxu0 0
  %1172 = vmatpush1.bf16.msra.mxu0 0
  %1173 = vmatprep.subr.bf16.mxu0 0
  %1174 = vmatpush1.bf16.msra.mxu0 0
  %1175 = vmatprep.mubr.bf16.mxu0 0
  %1176 = vmatmul.mubr.bf16.gmra.mrb[0].mxu0 %v1138
  %v1177 = vpop.f32.mrb[0].mxu0
  %v1178 = vadd.f32 0.0, %v1177
  %v1179 = vpop.f32.mrb[0].mxu0
  %v1180 = vpop.f32.mrb[0].mxu0
  %v1181 = vpop.f32.mrb[0].mxu0
  %1182 = vdwg.mxu0
  %v1183 = vpack.c.bf16 %v1178, %v1178
  %v1184 = vld [vmem:[%s3] sm:$0xf]
  %v1185 = vld [vmem:[%s3 + $0x4] sm:$0xf]
  %v1186 = vld [vmem:[%s3 + $0x8] sm:$0xf]
  %v1187 = vld [vmem:[%s3 + $0xc] sm:$0xf]
  %1189 = vrot.lane.b32.xlu0 %v1040, 96
  %v1190 = vpop.permute.xlu0 %1189
  %v1192 = vsel %vm339, %v1190, 0
  %1194 = vmatprep.subr.bf16.mxu0 0
  %1195 = vmatpush1.bf16.msra.mxu0 %v1075
  %1196 = vmatprep.subr.bf16.mxu0 0
  %1197 = vmatpush1.bf16.msra.mxu0 %v1076
  %1198 = vmatprep.subr.bf16.mxu0 0
  %1199 = vmatpush1.bf16.msra.mxu0 0
  %1200 = vmatprep.subr.bf16.mxu0 0
  %1201 = vmatpush1.bf16.msra.mxu0 0
  %1202 = vmatprep.subr.bf16.mxu0 0
  %1203 = vmatpush1.bf16.msra.mxu0 0
  %1204 = vmatprep.subr.bf16.mxu0 0
  %1205 = vmatpush1.bf16.msra.mxu0 0
  %1206 = vmatprep.subr.bf16.mxu0 0
  %1207 = vmatpush1.bf16.msra.mxu0 0
  %1208 = vmatprep.subr.bf16.mxu0 0
  %1209 = vmatpush1.bf16.msra.mxu0 0
  %1210 = vmatprep.subr.bf16.mxu0 0
  %1211 = vmatpush1.bf16.msra.mxu0 0
  %1212 = vmatprep.subr.bf16.mxu0 0
  %1213 = vmatpush1.bf16.msra.mxu0 0
  %1214 = vmatprep.subr.bf16.mxu0 0
  %1215 = vmatpush1.bf16.msra.mxu0 0
  %1216 = vmatprep.subr.bf16.mxu0 0
  %1217 = vmatpush1.bf16.msra.mxu0 0
  %1218 = vmatprep.subr.bf16.mxu0 0
  %1219 = vmatpush1.bf16.msra.mxu0 0
  %1220 = vmatprep.subr.bf16.mxu0 0
  %1221 = vmatpush1.bf16.msra.mxu0 0
  %1222 = vmatprep.subr.bf16.mxu0 0
  %1223 = vmatpush1.bf16.msra.mxu0 0
  %1224 = vmatprep.subr.bf16.mxu0 0
  %1225 = vmatpush1.bf16.msra.mxu0 0
  %1226 = vmatprep.mubr.bf16.mxu0 0
  %1227 = vmatmul.mubr.bf16.gmra.mrb[0].mxu0 %v1192
  %v1228 = vpop.f32.mrb[0].mxu0
  %v1229 = vadd.f32 %v296, %v1228
  %v1230 = vpop.f32.mrb[0].mxu0
  %v1231 = vpop.f32.mrb[0].mxu0
  %v1232 = vpop.f32.mrb[0].mxu0
  %1233 = vdwg.mxu0
  %v1234 = vsel %vm383, %v1229, -inf
  %1235 = vmax.xlane.f32.xlu0 %v1234
  %v1236 = vpop.xlane.xlu0 %1235
  %v1237 = vsub.f32 %v1229, %v1236
  %v1238 = vmul.f32 %v1237, 1.442695
  %v1239 = vpow.pop %v1238
  %v1240 = vsel %vm383, %v1239, 0.0
  %1241 = vadd.xlane.f32.xlu0 %v1240
  %v1242 = vpop.xlane.xlu0 %1241
  %v1243 = vrcp.pop %v1242
  %v1244 = vmul.f32 %v1239, %v1243
  %v1245 = vpack.c.bf16 %v1244, %v1244
  %1247 = vrot.lane.b32.xlu0 %v1081, 96
  %v1248 = vpop.permute.xlu0 %1247
  %v1250 = vsel %vm383, %v1245, 0
  %v1253 = vsel %vm399, %v1248, 0
  %1255 = vmatprep.subr.bf16.mxu0 0
  %1256 = vmatpush1.bf16.msra.mxu0 %v1253
  %1257 = vmatprep.subr.bf16.mxu0 0
  %1258 = vmatpush1.bf16.msra.mxu0 0
  %1259 = vmatprep.subr.bf16.mxu0 0
  %1260 = vmatpush1.bf16.msra.mxu0 0
  %1261 = vmatprep.subr.bf16.mxu0 0
  %1262 = vmatpush1.bf16.msra.mxu0 0
  %1263 = vmatprep.subr.bf16.mxu0 0
  %1264 = vmatpush1.bf16.msra.mxu0 0
  %1265 = vmatprep.subr.bf16.mxu0 0
  %1266 = vmatpush1.bf16.msra.mxu0 0
  %1267 = vmatprep.subr.bf16.mxu0 0
  %1268 = vmatpush1.bf16.msra.mxu0 0
  %1269 = vmatprep.subr.bf16.mxu0 0
  %1270 = vmatpush1.bf16.msra.mxu0 0
  %1271 = vmatprep.subr.bf16.mxu0 0
  %1272 = vmatpush1.bf16.msra.mxu0 0
  %1273 = vmatprep.subr.bf16.mxu0 0
  %1274 = vmatpush1.bf16.msra.mxu0 0
  %1275 = vmatprep.subr.bf16.mxu0 0
  %1276 = vmatpush1.bf16.msra.mxu0 0
  %1277 = vmatprep.subr.bf16.mxu0 0
  %1278 = vmatpush1.bf16.msra.mxu0 0
  %1279 = vmatprep.subr.bf16.mxu0 0
  %1280 = vmatpush1.bf16.msra.mxu0 0
  %1281 = vmatprep.subr.bf16.mxu0 0
  %1282 = vmatpush1.bf16.msra.mxu0 0
  %1283 = vmatprep.subr.bf16.mxu0 0
  %1284 = vmatpush1.bf16.msra.mxu0 0
  %1285 = vmatprep.subr.bf16.mxu0 0
  %1286 = vmatpush1.bf16.msra.mxu0 0
  %1287 = vmatprep.mubr.bf16.mxu0 0
  %1288 = vmatmul.mubr.bf16.gmra.mrb[0].mxu0 %v1250
  %v1289 = vpop.f32.mrb[0].mxu0
  %v1290 = vadd.f32 0.0, %v1289
  %v1291 = vpop.f32.mrb[0].mxu0
  %v1292 = vpop.f32.mrb[0].mxu0
  %v1293 = vpop.f32.mrb[0].mxu0
  %1294 = vdwg.mxu0
  %v1295 = vpack.c.bf16 %v1290, %v1290
  %v1296 = vld [vmem:[%s3 + $0x10] sm:$0xf]
  %v1297 = vld [vmem:[%s3 + $0x14] sm:$0xf]
  %v1298 = vld [vmem:[%s3 + $0x18] sm:$0xf]
  %v1299 = vld [vmem:[%s3 + $0x1c] sm:$0xf]
  %v1304 = vunpack.c.l.b16 %v1296
  %v1305 = vunpack.c.l.b16 %v1297
  %v1306 = vunpack.c.l.b16 %v1298
  %v1307 = vunpack.c.l.b16 %v1299
  %v1308 = vpack.c.b16 %v1305, %v1304
  %v1309 = vpack.c.b16 %v1307, %v1306
  %v1313 = vsel %vm339, %v1295, 0
  %1315 = vmatprep.subr.bf16.mxu0 0
  %1316 = vmatpush1.bf16.msra.mxu0 %v1308
  %1317 = vmatprep.subr.bf16.mxu0 0
  %1318 = vmatpush1.bf16.msra.mxu0 %v1309
  %1319 = vmatprep.subr.bf16.mxu0 0
  %1320 = vmatpush1.bf16.msra.mxu0 0
  %1321 = vmatprep.subr.bf16.mxu0 0
  %1322 = vmatpush1.bf16.msra.mxu0 0
  %1323 = vmatprep.subr.bf16.mxu0 0
  %1324 = vmatpush1.bf16.msra.mxu0 0
  %1325 = vmatprep.subr.bf16.mxu0 0
  %1326 = vmatpush1.bf16.msra.mxu0 0
  %1327 = vmatprep.subr.bf16.mxu0 0
  %1328 = vmatpush1.bf16.msra.mxu0 0
  %1329 = vmatprep.subr.bf16.mxu0 0
  %1330 = vmatpush1.bf16.msra.mxu0 0
  %1331 = vmatprep.subr.bf16.mxu0 0
  %1332 = vmatpush1.bf16.msra.mxu0 0
  %1333 = vmatprep.subr.bf16.mxu0 0
  %1334 = vmatpush1.bf16.msra.mxu0 0
  %1335 = vmatprep.subr.bf16.mxu0 0
  %1336 = vmatpush1.bf16.msra.mxu0 0
  %1337 = vmatprep.subr.bf16.mxu0 0
  %1338 = vmatpush1.bf16.msra.mxu0 0
  %1339 = vmatprep.subr.bf16.mxu0 0
  %1340 = vmatpush1.bf16.msra.mxu0 0
  %1341 = vmatprep.subr.bf16.mxu0 0
  %1342 = vmatpush1.bf16.msra.mxu0 0
  %1343 = vmatprep.subr.bf16.mxu0 0
  %1344 = vmatpush1.bf16.msra.mxu0 0
  %1345 = vmatprep.subr.bf16.mxu0 0
  %1346 = vmatpush1.bf16.msra.mxu0 0
  %1347 = vmatprep.mubr.bf16.mxu0 0
  %1348 = vmatmul.mubr.bf16.gmra.mrb[0].mxu0 %v1313
  %v1349 = vpop.f32.mrb[0].mxu0
  %v1350 = vadd.f32 0.0, %v1349
  %v1351 = vpop.f32.mrb[0].mxu0
  %v1352 = vpop.f32.mrb[0].mxu0
  %v1353 = vpop.f32.mrb[0].mxu0
  %1354 = vdwg.mxu0
  %v1359 = vunpack.c.l.b16 %v1184
  %v1360 = vunpack.c.l.b16 %v1185
  %v1361 = vunpack.c.l.b16 %v1186
  %v1362 = vunpack.c.l.b16 %v1187
  %v1363 = vpack.c.b16 %v1360, %v1359
  %v1364 = vpack.c.b16 %v1362, %v1361
  %v1368 = vsel %vm339, %v1183, 0
  %1370 = vmatprep.subr.bf16.mxu0 0
  %1371 = vmatpush1.bf16.msra.mxu0 %v1363
  %1372 = vmatprep.subr.bf16.mxu0 0
  %1373 = vmatpush1.bf16.msra.mxu0 %v1364
  %1374 = vmatprep.subr.bf16.mxu0 0
  %1375 = vmatpush1.bf16.msra.mxu0 0
  %1376 = vmatprep.subr.bf16.mxu0 0
  %1377 = vmatpush1.bf16.msra.mxu0 0
  %1378 = vmatprep.subr.bf16.mxu0 0
  %1379 = vmatpush1.bf16.msra.mxu0 0
  %1380 = vmatprep.subr.bf16.mxu0 0
  %1381 = vmatpush1.bf16.msra.mxu0 0
  %1382 = vmatprep.subr.bf16.mxu0 0
  %1383 = vmatpush1.bf16.msra.mxu0 0
  %1384 = vmatprep.subr.bf16.mxu0 0
  %1385 = vmatpush1.bf16.msra.mxu0 0
  %1386 = vmatprep.subr.bf16.mxu0 0
  %1387 = vmatpush1.bf16.msra.mxu0 0
  %1388 = vmatprep.subr.bf16.mxu0 0
  %1389 = vmatpush1.bf16.msra.mxu0 0
  %1390 = vmatprep.subr.bf16.mxu0 0
  %1391 = vmatpush1.bf16.msra.mxu0 0
  %1392 = vmatprep.subr.bf16.mxu0 0
  %1393 = vmatpush1.bf16.msra.mxu0 0
  %1394 = vmatprep.subr.bf16.mxu0 0
  %1395 = vmatpush1.bf16.msra.mxu0 0
  %1396 = vmatprep.subr.bf16.mxu0 0
  %1397 = vmatpush1.bf16.msra.mxu0 0
  %1398 = vmatprep.subr.bf16.mxu0 0
  %1399 = vmatpush1.bf16.msra.mxu0 0
  %1400 = vmatprep.subr.bf16.mxu0 0
  %1401 = vmatpush1.bf16.msra.mxu0 0
  %1402 = vmatprep.mubr.bf16.mxu0 0
  %1403 = vmatmul.mubr.bf16.gmra.mrb[0].mxu0 %v1368
  %v1404 = vpop.f32.mrb[0].mxu0
  %v1405 = vadd.f32 %v1350, %v1404
  %v1406 = vpop.f32.mrb[0].mxu0
  %v1407 = vpop.f32.mrb[0].mxu0
  %v1408 = vpop.f32.mrb[0].mxu0
  %1409 = vdwg.mxu0
  %1410 = vrot.lane.b32.xlu0 %v1040, 64
  %v1411 = vpop.permute.xlu0 %1410
  %v1413 = vsel %vm339, %v1411, 0
  %1415 = vmatprep.subr.bf16.mxu0 0
  %1416 = vmatpush1.bf16.msra.mxu0 %v1077
  %1417 = vmatprep.subr.bf16.mxu0 0
  %1418 = vmatpush1.bf16.msra.mxu0 %v1078
  %1419 = vmatprep.subr.bf16.mxu0 0
  %1420 = vmatpush1.bf16.msra.mxu0 0
  %1421 = vmatprep.subr.bf16.mxu0 0
  %1422 = vmatpush1.bf16.msra.mxu0 0
  %1423 = vmatprep.subr.bf16.mxu0 0
  %1424 = vmatpush1.bf16.msra.mxu0 0
  %1425 = vmatprep.subr.bf16.mxu0 0
  %1426 = vmatpush1.bf16.msra.mxu0 0
  %1427 = vmatprep.subr.bf16.mxu0 0
  %1428 = vmatpush1.bf16.msra.mxu0 0
  %1429 = vmatprep.subr.bf16.mxu0 0
  %1430 = vmatpush1.bf16.msra.mxu0 0
  %1431 = vmatprep.subr.bf16.mxu0 0
  %1432 = vmatpush1.bf16.msra.mxu0 0
  %1433 = vmatprep.subr.bf16.mxu0 0
  %1434 = vmatpush1.bf16.msra.mxu0 0
  %1435 = vmatprep.subr.bf16.mxu0 0
  %1436 = vmatpush1.bf16.msra.mxu0 0
  %1437 = vmatprep.subr.bf16.mxu0 0
  %1438 = vmatpush1.bf16.msra.mxu0 0
  %1439 = vmatprep.subr.bf16.mxu0 0
  %1440 = vmatpush1.bf16.msra.mxu0 0
  %1441 = vmatprep.subr.bf16.mxu0 0
  %1442 = vmatpush1.bf16.msra.mxu0 0
  %1443 = vmatprep.subr.bf16.mxu0 0
  %1444 = vmatpush1.bf16.msra.mxu0 0
  %1445 = vmatprep.subr.bf16.mxu0 0
  %1446 = vmatpush1.bf16.msra.mxu0 0
  %1447 = vmatprep.mubr.bf16.mxu0 0
  %1448 = vmatmul.mubr.bf16.gmra.mrb[0].mxu0 %v1413
  %v1449 = vpop.f32.mrb[0].mxu0
  %v1450 = vadd.f32 %v296, %v1449
  %v1451 = vpop.f32.mrb[0].mxu0
  %v1452 = vpop.f32.mrb[0].mxu0
  %v1453 = vpop.f32.mrb[0].mxu0
  %1454 = vdwg.mxu0
  %v1455 = vsel %vm383, %v1450, -inf
  %1456 = vmax.xlane.f32.xlu0 %v1455
  %v1457 = vpop.xlane.xlu0 %1456
  %v1458 = vsub.f32 %v1450, %v1457
  %v1459 = vmul.f32 %v1458, 1.442695
  %v1460 = vpow.pop %v1459
  %v1461 = vsel %vm383, %v1460, 0.0
  %1462 = vadd.xlane.f32.xlu0 %v1461
  %v1463 = vpop.xlane.xlu0 %1462
  %v1464 = vrcp.pop %v1463
  %v1465 = vmul.f32 %v1460, %v1464
  %v1466 = vpack.c.bf16 %v1465, %v1465
  %1467 = vrot.lane.b32.xlu0 %v1081, 64
  %v1468 = vpop.permute.xlu0 %1467
  %v1470 = vsel %vm383, %v1466, 0
  %v1473 = vsel %vm399, %v1468, 0
  %1475 = vmatprep.subr.bf16.mxu0 0
  %1476 = vmatpush1.bf16.msra.mxu0 %v1473
  %1477 = vmatprep.subr.bf16.mxu0 0
  %1478 = vmatpush1.bf16.msra.mxu0 0
  %1479 = vmatprep.subr.bf16.mxu0 0
  %1480 = vmatpush1.bf16.msra.mxu0 0
  %1481 = vmatprep.subr.bf16.mxu0 0
  %1482 = vmatpush1.bf16.msra.mxu0 0
  %1483 = vmatprep.subr.bf16.mxu0 0
  %1484 = vmatpush1.bf16.msra.mxu0 0
  %1485 = vmatprep.subr.bf16.mxu0 0
  %1486 = vmatpush1.bf16.msra.mxu0 0
  %1487 = vmatprep.subr.bf16.mxu0 0
  %1488 = vmatpush1.bf16.msra.mxu0 0
  %1489 = vmatprep.subr.bf16.mxu0 0
  %1490 = vmatpush1.bf16.msra.mxu0 0
  %1491 = vmatprep.subr.bf16.mxu0 0
  %1492 = vmatpush1.bf16.msra.mxu0 0
  %1493 = vmatprep.subr.bf16.mxu0 0
  %1494 = vmatpush1.bf16.msra.mxu0 0
  %1495 = vmatprep.subr.bf16.mxu0 0
  %1496 = vmatpush1.bf16.msra.mxu0 0
  %1497 = vmatprep.subr.bf16.mxu0 0
  %1498 = vmatpush1.bf16.msra.mxu0 0
  %1499 = vmatprep.subr.bf16.mxu0 0
  %1500 = vmatpush1.bf16.msra.mxu0 0
  %1501 = vmatprep.subr.bf16.mxu0 0
  %1502 = vmatpush1.bf16.msra.mxu0 0
  %1503 = vmatprep.subr.bf16.mxu0 0
  %1504 = vmatpush1.bf16.msra.mxu0 0
  %1505 = vmatprep.subr.bf16.mxu0 0
  %1506 = vmatpush1.bf16.msra.mxu0 0
  %1507 = vmatprep.mubr.bf16.mxu0 0
  %1508 = vmatmul.mubr.bf16.gmra.mrb[0].mxu0 %v1470
  %v1509 = vpop.f32.mrb[0].mxu0
  %v1510 = vadd.f32 0.0, %v1509
  %v1511 = vpop.f32.mrb[0].mxu0
  %v1512 = vpop.f32.mrb[0].mxu0
  %v1513 = vpop.f32.mrb[0].mxu0
  %1514 = vdwg.mxu0
  %v1515 = vpack.c.bf16 %v1510, %v1510
  %v1516 = vld [vmem:[%s3 + $0x20] sm:$0xf]
  %v1517 = vld [vmem:[%s3 + $0x24] sm:$0xf]
  %v1518 = vld [vmem:[%s3 + $0x28] sm:$0xf]
  %v1519 = vld [vmem:[%s3 + $0x2c] sm:$0xf]
  %v1524 = vunpack.c.l.b16 %v1516
  %v1525 = vunpack.c.l.b16 %v1517
  %v1526 = vunpack.c.l.b16 %v1518
  %v1527 = vunpack.c.l.b16 %v1519
  %v1528 = vpack.c.b16 %v1525, %v1524
  %v1529 = vpack.c.b16 %v1527, %v1526
  %v1533 = vsel %vm339, %v1515, 0
  %1535 = vmatprep.subr.bf16.mxu0 0
  %1536 = vmatpush1.bf16.msra.mxu0 %v1528
  %1537 = vmatprep.subr.bf16.mxu0 0
  %1538 = vmatpush1.bf16.msra.mxu0 %v1529
  %1539 = vmatprep.subr.bf16.mxu0 0
  %1540 = vmatpush1.bf16.msra.mxu0 0
  %1541 = vmatprep.subr.bf16.mxu0 0
  %1542 = vmatpush1.bf16.msra.mxu0 0
  %1543 = vmatprep.subr.bf16.mxu0 0
  %1544 = vmatpush1.bf16.msra.mxu0 0
  %1545 = vmatprep.subr.bf16.mxu0 0
  %1546 = vmatpush1.bf16.msra.mxu0 0
  %1547 = vmatprep.subr.bf16.mxu0 0
  %1548 = vmatpush1.bf16.msra.mxu0 0
  %1549 = vmatprep.subr.bf16.mxu0 0
  %1550 = vmatpush1.bf16.msra.mxu0 0
  %1551 = vmatprep.subr.bf16.mxu0 0
  %1552 = vmatpush1.bf16.msra.mxu0 0
  %1553 = vmatprep.subr.bf16.mxu0 0
  %1554 = vmatpush1.bf16.msra.mxu0 0
  %1555 = vmatprep.subr.bf16.mxu0 0
  %1556 = vmatpush1.bf16.msra.mxu0 0
  %1557 = vmatprep.subr.bf16.mxu0 0
  %1558 = vmatpush1.bf16.msra.mxu0 0
  %1559 = vmatprep.subr.bf16.mxu0 0
  %1560 = vmatpush1.bf16.msra.mxu0 0
  %1561 = vmatprep.subr.bf16.mxu0 0
  %1562 = vmatpush1.bf16.msra.mxu0 0
  %1563 = vmatprep.subr.bf16.mxu0 0
  %1564 = vmatpush1.bf16.msra.mxu0 0
  %1565 = vmatprep.subr.bf16.mxu0 0
  %1566 = vmatpush1.bf16.msra.mxu0 0
  %1567 = vmatprep.mubr.bf16.mxu0 0
  %1568 = vmatmul.mubr.bf16.gmra.mrb[0].mxu0 %v1533
  %v1569 = vpop.f32.mrb[0].mxu0
  %v1570 = vadd.f32 0.0, %v1569
  %v1571 = vpop.f32.mrb[0].mxu0
  %v1572 = vpop.f32.mrb[0].mxu0
  %v1573 = vpop.f32.mrb[0].mxu0
  %1574 = vdwg.mxu0
  %v1575 = vadd.f32 %v1405, %v1570
  %1576 = vrot.lane.b32.xlu0 %v1040, 32
  %v1577 = vpop.permute.xlu0 %1576
  %v1579 = vsel %vm339, %v1577, 0
  %1581 = vmatprep.subr.bf16.mxu0 0
  %1582 = vmatpush1.bf16.msra.mxu0 %v1079
  %1583 = vmatprep.subr.bf16.mxu0 0
  %1584 = vmatpush1.bf16.msra.mxu0 %v1080
  %1585 = vmatprep.subr.bf16.mxu0 0
  %1586 = vmatpush1.bf16.msra.mxu0 0
  %1587 = vmatprep.subr.bf16.mxu0 0
  %1588 = vmatpush1.bf16.msra.mxu0 0
  %1589 = vmatprep.subr.bf16.mxu0 0
  %1590 = vmatpush1.bf16.msra.mxu0 0
  %1591 = vmatprep.subr.bf16.mxu0 0
  %1592 = vmatpush1.bf16.msra.mxu0 0
  %1593 = vmatprep.subr.bf16.mxu0 0
  %1594 = vmatpush1.bf16.msra.mxu0 0
  %1595 = vmatprep.subr.bf16.mxu0 0
  %1596 = vmatpush1.bf16.msra.mxu0 0
  %1597 = vmatprep.subr.bf16.mxu0 0
  %1598 = vmatpush1.bf16.msra.mxu0 0
  %1599 = vmatprep.subr.bf16.mxu0 0
  %1600 = vmatpush1.bf16.msra.mxu0 0
  %1601 = vmatprep.subr.bf16.mxu0 0
  %1602 = vmatpush1.bf16.msra.mxu0 0
  %1603 = vmatprep.subr.bf16.mxu0 0
  %1604 = vmatpush1.bf16.msra.mxu0 0
  %1605 = vmatprep.subr.bf16.mxu0 0
  %1606 = vmatpush1.bf16.msra.mxu0 0
  %1607 = vmatprep.subr.bf16.mxu0 0
  %1608 = vmatpush1.bf16.msra.mxu0 0
  %1609 = vmatprep.subr.bf16.mxu0 0
  %1610 = vmatpush1.bf16.msra.mxu0 0
  %1611 = vmatprep.subr.bf16.mxu0 0
  %1612 = vmatpush1.bf16.msra.mxu0 0
  %1613 = vmatprep.mubr.bf16.mxu0 0
  %1614 = vmatmul.mubr.bf16.gmra.mrb[0].mxu0 %v1579
  %v1615 = vpop.f32.mrb[0].mxu0
  %v1616 = vadd.f32 %v296, %v1615
  %v1617 = vpop.f32.mrb[0].mxu0
  %v1618 = vpop.f32.mrb[0].mxu0
  %v1619 = vpop.f32.mrb[0].mxu0
  %1620 = vdwg.mxu0
  %v1621 = vsel %vm383, %v1616, -inf
  %1622 = vmax.xlane.f32.xlu0 %v1621
  %v1623 = vpop.xlane.xlu0 %1622
  %v1624 = vsub.f32 %v1616, %v1623
  %v1625 = vmul.f32 %v1624, 1.442695
  %v1626 = vpow.pop %v1625
  %v1627 = vsel %vm383, %v1626, 0.0
  %1628 = vadd.xlane.f32.xlu0 %v1627
  %v1629 = vpop.xlane.xlu0 %1628
  %v1630 = vrcp.pop %v1629
  %v1631 = vmul.f32 %v1626, %v1630
  %v1632 = vpack.c.bf16 %v1631, %v1631
  %1633 = vrot.lane.b32.xlu0 %v1081, 32
  %v1634 = vpop.permute.xlu0 %1633
  %v1636 = vsel %vm383, %v1632, 0
  %v1639 = vsel %vm399, %v1634, 0
  %1641 = vmatprep.subr.bf16.mxu0 0
  %1642 = vmatpush1.bf16.msra.mxu0 %v1639
  %1643 = vmatprep.subr.bf16.mxu0 0
  %1644 = vmatpush1.bf16.msra.mxu0 0
  %1645 = vmatprep.subr.bf16.mxu0 0
  %1646 = vmatpush1.bf16.msra.mxu0 0
  %1647 = vmatprep.subr.bf16.mxu0 0
  %1648 = vmatpush1.bf16.msra.mxu0 0
  %1649 = vmatprep.subr.bf16.mxu0 0
  %1650 = vmatpush1.bf16.msra.mxu0 0
  %1651 = vmatprep.subr.bf16.mxu0 0
  %1652 = vmatpush1.bf16.msra.mxu0 0
  %1653 = vmatprep.subr.bf16.mxu0 0
  %1654 = vmatpush1.bf16.msra.mxu0 0
  %1655 = vmatprep.subr.bf16.mxu0 0
  %1656 = vmatpush1.bf16.msra.mxu0 0
  %1657 = vmatprep.subr.bf16.mxu0 0
  %1658 = vmatpush1.bf16.msra.mxu0 0
  %1659 = vmatprep.subr.bf16.mxu0 0
  %1660 = vmatpush1.bf16.msra.mxu0 0
  %1661 = vmatprep.subr.bf16.mxu0 0
  %1662 = vmatpush1.bf16.msra.mxu0 0
  %1663 = vmatprep.subr.bf16.mxu0 0
  %1664 = vmatpush1.bf16.msra.mxu0 0
  %1665 = vmatprep.subr.bf16.mxu0 0
  %1666 = vmatpush1.bf16.msra.mxu0 0
  %1667 = vmatprep.subr.bf16.mxu0 0
  %1668 = vmatpush1.bf16.msra.mxu0 0
  %1669 = vmatprep.subr.bf16.mxu0 0
  %1670 = vmatpush1.bf16.msra.mxu0 0
  %1671 = vmatprep.subr.bf16.mxu0 0
  %1672 = vmatpush1.bf16.msra.mxu0 0
  %1673 = vmatprep.mubr.bf16.mxu0 0
  %1674 = vmatmul.mubr.bf16.gmra.mrb[0].mxu0 %v1636
  %v1675 = vpop.f32.mrb[0].mxu0
  %v1676 = vadd.f32 0.0, %v1675
  %v1677 = vpop.f32.mrb[0].mxu0
  %v1678 = vpop.f32.mrb[0].mxu0
  %v1679 = vpop.f32.mrb[0].mxu0
  %1680 = vdwg.mxu0
  %v1681 = vpack.c.bf16 %v1676, %v1676
  %v1682 = vld [vmem:[%s3 + $0x30] sm:$0xf]
  %v1683 = vld [vmem:[%s3 + $0x34] sm:$0xf]
  %v1684 = vld [vmem:[%s3 + $0x38] sm:$0xf]
  %v1685 = vld [vmem:[%s3 + $0x3c] sm:$0xf]
  %v1690 = vunpack.c.l.b16 %v1682
  %v1691 = vunpack.c.l.b16 %v1683
  %v1692 = vunpack.c.l.b16 %v1684
  %v1693 = vunpack.c.l.b16 %v1685
  %v1694 = vpack.c.b16 %v1691, %v1690
  %v1695 = vpack.c.b16 %v1693, %v1692
  %v1699 = vsel %vm339, %v1681, 0
  %1701 = vmatprep.subr.bf16.mxu0 0
  %1702 = vmatpush1.bf16.msra.mxu0 %v1694
  %1703 = vmatprep.subr.bf16.mxu0 0
  %1704 = vmatpush1.bf16.msra.mxu0 %v1695
  %1705 = vmatprep.subr.bf16.mxu0 0
  %1706 = vmatpush1.bf16.msra.mxu0 0
  %1707 = vmatprep.subr.bf16.mxu0 0
  %1708 = vmatpush1.bf16.msra.mxu0 0
  %1709 = vmatprep.subr.bf16.mxu0 0
  %1710 = vmatpush1.bf16.msra.mxu0 0
  %1711 = vmatprep.subr.bf16.mxu0 0
  %1712 = vmatpush1.bf16.msra.mxu0 0
  %1713 = vmatprep.subr.bf16.mxu0 0
  %1714 = vmatpush1.bf16.msra.mxu0 0
  %1715 = vmatprep.subr.bf16.mxu0 0
  %1716 = vmatpush1.bf16.msra.mxu0 0
  %1717 = vmatprep.subr.bf16.mxu0 0
  %1718 = vmatpush1.bf16.msra.mxu0 0
  %1719 = vmatprep.subr.bf16.mxu0 0
  %1720 = vmatpush1.bf16.msra.mxu0 0
  %1721 = vmatprep.subr.bf16.mxu0 0
  %1722 = vmatpush1.bf16.msra.mxu0 0
  %1723 = vmatprep.subr.bf16.mxu0 0
  %1724 = vmatpush1.bf16.msra.mxu0 0
  %1725 = vmatprep.subr.bf16.mxu0 0
  %1726 = vmatpush1.bf16.msra.mxu0 0
  %1727 = vmatprep.subr.bf16.mxu0 0
  %1728 = vmatpush1.bf16.msra.mxu0 0
  %1729 = vmatprep.subr.bf16.mxu0 0
  %1730 = vmatpush1.bf16.msra.mxu0 0
  %1731 = vmatprep.subr.bf16.mxu0 0
  %1732 = vmatpush1.bf16.msra.mxu0 0
  %1733 = vmatprep.mubr.bf16.mxu0 0
  %1734 = vmatmul.mubr.bf16.gmra.mrb[0].mxu0 %v1699
  %v1735 = vpop.f32.mrb[0].mxu0
  %v1736 = vadd.f32 0.0, %v1735
  %v1737 = vpop.f32.mrb[0].mxu0
  %v1738 = vpop.f32.mrb[0].mxu0
  %v1739 = vpop.f32.mrb[0].mxu0
  %1740 = vdwg.mxu0
  %v1741 = vadd.f32 %v1575, %v1736
  %v1742 = vld [vmem:[%s4] sm:$0x1]
  %v1744 = vlaneseq
  %v1745 = vshrl.u32 %v1744, 7
  %v1746 = vsub.s32 0, %v1745
  %v1747 = vrot.slane %v1742, %v1746
  %v1749 = vadd.f32 %v1741, %v1747
  %v1750 = vadd.f32 %v28, %v1749
  %1751 = vadd.xlane.f32.xlu0 %v1750
  %v1752 = vpop.xlane.xlu0 %1751
  %v1753 = vmul.f32 %v1752, %v1013
  %v1754 = vsub.f32 %v1750, %v1753
  %v1755 = vmul.f32 %v1754, %v1754
  %1756 = vadd.xlane.f32.xlu0 %v1755
  %v1757 = vpop.xlane.xlu0 %1756
  %v1758 = vmul.f32 %v1757, %v1013
  %v1759 = vadd.f32 %v1758, 1e-05
  %v1760 = vrsqrt.pop %v1759
  %v1761 = vmul.f32 %v1754, %v1760
  %v1762 = vld [vmem:[%s5] sm:$0x1]
  %v1764 = vlaneseq
  %v1765 = vshrl.u32 %v1764, 7
  %v1766 = vsub.s32 0, %v1765
  %v1767 = vrot.slane %v1762, %v1766
  %v1769 = vmul.f32 %v1761, %v1767
  %v1770 = vld [vmem:[%s6] sm:$0x1]
  %v1772 = vlaneseq
  %v1773 = vshrl.u32 %v1772, 7
  %v1774 = vsub.s32 0, %v1773
  %v1775 = vrot.slane %v1770, %v1774
  %v1777 = vadd.f32 %v1769, %v1775
  %s1778 = scalar_lea.vmem %s7, 8
  %1779 = vst [vmem:[%s1778] sm:$0xff] %v1777
  // Predicated region
  $region30: #{transformer_forward.18} parent=0 // pred_check
    _
  $region31: #{transformer_forward.18} parent=0 // pred_check_branch
    %1781 = sbr.rel (0) target = $region33
  $region32: #{transformer_forward.18} parent=0 // pred_region
    _
  $region33: #{transformer_forward.18} parent=0 // pred_fallthru
    _
  // Predicated region
  $region34: #{transformer_forward.18} parent=0 // pred_check
    _
  $region35: #{transformer_forward.18} parent=0 // pred_check_branch
    %1783 = sbr.rel (0) target = $region37
  $region36: #{transformer_forward.18} parent=0 // pred_region
    _
  $region37: #{transformer_forward.18} parent=0 // pred_fallthru
    _

// kernel: transformer_forward.13
$region0: #{transformer_forward.13}
  #allocation0 [shape = 'u32[]', space=smem, size = 0x4, offset = 0x4, fixed_abs, tag = 'smem constant byte address 0x4 - core index']
  #allocation1 [shape = 'u32[144,128]{1,0:T(1,128)}', space=vmem, size = 0x12000, scoped, tag = 'internal scratch']
  %s0 = inlined_call_operand.vmem [shape: f32[2,8,128], index: 0, kind: input, shape index: {}]
  %s1 = inlined_call_operand.vmem [shape: f32[2,1,8], index: 1, kind: input, shape index: {}]
  %s2 = inlined_call_operand.vmem [shape: bf16[128,384], index: 2, kind: input, shape index: {}]
  %s3 = inlined_call_operand.vmem [shape: f32[1,384], index: 3, kind: input, shape index: {}]
  %s4 = inlined_call_operand.vmem [shape: bf16[128,128], index: 4, kind: input, shape index: {}]
  %s5 = inlined_call_operand.vmem [shape: f32[1,128], index: 5, kind: input, shape index: {}]
  %s6 = inlined_call_operand.vmem [shape: f32[1,128], index: 6, kind: input, shape index: {}]
  %s7 = inlined_call_operand.vmem [shape: f32[1,128], index: 7, kind: input, shape index: {}]
  %s8 = inlined_call_operand.vmem [shape: f32[2,8,128], index: 8, kind: output, shape index: {}]
  %s9 = sld [smem:[#allocation0]]
  $region42: #{transformer_forward.13} parent=0
    _
  %s11 = ssub.s32 1, %s9
  %s12 = scalar_select 0, %s11, %s9
  // Predicated region
  $region2: #{transformer_forward.13} parent=0 // pred_check
    _
  $region3: #{transformer_forward.13} parent=0 // pred_check_branch
    %14 = sbr.rel (0) target = $region5
  $region4: #{transformer_forward.13} parent=0 // pred_region
    _
  $region5: #{transformer_forward.13} parent=0 // pred_fallthru
    _
  // Predicated region
  $region6: #{transformer_forward.13} parent=0 // pred_check
    _
  $region7: #{transformer_forward.13} parent=0 // pred_check_branch
    %16 = sbr.rel (0) target = $region9
  $region8: #{transformer_forward.13} parent=0 // pred_region
    _
  $region9: #{transformer_forward.13} parent=0 // pred_fallthru
    _
  // Predicated region
  $region10: #{transformer_forward.13} parent=0 // pred_check
    _
  $region11: #{transformer_forward.13} parent=0 // pred_check_branch
    %18 = sbr.rel (0) target = $region13
  $region12: #{transformer_forward.13} parent=0 // pred_region
    _
  $region13: #{transformer_forward.13} parent=0 // pred_fallthru
    _
  // Predicated region
  $region14: #{transformer_forward.13} parent=0 // pred_check
    _
  $region15: #{transformer_forward.13} parent=0 // pred_check_branch
    %20 = sbr.rel (0) target = $region17
  $region16: #{transformer_forward.13} parent=0 // pred_region
    _
  $region17: #{transformer_forward.13} parent=0 // pred_fallthru
    _
  // Predicated region
  $region18: #{transformer_forward.13} parent=0 // pred_check
    _
  $region19: #{transformer_forward.13} parent=0 // pred_check_branch
    %22 = sbr.rel (0) target = $region21
  $region20: #{transformer_forward.13} parent=0 // pred_region
    _
  $region21: #{transformer_forward.13} parent=0 // pred_fallthru
    _
  // Predicated region
  $region22: #{transformer_forward.13} parent=0 // pred_check
    _
  $region23: #{transformer_forward.13} parent=0 // pred_check_branch
    %24 = sbr.rel (0) target = $region25
  $region24: #{transformer_forward.13} parent=0 // pred_region
    _
  $region25: #{transformer_forward.13} parent=0 // pred_fallthru
    _
  // Predicated region
  $region26: #{transformer_forward.13} parent=0 // pred_check
    _
  $region27: #{transformer_forward.13} parent=0 // pred_check_branch
    %26 = sbr.rel (0) target = $region29
  $region28: #{transformer_forward.13} parent=0 // pred_region
    _
  $region29: #{transformer_forward.13} parent=0 // pred_fallthru
    _
  // Predicated region
  $region30: #{transformer_forward.13} parent=0 // pred_check
    _
  $region31: #{transformer_forward.13} parent=0 // pred_check_branch
    %28 = sbr.rel (0) target = $region33
  $region32: #{transformer_forward.13} parent=0 // pred_region
    _
  $region33: #{transformer_forward.13} parent=0 // pred_fallthru
    _
  %v30 = vld [vmem:[%s0] sm:$0xff]
  %v31 = vld [vmem:[%s0 + $0x8] sm:$0xff]
  %v32 = vpack.c.bf16 %v31, %v30
  %v33 = vld [vmem:[%s2] sm:$0xff]
  %v34 = vld [vmem:[%s2 + $0x8] sm:$0xf]
  %v35 = vld [vmem:[%s2 + $0xc] sm:$0xff]
  %v36 = vld [vmem:[%s2 + $0x14] sm:$0xf]
  %v37 = vld [vmem:[%s2 + $0x18] sm:$0xff]
  %v38 = vld [vmem:[%s2 + $0x20] sm:$0xf]
  %v39 = vld [vmem:[%s2 + $0x24] sm:$0xff]
  %v40 = vld [vmem:[%s2 + $0x2c] sm:$0xf]
  %v41 = vld [vmem:[%s2 + $0x30] sm:$0xff]
  %v42 = vld [vmem:[%s2 + $0x38] sm:$0xf]
  %v43 = vld [vmem:[%s2 + $0x3c] sm:$0xff]
  %v44 = vld [vmem:[%s2 + $0x44] sm:$0xf]
  %v45 = vld [vmem:[%s2 + $0x48] sm:$0xff]
  %v46 = vld [vmem:[%s2 + $0x50] sm:$0xf]
  %v47 = vld [vmem:[%s2 + $0x54] sm:$0xff]
  %v48 = vld [vmem:[%s2 + $0x5c] sm:$0xf]
  %v49 = vld [vmem:[%s2 + $0x60] sm:$0xff]
  %v50 = vld [vmem:[%s2 + $0x68] sm:$0xf]
  %v51 = vld [vmem:[%s2 + $0x6c] sm:$0xff]
  %v52 = vld [vmem:[%s2 + $0x74] sm:$0xf]
  %v53 = vld [vmem:[%s2 + $0x78] sm:$0xff]
  %v54 = vld [vmem:[%s2 + $0x80] sm:$0xf]
  %v55 = vld [vmem:[%s2 + $0x84] sm:$0xff]
  %v56 = vld [vmem:[%s2 + $0x8c] sm:$0xf]
  %v57 = vld [vmem:[%s2 + $0x90] sm:$0xff]
  %v58 = vld [vmem:[%s2 + $0x98] sm:$0xf]
  %v59 = vld [vmem:[%s2 + $0x9c] sm:$0xff]
  %v60 = vld [vmem:[%s2 + $0xa4] sm:$0xf]
  %v61 = vld [vmem:[%s2 + $0xa8] sm:$0xff]
  %v62 = vld [vmem:[%s2 + $0xb0] sm:$0xf]
  %v63 = vld [vmem:[%s2 + $0xb4] sm:$0xff]
  %v64 = vld [vmem:[%s2 + $0xbc] sm:$0xf]
  %v65 = vld [vmem:[%s3] sm:$0x7]
  %v67 = vlaneseq
  %v68 = vshrl.u32 %v67, 7
  %v69 = vsub.s32 0, %v68
  %v70 = vrot.slane %v65, %v69
  %v71 = vlaneseq
  %v72 = vshrl.u32 %v71, 7
  %v73 = vsub.s32 1, %v72
  %v74 = vrot.slane %v65, %v73
  %v75 = vlaneseq
  %v76 = vshrl.u32 %v75, 7
  %v77 = vsub.s32 2, %v76
  %v78 = vrot.slane %v65, %v77
  %v114 = vunpack.c.l.b16 %v33
  %v115 = vunpack.c.h.b16 %v33
  %v116 = vunpack.c.l.b16 %v34
  %v117 = vunpack.c.l.b16 %v35
  %v118 = vunpack.c.h.b16 %v35
  %v119 = vunpack.c.l.b16 %v36
  %v120 = vunpack.c.l.b16 %v37
  %v121 = vunpack.c.h.b16 %v37
  %v122 = vunpack.c.l.b16 %v38
  %v123 = vunpack.c.l.b16 %v39
  %v124 = vunpack.c.h.b16 %v39
  %v125 = vunpack.c.l.b16 %v40
  %v126 = vunpack.c.l.b16 %v41
  %v127 = vunpack.c.h.b16 %v41
  %v128 = vunpack.c.l.b16 %v42
  %v129 = vunpack.c.l.b16 %v43
  %v130 = vunpack.c.h.b16 %v43
  %v131 = vunpack.c.l.b16 %v44
  %v132 = vunpack.c.l.b16 %v45
  %v133 = vunpack.c.h.b16 %v45
  %v134 = vunpack.c.l.b16 %v46
  %v135 = vunpack.c.l.b16 %v47
  %v136 = vunpack.c.h.b16 %v47
  %v137 = vunpack.c.l.b16 %v48
  %v138 = vunpack.c.l.b16 %v49
  %v139 = vunpack.c.h.b16 %v49
  %v140 = vunpack.c.l.b16 %v50
  %v141 = vunpack.c.l.b16 %v51
  %v142 = vunpack.c.h.b16 %v51
  %v143 = vunpack.c.l.b16 %v52
  %v144 = vunpack.c.l.b16 %v53
  %v145 = vunpack.c.h.b16 %v53
  %v146 = vunpack.c.l.b16 %v54
  %v147 = vunpack.c.l.b16 %v55
  %v148 = vunpack.c.h.b16 %v55
  %v149 = vunpack.c.l.b16 %v56
  %v150 = vunpack.c.l.b16 %v57
  %v151 = vunpack.c.h.b16 %v57
  %v152 = vunpack.c.l.b16 %v58
  %v153 = vunpack.c.l.b16 %v59
  %v154 = vunpack.c.h.b16 %v59
  %v155 = vunpack.c.l.b16 %v60
  %v156 = vunpack.c.l.b16 %v61
  %v157 = vunpack.c.h.b16 %v61
  %v158 = vunpack.c.l.b16 %v62
  %v159 = vunpack.c.l.b16 %v63
  %v160 = vunpack.c.h.b16 %v63
  %v161 = vunpack.c.l.b16 %v64
  %v162 = vpack.c.b16 %v117, %v114
  %v163 = vpack.c.b16 %v118, %v115
  %v164 = vpack.c.b16 %v119, %v116
  %v165 = vpack.c.b16 %v123, %v120
  %v166 = vpack.c.b16 %v124, %v121
  %v167 = vpack.c.b16 %v125, %v122
  %v168 = vpack.c.b16 %v129, %v126
  %v169 = vpack.c.b16 %v130, %v127
  %v170 = vpack.c.b16 %v131, %v128
  %v171 = vpack.c.b16 %v135, %v132
  %v172 = vpack.c.b16 %v136, %v133
  %v173 = vpack.c.b16 %v137, %v134
  %v174 = vpack.c.b16 %v141, %v138
  %v175 = vpack.c.b16 %v142, %v139
  %v176 = vpack.c.b16 %v143, %v140
  %v177 = vpack.c.b16 %v147, %v144
  %v178 = vpack.c.b16 %v148, %v145
  %v179 = vpack.c.b16 %v149, %v146
  %v180 = vpack.c.b16 %v153, %v150
  %v181 = vpack.c.b16 %v154, %v151
  %v182 = vpack.c.b16 %v155, %v152
  %v183 = vpack.c.b16 %v159, %v156
  %v184 = vpack.c.b16 %v160, %v157
  %v185 = vpack.c.b16 %v161, %v158
  %210 = vmatprep.subr.bf16.mxu0 %v163
  %211 = vmatpush1.bf16.msra.mxu0 %v162
  %212 = vmatprep.subr.bf16.mxu0 %v166
  %213 = vmatpush1.bf16.msra.mxu0 %v165
  %214 = vmatprep.subr.bf16.mxu0 %v169
  %215 = vmatpush1.bf16.msra.mxu0 %v168
  %216 = vmatprep.subr.bf16.mxu0 %v172
  %217 = vmatpush1.bf16.msra.mxu0 %v171
  %218 = vmatprep.subr.bf16.mxu0 %v175
  %219 = vmatpush1.bf16.msra.mxu0 %v174
  %220 = vmatprep.subr.bf16.mxu0 %v178
  %221 = vmatpush1.bf16.msra.mxu0 %v177
  %222 = vmatprep.subr.bf16.mxu0 %v181
  %223 = vmatpush1.bf16.msra.mxu0 %v180
  %224 = vmatprep.subr.bf16.mxu0 %v184
  %225 = vmatpush1.bf16.msra.mxu0 %v183
  %226 = vmatprep.subr.bf16.mxu0 0
  %227 = vmatpush1.bf16.msra.mxu0 0
  %228 = vmatprep.subr.bf16.mxu0 0
  %229 = vmatpush1.bf16.msra.mxu0 0
  %230 = vmatprep.subr.bf16.mxu0 0
  %231 = vmatpush1.bf16.msra.mxu0 0
  %232 = vmatprep.subr.bf16.mxu0 0
  %233 = vmatpush1.bf16.msra.mxu0 0
  %234 = vmatprep.subr.bf16.mxu0 0
  %235 = vmatpush1.bf16.msra.mxu0 0
  %236 = vmatprep.subr.bf16.mxu0 0
  %237 = vmatpush1.bf16.msra.mxu0 0
  %238 = vmatprep.subr.bf16.mxu0 0
  %239 = vmatpush1.bf16.msra.mxu0 0
  %240 = vmatprep.subr.bf16.mxu0 0
  %241 = vmatpush1.bf16.msra.mxu0 0
  %242 = vmatprep.mubr.bf16.mxu0 0
  %243 = vmatmul.mubr.bf16.gmra.mrb[0].mxu0 %v32
  %v244 = vpop.f32.mrb[0].mxu0
  %v245 = vadd.f32 %v70, %v244
  %v246 = vpop.f32.mrb[0].mxu0
  %v247 = vadd.f32 %v74, %v246
  %v248 = vpop.f32.mrb[0].mxu0
  %v249 = vadd.f32 %v70, %v248
  %v250 = vpop.f32.mrb[0].mxu0
  %v251 = vadd.f32 %v74, %v250
  %252 = vdwg.mxu0
  %253 = vmatprep.subr.bf16.mxu0 0
  %254 = vmatpush1.bf16.msra.mxu0 %v164
  %255 = vmatprep.subr.bf16.mxu0 0
  %256 = vmatpush1.bf16.msra.mxu0 %v167
  %257 = vmatprep.subr.bf16.mxu0 0
  %258 = vmatpush1.bf16.msra.mxu0 %v170
  %259 = vmatprep.subr.bf16.mxu0 0
  %260 = vmatpush1.bf16.msra.mxu0 %v173
  %261 = vmatprep.subr.bf16.mxu0 0
  %262 = vmatpush1.bf16.msra.mxu0 %v176
  %263 = vmatprep.subr.bf16.mxu0 0
  %264 = vmatpush1.bf16.msra.mxu0 %v179
  %265 = vmatprep.subr.bf16.mxu0 0
  %266 = vmatpush1.bf16.msra.mxu0 %v182
  %267 = vmatprep.subr.bf16.mxu0 0
  %268 = vmatpush1.bf16.msra.mxu0 %v185
  %269 = vmatprep.subr.bf16.mxu0 0
  %270 = vmatpush1.bf16.msra.mxu0 0
  %271 = vmatprep.subr.bf16.mxu0 0
  %272 = vmatpush1.bf16.msra.mxu0 0
  %273 = vmatprep.subr.bf16.mxu0 0
  %274 = vmatpush1.bf16.msra.mxu0 0
  %275 = vmatprep.subr.bf16.mxu0 0
  %276 = vmatpush1.bf16.msra.mxu0 0
  %277 = vmatprep.subr.bf16.mxu0 0
  %278 = vmatpush1.bf16.msra.mxu0 0
  %279 = vmatprep.subr.bf16.mxu0 0
  %280 = vmatpush1.bf16.msra.mxu0 0
  %281 = vmatprep.subr.bf16.mxu0 0
  %282 = vmatpush1.bf16.msra.mxu0 0
  %283 = vmatprep.subr.bf16.mxu0 0
  %284 = vmatpush1.bf16.msra.mxu0 0
  %285 = vmatprep.mubr.bf16.mxu0 0
  %286 = vmatmul.mubr.bf16.gmra.mrb[0].mxu0 %v32
  %v287 = vpop.f32.mrb[0].mxu0
  %v288 = vadd.f32 %v78, %v287
  %v289 = vpop.f32.mrb[0].mxu0
  %v290 = vpop.f32.mrb[0].mxu0
  %v291 = vadd.f32 %v78, %v290
  %v292 = vpop.f32.mrb[0].mxu0
  %293 = vdwg.mxu0
  %v294 = vld [vmem:[%s1] sm:$0x1]
  %v295 = vpack.c.bf16 %v245, %v245
  %296 = vxpose.xlu0.b32.start [1/16] %v247, 128
  %297 = vxpose.xlu0.b32.cont [2/16] 0.0, 128
  %298 = vxpose.xlu0.b32.cont [3/16] 0.0, 128
  %299 = vxpose.xlu0.b32.cont [4/16] 0.0, 128
  %300 = vxpose.xlu0.b32.cont [5/16] 0.0, 128
  %301 = vxpose.xlu0.b32.cont [6/16] 0.0, 128
  %302 = vxpose.xlu0.b32.cont [7/16] 0.0, 128
  %303 = vxpose.xlu0.b32.cont [8/16] 0.0, 128
  %304 = vxpose.xlu0.b32.cont [9/16] 0.0, 128
  %305 = vxpose.xlu0.b32.cont [10/16] 0.0, 128
  %306 = vxpose.xlu0.b32.cont [11/16] 0.0, 128
  %307 = vxpose.xlu0.b32.cont [12/16] 0.0, 128
  %308 = vxpose.xlu0.b32.cont [13/16] 0.0, 128
  %309 = vxpose.xlu0.b32.cont [14/16] 0.0, 128
  %310 = vxpose.xlu0.b32.cont [15/16] 0.0, 128
  %311 = vxpose.xlu0.b32.end [16/16] 0.0, 128
  %v312 = vpop.trf.xlu0
  %v313 = vpop.trf.xlu0
  %v314 = vpop.trf.xlu0
  %v315 = vpop.trf.xlu0
  %v316 = vpop.trf.xlu0
  %v317 = vpop.trf.xlu0
  %v318 = vpop.trf.xlu0
  %v319 = vpop.trf.xlu0
  %v320 = vpop.trf.xlu0
  %v321 = vpop.trf.xlu0
  %v322 = vpop.trf.xlu0
  %v323 = vpop.trf.xlu0
  %v324 = vpop.trf.xlu0
  %v325 = vpop.trf.xlu0
  %v326 = vpop.trf.xlu0
  %v327 = vpop.trf.xlu0
  %v328 = vpack.c.bf16 %v313, %v312
  %v329 = vpack.c.bf16 %v315, %v314
  %v330 = vpack.c.bf16 %v317, %v316
  %v331 = vpack.c.bf16 %v319, %v318
  %v332 = vpack.c.bf16 %v321, %v320
  %v333 = vpack.c.bf16 %v323, %v322
  %v334 = vpack.c.bf16 %v325, %v324
  %v335 = vpack.c.bf16 %v327, %v326
  %v336 = vpack.c.bf16 %v288, %v288
  %v338 = vlaneseq
  %v339 = vshrl.u32 %v338, 7
  %v340 = vsub.s32 0, %v339
  %v341 = vrot.slane %v294, %v340
  %vm343 = vcmask 261120
  %v345 = vsel %vm343, %v295, 0
  %347 = vmatprep.subr.bf16.mxu0 0
  %348 = vmatpush1.bf16.msra.mxu0 %v328
  %349 = vmatprep.subr.bf16.mxu0 0
  %350 = vmatpush1.bf16.msra.mxu0 %v329
  %351 = vmatprep.subr.bf16.mxu0 0
  %352 = vmatpush1.bf16.msra.mxu0 0
  %353 = vmatprep.subr.bf16.mxu0 0
  %354 = vmatpush1.bf16.msra.mxu0 0
  %355 = vmatprep.subr.bf16.mxu0 0
  %356 = vmatpush1.bf16.msra.mxu0 0
  %357 = vmatprep.subr.bf16.mxu0 0
  %358 = vmatpush1.bf16.msra.mxu0 0
  %359 = vmatprep.subr.bf16.mxu0 0
  %360 = vmatpush1.bf16.msra.mxu0 0
  %361 = vmatprep.subr.bf16.mxu0 0
  %362 = vmatpush1.bf16.msra.mxu0 0
  %363 = vmatprep.subr.bf16.mxu0 0
  %364 = vmatpush1.bf16.msra.mxu0 0
  %365 = vmatprep.subr.bf16.mxu0 0
  %366 = vmatpush1.bf16.msra.mxu0 0
  %367 = vmatprep.subr.bf16.mxu0 0
  %368 = vmatpush1.bf16.msra.mxu0 0
  %369 = vmatprep.subr.bf16.mxu0 0
  %370 = vmatpush1.bf16.msra.mxu0 0
  %371 = vmatprep.subr.bf16.mxu0 0
  %372 = vmatpush1.bf16.msra.mxu0 0
  %373 = vmatprep.subr.bf16.mxu0 0
  %374 = vmatpush1.bf16.msra.mxu0 0
  %375 = vmatprep.subr.bf16.mxu0 0
  %376 = vmatpush1.bf16.msra.mxu0 0
  %377 = vmatprep.subr.bf16.mxu0 0
  %378 = vmatpush1.bf16.msra.mxu0 0
  %379 = vmatprep.mubr.bf16.mxu0 0
  %380 = vmatmul.mubr.bf16.gmra.mrb[0].mxu0 %v345
  %v381 = vpop.f32.mrb[0].mxu0
  %v382 = vadd.f32 %v341, %v381
  %v383 = vpop.f32.mrb[0].mxu0
  %v384 = vpop.f32.mrb[0].mxu0
  %v385 = vpop.f32.mrb[0].mxu0
  %386 = vdwg.mxu0
  %vm387 = vcmask 64512
  %v388 = vsel %vm387, %v382, -inf
  %389 = vmax.xlane.f32.xlu0 %v388
  %v390 = vpop.xlane.xlu0 %389
  %v391 = vsub.f32 %v382, %v390
  %v392 = vmul.f32 %v391, 1.442695
  %v393 = vpow.pop %v392
  %v394 = vsel %vm387, %v393, 0.0
  %395 = vadd.xlane.f32.xlu0 %v394
  %v396 = vpop.xlane.xlu0 %395
  %v397 = vrcp.pop %v396
  %v398 = vmul.f32 %v393, %v397
  %v399 = vpack.c.bf16 %v398, %v398
  %v401 = vsel %vm387, %v399, 0
  %vm403 = vcmask 1043456
  %v405 = vsel %vm403, %v336, 0
  %407 = vmatprep.subr.bf16.mxu0 0
  %408 = vmatpush1.bf16.msra.mxu0 %v405
  %409 = vmatprep.subr.bf16.mxu0 0
  %410 = vmatpush1.bf16.msra.mxu0 0
  %411 = vmatprep.subr.bf16.mxu0 0
  %412 = vmatpush1.bf16.msra.mxu0 0
  %413 = vmatprep.subr.bf16.mxu0 0
  %414 = vmatpush1.bf16.msra.mxu0 0
  %415 = vmatprep.subr.bf16.mxu0 0
  %416 = vmatpush1.bf16.msra.mxu0 0
  %417 = vmatprep.subr.bf16.mxu0 0
  %418 = vmatpush1.bf16.msra.mxu0 0
  %419 = vmatprep.subr.bf16.mxu0 0
  %420 = vmatpush1.bf16.msra.mxu0 0
  %421 = vmatprep.subr.bf16.mxu0 0
  %422 = vmatpush1.bf16.msra.mxu0 0
  %423 = vmatprep.subr.bf16.mxu0 0
  %424 = vmatpush1.bf16.msra.mxu0 0
  %425 = vmatprep.subr.bf16.mxu0 0
  %426 = vmatpush1.bf16.msra.mxu0 0
  %427 = vmatprep.subr.bf16.mxu0 0
  %428 = vmatpush1.bf16.msra.mxu0 0
  %429 = vmatprep.subr.bf16.mxu0 0
  %430 = vmatpush1.bf16.msra.mxu0 0
  %431 = vmatprep.subr.bf16.mxu0 0
  %432 = vmatpush1.bf16.msra.mxu0 0
  %433 = vmatprep.subr.bf16.mxu0 0
  %434 = vmatpush1.bf16.msra.mxu0 0
  %435 = vmatprep.subr.bf16.mxu0 0
  %436 = vmatpush1.bf16.msra.mxu0 0
  %437 = vmatprep.subr.bf16.mxu0 0
  %438 = vmatpush1.bf16.msra.mxu0 0
  %439 = vmatprep.mubr.bf16.mxu0 0
  %440 = vmatmul.mubr.bf16.gmra.mrb[0].mxu0 %v401
  %v441 = vpop.f32.mrb[0].mxu0
  %v442 = vadd.f32 0.0, %v441
  %v443 = vpop.f32.mrb[0].mxu0
  %v444 = vpop.f32.mrb[0].mxu0
  %v445 = vpop.f32.mrb[0].mxu0
  %446 = vdwg.mxu0
  %v447 = vpack.c.bf16 %v442, %v442
  %v448 = vld [vmem:[%s4] sm:$0xf]
  %v449 = vld [vmem:[%s4 + $0x4] sm:$0xf]
  %v450 = vld [vmem:[%s4 + $0x8] sm:$0xf]
  %v451 = vld [vmem:[%s4 + $0xc] sm:$0xf]
  %453 = vrot.lane.b32.xlu0 %v295, 96
  %v454 = vpop.permute.xlu0 %453
  %v456 = vsel %vm343, %v454, 0
  %458 = vmatprep.subr.bf16.mxu0 0
  %459 = vmatpush1.bf16.msra.mxu0 %v330
  %460 = vmatprep.subr.bf16.mxu0 0
  %461 = vmatpush1.bf16.msra.mxu0 %v331
  %462 = vmatprep.subr.bf16.mxu0 0
  %463 = vmatpush1.bf16.msra.mxu0 0
  %464 = vmatprep.subr.bf16.mxu0 0
  %465 = vmatpush1.bf16.msra.mxu0 0
  %466 = vmatprep.subr.bf16.mxu0 0
  %467 = vmatpush1.bf16.msra.mxu0 0
  %468 = vmatprep.subr.bf16.mxu0 0
  %469 = vmatpush1.bf16.msra.mxu0 0
  %470 = vmatprep.subr.bf16.mxu0 0
  %471 = vmatpush1.bf16.msra.mxu0 0
  %472 = vmatprep.subr.bf16.mxu0 0
  %473 = vmatpush1.bf16.msra.mxu0 0
  %474 = vmatprep.subr.bf16.mxu0 0
  %475 = vmatpush1.bf16.msra.mxu0 0
  %476 = vmatprep.subr.bf16.mxu0 0
  %477 = vmatpush1.bf16.msra.mxu0 0
  %478 = vmatprep.subr.bf16.mxu0 0
  %479 = vmatpush1.bf16.msra.mxu0 0
  %480 = vmatprep.subr.bf16.mxu0 0
  %481 = vmatpush1.bf16.msra.mxu0 0
  %482 = vmatprep.subr.bf16.mxu0 0
  %483 = vmatpush1.bf16.msra.mxu0 0
  %484 = vmatprep.subr.bf16.mxu0 0
  %485 = vmatpush1.bf16.msra.mxu0 0
  %486 = vmatprep.subr.bf16.mxu0 0
  %487 = vmatpush1.bf16.msra.mxu0 0
  %488 = vmatprep.subr.bf16.mxu0 0
  %489 = vmatpush1.bf16.msra.mxu0 0
  %490 = vmatprep.mubr.bf16.mxu0 0
  %491 = vmatmul.mubr.bf16.gmra.mrb[0].mxu0 %v456
  %v492 = vpop.f32.mrb[0].mxu0
  %v493 = vadd.f32 %v341, %v492
  %v494 = vpop.f32.mrb[0].mxu0
  %v495 = vpop.f32.mrb[0].mxu0
  %v496 = vpop.f32.mrb[0].mxu0
  %497 = vdwg.mxu0
  %v498 = vsel %vm387, %v493, -inf
  %499 = vmax.xlane.f32.xlu0 %v498
  %v500 = vpop.xlane.xlu0 %499
  %v501 = vsub.f32 %v493, %v500
  %v502 = vmul.f32 %v501, 1.442695
  %v503 = vpow.pop %v502
  %v504 = vsel %vm387, %v503, 0.0
  %505 = vadd.xlane.f32.xlu0 %v504
  %v506 = vpop.xlane.xlu0 %505
  %v507 = vrcp.pop %v506
  %v508 = vmul.f32 %v503, %v507
  %v509 = vpack.c.bf16 %v508, %v508
  %511 = vrot.lane.b32.xlu0 %v336, 96
  %v512 = vpop.permute.xlu0 %511
  %v514 = vsel %vm387, %v509, 0
  %v517 = vsel %vm403, %v512, 0
  %519 = vmatprep.subr.bf16.mxu0 0
  %520 = vmatpush1.bf16.msra.mxu0 %v517
  %521 = vmatprep.subr.bf16.mxu0 0
  %522 = vmatpush1.bf16.msra.mxu0 0
  %523 = vmatprep.subr.bf16.mxu0 0
  %524 = vmatpush1.bf16.msra.mxu0 0
  %525 = vmatprep.subr.bf16.mxu0 0
  %526 = vmatpush1.bf16.msra.mxu0 0
  %527 = vmatprep.subr.bf16.mxu0 0
  %528 = vmatpush1.bf16.msra.mxu0 0
  %529 = vmatprep.subr.bf16.mxu0 0
  %530 = vmatpush1.bf16.msra.mxu0 0
  %531 = vmatprep.subr.bf16.mxu0 0
  %532 = vmatpush1.bf16.msra.mxu0 0
  %533 = vmatprep.subr.bf16.mxu0 0
  %534 = vmatpush1.bf16.msra.mxu0 0
  %535 = vmatprep.subr.bf16.mxu0 0
  %536 = vmatpush1.bf16.msra.mxu0 0
  %537 = vmatprep.subr.bf16.mxu0 0
  %538 = vmatpush1.bf16.msra.mxu0 0
  %539 = vmatprep.subr.bf16.mxu0 0
  %540 = vmatpush1.bf16.msra.mxu0 0
  %541 = vmatprep.subr.bf16.mxu0 0
  %542 = vmatpush1.bf16.msra.mxu0 0
  %543 = vmatprep.subr.bf16.mxu0 0
  %544 = vmatpush1.bf16.msra.mxu0 0
  %545 = vmatprep.subr.bf16.mxu0 0
  %546 = vmatpush1.bf16.msra.mxu0 0
  %547 = vmatprep.subr.bf16.mxu0 0
  %548 = vmatpush1.bf16.msra.mxu0 0
  %549 = vmatprep.subr.bf16.mxu0 0
  %550 = vmatpush1.bf16.msra.mxu0 0
  %551 = vmatprep.mubr.bf16.mxu0 0
  %552 = vmatmul.mubr.bf16.gmra.mrb[0].mxu0 %v514
  %v553 = vpop.f32.mrb[0].mxu0
  %v554 = vadd.f32 0.0, %v553
  %v555 = vpop.f32.mrb[0].mxu0
  %v556 = vpop.f32.mrb[0].mxu0
  %v557 = vpop.f32.mrb[0].mxu0
  %558 = vdwg.mxu0
  %v559 = vpack.c.bf16 %v554, %v554
  %v560 = vld [vmem:[%s4 + $0x10] sm:$0xf]
  %v561 = vld [vmem:[%s4 + $0x14] sm:$0xf]
  %v562 = vld [vmem:[%s4 + $0x18] sm:$0xf]
  %v563 = vld [vmem:[%s4 + $0x1c] sm:$0xf]
  %v568 = vunpack.c.l.b16 %v560
  %v569 = vunpack.c.l.b16 %v561
  %v570 = vunpack.c.l.b16 %v562
  %v571 = vunpack.c.l.b16 %v563
  %v572 = vpack.c.b16 %v569, %v568
  %v573 = vpack.c.b16 %v571, %v570
  %v577 = vsel %vm343, %v559, 0
  %579 = vmatprep.subr.bf16.mxu0 0
  %580 = vmatpush1.bf16.msra.mxu0 %v572
  %581 = vmatprep.subr.bf16.mxu0 0
  %582 = vmatpush1.bf16.msra.mxu0 %v573
  %583 = vmatprep.subr.bf16.mxu0 0
  %584 = vmatpush1.bf16.msra.mxu0 0
  %585 = vmatprep.subr.bf16.mxu0 0
  %586 = vmatpush1.bf16.msra.mxu0 0
  %587 = vmatprep.subr.bf16.mxu0 0
  %588 = vmatpush1.bf16.msra.mxu0 0
  %589 = vmatprep.subr.bf16.mxu0 0
  %590 = vmatpush1.bf16.msra.mxu0 0
  %591 = vmatprep.subr.bf16.mxu0 0
  %592 = vmatpush1.bf16.msra.mxu0 0
  %593 = vmatprep.subr.bf16.mxu0 0
  %594 = vmatpush1.bf16.msra.mxu0 0
  %595 = vmatprep.subr.bf16.mxu0 0
  %596 = vmatpush1.bf16.msra.mxu0 0
  %597 = vmatprep.subr.bf16.mxu0 0
  %598 = vmatpush1.bf16.msra.mxu0 0
  %599 = vmatprep.subr.bf16.mxu0 0
  %600 = vmatpush1.bf16.msra.mxu0 0
  %601 = vmatprep.subr.bf16.mxu0 0
  %602 = vmatpush1.bf16.msra.mxu0 0
  %603 = vmatprep.subr.bf16.mxu0 0
  %604 = vmatpush1.bf16.msra.mxu0 0
  %605 = vmatprep.subr.bf16.mxu0 0
  %606 = vmatpush1.bf16.msra.mxu0 0
  %607 = vmatprep.subr.bf16.mxu0 0
  %608 = vmatpush1.bf16.msra.mxu0 0
  %609 = vmatprep.subr.bf16.mxu0 0
  %610 = vmatpush1.bf16.msra.mxu0 0
  %611 = vmatprep.mubr.bf16.mxu0 0
  %612 = vmatmul.mubr.bf16.gmra.mrb[0].mxu0 %v577
  %v613 = vpop.f32.mrb[0].mxu0
  %v614 = vadd.f32 0.0, %v613
  %v615 = vpop.f32.mrb[0].mxu0
  %v616 = vpop.f32.mrb[0].mxu0
  %v617 = vpop.f32.mrb[0].mxu0
  %618 = vdwg.mxu0
  %v623 = vunpack.c.l.b16 %v448
  %v624 = vunpack.c.l.b16 %v449
  %v625 = vunpack.c.l.b16 %v450
  %v626 = vunpack.c.l.b16 %v451
  %v627 = vpack.c.b16 %v624, %v623
  %v628 = vpack.c.b16 %v626, %v625
  %v632 = vsel %vm343, %v447, 0
  %634 = vmatprep.subr.bf16.mxu0 0
  %635 = vmatpush1.bf16.msra.mxu0 %v627
  %636 = vmatprep.subr.bf16.mxu0 0
  %637 = vmatpush1.bf16.msra.mxu0 %v628
  %638 = vmatprep.subr.bf16.mxu0 0
  %639 = vmatpush1.bf16.msra.mxu0 0
  %640 = vmatprep.subr.bf16.mxu0 0
  %641 = vmatpush1.bf16.msra.mxu0 0
  %642 = vmatprep.subr.bf16.mxu0 0
  %643 = vmatpush1.bf16.msra.mxu0 0
  %644 = vmatprep.subr.bf16.mxu0 0
  %645 = vmatpush1.bf16.msra.mxu0 0
  %646 = vmatprep.subr.bf16.mxu0 0
  %647 = vmatpush1.bf16.msra.mxu0 0
  %648 = vmatprep.subr.bf16.mxu0 0
  %649 = vmatpush1.bf16.msra.mxu0 0
  %650 = vmatprep.subr.bf16.mxu0 0
  %651 = vmatpush1.bf16.msra.mxu0 0
  %652 = vmatprep.subr.bf16.mxu0 0
  %653 = vmatpush1.bf16.msra.mxu0 0
  %654 = vmatprep.subr.bf16.mxu0 0
  %655 = vmatpush1.bf16.msra.mxu0 0
  %656 = vmatprep.subr.bf16.mxu0 0
  %657 = vmatpush1.bf16.msra.mxu0 0
  %658 = vmatprep.subr.bf16.mxu0 0
  %659 = vmatpush1.bf16.msra.mxu0 0
  %660 = vmatprep.subr.bf16.mxu0 0
  %661 = vmatpush1.bf16.msra.mxu0 0
  %662 = vmatprep.subr.bf16.mxu0 0
  %663 = vmatpush1.bf16.msra.mxu0 0
  %664 = vmatprep.subr.bf16.mxu0 0
  %665 = vmatpush1.bf16.msra.mxu0 0
  %666 = vmatprep.mubr.bf16.mxu0 0
  %667 = vmatmul.mubr.bf16.gmra.mrb[0].mxu0 %v632
  %v668 = vpop.f32.mrb[0].mxu0
  %v669 = vadd.f32 %v614, %v668
  %v670 = vpop.f32.mrb[0].mxu0
  %v671 = vpop.f32.mrb[0].mxu0
  %v672 = vpop.f32.mrb[0].mxu0
  %673 = vdwg.mxu0
  %674 = vrot.lane.b32.xlu0 %v295, 64
  %v675 = vpop.permute.xlu0 %674
  %v677 = vsel %vm343, %v675, 0
  %679 = vmatprep.subr.bf16.mxu0 0
  %680 = vmatpush1.bf16.msra.mxu0 %v332
  %681 = vmatprep.subr.bf16.mxu0 0
  %682 = vmatpush1.bf16.msra.mxu0 %v333
  %683 = vmatprep.subr.bf16.mxu0 0
  %684 = vmatpush1.bf16.msra.mxu0 0
  %685 = vmatprep.subr.bf16.mxu0 0
  %686 = vmatpush1.bf16.msra.mxu0 0
  %687 = vmatprep.subr.bf16.mxu0 0
  %688 = vmatpush1.bf16.msra.mxu0 0
  %689 = vmatprep.subr.bf16.mxu0 0
  %690 = vmatpush1.bf16.msra.mxu0 0
  %691 = vmatprep.subr.bf16.mxu0 0
  %692 = vmatpush1.bf16.msra.mxu0 0
  %693 = vmatprep.subr.bf16.mxu0 0
  %694 = vmatpush1.bf16.msra.mxu0 0
  %695 = vmatprep.subr.bf16.mxu0 0
  %696 = vmatpush1.bf16.msra.mxu0 0
  %697 = vmatprep.subr.bf16.mxu0 0
  %698 = vmatpush1.bf16.msra.mxu0 0
  %699 = vmatprep.subr.bf16.mxu0 0
  %700 = vmatpush1.bf16.msra.mxu0 0
  %701 = vmatprep.subr.bf16.mxu0 0
  %702 = vmatpush1.bf16.msra.mxu0 0
  %703 = vmatprep.subr.bf16.mxu0 0
  %704 = vmatpush1.bf16.msra.mxu0 0
  %705 = vmatprep.subr.bf16.mxu0 0
  %706 = vmatpush1.bf16.msra.mxu0 0
  %707 = vmatprep.subr.bf16.mxu0 0
  %708 = vmatpush1.bf16.msra.mxu0 0
  %709 = vmatprep.subr.bf16.mxu0 0
  %710 = vmatpush1.bf16.msra.mxu0 0
  %711 = vmatprep.mubr.bf16.mxu0 0
  %712 = vmatmul.mubr.bf16.gmra.mrb[0].mxu0 %v677
  %v713 = vpop.f32.mrb[0].mxu0
  %v714 = vadd.f32 %v341, %v713
  %v715 = vpop.f32.mrb[0].mxu0
  %v716 = vpop.f32.mrb[0].mxu0
  %v717 = vpop.f32.mrb[0].mxu0
  %718 = vdwg.mxu0
  %v719 = vsel %vm387, %v714, -inf
  %720 = vmax.xlane.f32.xlu0 %v719
  %v721 = vpop.xlane.xlu0 %720
  %v722 = vsub.f32 %v714, %v721
  %v723 = vmul.f32 %v722, 1.442695
  %v724 = vpow.pop %v723
  %v725 = vsel %vm387, %v724, 0.0
  %726 = vadd.xlane.f32.xlu0 %v725
  %v727 = vpop.xlane.xlu0 %726
  %v728 = vrcp.pop %v727
  %v729 = vmul.f32 %v724, %v728
  %v730 = vpack.c.bf16 %v729, %v729
  %731 = vrot.lane.b32.xlu0 %v336, 64
  %v732 = vpop.permute.xlu0 %731
  %v734 = vsel %vm387, %v730, 0
  %v737 = vsel %vm403, %v732, 0
  %739 = vmatprep.subr.bf16.mxu0 0
  %740 = vmatpush1.bf16.msra.mxu0 %v737
  %741 = vmatprep.subr.bf16.mxu0 0
  %742 = vmatpush1.bf16.msra.mxu0 0
  %743 = vmatprep.subr.bf16.mxu0 0
  %744 = vmatpush1.bf16.msra.mxu0 0
  %745 = vmatprep.subr.bf16.mxu0 0
  %746 = vmatpush1.bf16.msra.mxu0 0
  %747 = vmatprep.subr.bf16.mxu0 0
  %748 = vmatpush1.bf16.msra.mxu0 0
  %749 = vmatprep.subr.bf16.mxu0 0
  %750 = vmatpush1.bf16.msra.mxu0 0
  %751 = vmatprep.subr.bf16.mxu0 0
  %752 = vmatpush1.bf16.msra.mxu0 0
  %753 = vmatprep.subr.bf16.mxu0 0
  %754 = vmatpush1.bf16.msra.mxu0 0
  %755 = vmatprep.subr.bf16.mxu0 0
  %756 = vmatpush1.bf16.msra.mxu0 0
  %757 = vmatprep.subr.bf16.mxu0 0
  %758 = vmatpush1.bf16.msra.mxu0 0
  %759 = vmatprep.subr.bf16.mxu0 0
  %760 = vmatpush1.bf16.msra.mxu0 0
  %761 = vmatprep.subr.bf16.mxu0 0
  %762 = vmatpush1.bf16.msra.mxu0 0
  %763 = vmatprep.subr.bf16.mxu0 0
  %764 = vmatpush1.bf16.msra.mxu0 0
  %765 = vmatprep.subr.bf16.mxu0 0
  %766 = vmatpush1.bf16.msra.mxu0 0
  %767 = vmatprep.subr.bf16.mxu0 0
  %768 = vmatpush1.bf16.msra.mxu0 0
  %769 = vmatprep.subr.bf16.mxu0 0
  %770 = vmatpush1.bf16.msra.mxu0 0
  %771 = vmatprep.mubr.bf16.mxu0 0
  %772 = vmatmul.mubr.bf16.gmra.mrb[0].mxu0 %v734
  %v773 = vpop.f32.mrb[0].mxu0
  %v774 = vadd.f32 0.0, %v773
  %v775 = vpop.f32.mrb[0].mxu0
  %v776 = vpop.f32.mrb[0].mxu0
  %v777 = vpop.f32.mrb[0].mxu0
  %778 = vdwg.mxu0
  %v779 = vpack.c.bf16 %v774, %v774
  %v780 = vld [vmem:[%s4 + $0x20] sm:$0xf]
  %v781 = vld [vmem:[%s4 + $0x24] sm:$0xf]
  %v782 = vld [vmem:[%s4 + $0x28] sm:$0xf]
  %v783 = vld [vmem:[%s4 + $0x2c] sm:$0xf]
  %v788 = vunpack.c.l.b16 %v780
  %v789 = vunpack.c.l.b16 %v781
  %v790 = vunpack.c.l.b16 %v782
  %v791 = vunpack.c.l.b16 %v783
  %v792 = vpack.c.b16 %v789, %v788
  %v793 = vpack.c.b16 %v791, %v790
  %v797 = vsel %vm343, %v779, 0
  %799 = vmatprep.subr.bf16.mxu0 0
  %800 = vmatpush1.bf16.msra.mxu0 %v792
  %801 = vmatprep.subr.bf16.mxu0 0
  %802 = vmatpush1.bf16.msra.mxu0 %v793
  %803 = vmatprep.subr.bf16.mxu0 0
  %804 = vmatpush1.bf16.msra.mxu0 0
  %805 = vmatprep.subr.bf16.mxu0 0
  %806 = vmatpush1.bf16.msra.mxu0 0
  %807 = vmatprep.subr.bf16.mxu0 0
  %808 = vmatpush1.bf16.msra.mxu0 0
  %809 = vmatprep.subr.bf16.mxu0 0
  %810 = vmatpush1.bf16.msra.mxu0 0
  %811 = vmatprep.subr.bf16.mxu0 0
  %812 = vmatpush1.bf16.msra.mxu0 0
  %813 = vmatprep.subr.bf16.mxu0 0
  %814 = vmatpush1.bf16.msra.mxu0 0
  %815 = vmatprep.subr.bf16.mxu0 0
  %816 = vmatpush1.bf16.msra.mxu0 0
  %817 = vmatprep.subr.bf16.mxu0 0
  %818 = vmatpush1.bf16.msra.mxu0 0
  %819 = vmatprep.subr.bf16.mxu0 0
  %820 = vmatpush1.bf16.msra.mxu0 0
  %821 = vmatprep.subr.bf16.mxu0 0
  %822 = vmatpush1.bf16.msra.mxu0 0
  %823 = vmatprep.subr.bf16.mxu0 0
  %824 = vmatpush1.bf16.msra.mxu0 0
  %825 = vmatprep.subr.bf16.mxu0 0
  %826 = vmatpush1.bf16.msra.mxu0 0
  %827 = vmatprep.subr.bf16.mxu0 0
  %828 = vmatpush1.bf16.msra.mxu0 0
  %829 = vmatprep.subr.bf16.mxu0 0
  %830 = vmatpush1.bf16.msra.mxu0 0
  %831 = vmatprep.mubr.bf16.mxu0 0
  %832 = vmatmul.mubr.bf16.gmra.mrb[0].mxu0 %v797
  %v833 = vpop.f32.mrb[0].mxu0
  %v834 = vadd.f32 0.0, %v833
  %v835 = vpop.f32.mrb[0].mxu0
  %v836 = vpop.f32.mrb[0].mxu0
  %v837 = vpop.f32.mrb[0].mxu0
  %838 = vdwg.mxu0
  %v839 = vadd.f32 %v669, %v834
  %840 = vrot.lane.b32.xlu0 %v295, 32
  %v841 = vpop.permute.xlu0 %840
  %v843 = vsel %vm343, %v841, 0
  %845 = vmatprep.subr.bf16.mxu0 0
  %846 = vmatpush1.bf16.msra.mxu0 %v334
  %847 = vmatprep.subr.bf16.mxu0 0
  %848 = vmatpush1.bf16.msra.mxu0 %v335
  %849 = vmatprep.subr.bf16.mxu0 0
  %850 = vmatpush1.bf16.msra.mxu0 0
  %851 = vmatprep.subr.bf16.mxu0 0
  %852 = vmatpush1.bf16.msra.mxu0 0
  %853 = vmatprep.subr.bf16.mxu0 0
  %854 = vmatpush1.bf16.msra.mxu0 0
  %855 = vmatprep.subr.bf16.mxu0 0
  %856 = vmatpush1.bf16.msra.mxu0 0
  %857 = vmatprep.subr.bf16.mxu0 0
  %858 = vmatpush1.bf16.msra.mxu0 0
  %859 = vmatprep.subr.bf16.mxu0 0
  %860 = vmatpush1.bf16.msra.mxu0 0
  %861 = vmatprep.subr.bf16.mxu0 0
  %862 = vmatpush1.bf16.msra.mxu0 0
  %863 = vmatprep.subr.bf16.mxu0 0
  %864 = vmatpush1.bf16.msra.mxu0 0
  %865 = vmatprep.subr.bf16.mxu0 0
  %866 = vmatpush1.bf16.msra.mxu0 0
  %867 = vmatprep.subr.bf16.mxu0 0
  %868 = vmatpush1.bf16.msra.mxu0 0
  %869 = vmatprep.subr.bf16.mxu0 0
  %870 = vmatpush1.bf16.msra.mxu0 0
  %871 = vmatprep.subr.bf16.mxu0 0
  %872 = vmatpush1.bf16.msra.mxu0 0
  %873 = vmatprep.subr.bf16.mxu0 0
  %874 = vmatpush1.bf16.msra.mxu0 0
  %875 = vmatprep.subr.bf16.mxu0 0
  %876 = vmatpush1.bf16.msra.mxu0 0
  %877 = vmatprep.mubr.bf16.mxu0 0
  %878 = vmatmul.mubr.bf16.gmra.mrb[0].mxu0 %v843
  %v879 = vpop.f32.mrb[0].mxu0
  %v880 = vadd.f32 %v341, %v879
  %v881 = vpop.f32.mrb[0].mxu0
  %v882 = vpop.f32.mrb[0].mxu0
  %v883 = vpop.f32.mrb[0].mxu0
  %884 = vdwg.mxu0
  %v885 = vsel %vm387, %v880, -inf
  %886 = vmax.xlane.f32.xlu0 %v885
  %v887 = vpop.xlane.xlu0 %886
  %v888 = vsub.f32 %v880, %v887
  %v889 = vmul.f32 %v888, 1.442695
  %v890 = vpow.pop %v889
  %v891 = vsel %vm387, %v890, 0.0
  %892 = vadd.xlane.f32.xlu0 %v891
  %v893 = vpop.xlane.xlu0 %892
  %v894 = vrcp.pop %v893
  %v895 = vmul.f32 %v890, %v894
  %v896 = vpack.c.bf16 %v895, %v895
  %897 = vrot.lane.b32.xlu0 %v336, 32
  %v898 = vpop.permute.xlu0 %897
  %v900 = vsel %vm387, %v896, 0
  %v903 = vsel %vm403, %v898, 0
  %905 = vmatprep.subr.bf16.mxu0 0
  %906 = vmatpush1.bf16.msra.mxu0 %v903
  %907 = vmatprep.subr.bf16.mxu0 0
  %908 = vmatpush1.bf16.msra.mxu0 0
  %909 = vmatprep.subr.bf16.mxu0 0
  %910 = vmatpush1.bf16.msra.mxu0 0
  %911 = vmatprep.subr.bf16.mxu0 0
  %912 = vmatpush1.bf16.msra.mxu0 0
  %913 = vmatprep.subr.bf16.mxu0 0
  %914 = vmatpush1.bf16.msra.mxu0 0
  %915 = vmatprep.subr.bf16.mxu0 0
  %916 = vmatpush1.bf16.msra.mxu0 0
  %917 = vmatprep.subr.bf16.mxu0 0
  %918 = vmatpush1.bf16.msra.mxu0 0
  %919 = vmatprep.subr.bf16.mxu0 0
  %920 = vmatpush1.bf16.msra.mxu0 0
  %921 = vmatprep.subr.bf16.mxu0 0
  %922 = vmatpush1.bf16.msra.mxu0 0
  %923 = vmatprep.subr.bf16.mxu0 0
  %924 = vmatpush1.bf16.msra.mxu0 0
  %925 = vmatprep.subr.bf16.mxu0 0
  %926 = vmatpush1.bf16.msra.mxu0 0
  %927 = vmatprep.subr.bf16.mxu0 0
  %928 = vmatpush1.bf16.msra.mxu0 0
  %929 = vmatprep.subr.bf16.mxu0 0
  %930 = vmatpush1.bf16.msra.mxu0 0
  %931 = vmatprep.subr.bf16.mxu0 0
  %932 = vmatpush1.bf16.msra.mxu0 0
  %933 = vmatprep.subr.bf16.mxu0 0
  %934 = vmatpush1.bf16.msra.mxu0 0
  %935 = vmatprep.subr.bf16.mxu0 0
  %936 = vmatpush1.bf16.msra.mxu0 0
  %937 = vmatprep.mubr.bf16.mxu0 0
  %938 = vmatmul.mubr.bf16.gmra.mrb[0].mxu0 %v900
  %v939 = vpop.f32.mrb[0].mxu0
  %v940 = vadd.f32 0.0, %v939
  %v941 = vpop.f32.mrb[0].mxu0
  %v942 = vpop.f32.mrb[0].mxu0
  %v943 = vpop.f32.mrb[0].mxu0
  %944 = vdwg.mxu0
  %v945 = vpack.c.bf16 %v940, %v940
  %v946 = vld [vmem:[%s4 + $0x30] sm:$0xf]
  %v947 = vld [vmem:[%s4 + $0x34] sm:$0xf]
  %v948 = vld [vmem:[%s4 + $0x38] sm:$0xf]
  %v949 = vld [vmem:[%s4 + $0x3c] sm:$0xf]
  %v954 = vunpack.c.l.b16 %v946
  %v955 = vunpack.c.l.b16 %v947
  %v956 = vunpack.c.l.b16 %v948
  %v957 = vunpack.c.l.b16 %v949
  %v958 = vpack.c.b16 %v955, %v954
  %v959 = vpack.c.b16 %v957, %v956
  %v963 = vsel %vm343, %v945, 0
  %965 = vmatprep.subr.bf16.mxu0 0
  %966 = vmatpush1.bf16.msra.mxu0 %v958
  %967 = vmatprep.subr.bf16.mxu0 0
  %968 = vmatpush1.bf16.msra.mxu0 %v959
  %969 = vmatprep.subr.bf16.mxu0 0
  %970 = vmatpush1.bf16.msra.mxu0 0
  %971 = vmatprep.subr.bf16.mxu0 0
  %972 = vmatpush1.bf16.msra.mxu0 0
  %973 = vmatprep.subr.bf16.mxu0 0
  %974 = vmatpush1.bf16.msra.mxu0 0
  %975 = vmatprep.subr.bf16.mxu0 0
  %976 = vmatpush1.bf16.msra.mxu0 0
  %977 = vmatprep.subr.bf16.mxu0 0
  %978 = vmatpush1.bf16.msra.mxu0 0
  %979 = vmatprep.subr.bf16.mxu0 0
  %980 = vmatpush1.bf16.msra.mxu0 0
  %981 = vmatprep.subr.bf16.mxu0 0
  %982 = vmatpush1.bf16.msra.mxu0 0
  %983 = vmatprep.subr.bf16.mxu0 0
  %984 = vmatpush1.bf16.msra.mxu0 0
  %985 = vmatprep.subr.bf16.mxu0 0
  %986 = vmatpush1.bf16.msra.mxu0 0
  %987 = vmatprep.subr.bf16.mxu0 0
  %988 = vmatpush1.bf16.msra.mxu0 0
  %989 = vmatprep.subr.bf16.mxu0 0
  %990 = vmatpush1.bf16.msra.mxu0 0
  %991 = vmatprep.subr.bf16.mxu0 0
  %992 = vmatpush1.bf16.msra.mxu0 0
  %993 = vmatprep.subr.bf16.mxu0 0
  %994 = vmatpush1.bf16.msra.mxu0 0
  %995 = vmatprep.subr.bf16.mxu0 0
  %996 = vmatpush1.bf16.msra.mxu0 0
  %997 = vmatprep.mubr.bf16.mxu0 0
  %998 = vmatmul.mubr.bf16.gmra.mrb[0].mxu0 %v963
  %v999 = vpop.f32.mrb[0].mxu0
  %v1000 = vadd.f32 0.0, %v999
  %v1001 = vpop.f32.mrb[0].mxu0
  %v1002 = vpop.f32.mrb[0].mxu0
  %v1003 = vpop.f32.mrb[0].mxu0
  %1004 = vdwg.mxu0
  %v1005 = vadd.f32 %v839, %v1000
  %v1006 = vld [vmem:[%s5] sm:$0x1]
  %v1008 = vlaneseq
  %v1009 = vshrl.u32 %v1008, 7
  %v1010 = vsub.s32 0, %v1009
  %v1011 = vrot.slane %v1006, %v1010
  %v1013 = vadd.f32 %v1005, %v1011
  %v1014 = vadd.f32 %v30, %v1013
  %1015 = vadd.xlane.f32.xlu0 %v1014
  %v1016 = vpop.xlane.xlu0 %1015
  %v1017 = vrcp.pop 128.0
  %v1018 = vmul.f32 %v1016, %v1017
  %v1019 = vsub.f32 %v1014, %v1018
  %v1020 = vmul.f32 %v1019, %v1019
  %1021 = vadd.xlane.f32.xlu0 %v1020
  %v1022 = vpop.xlane.xlu0 %1021
  %v1023 = vmul.f32 %v1022, %v1017
  %v1024 = vadd.f32 %v1023, 1e-05
  %v1025 = vrsqrt.pop %v1024
  %v1026 = vmul.f32 %v1019, %v1025
  %v1027 = vld [vmem:[%s6] sm:$0x1]
  %v1029 = vlaneseq
  %v1030 = vshrl.u32 %v1029, 7
  %v1031 = vsub.s32 0, %v1030
  %v1032 = vrot.slane %v1027, %v1031
  %v1034 = vmul.f32 %v1026, %v1032
  %v1035 = vld [vmem:[%s7] sm:$0x1]
  %v1037 = vlaneseq
  %v1038 = vshrl.u32 %v1037, 7
  %v1039 = vsub.s32 0, %v1038
  %v1040 = vrot.slane %v1035, %v1039
  %v1042 = vadd.f32 %v1034, %v1040
  %1043 = vst [vmem:[%s8] sm:$0xff] %v1042
  %s1044 = scalar_lea.vmem %s1, 1
  %v1045 = vld [vmem:[%s1044] sm:$0x1]
  %v1046 = vpack.c.bf16 %v249, %v249
  %1047 = vxpose.xlu0.b32.start [1/16] %v251, 128
  %1048 = vxpose.xlu0.b32.cont [2/16] 0.0, 128
  %1049 = vxpose.xlu0.b32.cont [3/16] 0.0, 128
  %1050 = vxpose.xlu0.b32.cont [4/16] 0.0, 128
  %1051 = vxpose.xlu0.b32.cont [5/16] 0.0, 128
  %1052 = vxpose.xlu0.b32.cont [6/16] 0.0, 128
  %1053 = vxpose.xlu0.b32.cont [7/16] 0.0, 128
  %1054 = vxpose.xlu0.b32.cont [8/16] 0.0, 128
  %1055 = vxpose.xlu0.b32.cont [9/16] 0.0, 128
  %1056 = vxpose.xlu0.b32.cont [10/16] 0.0, 128
  %1057 = vxpose.xlu0.b32.cont [11/16] 0.0, 128
  %1058 = vxpose.xlu0.b32.cont [12/16] 0.0, 128
  %1059 = vxpose.xlu0.b32.cont [13/16] 0.0, 128
  %1060 = vxpose.xlu0.b32.cont [14/16] 0.0, 128
  %1061 = vxpose.xlu0.b32.cont [15/16] 0.0, 128
  %1062 = vxpose.xlu0.b32.end [16/16] 0.0, 128
  %v1063 = vpop.trf.xlu0
  %v1064 = vpop.trf.xlu0
  %v1065 = vpop.trf.xlu0
  %v1066 = vpop.trf.xlu0
  %v1067 = vpop.trf.xlu0
  %v1068 = vpop.trf.xlu0
  %v1069 = vpop.trf.xlu0
  %v1070 = vpop.trf.xlu0
  %v1071 = vpop.trf.xlu0
  %v1072 = vpop.trf.xlu0
  %v1073 = vpop.trf.xlu0
  %v1074 = vpop.trf.xlu0
  %v1075 = vpop.trf.xlu0
  %v1076 = vpop.trf.xlu0
  %v1077 = vpop.trf.xlu0
  %v1078 = vpop.trf.xlu0
  %v1079 = vpack.c.bf16 %v1064, %v1063
  %v1080 = vpack.c.bf16 %v1066, %v1065
  %v1081 = vpack.c.bf16 %v1068, %v1067
  %v1082 = vpack.c.bf16 %v1070, %v1069
  %v1083 = vpack.c.bf16 %v1072, %v1071
  %v1084 = vpack.c.bf16 %v1074, %v1073
  %v1085 = vpack.c.bf16 %v1076, %v1075
  %v1086 = vpack.c.bf16 %v1078, %v1077
  %v1087 = vpack.c.bf16 %v291, %v291
  %v1089 = vlaneseq
  %v1090 = vshrl.u32 %v1089, 7
  %v1091 = vsub.s32 0, %v1090
  %v1092 = vrot.slane %v1045, %v1091
  %v1095 = vsel %vm343, %v1046, 0
  %1097 = vmatprep.subr.bf16.mxu0 0
  %1098 = vmatpush1.bf16.msra.mxu0 %v1079
  %1099 = vmatprep.subr.bf16.mxu0 0
  %1100 = vmatpush1.bf16.msra.mxu0 %v1080
  %1101 = vmatprep.subr.bf16.mxu0 0
  %1102 = vmatpush1.bf16.msra.mxu0 0
  %1103 = vmatprep.subr.bf16.mxu0 0
  %1104 = vmatpush1.bf16.msra.mxu0 0
  %1105 = vmatprep.subr.bf16.mxu0 0
  %1106 = vmatpush1.bf16.msra.mxu0 0
  %1107 = vmatprep.subr.bf16.mxu0 0
  %1108 = vmatpush1.bf16.msra.mxu0 0
  %1109 = vmatprep.subr.bf16.mxu0 0
  %1110 = vmatpush1.bf16.msra.mxu0 0
  %1111 = vmatprep.subr.bf16.mxu0 0
  %1112 = vmatpush1.bf16.msra.mxu0 0
  %1113 = vmatprep.subr.bf16.mxu0 0
  %1114 = vmatpush1.bf16.msra.mxu0 0
  %1115 = vmatprep.subr.bf16.mxu0 0
  %1116 = vmatpush1.bf16.msra.mxu0 0
  %1117 = vmatprep.subr.bf16.mxu0 0
  %1118 = vmatpush1.bf16.msra.mxu0 0
  %1119 = vmatprep.subr.bf16.mxu0 0
  %1120 = vmatpush1.bf16.msra.mxu0 0
  %1121 = vmatprep.subr.bf16.mxu0 0
  %1122 = vmatpush1.bf16.msra.mxu0 0
  %1123 = vmatprep.subr.bf16.mxu0 0
  %1124 = vmatpush1.bf16.msra.mxu0 0
  %1125 = vmatprep.subr.bf16.mxu0 0
  %1126 = vmatpush1.bf16.msra.mxu0 0
  %1127 = vmatprep.subr.bf16.mxu0 0
  %1128 = vmatpush1.bf16.msra.mxu0 0
  %1129 = vmatprep.mubr.bf16.mxu0 0
  %1130 = vmatmul.mubr.bf16.gmra.mrb[0].mxu0 %v1095
  %v1131 = vpop.f32.mrb[0].mxu0
  %v1132 = vadd.f32 %v1092, %v1131
  %v1133 = vpop.f32.mrb[0].mxu0
  %v1134 = vpop.f32.mrb[0].mxu0
  %v1135 = vpop.f32.mrb[0].mxu0
  %1136 = vdwg.mxu0
  %v1137 = vsel %vm387, %v1132, -inf
  %1138 = vmax.xlane.f32.xlu0 %v1137
  %v1139 = vpop.xlane.xlu0 %1138
  %v1140 = vsub.f32 %v1132, %v1139
  %v1141 = vmul.f32 %v1140, 1.442695
  %v1142 = vpow.pop %v1141
  %v1143 = vsel %vm387, %v1142, 0.0
  %1144 = vadd.xlane.f32.xlu0 %v1143
  %v1145 = vpop.xlane.xlu0 %1144
  %v1146 = vrcp.pop %v1145
  %v1147 = vmul.f32 %v1142, %v1146
  %v1148 = vpack.c.bf16 %v1147, %v1147
  %v1150 = vsel %vm387, %v1148, 0
  %v1153 = vsel %vm403, %v1087, 0
  %1155 = vmatprep.subr.bf16.mxu0 0
  %1156 = vmatpush1.bf16.msra.mxu0 %v1153
  %1157 = vmatprep.subr.bf16.mxu0 0
  %1158 = vmatpush1.bf16.msra.mxu0 0
  %1159 = vmatprep.subr.bf16.mxu0 0
  %1160 = vmatpush1.bf16.msra.mxu0 0
  %1161 = vmatprep.subr.bf16.mxu0 0
  %1162 = vmatpush1.bf16.msra.mxu0 0
  %1163 = vmatprep.subr.bf16.mxu0 0
  %1164 = vmatpush1.bf16.msra.mxu0 0
  %1165 = vmatprep.subr.bf16.mxu0 0
  %1166 = vmatpush1.bf16.msra.mxu0 0
  %1167 = vmatprep.subr.bf16.mxu0 0
  %1168 = vmatpush1.bf16.msra.mxu0 0
  %1169 = vmatprep.subr.bf16.mxu0 0
  %1170 = vmatpush1.bf16.msra.mxu0 0
  %1171 = vmatprep.subr.bf16.mxu0 0
  %1172 = vmatpush1.bf16.msra.mxu0 0
  %1173 = vmatprep.subr.bf16.mxu0 0
  %1174 = vmatpush1.bf16.msra.mxu0 0
  %1175 = vmatprep.subr.bf16.mxu0 0
  %1176 = vmatpush1.bf16.msra.mxu0 0
  %1177 = vmatprep.subr.bf16.mxu0 0
  %1178 = vmatpush1.bf16.msra.mxu0 0
  %1179 = vmatprep.subr.bf16.mxu0 0
  %1180 = vmatpush1.bf16.msra.mxu0 0
  %1181 = vmatprep.subr.bf16.mxu0 0
  %1182 = vmatpush1.bf16.msra.mxu0 0
  %1183 = vmatprep.subr.bf16.mxu0 0
  %1184 = vmatpush1.bf16.msra.mxu0 0
  %1185 = vmatprep.subr.bf16.mxu0 0
  %1186 = vmatpush1.bf16.msra.mxu0 0
  %1187 = vmatprep.mubr.bf16.mxu0 0
  %1188 = vmatmul.mubr.bf16.gmra.mrb[0].mxu0 %v1150
  %v1189 = vpop.f32.mrb[0].mxu0
  %v1190 = vadd.f32 0.0, %v1189
  %v1191 = vpop.f32.mrb[0].mxu0
  %v1192 = vpop.f32.mrb[0].mxu0
  %v1193 = vpop.f32.mrb[0].mxu0
  %1194 = vdwg.mxu0
  %v1195 = vpack.c.bf16 %v1190, %v1190
  %v1196 = vld [vmem:[%s4] sm:$0xf]
  %v1197 = vld [vmem:[%s4 + $0x4] sm:$0xf]
  %v1198 = vld [vmem:[%s4 + $0x8] sm:$0xf]
  %v1199 = vld [vmem:[%s4 + $0xc] sm:$0xf]
  %1201 = vrot.lane.b32.xlu0 %v1046, 96
  %v1202 = vpop.permute.xlu0 %1201
  %v1204 = vsel %vm343, %v1202, 0
  %1206 = vmatprep.subr.bf16.mxu0 0
  %1207 = vmatpush1.bf16.msra.mxu0 %v1081
  %1208 = vmatprep.subr.bf16.mxu0 0
  %1209 = vmatpush1.bf16.msra.mxu0 %v1082
  %1210 = vmatprep.subr.bf16.mxu0 0
  %1211 = vmatpush1.bf16.msra.mxu0 0
  %1212 = vmatprep.subr.bf16.mxu0 0
  %1213 = vmatpush1.bf16.msra.mxu0 0
  %1214 = vmatprep.subr.bf16.mxu0 0
  %1215 = vmatpush1.bf16.msra.mxu0 0
  %1216 = vmatprep.subr.bf16.mxu0 0
  %1217 = vmatpush1.bf16.msra.mxu0 0
  %1218 = vmatprep.subr.bf16.mxu0 0
  %1219 = vmatpush1.bf16.msra.mxu0 0
  %1220 = vmatprep.subr.bf16.mxu0 0
  %1221 = vmatpush1.bf16.msra.mxu0 0
  %1222 = vmatprep.subr.bf16.mxu0 0
  %1223 = vmatpush1.bf16.msra.mxu0 0
  %1224 = vmatprep.subr.bf16.mxu0 0
  %1225 = vmatpush1.bf16.msra.mxu0 0
  %1226 = vmatprep.subr.bf16.mxu0 0
  %1227 = vmatpush1.bf16.msra.mxu0 0
  %1228 = vmatprep.subr.bf16.mxu0 0
  %1229 = vmatpush1.bf16.msra.mxu0 0
  %1230 = vmatprep.subr.bf16.mxu0 0
  %1231 = vmatpush1.bf16.msra.mxu0 0
  %1232 = vmatprep.subr.bf16.mxu0 0
  %1233 = vmatpush1.bf16.msra.mxu0 0
  %1234 = vmatprep.subr.bf16.mxu0 0
  %1235 = vmatpush1.bf16.msra.mxu0 0
  %1236 = vmatprep.subr.bf16.mxu0 0
  %1237 = vmatpush1.bf16.msra.mxu0 0
  %1238 = vmatprep.mubr.bf16.mxu0 0
  %1239 = vmatmul.mubr.bf16.gmra.mrb[0].mxu0 %v1204
  %v1240 = vpop.f32.mrb[0].mxu0
  %v1241 = vadd.f32 %v1092, %v1240
  %v1242 = vpop.f32.mrb[0].mxu0
  %v1243 = vpop.f32.mrb[0].mxu0
  %v1244 = vpop.f32.mrb[0].mxu0
  %1245 = vdwg.mxu0
  %v1246 = vsel %vm387, %v1241, -inf
  %1247 = vmax.xlane.f32.xlu0 %v1246
  %v1248 = vpop.xlane.xlu0 %1247
  %v1249 = vsub.f32 %v1241, %v1248
  %v1250 = vmul.f32 %v1249, 1.442695
  %v1251 = vpow.pop %v1250
  %v1252 = vsel %vm387, %v1251, 0.0
  %1253 = vadd.xlane.f32.xlu0 %v1252
  %v1254 = vpop.xlane.xlu0 %1253
  %v1255 = vrcp.pop %v1254
  %v1256 = vmul.f32 %v1251, %v1255
  %v1257 = vpack.c.bf16 %v1256, %v1256
  %1259 = vrot.lane.b32.xlu0 %v1087, 96
  %v1260 = vpop.permute.xlu0 %1259
  %v1262 = vsel %vm387, %v1257, 0
  %v1265 = vsel %vm403, %v1260, 0
  %1267 = vmatprep.subr.bf16.mxu0 0
  %1268 = vmatpush1.bf16.msra.mxu0 %v1265
  %1269 = vmatprep.subr.bf16.mxu0 0
  %1270 = vmatpush1.bf16.msra.mxu0 0
  %1271 = vmatprep.subr.bf16.mxu0 0
  %1272 = vmatpush1.bf16.msra.mxu0 0
  %1273 = vmatprep.subr.bf16.mxu0 0
  %1274 = vmatpush1.bf16.msra.mxu0 0
  %1275 = vmatprep.subr.bf16.mxu0 0
  %1276 = vmatpush1.bf16.msra.mxu0 0
  %1277 = vmatprep.subr.bf16.mxu0 0
  %1278 = vmatpush1.bf16.msra.mxu0 0
  %1279 = vmatprep.subr.bf16.mxu0 0
  %1280 = vmatpush1.bf16.msra.mxu0 0
  %1281 = vmatprep.subr.bf16.mxu0 0
  %1282 = vmatpush1.bf16.msra.mxu0 0
  %1283 = vmatprep.subr.bf16.mxu0 0
  %1284 = vmatpush1.bf16.msra.mxu0 0
  %1285 = vmatprep.subr.bf16.mxu0 0
  %1286 = vmatpush1.bf16.msra.mxu0 0
  %1287 = vmatprep.subr.bf16.mxu0 0
  %1288 = vmatpush1.bf16.msra.mxu0 0
  %1289 = vmatprep.subr.bf16.mxu0 0
  %1290 = vmatpush1.bf16.msra.mxu0 0
  %1291 = vmatprep.subr.bf16.mxu0 0
  %1292 = vmatpush1.bf16.msra.mxu0 0
  %1293 = vmatprep.subr.bf16.mxu0 0
  %1294 = vmatpush1.bf16.msra.mxu0 0
  %1295 = vmatprep.subr.bf16.mxu0 0
  %1296 = vmatpush1.bf16.msra.mxu0 0
  %1297 = vmatprep.subr.bf16.mxu0 0
  %1298 = vmatpush1.bf16.msra.mxu0 0
  %1299 = vmatprep.mubr.bf16.mxu0 0
  %1300 = vmatmul.mubr.bf16.gmra.mrb[0].mxu0 %v1262
  %v1301 = vpop.f32.mrb[0].mxu0
  %v1302 = vadd.f32 0.0, %v1301
  %v1303 = vpop.f32.mrb[0].mxu0
  %v1304 = vpop.f32.mrb[0].mxu0
  %v1305 = vpop.f32.mrb[0].mxu0
  %1306 = vdwg.mxu0
  %v1307 = vpack.c.bf16 %v1302, %v1302
  %v1308 = vld [vmem:[%s4 + $0x10] sm:$0xf]
  %v1309 = vld [vmem:[%s4 + $0x14] sm:$0xf]
  %v1310 = vld [vmem:[%s4 + $0x18] sm:$0xf]
  %v1311 = vld [vmem:[%s4 + $0x1c] sm:$0xf]
  %v1316 = vunpack.c.l.b16 %v1308
  %v1317 = vunpack.c.l.b16 %v1309
  %v1318 = vunpack.c.l.b16 %v1310
  %v1319 = vunpack.c.l.b16 %v1311
  %v1320 = vpack.c.b16 %v1317, %v1316
  %v1321 = vpack.c.b16 %v1319, %v1318
  %v1325 = vsel %vm343, %v1307, 0
  %1327 = vmatprep.subr.bf16.mxu0 0
  %1328 = vmatpush1.bf16.msra.mxu0 %v1320
  %1329 = vmatprep.subr.bf16.mxu0 0
  %1330 = vmatpush1.bf16.msra.mxu0 %v1321
  %1331 = vmatprep.subr.bf16.mxu0 0
  %1332 = vmatpush1.bf16.msra.mxu0 0
  %1333 = vmatprep.subr.bf16.mxu0 0
  %1334 = vmatpush1.bf16.msra.mxu0 0
  %1335 = vmatprep.subr.bf16.mxu0 0
  %1336 = vmatpush1.bf16.msra.mxu0 0
  %1337 = vmatprep.subr.bf16.mxu0 0
  %1338 = vmatpush1.bf16.msra.mxu0 0
  %1339 = vmatprep.subr.bf16.mxu0 0
  %1340 = vmatpush1.bf16.msra.mxu0 0
  %1341 = vmatprep.subr.bf16.mxu0 0
  %1342 = vmatpush1.bf16.msra.mxu0 0
  %1343 = vmatprep.subr.bf16.mxu0 0
  %1344 = vmatpush1.bf16.msra.mxu0 0
  %1345 = vmatprep.subr.bf16.mxu0 0
  %1346 = vmatpush1.bf16.msra.mxu0 0
  %1347 = vmatprep.subr.bf16.mxu0 0
  %1348 = vmatpush1.bf16.msra.mxu0 0
  %1349 = vmatprep.subr.bf16.mxu0 0
  %1350 = vmatpush1.bf16.msra.mxu0 0
  %1351 = vmatprep.subr.bf16.mxu0 0
  %1352 = vmatpush1.bf16.msra.mxu0 0
  %1353 = vmatprep.subr.bf16.mxu0 0
  %1354 = vmatpush1.bf16.msra.mxu0 0
  %1355 = vmatprep.subr.bf16.mxu0 0
  %1356 = vmatpush1.bf16.msra.mxu0 0
  %1357 = vmatprep.subr.bf16.mxu0 0
  %1358 = vmatpush1.bf16.msra.mxu0 0
  %1359 = vmatprep.mubr.bf16.mxu0 0
  %1360 = vmatmul.mubr.bf16.gmra.mrb[0].mxu0 %v1325
  %v1361 = vpop.f32.mrb[0].mxu0
  %v1362 = vadd.f32 0.0, %v1361
  %v1363 = vpop.f32.mrb[0].mxu0
  %v1364 = vpop.f32.mrb[0].mxu0
  %v1365 = vpop.f32.mrb[0].mxu0
  %1366 = vdwg.mxu0
  %v1371 = vunpack.c.l.b16 %v1196
  %v1372 = vunpack.c.l.b16 %v1197
  %v1373 = vunpack.c.l.b16 %v1198
  %v1374 = vunpack.c.l.b16 %v1199
  %v1375 = vpack.c.b16 %v1372, %v1371
  %v1376 = vpack.c.b16 %v1374, %v1373
  %v1380 = vsel %vm343, %v1195, 0
  %1382 = vmatprep.subr.bf16.mxu0 0
  %1383 = vmatpush1.bf16.msra.mxu0 %v1375
  %1384 = vmatprep.subr.bf16.mxu0 0
  %1385 = vmatpush1.bf16.msra.mxu0 %v1376
  %1386 = vmatprep.subr.bf16.mxu0 0
  %1387 = vmatpush1.bf16.msra.mxu0 0
  %1388 = vmatprep.subr.bf16.mxu0 0
  %1389 = vmatpush1.bf16.msra.mxu0 0
  %1390 = vmatprep.subr.bf16.mxu0 0
  %1391 = vmatpush1.bf16.msra.mxu0 0
  %1392 = vmatprep.subr.bf16.mxu0 0
  %1393 = vmatpush1.bf16.msra.mxu0 0
  %1394 = vmatprep.subr.bf16.mxu0 0
  %1395 = vmatpush1.bf16.msra.mxu0 0
  %1396 = vmatprep.subr.bf16.mxu0 0
  %1397 = vmatpush1.bf16.msra.mxu0 0
  %1398 = vmatprep.subr.bf16.mxu0 0
  %1399 = vmatpush1.bf16.msra.mxu0 0
  %1400 = vmatprep.subr.bf16.mxu0 0
  %1401 = vmatpush1.bf16.msra.mxu0 0
  %1402 = vmatprep.subr.bf16.mxu0 0
  %1403 = vmatpush1.bf16.msra.mxu0 0
  %1404 = vmatprep.subr.bf16.mxu0 0
  %1405 = vmatpush1.bf16.msra.mxu0 0
  %1406 = vmatprep.subr.bf16.mxu0 0
  %1407 = vmatpush1.bf16.msra.mxu0 0
  %1408 = vmatprep.subr.bf16.mxu0 0
  %1409 = vmatpush1.bf16.msra.mxu0 0
  %1410 = vmatprep.subr.bf16.mxu0 0
  %1411 = vmatpush1.bf16.msra.mxu0 0
  %1412 = vmatprep.subr.bf16.mxu0 0
  %1413 = vmatpush1.bf16.msra.mxu0 0
  %1414 = vmatprep.mubr.bf16.mxu0 0
  %1415 = vmatmul.mubr.bf16.gmra.mrb[0].mxu0 %v1380
  %v1416 = vpop.f32.mrb[0].mxu0
  %v1417 = vadd.f32 %v1362, %v1416
  %v1418 = vpop.f32.mrb[0].mxu0
  %v1419 = vpop.f32.mrb[0].mxu0
  %v1420 = vpop.f32.mrb[0].mxu0
  %1421 = vdwg.mxu0
  %1422 = vrot.lane.b32.xlu0 %v1046, 64
  %v1423 = vpop.permute.xlu0 %1422
  %v1425 = vsel %vm343, %v1423, 0
  %1427 = vmatprep.subr.bf16.mxu0 0
  %1428 = vmatpush1.bf16.msra.mxu0 %v1083
  %1429 = vmatprep.subr.bf16.mxu0 0
  %1430 = vmatpush1.bf16.msra.mxu0 %v1084
  %1431 = vmatprep.subr.bf16.mxu0 0
  %1432 = vmatpush1.bf16.msra.mxu0 0
  %1433 = vmatprep.subr.bf16.mxu0 0
  %1434 = vmatpush1.bf16.msra.mxu0 0
  %1435 = vmatprep.subr.bf16.mxu0 0
  %1436 = vmatpush1.bf16.msra.mxu0 0
  %1437 = vmatprep.subr.bf16.mxu0 0
  %1438 = vmatpush1.bf16.msra.mxu0 0
  %1439 = vmatprep.subr.bf16.mxu0 0
  %1440 = vmatpush1.bf16.msra.mxu0 0
  %1441 = vmatprep.subr.bf16.mxu0 0
  %1442 = vmatpush1.bf16.msra.mxu0 0
  %1443 = vmatprep.subr.bf16.mxu0 0
  %1444 = vmatpush1.bf16.msra.mxu0 0
  %1445 = vmatprep.subr.bf16.mxu0 0
  %1446 = vmatpush1.bf16.msra.mxu0 0
  %1447 = vmatprep.subr.bf16.mxu0 0
  %1448 = vmatpush1.bf16.msra.mxu0 0
  %1449 = vmatprep.subr.bf16.mxu0 0
  %1450 = vmatpush1.bf16.msra.mxu0 0
  %1451 = vmatprep.subr.bf16.mxu0 0
  %1452 = vmatpush1.bf16.msra.mxu0 0
  %1453 = vmatprep.subr.bf16.mxu0 0
  %1454 = vmatpush1.bf16.msra.mxu0 0
  %1455 = vmatprep.subr.bf16.mxu0 0
  %1456 = vmatpush1.bf16.msra.mxu0 0
  %1457 = vmatprep.subr.bf16.mxu0 0
  %1458 = vmatpush1.bf16.msra.mxu0 0
  %1459 = vmatprep.mubr.bf16.mxu0 0
  %1460 = vmatmul.mubr.bf16.gmra.mrb[0].mxu0 %v1425
  %v1461 = vpop.f32.mrb[0].mxu0
  %v1462 = vadd.f32 %v1092, %v1461
  %v1463 = vpop.f32.mrb[0].mxu0
  %v1464 = vpop.f32.mrb[0].mxu0
  %v1465 = vpop.f32.mrb[0].mxu0
  %1466 = vdwg.mxu0
  %v1467 = vsel %vm387, %v1462, -inf
  %1468 = vmax.xlane.f32.xlu0 %v1467
  %v1469 = vpop.xlane.xlu0 %1468
  %v1470 = vsub.f32 %v1462, %v1469
  %v1471 = vmul.f32 %v1470, 1.442695
  %v1472 = vpow.pop %v1471
  %v1473 = vsel %vm387, %v1472, 0.0
  %1474 = vadd.xlane.f32.xlu0 %v1473
  %v1475 = vpop.xlane.xlu0 %1474
  %v1476 = vrcp.pop %v1475
  %v1477 = vmul.f32 %v1472, %v1476
  %v1478 = vpack.c.bf16 %v1477, %v1477
  %1479 = vrot.lane.b32.xlu0 %v1087, 64
  %v1480 = vpop.permute.xlu0 %1479
  %v1482 = vsel %vm387, %v1478, 0
  %v1485 = vsel %vm403, %v1480, 0
  %1487 = vmatprep.subr.bf16.mxu0 0
  %1488 = vmatpush1.bf16.msra.mxu0 %v1485
  %1489 = vmatprep.subr.bf16.mxu0 0
  %1490 = vmatpush1.bf16.msra.mxu0 0
  %1491 = vmatprep.subr.bf16.mxu0 0
  %1492 = vmatpush1.bf16.msra.mxu0 0
  %1493 = vmatprep.subr.bf16.mxu0 0
  %1494 = vmatpush1.bf16.msra.mxu0 0
  %1495 = vmatprep.subr.bf16.mxu0 0
  %1496 = vmatpush1.bf16.msra.mxu0 0
  %1497 = vmatprep.subr.bf16.mxu0 0
  %1498 = vmatpush1.bf16.msra.mxu0 0
  %1499 = vmatprep.subr.bf16.mxu0 0
  %1500 = vmatpush1.bf16.msra.mxu0 0
  %1501 = vmatprep.subr.bf16.mxu0 0
  %1502 = vmatpush1.bf16.msra.mxu0 0
  %1503 = vmatprep.subr.bf16.mxu0 0
  %1504 = vmatpush1.bf16.msra.mxu0 0
  %1505 = vmatprep.subr.bf16.mxu0 0
  %1506 = vmatpush1.bf16.msra.mxu0 0
  %1507 = vmatprep.subr.bf16.mxu0 0
  %1508 = vmatpush1.bf16.msra.mxu0 0
  %1509 = vmatprep.subr.bf16.mxu0 0
  %1510 = vmatpush1.bf16.msra.mxu0 0
  %1511 = vmatprep.subr.bf16.mxu0 0
  %1512 = vmatpush1.bf16.msra.mxu0 0
  %1513 = vmatprep.subr.bf16.mxu0 0
  %1514 = vmatpush1.bf16.msra.mxu0 0
  %1515 = vmatprep.subr.bf16.mxu0 0
  %1516 = vmatpush1.bf16.msra.mxu0 0
  %1517 = vmatprep.subr.bf16.mxu0 0
  %1518 = vmatpush1.bf16.msra.mxu0 0
  %1519 = vmatprep.mubr.bf16.mxu0 0
  %1520 = vmatmul.mubr.bf16.gmra.mrb[0].mxu0 %v1482
  %v1521 = vpop.f32.mrb[0].mxu0
  %v1522 = vadd.f32 0.0, %v1521
  %v1523 = vpop.f32.mrb[0].mxu0
  %v1524 = vpop.f32.mrb[0].mxu0
  %v1525 = vpop.f32.mrb[0].mxu0
  %1526 = vdwg.mxu0
  %v1527 = vpack.c.bf16 %v1522, %v1522
  %v1528 = vld [vmem:[%s4 + $0x20] sm:$0xf]
  %v1529 = vld [vmem:[%s4 + $0x24] sm:$0xf]
  %v1530 = vld [vmem:[%s4 + $0x28] sm:$0xf]
  %v1531 = vld [vmem:[%s4 + $0x2c] sm:$0xf]
  %v1536 = vunpack.c.l.b16 %v1528
  %v1537 = vunpack.c.l.b16 %v1529
  %v1538 = vunpack.c.l.b16 %v1530
  %v1539 = vunpack.c.l.b16 %v1531
  %v1540 = vpack.c.b16 %v1537, %v1536
  %v1541 = vpack.c.b16 %v1539, %v1538
  %v1545 = vsel %vm343, %v1527, 0
  %1547 = vmatprep.subr.bf16.mxu0 0
  %1548 = vmatpush1.bf16.msra.mxu0 %v1540
  %1549 = vmatprep.subr.bf16.mxu0 0
  %1550 = vmatpush1.bf16.msra.mxu0 %v1541
  %1551 = vmatprep.subr.bf16.mxu0 0
  %1552 = vmatpush1.bf16.msra.mxu0 0
  %1553 = vmatprep.subr.bf16.mxu0 0
  %1554 = vmatpush1.bf16.msra.mxu0 0
  %1555 = vmatprep.subr.bf16.mxu0 0
  %1556 = vmatpush1.bf16.msra.mxu0 0
  %1557 = vmatprep.subr.bf16.mxu0 0
  %1558 = vmatpush1.bf16.msra.mxu0 0
  %1559 = vmatprep.subr.bf16.mxu0 0
  %1560 = vmatpush1.bf16.msra.mxu0 0
  %1561 = vmatprep.subr.bf16.mxu0 0
  %1562 = vmatpush1.bf16.msra.mxu0 0
  %1563 = vmatprep.subr.bf16.mxu0 0
  %1564 = vmatpush1.bf16.msra.mxu0 0
  %1565 = vmatprep.subr.bf16.mxu0 0
  %1566 = vmatpush1.bf16.msra.mxu0 0
  %1567 = vmatprep.subr.bf16.mxu0 0
  %1568 = vmatpush1.bf16.msra.mxu0 0
  %1569 = vmatprep.subr.bf16.mxu0 0
  %1570 = vmatpush1.bf16.msra.mxu0 0
  %1571 = vmatprep.subr.bf16.mxu0 0
  %1572 = vmatpush1.bf16.msra.mxu0 0
  %1573 = vmatprep.subr.bf16.mxu0 0
  %1574 = vmatpush1.bf16.msra.mxu0 0
  %1575 = vmatprep.subr.bf16.mxu0 0
  %1576 = vmatpush1.bf16.msra.mxu0 0
  %1577 = vmatprep.subr.bf16.mxu0 0
  %1578 = vmatpush1.bf16.msra.mxu0 0
  %1579 = vmatprep.mubr.bf16.mxu0 0
  %1580 = vmatmul.mubr.bf16.gmra.mrb[0].mxu0 %v1545
  %v1581 = vpop.f32.mrb[0].mxu0
  %v1582 = vadd.f32 0.0, %v1581
  %v1583 = vpop.f32.mrb[0].mxu0
  %v1584 = vpop.f32.mrb[0].mxu0
  %v1585 = vpop.f32.mrb[0].mxu0
  %1586 = vdwg.mxu0
  %v1587 = vadd.f32 %v1417, %v1582
  %1588 = vrot.lane.b32.xlu0 %v1046, 32
  %v1589 = vpop.permute.xlu0 %1588
  %v1591 = vsel %vm343, %v1589, 0
  %1593 = vmatprep.subr.bf16.mxu0 0
  %1594 = vmatpush1.bf16.msra.mxu0 %v1085
  %1595 = vmatprep.subr.bf16.mxu0 0
  %1596 = vmatpush1.bf16.msra.mxu0 %v1086
  %1597 = vmatprep.subr.bf16.mxu0 0
  %1598 = vmatpush1.bf16.msra.mxu0 0
  %1599 = vmatprep.subr.bf16.mxu0 0
  %1600 = vmatpush1.bf16.msra.mxu0 0
  %1601 = vmatprep.subr.bf16.mxu0 0
  %1602 = vmatpush1.bf16.msra.mxu0 0
  %1603 = vmatprep.subr.bf16.mxu0 0
  %1604 = vmatpush1.bf16.msra.mxu0 0
  %1605 = vmatprep.subr.bf16.mxu0 0
  %1606 = vmatpush1.bf16.msra.mxu0 0
  %1607 = vmatprep.subr.bf16.mxu0 0
  %1608 = vmatpush1.bf16.msra.mxu0 0
  %1609 = vmatprep.subr.bf16.mxu0 0
  %1610 = vmatpush1.bf16.msra.mxu0 0
  %1611 = vmatprep.subr.bf16.mxu0 0
  %1612 = vmatpush1.bf16.msra.mxu0 0
  %1613 = vmatprep.subr.bf16.mxu0 0
  %1614 = vmatpush1.bf16.msra.mxu0 0
  %1615 = vmatprep.subr.bf16.mxu0 0
  %1616 = vmatpush1.bf16.msra.mxu0 0
  %1617 = vmatprep.subr.bf16.mxu0 0
  %1618 = vmatpush1.bf16.msra.mxu0 0
  %1619 = vmatprep.subr.bf16.mxu0 0
  %1620 = vmatpush1.bf16.msra.mxu0 0
  %1621 = vmatprep.subr.bf16.mxu0 0
  %1622 = vmatpush1.bf16.msra.mxu0 0
  %1623 = vmatprep.subr.bf16.mxu0 0
  %1624 = vmatpush1.bf16.msra.mxu0 0
  %1625 = vmatprep.mubr.bf16.mxu0 0
  %1626 = vmatmul.mubr.bf16.gmra.mrb[0].mxu0 %v1591
  %v1627 = vpop.f32.mrb[0].mxu0
  %v1628 = vadd.f32 %v1092, %v1627
  %v1629 = vpop.f32.mrb[0].mxu0
  %v1630 = vpop.f32.mrb[0].mxu0
  %v1631 = vpop.f32.mrb[0].mxu0
  %1632 = vdwg.mxu0
  %v1633 = vsel %vm387, %v1628, -inf
  %1634 = vmax.xlane.f32.xlu0 %v1633
  %v1635 = vpop.xlane.xlu0 %1634
  %v1636 = vsub.f32 %v1628, %v1635
  %v1637 = vmul.f32 %v1636, 1.442695
  %v1638 = vpow.pop %v1637
  %v1639 = vsel %vm387, %v1638, 0.0
  %1640 = vadd.xlane.f32.xlu0 %v1639
  %v1641 = vpop.xlane.xlu0 %1640
  %v1642 = vrcp.pop %v1641
  %v1643 = vmul.f32 %v1638, %v1642
  %v1644 = vpack.c.bf16 %v1643, %v1643
  %1645 = vrot.lane.b32.xlu0 %v1087, 32
  %v1646 = vpop.permute.xlu0 %1645
  %v1648 = vsel %vm387, %v1644, 0
  %v1651 = vsel %vm403, %v1646, 0
  %1653 = vmatprep.subr.bf16.mxu0 0
  %1654 = vmatpush1.bf16.msra.mxu0 %v1651
  %1655 = vmatprep.subr.bf16.mxu0 0
  %1656 = vmatpush1.bf16.msra.mxu0 0
  %1657 = vmatprep.subr.bf16.mxu0 0
  %1658 = vmatpush1.bf16.msra.mxu0 0
  %1659 = vmatprep.subr.bf16.mxu0 0
  %1660 = vmatpush1.bf16.msra.mxu0 0
  %1661 = vmatprep.subr.bf16.mxu0 0
  %1662 = vmatpush1.bf16.msra.mxu0 0
  %1663 = vmatprep.subr.bf16.mxu0 0
  %1664 = vmatpush1.bf16.msra.mxu0 0
  %1665 = vmatprep.subr.bf16.mxu0 0
  %1666 = vmatpush1.bf16.msra.mxu0 0
  %1667 = vmatprep.subr.bf16.mxu0 0
  %1668 = vmatpush1.bf16.msra.mxu0 0
  %1669 = vmatprep.subr.bf16.mxu0 0
  %1670 = vmatpush1.bf16.msra.mxu0 0
  %1671 = vmatprep.subr.bf16.mxu0 0
  %1672 = vmatpush1.bf16.msra.mxu0 0
  %1673 = vmatprep.subr.bf16.mxu0 0
  %1674 = vmatpush1.bf16.msra.mxu0 0
  %1675 = vmatprep.subr.bf16.mxu0 0
  %1676 = vmatpush1.bf16.msra.mxu0 0
  %1677 = vmatprep.subr.bf16.mxu0 0
  %1678 = vmatpush1.bf16.msra.mxu0 0
  %1679 = vmatprep.subr.bf16.mxu0 0
  %1680 = vmatpush1.bf16.msra.mxu0 0
  %1681 = vmatprep.subr.bf16.mxu0 0
  %1682 = vmatpush1.bf16.msra.mxu0 0
  %1683 = vmatprep.subr.bf16.mxu0 0
  %1684 = vmatpush1.bf16.msra.mxu0 0
  %1685 = vmatprep.mubr.bf16.mxu0 0
  %1686 = vmatmul.mubr.bf16.gmra.mrb[0].mxu0 %v1648
  %v1687 = vpop.f32.mrb[0].mxu0
  %v1688 = vadd.f32 0.0, %v1687
  %v1689 = vpop.f32.mrb[0].mxu0
  %v1690 = vpop.f32.mrb[0].mxu0
  %v1691 = vpop.f32.mrb[0].mxu0
  %1692 = vdwg.mxu0
  %v1693 = vpack.c.bf16 %v1688, %v1688
  %v1694 = vld [vmem:[%s4 + $0x30] sm:$0xf]
  %v1695 = vld [vmem:[%s4 + $0x34] sm:$0xf]
  %v1696 = vld [vmem:[%s4 + $0x38] sm:$0xf]
  %v1697 = vld [vmem:[%s4 + $0x3c] sm:$0xf]
  %v1702 = vunpack.c.l.b16 %v1694
  %v1703 = vunpack.c.l.b16 %v1695
  %v1704 = vunpack.c.l.b16 %v1696
  %v1705 = vunpack.c.l.b16 %v1697
  %v1706 = vpack.c.b16 %v1703, %v1702
  %v1707 = vpack.c.b16 %v1705, %v1704
  %v1711 = vsel %vm343, %v1693, 0
  %1713 = vmatprep.subr.bf16.mxu0 0
  %1714 = vmatpush1.bf16.msra.mxu0 %v1706
  %1715 = vmatprep.subr.bf16.mxu0 0
  %1716 = vmatpush1.bf16.msra.mxu0 %v1707
  %1717 = vmatprep.subr.bf16.mxu0 0
  %1718 = vmatpush1.bf16.msra.mxu0 0
  %1719 = vmatprep.subr.bf16.mxu0 0
  %1720 = vmatpush1.bf16.msra.mxu0 0
  %1721 = vmatprep.subr.bf16.mxu0 0
  %1722 = vmatpush1.bf16.msra.mxu0 0
  %1723 = vmatprep.subr.bf16.mxu0 0
  %1724 = vmatpush1.bf16.msra.mxu0 0
  %1725 = vmatprep.subr.bf16.mxu0 0
  %1726 = vmatpush1.bf16.msra.mxu0 0
  %1727 = vmatprep.subr.bf16.mxu0 0
  %1728 = vmatpush1.bf16.msra.mxu0 0
  %1729 = vmatprep.subr.bf16.mxu0 0
  %1730 = vmatpush1.bf16.msra.mxu0 0
  %1731 = vmatprep.subr.bf16.mxu0 0
  %1732 = vmatpush1.bf16.msra.mxu0 0
  %1733 = vmatprep.subr.bf16.mxu0 0
  %1734 = vmatpush1.bf16.msra.mxu0 0
  %1735 = vmatprep.subr.bf16.mxu0 0
  %1736 = vmatpush1.bf16.msra.mxu0 0
  %1737 = vmatprep.subr.bf16.mxu0 0
  %1738 = vmatpush1.bf16.msra.mxu0 0
  %1739 = vmatprep.subr.bf16.mxu0 0
  %1740 = vmatpush1.bf16.msra.mxu0 0
  %1741 = vmatprep.subr.bf16.mxu0 0
  %1742 = vmatpush1.bf16.msra.mxu0 0
  %1743 = vmatprep.subr.bf16.mxu0 0
  %1744 = vmatpush1.bf16.msra.mxu0 0
  %1745 = vmatprep.mubr.bf16.mxu0 0
  %1746 = vmatmul.mubr.bf16.gmra.mrb[0].mxu0 %v1711
  %v1747 = vpop.f32.mrb[0].mxu0
  %v1748 = vadd.f32 0.0, %v1747
  %v1749 = vpop.f32.mrb[0].mxu0
  %v1750 = vpop.f32.mrb[0].mxu0
  %v1751 = vpop.f32.mrb[0].mxu0
  %1752 = vdwg.mxu0
  %v1753 = vadd.f32 %v1587, %v1748
  %v1754 = vld [vmem:[%s5] sm:$0x1]
  %v1756 = vlaneseq
  %v1757 = vshrl.u32 %v1756, 7
  %v1758 = vsub.s32 0, %v1757
  %v1759 = vrot.slane %v1754, %v1758
  %v1761 = vadd.f32 %v1753, %v1759
  %v1762 = vadd.f32 %v31, %v1761
  %1763 = vadd.xlane.f32.xlu0 %v1762
  %v1764 = vpop.xlane.xlu0 %1763
  %v1765 = vmul.f32 %v1764, %v1017
  %v1766 = vsub.f32 %v1762, %v1765
  %v1767 = vmul.f32 %v1766, %v1766
  %1768 = vadd.xlane.f32.xlu0 %v1767
  %v1769 = vpop.xlane.xlu0 %1768
  %v1770 = vmul.f32 %v1769, %v1017
  %v1771 = vadd.f32 %v1770, 1e-05
  %v1772 = vrsqrt.pop %v1771
  %v1773 = vmul.f32 %v1766, %v1772
  %v1774 = vld [vmem:[%s6] sm:$0x1]
  %v1776 = vlaneseq
  %v1777 = vshrl.u32 %v1776, 7
  %v1778 = vsub.s32 0, %v1777
  %v1779 = vrot.slane %v1774, %v1778
  %v1781 = vmul.f32 %v1773, %v1779
  %v1782 = vld [vmem:[%s7] sm:$0x1]
  %v1784 = vlaneseq
  %v1785 = vshrl.u32 %v1784, 7
  %v1786 = vsub.s32 0, %v1785
  %v1787 = vrot.slane %v1782, %v1786
  %v1789 = vadd.f32 %v1781, %v1787
  %s1790 = scalar_lea.vmem %s8, 8
  %1791 = vst [vmem:[%s1790] sm:$0xff] %v1789
  // Predicated region
  $region34: #{transformer_forward.13} parent=0 // pred_check
    _
  $region35: #{transformer_forward.13} parent=0 // pred_check_branch
    %1793 = sbr.rel (0) target = $region37
  $region36: #{transformer_forward.13} parent=0 // pred_region
    _
  $region37: #{transformer_forward.13} parent=0 // pred_fallthru
    _
  // Predicated region
  $region38: #{transformer_forward.13} parent=0 // pred_check
    _
  $region39: #{transformer_forward.13} parent=0 // pred_check_branch
    %1795 = sbr.rel (0) target = $region41
  $region40: #{transformer_forward.13} parent=0 // pred_region
    _
  $region41: #{transformer_forward.13} parent=0 // pred_fallthru
    _

// kernel: transformer_forward.25
$region0: #{transformer_forward.25}
  #allocation0 [shape = 'u32[]', space=smem, size = 0x4, offset = 0x4, fixed_abs, tag = 'smem constant byte address 0x4 - core index']
  #allocation1 [shape = 'u32[144,128]{1,0:T(1,128)}', space=vmem, size = 0x12000, scoped, tag = 'internal scratch']
  #allocation2 [shape = 'f32[16,24]{1,0:T(8,128)}', space=vmem, size = 0x2000, scoped, tag = 'scratch operand']
  %s0 = inlined_call_operand.vmem [shape: bf16[16,128], index: 0, kind: input, shape index: {}]
  %s1 = inlined_call_operand.vmem [shape: bf16[128,24], index: 1, kind: input, shape index: {}]
  %s2 = inlined_call_operand.vmem [shape: f32[1,24], index: 2, kind: input, shape index: {}]
  %s3 = inlined_call_operand.hbm [shape: f32[16,24], index: 3, kind: output, shape index: {}]
  %s4 = sld [smem:[#allocation0]]
  $region30: #{transformer_forward.25} parent=0
    _
  %s6 = ssub.s32 1, %s4
  %s7 = scalar_select 0, %s6, %s4
  $region1: #{transformer_forward.25} parent=0
    #allocation3 [shape = 'u8[8192]{0}', space=vmem, size = 0x2000, scoped, tag = 'output window, operand 0, single buffered']
    #allocation4 [shape = 's32[1]{0}', space=sflag, size = 0x4, scoped, tag = 'scoped memory for transformer_forward.25']
    %8 = vsyncpa [#allocation4], 0
    // Predicated region
    $region2: #{transformer_forward.25} parent=1 // pred_check
      _
    $region3: #{transformer_forward.25} parent=1 // pred_check_branch
      %10 = sbr.rel (0) target = $region5
    $region4: #{transformer_forward.25} parent=1 // pred_region
      _
    $region5: #{transformer_forward.25} parent=1 // pred_fallthru
      _
    // Predicated region
    $region6: #{transformer_forward.25} parent=1 // pred_check
      _
    $region7: #{transformer_forward.25} parent=1 // pred_check_branch
      %12 = sbr.rel (0) target = $region9
    $region8: #{transformer_forward.25} parent=1 // pred_region
      _
    $region9: #{transformer_forward.25} parent=1 // pred_fallthru
      _
    // Predicated region
    $region10: #{transformer_forward.25} parent=1 // pred_check
      _
    $region11: #{transformer_forward.25} parent=1 // pred_check_branch
      %14 = sbr.rel (0) target = $region13
    $region12: #{transformer_forward.25} parent=1 // pred_region
      _
    $region13: #{transformer_forward.25} parent=1 // pred_fallthru
      _
    %p16 = scmp.eq.s32.totalorder 0, 0
    // Predicated region
    $region14: #{transformer_forward.25} parent=1 // pred_check
      %p17 = pneg %p16
    $region15: #{transformer_forward.25} parent=1 // pred_check_branch
      %19 = sbr.rel (%p17) target = $region17
    $region16: #{transformer_forward.25} parent=1 // pred_region
      %vm20 = vcmask 195584
      %21 = vst.msk [vmem:[#allocation2] sm:$0xff] %vm20, 0.0
      %22 = vst.msk [vmem:[#allocation2 + $0x8] sm:$0xff] %vm20, 0.0
    $region17: #{transformer_forward.25} parent=1 // pred_fallthru
      _
    %v23 = vld [vmem:[#allocation2] sm:$0xff]
    %v24 = vld [vmem:[#allocation2 + $0x8] sm:$0xff]
    %v25 = vld [vmem:[%s0] sm:$0xf]
    %v26 = vld [vmem:[%s0 + $0x4] sm:$0xf]
    %v27 = vld [vmem:[%s1] sm:$0xf]
    %v28 = vld [vmem:[%s1 + $0x4] sm:$0xf]
    %v29 = vld [vmem:[%s1 + $0x8] sm:$0xf]
    %v30 = vld [vmem:[%s1 + $0xc] sm:$0xf]
    %v31 = vld [vmem:[%s1 + $0x10] sm:$0xf]
    %v32 = vld [vmem:[%s1 + $0x14] sm:$0xf]
    %v33 = vld [vmem:[%s1 + $0x18] sm:$0xf]
    %v34 = vld [vmem:[%s1 + $0x1c] sm:$0xf]
    %v35 = vld [vmem:[%s1 + $0x20] sm:$0xf]
    %v36 = vld [vmem:[%s1 + $0x24] sm:$0xf]
    %v37 = vld [vmem:[%s1 + $0x28] sm:$0xf]
    %v38 = vld [vmem:[%s1 + $0x2c] sm:$0xf]
    %v39 = vld [vmem:[%s1 + $0x30] sm:$0xf]
    %v40 = vld [vmem:[%s1 + $0x34] sm:$0xf]
    %v41 = vld [vmem:[%s1 + $0x38] sm:$0xf]
    %v42 = vld [vmem:[%s1 + $0x3c] sm:$0xf]
    %v45 = vunpack.c.l.b16 %v25
    %v46 = vunpack.c.l.b16 %v26
    %v47 = vpack.c.b16 %v46, %v45
    %v65 = vunpack.c.l.b16 %v27
    %v66 = vunpack.c.l.b16 %v28
    %v67 = vunpack.c.l.b16 %v29
    %v68 = vunpack.c.l.b16 %v30
    %v69 = vunpack.c.l.b16 %v31
    %v70 = vunpack.c.l.b16 %v32
    %v71 = vunpack.c.l.b16 %v33
    %v72 = vunpack.c.l.b16 %v34
    %v73 = vunpack.c.l.b16 %v35
    %v74 = vunpack.c.l.b16 %v36
    %v75 = vunpack.c.l.b16 %v37
    %v76 = vunpack.c.l.b16 %v38
    %v77 = vunpack.c.l.b16 %v39
    %v78 = vunpack.c.l.b16 %v40
    %v79 = vunpack.c.l.b16 %v41
    %v80 = vunpack.c.l.b16 %v42
    %v81 = vpack.c.b16 %v66, %v65
    %v82 = vpack.c.b16 %v68, %v67
    %v83 = vpack.c.b16 %v70, %v69
    %v84 = vpack.c.b16 %v72, %v71
    %v85 = vpack.c.b16 %v74, %v73
    %v86 = vpack.c.b16 %v76, %v75
    %v87 = vpack.c.b16 %v78, %v77
    %v88 = vpack.c.b16 %v80, %v79
    %97 = vmatprep.subr.bf16.mxu0 0
    %98 = vmatpush1.bf16.msra.mxu0 %v81
    %99 = vmatprep.subr.bf16.mxu0 0
    %100 = vmatpush1.bf16.msra.mxu0 %v82
    %101 = vmatprep.subr.bf16.mxu0 0
    %102 = vmatpush1.bf16.msra.mxu0 %v83
    %103 = vmatprep.subr.bf16.mxu0 0
    %104 = vmatpush1.bf16.msra.mxu0 %v84
    %105 = vmatprep.subr.bf16.mxu0 0
    %106 = vmatpush1.bf16.msra.mxu0 %v85
    %107 = vmatprep.subr.bf16.mxu0 0
    %108 = vmatpush1.bf16.msra.mxu0 %v86
    %109 = vmatprep.subr.bf16.mxu0 0
    %110 = vmatpush1.bf16.msra.mxu0 %v87
    %111 = vmatprep.subr.bf16.mxu0 0
    %112 = vmatpush1.bf16.msra.mxu0 %v88
    %113 = vmatprep.subr.bf16.mxu0 0
    %114 = vmatpush1.bf16.msra.mxu0 0
    %115 = vmatprep.subr.bf16.mxu0 0
    %116 = vmatpush1.bf16.msra.mxu0 0
    %117 = vmatprep.subr.bf16.mxu0 0
    %118 = vmatpush1.bf16.msra.mxu0 0
    %119 = vmatprep.subr.bf16.mxu0 0
    %120 = vmatpush1.bf16.msra.mxu0 0
    %121 = vmatprep.subr.bf16.mxu0 0
    %122 = vmatpush1.bf16.msra.mxu0 0
    %123 = vmatprep.subr.bf16.mxu0 0
    %124 = vmatpush1.bf16.msra.mxu0 0
    %125 = vmatprep.subr.bf16.mxu0 0
    %126 = vmatpush1.bf16.msra.mxu0 0
    %127 = vmatprep.subr.bf16.mxu0 0
    %128 = vmatpush1.bf16.msra.mxu0 0
    %129 = vmatprep.mubr.bf16.mxu0 0
    %130 = vmatmul.mubr.bf16.gmra.mrb[0].mxu0 %v47
    %v131 = vpop.f32.mrb[0].mxu0
    %v132 = vadd.f32 0.0, %v131
    %v133 = vpop.f32.mrb[0].mxu0
    %v134 = vpop.f32.mrb[0].mxu0
    %v135 = vadd.f32 0.0, %v134
    %v136 = vpop.f32.mrb[0].mxu0
    %137 = vdwg.mxu0
    %v138 = vadd.f32 %v23, %v132
    %v139 = vadd.f32 %v24, %v135
    %vm140 = vcmask 195584
    %141 = vst.msk [vmem:[#allocation2] sm:$0xff] %vm140, %v138
    %142 = vst.msk [vmem:[#allocation2 + $0x8] sm:$0xff] %vm140, %v139
    // Predicated region
    $region18: #{transformer_forward.25} parent=1 // pred_check
      %p143 = pneg %p16
    $region19: #{transformer_forward.25} parent=1 // pred_check_branch
      %145 = sbr.rel (%p143) target = $region21
    $region20: #{transformer_forward.25} parent=1 // pred_region
      %v146 = vld [vmem:[#allocation2] sm:$0xff]
      %v147 = vld [vmem:[#allocation2 + $0x8] sm:$0xff]
      %v148 = vld [vmem:[%s2] sm:$0x1]
      %v150 = vlaneseq
      %v151 = vshrl.u32 %v150, 7
      %v152 = vsub.s32 0, %v151
      %v153 = vrot.slane %v148, %v152
      %v155 = vadd.f32 %v146, %v153
      %v156 = vadd.f32 %v147, %v153
      %157 = vst.msk [vmem:[#allocation3] sm:$0xff] %vm140, %v155
      %158 = vst.msk [vmem:[#allocation3 + $0x8] sm:$0xff] %vm140, %v156
    $region21: #{transformer_forward.25} parent=1 // pred_fallthru
      _
    // Predicated region
    $region22: #{transformer_forward.25} parent=1 // pred_check
      _
    $region23: #{transformer_forward.25} parent=1 // pred_check_branch
      %160 = sbr.rel (0) target = $region25
    $region24: #{transformer_forward.25} parent=1 // pred_region
      %s162 = ssub.s32 256, 256
      %163 = vsyncadd [#allocation4], %s162
      %s164 = sshll.u32 [#allocation3], 4
      %s165 = int_to_ptr.vmem [resolvable:$true] %s164
      %170 = dma.vmem_to_hbm [thread:$0]  %s165, 256, %s3, [#allocation4], 128, 128, 8
    $region25: #{transformer_forward.25} parent=1 // pred_fallthru
      _
    // Predicated region
    $region26: #{transformer_forward.25} parent=1 // pred_check
      _
    $region27: #{transformer_forward.25} parent=1 // pred_check_branch
      %172 = sbr.rel (0) target = $region29
    $region28: #{transformer_forward.25} parent=1 // pred_region
      %173 = dma.done [#allocation4], 256
    $region29: #{transformer_forward.25} parent=1 // pred_fallthru
      _
    %174 = vsyncpa [#allocation4], 1

// kernel: transformer_forward.19
$region0: #{transformer_forward.19}
  #allocation0 [shape = 'u32[]', space=smem, size = 0x4, offset = 0x4, fixed_abs, tag = 'smem constant byte address 0x4 - core index']
  #allocation1 [shape = 'u32[144,128]{1,0:T(1,128)}', space=vmem, size = 0x12000, scoped, tag = 'internal scratch']
  %s0 = inlined_call_operand.vmem [shape: f32[2,8,128], index: 0, kind: input, shape index: {}]
  %s1 = inlined_call_operand.vmem [shape: bf16[2,8,128], index: 1, kind: input, shape index: {}]
  %s2 = inlined_call_operand.vmem [shape: bf16[128,384], index: 2, kind: input, shape index: {}]
  %s3 = inlined_call_operand.vmem [shape: f32[1,384], index: 3, kind: input, shape index: {}]
  %s4 = inlined_call_operand.vmem [shape: bf16[128,128], index: 4, kind: input, shape index: {}]
  %s5 = inlined_call_operand.vmem [shape: f32[1,128], index: 5, kind: input, shape index: {}]
  %s6 = inlined_call_operand.vmem [shape: f32[1,128], index: 6, kind: input, shape index: {}]
  %s7 = inlined_call_operand.vmem [shape: f32[1,128], index: 7, kind: input, shape index: {}]
  %s8 = inlined_call_operand.vmem [shape: f32[2,8,128], index: 8, kind: output, shape index: {}]
  %s9 = sld [smem:[#allocation0]]
  $region42: #{transformer_forward.19} parent=0
    _
  %s11 = ssub.s32 1, %s9
  %s12 = scalar_select 0, %s11, %s9
  // Predicated region
  $region2: #{transformer_forward.19} parent=0 // pred_check
    _
  $region3: #{transformer_forward.19} parent=0 // pred_check_branch
    %14 = sbr.rel (0) target = $region5
  $region4: #{transformer_forward.19} parent=0 // pred_region
    _
  $region5: #{transformer_forward.19} parent=0 // pred_fallthru
    _
  // Predicated region
  $region6: #{transformer_forward.19} parent=0 // pred_check
    _
  $region7: #{transformer_forward.19} parent=0 // pred_check_branch
    %16 = sbr.rel (0) target = $region9
  $region8: #{transformer_forward.19} parent=0 // pred_region
    _
  $region9: #{transformer_forward.19} parent=0 // pred_fallthru
    _
  // Predicated region
  $region10: #{transformer_forward.19} parent=0 // pred_check
    _
  $region11: #{transformer_forward.19} parent=0 // pred_check_branch
    %18 = sbr.rel (0) target = $region13
  $region12: #{transformer_forward.19} parent=0 // pred_region
    _
  $region13: #{transformer_forward.19} parent=0 // pred_fallthru
    _
  // Predicated region
  $region14: #{transformer_forward.19} parent=0 // pred_check
    _
  $region15: #{transformer_forward.19} parent=0 // pred_check_branch
    %20 = sbr.rel (0) target = $region17
  $region16: #{transformer_forward.19} parent=0 // pred_region
    _
  $region17: #{transformer_forward.19} parent=0 // pred_fallthru
    _
  // Predicated region
  $region18: #{transformer_forward.19} parent=0 // pred_check
    _
  $region19: #{transformer_forward.19} parent=0 // pred_check_branch
    %22 = sbr.rel (0) target = $region21
  $region20: #{transformer_forward.19} parent=0 // pred_region
    _
  $region21: #{transformer_forward.19} parent=0 // pred_fallthru
    _
  // Predicated region
  $region22: #{transformer_forward.19} parent=0 // pred_check
    _
  $region23: #{transformer_forward.19} parent=0 // pred_check_branch
    %24 = sbr.rel (0) target = $region25
  $region24: #{transformer_forward.19} parent=0 // pred_region
    _
  $region25: #{transformer_forward.19} parent=0 // pred_fallthru
    _
  // Predicated region
  $region26: #{transformer_forward.19} parent=0 // pred_check
    _
  $region27: #{transformer_forward.19} parent=0 // pred_check_branch
    %26 = sbr.rel (0) target = $region29
  $region28: #{transformer_forward.19} parent=0 // pred_region
    _
  $region29: #{transformer_forward.19} parent=0 // pred_fallthru
    _
  // Predicated region
  $region30: #{transformer_forward.19} parent=0 // pred_check
    _
  $region31: #{transformer_forward.19} parent=0 // pred_check_branch
    %28 = sbr.rel (0) target = $region33
  $region32: #{transformer_forward.19} parent=0 // pred_region
    _
  $region33: #{transformer_forward.19} parent=0 // pred_fallthru
    _
  %v30 = vld [vmem:[%s0] sm:$0xff]
  %v31 = vld [vmem:[%s0 + $0x8] sm:$0xff]
  %v32 = vld [vmem:[%s1] sm:$0xf]
  %v33 = vld [vmem:[%s1 + $0x4] sm:$0xf]
  %v34 = vpack.c.bf16 %v31, %v30
  %v35 = vld [vmem:[%s2] sm:$0xf]
  %v36 = vld [vmem:[%s2 + $0xc] sm:$0xf]
  %v37 = vld [vmem:[%s2 + $0x18] sm:$0xf]
  %v38 = vld [vmem:[%s2 + $0x24] sm:$0xf]
  %v39 = vld [vmem:[%s2 + $0x30] sm:$0xf]
  %v40 = vld [vmem:[%s2 + $0x3c] sm:$0xf]
  %v41 = vld [vmem:[%s2 + $0x48] sm:$0xf]
  %v42 = vld [vmem:[%s2 + $0x54] sm:$0xf]
  %v43 = vld [vmem:[%s2 + $0x60] sm:$0xf]
  %v44 = vld [vmem:[%s2 + $0x6c] sm:$0xf]
  %v45 = vld [vmem:[%s2 + $0x78] sm:$0xf]
  %v46 = vld [vmem:[%s2 + $0x84] sm:$0xf]
  %v47 = vld [vmem:[%s2 + $0x90] sm:$0xf]
  %v48 = vld [vmem:[%s2 + $0x9c] sm:$0xf]
  %v49 = vld [vmem:[%s2 + $0xa8] sm:$0xf]
  %v50 = vld [vmem:[%s2 + $0xb4] sm:$0xf]
  %v51 = vld [vmem:[%s3] sm:$0x1]
  %v53 = vlaneseq
  %v54 = vshrl.u32 %v53, 7
  %v55 = vsub.s32 0, %v54
  %v56 = vrot.slane %v51, %v55
  %v74 = vunpack.c.l.b16 %v35
  %v75 = vunpack.c.l.b16 %v36
  %v76 = vunpack.c.l.b16 %v37
  %v77 = vunpack.c.l.b16 %v38
  %v78 = vunpack.c.l.b16 %v39
  %v79 = vunpack.c.l.b16 %v40
  %v80 = vunpack.c.l.b16 %v41
  %v81 = vunpack.c.l.b16 %v42
  %v82 = vunpack.c.l.b16 %v43
  %v83 = vunpack.c.l.b16 %v44
  %v84 = vunpack.c.l.b16 %v45
  %v85 = vunpack.c.l.b16 %v46
  %v86 = vunpack.c.l.b16 %v47
  %v87 = vunpack.c.l.b16 %v48
  %v88 = vunpack.c.l.b16 %v49
  %v89 = vunpack.c.l.b16 %v50
  %v90 = vpack.c.b16 %v75, %v74
  %v91 = vpack.c.b16 %v77, %v76
  %v92 = vpack.c.b16 %v79, %v78
  %v93 = vpack.c.b16 %v81, %v80
  %v94 = vpack.c.b16 %v83, %v82
  %v95 = vpack.c.b16 %v85, %v84
  %v96 = vpack.c.b16 %v87, %v86
  %v97 = vpack.c.b16 %v89, %v88
  %106 = vmatprep.subr.bf16.mxu0 0
  %107 = vmatpush1.bf16.msra.mxu0 %v90
  %108 = vmatprep.subr.bf16.mxu0 0
  %109 = vmatpush1.bf16.msra.mxu0 %v91
  %110 = vmatprep.subr.bf16.mxu0 0
  %111 = vmatpush1.bf16.msra.mxu0 %v92
  %112 = vmatprep.subr.bf16.mxu0 0
  %113 = vmatpush1.bf16.msra.mxu0 %v93
  %114 = vmatprep.subr.bf16.mxu0 0
  %115 = vmatpush1.bf16.msra.mxu0 %v94
  %116 = vmatprep.subr.bf16.mxu0 0
  %117 = vmatpush1.bf16.msra.mxu0 %v95
  %118 = vmatprep.subr.bf16.mxu0 0
  %119 = vmatpush1.bf16.msra.mxu0 %v96
  %120 = vmatprep.subr.bf16.mxu0 0
  %121 = vmatpush1.bf16.msra.mxu0 %v97
  %122 = vmatprep.subr.bf16.mxu0 0
  %123 = vmatpush1.bf16.msra.mxu0 0
  %124 = vmatprep.subr.bf16.mxu0 0
  %125 = vmatpush1.bf16.msra.mxu0 0
  %126 = vmatprep.subr.bf16.mxu0 0
  %127 = vmatpush1.bf16.msra.mxu0 0
  %128 = vmatprep.subr.bf16.mxu0 0
  %129 = vmatpush1.bf16.msra.mxu0 0
  %130 = vmatprep.subr.bf16.mxu0 0
  %131 = vmatpush1.bf16.msra.mxu0 0
  %132 = vmatprep.subr.bf16.mxu0 0
  %133 = vmatpush1.bf16.msra.mxu0 0
  %134 = vmatprep.subr.bf16.mxu0 0
  %135 = vmatpush1.bf16.msra.mxu0 0
  %136 = vmatprep.subr.bf16.mxu0 0
  %137 = vmatpush1.bf16.msra.mxu0 0
  %138 = vmatprep.mubr.bf16.mxu0 0
  %139 = vmatmul.mubr.bf16.gmra.mrb[0].mxu0 %v34
  %v140 = vpop.f32.mrb[0].mxu0
  %v141 = vadd.f32 %v56, %v140
  %v142 = vpop.f32.mrb[0].mxu0
  %v143 = vpop.f32.mrb[0].mxu0
  %v144 = vadd.f32 %v56, %v143
  %v145 = vpop.f32.mrb[0].mxu0
  %146 = vdwg.mxu0
  %v147 = vld [vmem:[%s2 + $0x4] sm:$0xff]
  %v148 = vld [vmem:[%s2 + $0x10] sm:$0xff]
  %v149 = vld [vmem:[%s2 + $0x1c] sm:$0xff]
  %v150 = vld [vmem:[%s2 + $0x28] sm:$0xff]
  %v151 = vld [vmem:[%s2 + $0x34] sm:$0xff]
  %v152 = vld [vmem:[%s2 + $0x40] sm:$0xff]
  %v153 = vld [vmem:[%s2 + $0x4c] sm:$0xff]
  %v154 = vld [vmem:[%s2 + $0x58] sm:$0xff]
  %v155 = vld [vmem:[%s2 + $0x64] sm:$0xff]
  %v156 = vld [vmem:[%s2 + $0x70] sm:$0xff]
  %v157 = vld [vmem:[%s2 + $0x7c] sm:$0xff]
  %v158 = vld [vmem:[%s2 + $0x88] sm:$0xff]
  %v159 = vld [vmem:[%s2 + $0x94] sm:$0xff]
  %v160 = vld [vmem:[%s2 + $0xa0] sm:$0xff]
  %v161 = vld [vmem:[%s2 + $0xac] sm:$0xff]
  %v162 = vld [vmem:[%s2 + $0xb8] sm:$0xff]
  %v163 = vld [vmem:[%s3 + $0x1] sm:$0x3]
  %v165 = vlaneseq
  %v166 = vshrl.u32 %v165, 7
  %v167 = vsub.s32 0, %v166
  %v168 = vrot.slane %v163, %v167
  %v169 = vlaneseq
  %v170 = vshrl.u32 %v169, 7
  %v171 = vsub.s32 1, %v170
  %v172 = vrot.slane %v163, %v171
  %v177 = vunpack.c.l.b16 %v32
  %v178 = vunpack.c.l.b16 %v33
  %v179 = vpack.c.b16 %v178, %v177
  %v197 = vunpack.c.l.b16 %v147
  %v198 = vunpack.c.h.b16 %v147
  %v199 = vunpack.c.l.b16 %v148
  %v200 = vunpack.c.h.b16 %v148
  %v201 = vunpack.c.l.b16 %v149
  %v202 = vunpack.c.h.b16 %v149
  %v203 = vunpack.c.l.b16 %v150
  %v204 = vunpack.c.h.b16 %v150
  %v205 = vunpack.c.l.b16 %v151
  %v206 = vunpack.c.h.b16 %v151
  %v207 = vunpack.c.l.b16 %v152
  %v208 = vunpack.c.h.b16 %v152
  %v209 = vunpack.c.l.b16 %v153
  %v210 = vunpack.c.h.b16 %v153
  %v211 = vunpack.c.l.b16 %v154
  %v212 = vunpack.c.h.b16 %v154
  %v213 = vunpack.c.l.b16 %v155
  %v214 = vunpack.c.h.b16 %v155
  %v215 = vunpack.c.l.b16 %v156
  %v216 = vunpack.c.h.b16 %v156
  %v217 = vunpack.c.l.b16 %v157
  %v218 = vunpack.c.h.b16 %v157
  %v219 = vunpack.c.l.b16 %v158
  %v220 = vunpack.c.h.b16 %v158
  %v221 = vunpack.c.l.b16 %v159
  %v222 = vunpack.c.h.b16 %v159
  %v223 = vunpack.c.l.b16 %v160
  %v224 = vunpack.c.h.b16 %v160
  %v225 = vunpack.c.l.b16 %v161
  %v226 = vunpack.c.h.b16 %v161
  %v227 = vunpack.c.l.b16 %v162
  %v228 = vunpack.c.h.b16 %v162
  %v229 = vpack.c.b16 %v199, %v197
  %v230 = vpack.c.b16 %v200, %v198
  %v231 = vpack.c.b16 %v203, %v201
  %v232 = vpack.c.b16 %v204, %v202
  %v233 = vpack.c.b16 %v207, %v205
  %v234 = vpack.c.b16 %v208, %v206
  %v235 = vpack.c.b16 %v211, %v209
  %v236 = vpack.c.b16 %v212, %v210
  %v237 = vpack.c.b16 %v215, %v213
  %v238 = vpack.c.b16 %v216, %v214
  %v239 = vpack.c.b16 %v219, %v217
  %v240 = vpack.c.b16 %v220, %v218
  %v241 = vpack.c.b16 %v223, %v221
  %v242 = vpack.c.b16 %v224, %v222
  %v243 = vpack.c.b16 %v227, %v225
  %v244 = vpack.c.b16 %v228, %v226
  %261 = vmatprep.subr.bf16.mxu0 %v230
  %262 = vmatpush1.bf16.msra.mxu0 %v229
  %263 = vmatprep.subr.bf16.mxu0 %v232
  %264 = vmatpush1.bf16.msra.mxu0 %v231
  %265 = vmatprep.subr.bf16.mxu0 %v234
  %266 = vmatpush1.bf16.msra.mxu0 %v233
  %267 = vmatprep.subr.bf16.mxu0 %v236
  %268 = vmatpush1.bf16.msra.mxu0 %v235
  %269 = vmatprep.subr.bf16.mxu0 %v238
  %270 = vmatpush1.bf16.msra.mxu0 %v237
  %271 = vmatprep.subr.bf16.mxu0 %v240
  %272 = vmatpush1.bf16.msra.mxu0 %v239
  %273 = vmatprep.subr.bf16.mxu0 %v242
  %274 = vmatpush1.bf16.msra.mxu0 %v241
  %275 = vmatprep.subr.bf16.mxu0 %v244
  %276 = vmatpush1.bf16.msra.mxu0 %v243
  %277 = vmatprep.subr.bf16.mxu0 0
  %278 = vmatpush1.bf16.msra.mxu0 0
  %279 = vmatprep.subr.bf16.mxu0 0
  %280 = vmatpush1.bf16.msra.mxu0 0
  %281 = vmatprep.subr.bf16.mxu0 0
  %282 = vmatpush1.bf16.msra.mxu0 0
  %283 = vmatprep.subr.bf16.mxu0 0
  %284 = vmatpush1.bf16.msra.mxu0 0
  %285 = vmatprep.subr.bf16.mxu0 0
  %286 = vmatpush1.bf16.msra.mxu0 0
  %287 = vmatprep.subr.bf16.mxu0 0
  %288 = vmatpush1.bf16.msra.mxu0 0
  %289 = vmatprep.subr.bf16.mxu0 0
  %290 = vmatpush1.bf16.msra.mxu0 0
  %291 = vmatprep.subr.bf16.mxu0 0
  %292 = vmatpush1.bf16.msra.mxu0 0
  %293 = vmatprep.mubr.bf16.mxu0 0
  %294 = vmatmul.mubr.bf16.gmra.mrb[0].mxu0 %v179
  %v295 = vpop.f32.mrb[0].mxu0
  %v296 = vadd.f32 %v168, %v295
  %v297 = vpop.f32.mrb[0].mxu0
  %v298 = vadd.f32 %v172, %v297
  %v299 = vpop.f32.mrb[0].mxu0
  %v300 = vadd.f32 %v168, %v299
  %v301 = vpop.f32.mrb[0].mxu0
  %v302 = vadd.f32 %v172, %v301
  %303 = vdwg.mxu0
  %v304 = vpack.c.bf16 %v141, %v141
  %305 = vxpose.xlu0.b32.start [1/16] %v296, 128
  %306 = vxpose.xlu0.b32.cont [2/16] 0.0, 128
  %307 = vxpose.xlu0.b32.cont [3/16] 0.0, 128
  %308 = vxpose.xlu0.b32.cont [4/16] 0.0, 128
  %309 = vxpose.xlu0.b32.cont [5/16] 0.0, 128
  %310 = vxpose.xlu0.b32.cont [6/16] 0.0, 128
  %311 = vxpose.xlu0.b32.cont [7/16] 0.0, 128
  %312 = vxpose.xlu0.b32.cont [8/16] 0.0, 128
  %313 = vxpose.xlu0.b32.cont [9/16] 0.0, 128
  %314 = vxpose.xlu0.b32.cont [10/16] 0.0, 128
  %315 = vxpose.xlu0.b32.cont [11/16] 0.0, 128
  %316 = vxpose.xlu0.b32.cont [12/16] 0.0, 128
  %317 = vxpose.xlu0.b32.cont [13/16] 0.0, 128
  %318 = vxpose.xlu0.b32.cont [14/16] 0.0, 128
  %319 = vxpose.xlu0.b32.cont [15/16] 0.0, 128
  %320 = vxpose.xlu0.b32.end [16/16] 0.0, 128
  %v321 = vpop.trf.xlu0
  %v322 = vpop.trf.xlu0
  %v323 = vpop.trf.xlu0
  %v324 = vpop.trf.xlu0
  %v325 = vpop.trf.xlu0
  %v326 = vpop.trf.xlu0
  %v327 = vpop.trf.xlu0
  %v328 = vpop.trf.xlu0
  %v329 = vpop.trf.xlu0
  %v330 = vpop.trf.xlu0
  %v331 = vpop.trf.xlu0
  %v332 = vpop.trf.xlu0
  %v333 = vpop.trf.xlu0
  %v334 = vpop.trf.xlu0
  %v335 = vpop.trf.xlu0
  %v336 = vpop.trf.xlu0
  %v337 = vpack.c.bf16 %v322, %v321
  %v338 = vpack.c.bf16 %v324, %v323
  %v339 = vpack.c.bf16 %v326, %v325
  %v340 = vpack.c.bf16 %v328, %v327
  %v341 = vpack.c.bf16 %v330, %v329
  %v342 = vpack.c.bf16 %v332, %v331
  %v343 = vpack.c.bf16 %v334, %v333
  %v344 = vpack.c.bf16 %v336, %v335
  %v345 = vpack.c.bf16 %v298, %v298
  %vm346 = vcmask 261120
  %v348 = vsel %vm346, %v304, 0
  %350 = vmatprep.subr.bf16.mxu0 0
  %351 = vmatpush1.bf16.msra.mxu0 %v337
  %352 = vmatprep.subr.bf16.mxu0 0
  %353 = vmatpush1.bf16.msra.mxu0 %v338
  %354 = vmatprep.subr.bf16.mxu0 0
  %355 = vmatpush1.bf16.msra.mxu0 0
  %356 = vmatprep.subr.bf16.mxu0 0
  %357 = vmatpush1.bf16.msra.mxu0 0
  %358 = vmatprep.subr.bf16.mxu0 0
  %359 = vmatpush1.bf16.msra.mxu0 0
  %360 = vmatprep.subr.bf16.mxu0 0
  %361 = vmatpush1.bf16.msra.mxu0 0
  %362 = vmatprep.subr.bf16.mxu0 0
  %363 = vmatpush1.bf16.msra.mxu0 0
  %364 = vmatprep.subr.bf16.mxu0 0
  %365 = vmatpush1.bf16.msra.mxu0 0
  %366 = vmatprep.subr.bf16.mxu0 0
  %367 = vmatpush1.bf16.msra.mxu0 0
  %368 = vmatprep.subr.bf16.mxu0 0
  %369 = vmatpush1.bf16.msra.mxu0 0
  %370 = vmatprep.subr.bf16.mxu0 0
  %371 = vmatpush1.bf16.msra.mxu0 0
  %372 = vmatprep.subr.bf16.mxu0 0
  %373 = vmatpush1.bf16.msra.mxu0 0
  %374 = vmatprep.subr.bf16.mxu0 0
  %375 = vmatpush1.bf16.msra.mxu0 0
  %376 = vmatprep.subr.bf16.mxu0 0
  %377 = vmatpush1.bf16.msra.mxu0 0
  %378 = vmatprep.subr.bf16.mxu0 0
  %379 = vmatpush1.bf16.msra.mxu0 0
  %380 = vmatprep.subr.bf16.mxu0 0
  %381 = vmatpush1.bf16.msra.mxu0 0
  %382 = vmatprep.mubr.bf16.mxu0 0
  %383 = vmatmul.mubr.bf16.gmra.mrb[0].mxu0 %v348
  %v384 = vpop.f32.mrb[0].mxu0
  %v385 = vadd.f32 0.0, %v384
  %v386 = vpop.f32.mrb[0].mxu0
  %v387 = vpop.f32.mrb[0].mxu0
  %v388 = vpop.f32.mrb[0].mxu0
  %389 = vdwg.mxu0
  %vm390 = vcmask 64512
  %v391 = vsel %vm390, %v385, -inf
  %392 = vmax.xlane.f32.xlu0 %v391
  %v393 = vpop.xlane.xlu0 %392
  %v394 = vsub.f32 %v385, %v393
  %v395 = vmul.f32 %v394, 1.442695
  %v396 = vpow.pop %v395
  %v397 = vsel %vm390, %v396, 0.0
  %398 = vadd.xlane.f32.xlu0 %v397
  %v399 = vpop.xlane.xlu0 %398
  %v400 = vrcp.pop %v399
  %v401 = vmul.f32 %v396, %v400
  %v402 = vpack.c.bf16 %v401, %v401
  %v404 = vsel %vm390, %v402, 0
  %vm406 = vcmask 1043456
  %v408 = vsel %vm406, %v345, 0
  %410 = vmatprep.subr.bf16.mxu0 0
  %411 = vmatpush1.bf16.msra.mxu0 %v408
  %412 = vmatprep.subr.bf16.mxu0 0
  %413 = vmatpush1.bf16.msra.mxu0 0
  %414 = vmatprep.subr.bf16.mxu0 0
  %415 = vmatpush1.bf16.msra.mxu0 0
  %416 = vmatprep.subr.bf16.mxu0 0
  %417 = vmatpush1.bf16.msra.mxu0 0
  %418 = vmatprep.subr.bf16.mxu0 0
  %419 = vmatpush1.bf16.msra.mxu0 0
  %420 = vmatprep.subr.bf16.mxu0 0
  %421 = vmatpush1.bf16.msra.mxu0 0
  %422 = vmatprep.subr.bf16.mxu0 0
  %423 = vmatpush1.bf16.msra.mxu0 0
  %424 = vmatprep.subr.bf16.mxu0 0
  %425 = vmatpush1.bf16.msra.mxu0 0
  %426 = vmatprep.subr.bf16.mxu0 0
  %427 = vmatpush1.bf16.msra.mxu0 0
  %428 = vmatprep.subr.bf16.mxu0 0
  %429 = vmatpush1.bf16.msra.mxu0 0
  %430 = vmatprep.subr.bf16.mxu0 0
  %431 = vmatpush1.bf16.msra.mxu0 0
  %432 = vmatprep.subr.bf16.mxu0 0
  %433 = vmatpush1.bf16.msra.mxu0 0
  %434 = vmatprep.subr.bf16.mxu0 0
  %435 = vmatpush1.bf16.msra.mxu0 0
  %436 = vmatprep.subr.bf16.mxu0 0
  %437 = vmatpush1.bf16.msra.mxu0 0
  %438 = vmatprep.subr.bf16.mxu0 0
  %439 = vmatpush1.bf16.msra.mxu0 0
  %440 = vmatprep.subr.bf16.mxu0 0
  %441 = vmatpush1.bf16.msra.mxu0 0
  %442 = vmatprep.mubr.bf16.mxu0 0
  %443 = vmatmul.mubr.bf16.gmra.mrb[0].mxu0 %v404
  %v444 = vpop.f32.mrb[0].mxu0
  %v445 = vadd.f32 0.0, %v444
  %v446 = vpop.f32.mrb[0].mxu0
  %v447 = vpop.f32.mrb[0].mxu0
  %v448 = vpop.f32.mrb[0].mxu0
  %449 = vdwg.mxu0
  %v450 = vpack.c.bf16 %v445, %v445
  %v451 = vld [vmem:[%s4] sm:$0xf]
  %v452 = vld [vmem:[%s4 + $0x4] sm:$0xf]
  %v453 = vld [vmem:[%s4 + $0x8] sm:$0xf]
  %v454 = vld [vmem:[%s4 + $0xc] sm:$0xf]
  %456 = vrot.lane.b32.xlu0 %v304, 96
  %v457 = vpop.permute.xlu0 %456
  %v459 = vsel %vm346, %v457, 0
  %461 = vmatprep.subr.bf16.mxu0 0
  %462 = vmatpush1.bf16.msra.mxu0 %v339
  %463 = vmatprep.subr.bf16.mxu0 0
  %464 = vmatpush1.bf16.msra.mxu0 %v340
  %465 = vmatprep.subr.bf16.mxu0 0
  %466 = vmatpush1.bf16.msra.mxu0 0
  %467 = vmatprep.subr.bf16.mxu0 0
  %468 = vmatpush1.bf16.msra.mxu0 0
  %469 = vmatprep.subr.bf16.mxu0 0
  %470 = vmatpush1.bf16.msra.mxu0 0
  %471 = vmatprep.subr.bf16.mxu0 0
  %472 = vmatpush1.bf16.msra.mxu0 0
  %473 = vmatprep.subr.bf16.mxu0 0
  %474 = vmatpush1.bf16.msra.mxu0 0
  %475 = vmatprep.subr.bf16.mxu0 0
  %476 = vmatpush1.bf16.msra.mxu0 0
  %477 = vmatprep.subr.bf16.mxu0 0
  %478 = vmatpush1.bf16.msra.mxu0 0
  %479 = vmatprep.subr.bf16.mxu0 0
  %480 = vmatpush1.bf16.msra.mxu0 0
  %481 = vmatprep.subr.bf16.mxu0 0
  %482 = vmatpush1.bf16.msra.mxu0 0
  %483 = vmatprep.subr.bf16.mxu0 0
  %484 = vmatpush1.bf16.msra.mxu0 0
  %485 = vmatprep.subr.bf16.mxu0 0
  %486 = vmatpush1.bf16.msra.mxu0 0
  %487 = vmatprep.subr.bf16.mxu0 0
  %488 = vmatpush1.bf16.msra.mxu0 0
  %489 = vmatprep.subr.bf16.mxu0 0
  %490 = vmatpush1.bf16.msra.mxu0 0
  %491 = vmatprep.subr.bf16.mxu0 0
  %492 = vmatpush1.bf16.msra.mxu0 0
  %493 = vmatprep.mubr.bf16.mxu0 0
  %494 = vmatmul.mubr.bf16.gmra.mrb[0].mxu0 %v459
  %v495 = vpop.f32.mrb[0].mxu0
  %v496 = vadd.f32 0.0, %v495
  %v497 = vpop.f32.mrb[0].mxu0
  %v498 = vpop.f32.mrb[0].mxu0
  %v499 = vpop.f32.mrb[0].mxu0
  %500 = vdwg.mxu0
  %v501 = vsel %vm390, %v496, -inf
  %502 = vmax.xlane.f32.xlu0 %v501
  %v503 = vpop.xlane.xlu0 %502
  %v504 = vsub.f32 %v496, %v503
  %v505 = vmul.f32 %v504, 1.442695
  %v506 = vpow.pop %v505
  %v507 = vsel %vm390, %v506, 0.0
  %508 = vadd.xlane.f32.xlu0 %v507
  %v509 = vpop.xlane.xlu0 %508
  %v510 = vrcp.pop %v509
  %v511 = vmul.f32 %v506, %v510
  %v512 = vpack.c.bf16 %v511, %v511
  %514 = vrot.lane.b32.xlu0 %v345, 96
  %v515 = vpop.permute.xlu0 %514
  %v517 = vsel %vm390, %v512, 0
  %v520 = vsel %vm406, %v515, 0
  %522 = vmatprep.subr.bf16.mxu0 0
  %523 = vmatpush1.bf16.msra.mxu0 %v520
  %524 = vmatprep.subr.bf16.mxu0 0
  %525 = vmatpush1.bf16.msra.mxu0 0
  %526 = vmatprep.subr.bf16.mxu0 0
  %527 = vmatpush1.bf16.msra.mxu0 0
  %528 = vmatprep.subr.bf16.mxu0 0
  %529 = vmatpush1.bf16.msra.mxu0 0
  %530 = vmatprep.subr.bf16.mxu0 0
  %531 = vmatpush1.bf16.msra.mxu0 0
  %532 = vmatprep.subr.bf16.mxu0 0
  %533 = vmatpush1.bf16.msra.mxu0 0
  %534 = vmatprep.subr.bf16.mxu0 0
  %535 = vmatpush1.bf16.msra.mxu0 0
  %536 = vmatprep.subr.bf16.mxu0 0
  %537 = vmatpush1.bf16.msra.mxu0 0
  %538 = vmatprep.subr.bf16.mxu0 0
  %539 = vmatpush1.bf16.msra.mxu0 0
  %540 = vmatprep.subr.bf16.mxu0 0
  %541 = vmatpush1.bf16.msra.mxu0 0
  %542 = vmatprep.subr.bf16.mxu0 0
  %543 = vmatpush1.bf16.msra.mxu0 0
  %544 = vmatprep.subr.bf16.mxu0 0
  %545 = vmatpush1.bf16.msra.mxu0 0
  %546 = vmatprep.subr.bf16.mxu0 0
  %547 = vmatpush1.bf16.msra.mxu0 0
  %548 = vmatprep.subr.bf16.mxu0 0
  %549 = vmatpush1.bf16.msra.mxu0 0
  %550 = vmatprep.subr.bf16.mxu0 0
  %551 = vmatpush1.bf16.msra.mxu0 0
  %552 = vmatprep.subr.bf16.mxu0 0
  %553 = vmatpush1.bf16.msra.mxu0 0
  %554 = vmatprep.mubr.bf16.mxu0 0
  %555 = vmatmul.mubr.bf16.gmra.mrb[0].mxu0 %v517
  %v556 = vpop.f32.mrb[0].mxu0
  %v557 = vadd.f32 0.0, %v556
  %v558 = vpop.f32.mrb[0].mxu0
  %v559 = vpop.f32.mrb[0].mxu0
  %v560 = vpop.f32.mrb[0].mxu0
  %561 = vdwg.mxu0
  %v562 = vpack.c.bf16 %v557, %v557
  %v563 = vld [vmem:[%s4 + $0x10] sm:$0xf]
  %v564 = vld [vmem:[%s4 + $0x14] sm:$0xf]
  %v565 = vld [vmem:[%s4 + $0x18] sm:$0xf]
  %v566 = vld [vmem:[%s4 + $0x1c] sm:$0xf]
  %v571 = vunpack.c.l.b16 %v563
  %v572 = vunpack.c.l.b16 %v564
  %v573 = vunpack.c.l.b16 %v565
  %v574 = vunpack.c.l.b16 %v566
  %v575 = vpack.c.b16 %v572, %v571
  %v576 = vpack.c.b16 %v574, %v573
  %v580 = vsel %vm346, %v562, 0
  %582 = vmatprep.subr.bf16.mxu0 0
  %583 = vmatpush1.bf16.msra.mxu0 %v575
  %584 = vmatprep.subr.bf16.mxu0 0
  %585 = vmatpush1.bf16.msra.mxu0 %v576
  %586 = vmatprep.subr.bf16.mxu0 0
  %587 = vmatpush1.bf16.msra.mxu0 0
  %588 = vmatprep.subr.bf16.mxu0 0
  %589 = vmatpush1.bf16.msra.mxu0 0
  %590 = vmatprep.subr.bf16.mxu0 0
  %591 = vmatpush1.bf16.msra.mxu0 0
  %592 = vmatprep.subr.bf16.mxu0 0
  %593 = vmatpush1.bf16.msra.mxu0 0
  %594 = vmatprep.subr.bf16.mxu0 0
  %595 = vmatpush1.bf16.msra.mxu0 0
  %596 = vmatprep.subr.bf16.mxu0 0
  %597 = vmatpush1.bf16.msra.mxu0 0
  %598 = vmatprep.subr.bf16.mxu0 0
  %599 = vmatpush1.bf16.msra.mxu0 0
  %600 = vmatprep.subr.bf16.mxu0 0
  %601 = vmatpush1.bf16.msra.mxu0 0
  %602 = vmatprep.subr.bf16.mxu0 0
  %603 = vmatpush1.bf16.msra.mxu0 0
  %604 = vmatprep.subr.bf16.mxu0 0
  %605 = vmatpush1.bf16.msra.mxu0 0
  %606 = vmatprep.subr.bf16.mxu0 0
  %607 = vmatpush1.bf16.msra.mxu0 0
  %608 = vmatprep.subr.bf16.mxu0 0
  %609 = vmatpush1.bf16.msra.mxu0 0
  %610 = vmatprep.subr.bf16.mxu0 0
  %611 = vmatpush1.bf16.msra.mxu0 0
  %612 = vmatprep.subr.bf16.mxu0 0
  %613 = vmatpush1.bf16.msra.mxu0 0
  %614 = vmatprep.mubr.bf16.mxu0 0
  %615 = vmatmul.mubr.bf16.gmra.mrb[0].mxu0 %v580
  %v616 = vpop.f32.mrb[0].mxu0
  %v617 = vadd.f32 0.0, %v616
  %v618 = vpop.f32.mrb[0].mxu0
  %v619 = vpop.f32.mrb[0].mxu0
  %v620 = vpop.f32.mrb[0].mxu0
  %621 = vdwg.mxu0
  %v626 = vunpack.c.l.b16 %v451
  %v627 = vunpack.c.l.b16 %v452
  %v628 = vunpack.c.l.b16 %v453
  %v629 = vunpack.c.l.b16 %v454
  %v630 = vpack.c.b16 %v627, %v626
  %v631 = vpack.c.b16 %v629, %v628
  %v635 = vsel %vm346, %v450, 0
  %637 = vmatprep.subr.bf16.mxu0 0
  %638 = vmatpush1.bf16.msra.mxu0 %v630
  %639 = vmatprep.subr.bf16.mxu0 0
  %640 = vmatpush1.bf16.msra.mxu0 %v631
  %641 = vmatprep.subr.bf16.mxu0 0
  %642 = vmatpush1.bf16.msra.mxu0 0
  %643 = vmatprep.subr.bf16.mxu0 0
  %644 = vmatpush1.bf16.msra.mxu0 0
  %645 = vmatprep.subr.bf16.mxu0 0
  %646 = vmatpush1.bf16.msra.mxu0 0
  %647 = vmatprep.subr.bf16.mxu0 0
  %648 = vmatpush1.bf16.msra.mxu0 0
  %649 = vmatprep.subr.bf16.mxu0 0
  %650 = vmatpush1.bf16.msra.mxu0 0
  %651 = vmatprep.subr.bf16.mxu0 0
  %652 = vmatpush1.bf16.msra.mxu0 0
  %653 = vmatprep.subr.bf16.mxu0 0
  %654 = vmatpush1.bf16.msra.mxu0 0
  %655 = vmatprep.subr.bf16.mxu0 0
  %656 = vmatpush1.bf16.msra.mxu0 0
  %657 = vmatprep.subr.bf16.mxu0 0
  %658 = vmatpush1.bf16.msra.mxu0 0
  %659 = vmatprep.subr.bf16.mxu0 0
  %660 = vmatpush1.bf16.msra.mxu0 0
  %661 = vmatprep.subr.bf16.mxu0 0
  %662 = vmatpush1.bf16.msra.mxu0 0
  %663 = vmatprep.subr.bf16.mxu0 0
  %664 = vmatpush1.bf16.msra.mxu0 0
  %665 = vmatprep.subr.bf16.mxu0 0
  %666 = vmatpush1.bf16.msra.mxu0 0
  %667 = vmatprep.subr.bf16.mxu0 0
  %668 = vmatpush1.bf16.msra.mxu0 0
  %669 = vmatprep.mubr.bf16.mxu0 0
  %670 = vmatmul.mubr.bf16.gmra.mrb[0].mxu0 %v635
  %v671 = vpop.f32.mrb[0].mxu0
  %v672 = vadd.f32 %v617, %v671
  %v673 = vpop.f32.mrb[0].mxu0
  %v674 = vpop.f32.mrb[0].mxu0
  %v675 = vpop.f32.mrb[0].mxu0
  %676 = vdwg.mxu0
  %677 = vrot.lane.b32.xlu0 %v304, 64
  %v678 = vpop.permute.xlu0 %677
  %v680 = vsel %vm346, %v678, 0
  %682 = vmatprep.subr.bf16.mxu0 0
  %683 = vmatpush1.bf16.msra.mxu0 %v341
  %684 = vmatprep.subr.bf16.mxu0 0
  %685 = vmatpush1.bf16.msra.mxu0 %v342
  %686 = vmatprep.subr.bf16.mxu0 0
  %687 = vmatpush1.bf16.msra.mxu0 0
  %688 = vmatprep.subr.bf16.mxu0 0
  %689 = vmatpush1.bf16.msra.mxu0 0
  %690 = vmatprep.subr.bf16.mxu0 0
  %691 = vmatpush1.bf16.msra.mxu0 0
  %692 = vmatprep.subr.bf16.mxu0 0
  %693 = vmatpush1.bf16.msra.mxu0 0
  %694 = vmatprep.subr.bf16.mxu0 0
  %695 = vmatpush1.bf16.msra.mxu0 0
  %696 = vmatprep.subr.bf16.mxu0 0
  %697 = vmatpush1.bf16.msra.mxu0 0
  %698 = vmatprep.subr.bf16.mxu0 0
  %699 = vmatpush1.bf16.msra.mxu0 0
  %700 = vmatprep.subr.bf16.mxu0 0
  %701 = vmatpush1.bf16.msra.mxu0 0
  %702 = vmatprep.subr.bf16.mxu0 0
  %703 = vmatpush1.bf16.msra.mxu0 0
  %704 = vmatprep.subr.bf16.mxu0 0
  %705 = vmatpush1.bf16.msra.mxu0 0
  %706 = vmatprep.subr.bf16.mxu0 0
  %707 = vmatpush1.bf16.msra.mxu0 0
  %708 = vmatprep.subr.bf16.mxu0 0
  %709 = vmatpush1.bf16.msra.mxu0 0
  %710 = vmatprep.subr.bf16.mxu0 0
  %711 = vmatpush1.bf16.msra.mxu0 0
  %712 = vmatprep.subr.bf16.mxu0 0
  %713 = vmatpush1.bf16.msra.mxu0 0
  %714 = vmatprep.mubr.bf16.mxu0 0
  %715 = vmatmul.mubr.bf16.gmra.mrb[0].mxu0 %v680
  %v716 = vpop.f32.mrb[0].mxu0
  %v717 = vadd.f32 0.0, %v716
  %v718 = vpop.f32.mrb[0].mxu0
  %v719 = vpop.f32.mrb[0].mxu0
  %v720 = vpop.f32.mrb[0].mxu0
  %721 = vdwg.mxu0
  %v722 = vsel %vm390, %v717, -inf
  %723 = vmax.xlane.f32.xlu0 %v722
  %v724 = vpop.xlane.xlu0 %723
  %v725 = vsub.f32 %v717, %v724
  %v726 = vmul.f32 %v725, 1.442695
  %v727 = vpow.pop %v726
  %v728 = vsel %vm390, %v727, 0.0
  %729 = vadd.xlane.f32.xlu0 %v728
  %v730 = vpop.xlane.xlu0 %729
  %v731 = vrcp.pop %v730
  %v732 = vmul.f32 %v727, %v731
  %v733 = vpack.c.bf16 %v732, %v732
  %734 = vrot.lane.b32.xlu0 %v345, 64
  %v735 = vpop.permute.xlu0 %734
  %v737 = vsel %vm390, %v733, 0
  %v740 = vsel %vm406, %v735, 0
  %742 = vmatprep.subr.bf16.mxu0 0
  %743 = vmatpush1.bf16.msra.mxu0 %v740
  %744 = vmatprep.subr.bf16.mxu0 0
  %745 = vmatpush1.bf16.msra.mxu0 0
  %746 = vmatprep.subr.bf16.mxu0 0
  %747 = vmatpush1.bf16.msra.mxu0 0
  %748 = vmatprep.subr.bf16.mxu0 0
  %749 = vmatpush1.bf16.msra.mxu0 0
  %750 = vmatprep.subr.bf16.mxu0 0
  %751 = vmatpush1.bf16.msra.mxu0 0
  %752 = vmatprep.subr.bf16.mxu0 0
  %753 = vmatpush1.bf16.msra.mxu0 0
  %754 = vmatprep.subr.bf16.mxu0 0
  %755 = vmatpush1.bf16.msra.mxu0 0
  %756 = vmatprep.subr.bf16.mxu0 0
  %757 = vmatpush1.bf16.msra.mxu0 0
  %758 = vmatprep.subr.bf16.mxu0 0
  %759 = vmatpush1.bf16.msra.mxu0 0
  %760 = vmatprep.subr.bf16.mxu0 0
  %761 = vmatpush1.bf16.msra.mxu0 0
  %762 = vmatprep.subr.bf16.mxu0 0
  %763 = vmatpush1.bf16.msra.mxu0 0
  %764 = vmatprep.subr.bf16.mxu0 0
  %765 = vmatpush1.bf16.msra.mxu0 0
  %766 = vmatprep.subr.bf16.mxu0 0
  %767 = vmatpush1.bf16.msra.mxu0 0
  %768 = vmatprep.subr.bf16.mxu0 0
  %769 = vmatpush1.bf16.msra.mxu0 0
  %770 = vmatprep.subr.bf16.mxu0 0
  %771 = vmatpush1.bf16.msra.mxu0 0
  %772 = vmatprep.subr.bf16.mxu0 0
  %773 = vmatpush1.bf16.msra.mxu0 0
  %774 = vmatprep.mubr.bf16.mxu0 0
  %775 = vmatmul.mubr.bf16.gmra.mrb[0].mxu0 %v737
  %v776 = vpop.f32.mrb[0].mxu0
  %v777 = vadd.f32 0.0, %v776
  %v778 = vpop.f32.mrb[0].mxu0
  %v779 = vpop.f32.mrb[0].mxu0
  %v780 = vpop.f32.mrb[0].mxu0
  %781 = vdwg.mxu0
  %v782 = vpack.c.bf16 %v777, %v777
  %v783 = vld [vmem:[%s4 + $0x20] sm:$0xf]
  %v784 = vld [vmem:[%s4 + $0x24] sm:$0xf]
  %v785 = vld [vmem:[%s4 + $0x28] sm:$0xf]
  %v786 = vld [vmem:[%s4 + $0x2c] sm:$0xf]
  %v791 = vunpack.c.l.b16 %v783
  %v792 = vunpack.c.l.b16 %v784
  %v793 = vunpack.c.l.b16 %v785
  %v794 = vunpack.c.l.b16 %v786
  %v795 = vpack.c.b16 %v792, %v791
  %v796 = vpack.c.b16 %v794, %v793
  %v800 = vsel %vm346, %v782, 0
  %802 = vmatprep.subr.bf16.mxu0 0
  %803 = vmatpush1.bf16.msra.mxu0 %v795
  %804 = vmatprep.subr.bf16.mxu0 0
  %805 = vmatpush1.bf16.msra.mxu0 %v796
  %806 = vmatprep.subr.bf16.mxu0 0
  %807 = vmatpush1.bf16.msra.mxu0 0
  %808 = vmatprep.subr.bf16.mxu0 0
  %809 = vmatpush1.bf16.msra.mxu0 0
  %810 = vmatprep.subr.bf16.mxu0 0
  %811 = vmatpush1.bf16.msra.mxu0 0
  %812 = vmatprep.subr.bf16.mxu0 0
  %813 = vmatpush1.bf16.msra.mxu0 0
  %814 = vmatprep.subr.bf16.mxu0 0
  %815 = vmatpush1.bf16.msra.mxu0 0
  %816 = vmatprep.subr.bf16.mxu0 0
  %817 = vmatpush1.bf16.msra.mxu0 0
  %818 = vmatprep.subr.bf16.mxu0 0
  %819 = vmatpush1.bf16.msra.mxu0 0
  %820 = vmatprep.subr.bf16.mxu0 0
  %821 = vmatpush1.bf16.msra.mxu0 0
  %822 = vmatprep.subr.bf16.mxu0 0
  %823 = vmatpush1.bf16.msra.mxu0 0
  %824 = vmatprep.subr.bf16.mxu0 0
  %825 = vmatpush1.bf16.msra.mxu0 0
  %826 = vmatprep.subr.bf16.mxu0 0
  %827 = vmatpush1.bf16.msra.mxu0 0
  %828 = vmatprep.subr.bf16.mxu0 0
  %829 = vmatpush1.bf16.msra.mxu0 0
  %830 = vmatprep.subr.bf16.mxu0 0
  %831 = vmatpush1.bf16.msra.mxu0 0
  %832 = vmatprep.subr.bf16.mxu0 0
  %833 = vmatpush1.bf16.msra.mxu0 0
  %834 = vmatprep.mubr.bf16.mxu0 0
  %835 = vmatmul.mubr.bf16.gmra.mrb[0].mxu0 %v800
  %v836 = vpop.f32.mrb[0].mxu0
  %v837 = vadd.f32 0.0, %v836
  %v838 = vpop.f32.mrb[0].mxu0
  %v839 = vpop.f32.mrb[0].mxu0
  %v840 = vpop.f32.mrb[0].mxu0
  %841 = vdwg.mxu0
  %v842 = vadd.f32 %v672, %v837
  %843 = vrot.lane.b32.xlu0 %v304, 32
  %v844 = vpop.permute.xlu0 %843
  %v846 = vsel %vm346, %v844, 0
  %848 = vmatprep.subr.bf16.mxu0 0
  %849 = vmatpush1.bf16.msra.mxu0 %v343
  %850 = vmatprep.subr.bf16.mxu0 0
  %851 = vmatpush1.bf16.msra.mxu0 %v344
  %852 = vmatprep.subr.bf16.mxu0 0
  %853 = vmatpush1.bf16.msra.mxu0 0
  %854 = vmatprep.subr.bf16.mxu0 0
  %855 = vmatpush1.bf16.msra.mxu0 0
  %856 = vmatprep.subr.bf16.mxu0 0
  %857 = vmatpush1.bf16.msra.mxu0 0
  %858 = vmatprep.subr.bf16.mxu0 0
  %859 = vmatpush1.bf16.msra.mxu0 0
  %860 = vmatprep.subr.bf16.mxu0 0
  %861 = vmatpush1.bf16.msra.mxu0 0
  %862 = vmatprep.subr.bf16.mxu0 0
  %863 = vmatpush1.bf16.msra.mxu0 0
  %864 = vmatprep.subr.bf16.mxu0 0
  %865 = vmatpush1.bf16.msra.mxu0 0
  %866 = vmatprep.subr.bf16.mxu0 0
  %867 = vmatpush1.bf16.msra.mxu0 0
  %868 = vmatprep.subr.bf16.mxu0 0
  %869 = vmatpush1.bf16.msra.mxu0 0
  %870 = vmatprep.subr.bf16.mxu0 0
  %871 = vmatpush1.bf16.msra.mxu0 0
  %872 = vmatprep.subr.bf16.mxu0 0
  %873 = vmatpush1.bf16.msra.mxu0 0
  %874 = vmatprep.subr.bf16.mxu0 0
  %875 = vmatpush1.bf16.msra.mxu0 0
  %876 = vmatprep.subr.bf16.mxu0 0
  %877 = vmatpush1.bf16.msra.mxu0 0
  %878 = vmatprep.subr.bf16.mxu0 0
  %879 = vmatpush1.bf16.msra.mxu0 0
  %880 = vmatprep.mubr.bf16.mxu0 0
  %881 = vmatmul.mubr.bf16.gmra.mrb[0].mxu0 %v846
  %v882 = vpop.f32.mrb[0].mxu0
  %v883 = vadd.f32 0.0, %v882
  %v884 = vpop.f32.mrb[0].mxu0
  %v885 = vpop.f32.mrb[0].mxu0
  %v886 = vpop.f32.mrb[0].mxu0
  %887 = vdwg.mxu0
  %v888 = vsel %vm390, %v883, -inf
  %889 = vmax.xlane.f32.xlu0 %v888
  %v890 = vpop.xlane.xlu0 %889
  %v891 = vsub.f32 %v883, %v890
  %v892 = vmul.f32 %v891, 1.442695
  %v893 = vpow.pop %v892
  %v894 = vsel %vm390, %v893, 0.0
  %895 = vadd.xlane.f32.xlu0 %v894
  %v896 = vpop.xlane.xlu0 %895
  %v897 = vrcp.pop %v896
  %v898 = vmul.f32 %v893, %v897
  %v899 = vpack.c.bf16 %v898, %v898
  %900 = vrot.lane.b32.xlu0 %v345, 32
  %v901 = vpop.permute.xlu0 %900
  %v903 = vsel %vm390, %v899, 0
  %v906 = vsel %vm406, %v901, 0
  %908 = vmatprep.subr.bf16.mxu0 0
  %909 = vmatpush1.bf16.msra.mxu0 %v906
  %910 = vmatprep.subr.bf16.mxu0 0
  %911 = vmatpush1.bf16.msra.mxu0 0
  %912 = vmatprep.subr.bf16.mxu0 0
  %913 = vmatpush1.bf16.msra.mxu0 0
  %914 = vmatprep.subr.bf16.mxu0 0
  %915 = vmatpush1.bf16.msra.mxu0 0
  %916 = vmatprep.subr.bf16.mxu0 0
  %917 = vmatpush1.bf16.msra.mxu0 0
  %918 = vmatprep.subr.bf16.mxu0 0
  %919 = vmatpush1.bf16.msra.mxu0 0
  %920 = vmatprep.subr.bf16.mxu0 0
  %921 = vmatpush1.bf16.msra.mxu0 0
  %922 = vmatprep.subr.bf16.mxu0 0
  %923 = vmatpush1.bf16.msra.mxu0 0
  %924 = vmatprep.subr.bf16.mxu0 0
  %925 = vmatpush1.bf16.msra.mxu0 0
  %926 = vmatprep.subr.bf16.mxu0 0
  %927 = vmatpush1.bf16.msra.mxu0 0
  %928 = vmatprep.subr.bf16.mxu0 0
  %929 = vmatpush1.bf16.msra.mxu0 0
  %930 = vmatprep.subr.bf16.mxu0 0
  %931 = vmatpush1.bf16.msra.mxu0 0
  %932 = vmatprep.subr.bf16.mxu0 0
  %933 = vmatpush1.bf16.msra.mxu0 0
  %934 = vmatprep.subr.bf16.mxu0 0
  %935 = vmatpush1.bf16.msra.mxu0 0
  %936 = vmatprep.subr.bf16.mxu0 0
  %937 = vmatpush1.bf16.msra.mxu0 0
  %938 = vmatprep.subr.bf16.mxu0 0
  %939 = vmatpush1.bf16.msra.mxu0 0
  %940 = vmatprep.mubr.bf16.mxu0 0
  %941 = vmatmul.mubr.bf16.gmra.mrb[0].mxu0 %v903
  %v942 = vpop.f32.mrb[0].mxu0
  %v943 = vadd.f32 0.0, %v942
  %v944 = vpop.f32.mrb[0].mxu0
  %v945 = vpop.f32.mrb[0].mxu0
  %v946 = vpop.f32.mrb[0].mxu0
  %947 = vdwg.mxu0
  %v948 = vpack.c.bf16 %v943, %v943
  %v949 = vld [vmem:[%s4 + $0x30] sm:$0xf]
  %v950 = vld [vmem:[%s4 + $0x34] sm:$0xf]
  %v951 = vld [vmem:[%s4 + $0x38] sm:$0xf]
  %v952 = vld [vmem:[%s4 + $0x3c] sm:$0xf]
  %v957 = vunpack.c.l.b16 %v949
  %v958 = vunpack.c.l.b16 %v950
  %v959 = vunpack.c.l.b16 %v951
  %v960 = vunpack.c.l.b16 %v952
  %v961 = vpack.c.b16 %v958, %v957
  %v962 = vpack.c.b16 %v960, %v959
  %v966 = vsel %vm346, %v948, 0
  %968 = vmatprep.subr.bf16.mxu0 0
  %969 = vmatpush1.bf16.msra.mxu0 %v961
  %970 = vmatprep.subr.bf16.mxu0 0
  %971 = vmatpush1.bf16.msra.mxu0 %v962
  %972 = vmatprep.subr.bf16.mxu0 0
  %973 = vmatpush1.bf16.msra.mxu0 0
  %974 = vmatprep.subr.bf16.mxu0 0
  %975 = vmatpush1.bf16.msra.mxu0 0
  %976 = vmatprep.subr.bf16.mxu0 0
  %977 = vmatpush1.bf16.msra.mxu0 0
  %978 = vmatprep.subr.bf16.mxu0 0
  %979 = vmatpush1.bf16.msra.mxu0 0
  %980 = vmatprep.subr.bf16.mxu0 0
  %981 = vmatpush1.bf16.msra.mxu0 0
  %982 = vmatprep.subr.bf16.mxu0 0
  %983 = vmatpush1.bf16.msra.mxu0 0
  %984 = vmatprep.subr.bf16.mxu0 0
  %985 = vmatpush1.bf16.msra.mxu0 0
  %986 = vmatprep.subr.bf16.mxu0 0
  %987 = vmatpush1.bf16.msra.mxu0 0
  %988 = vmatprep.subr.bf16.mxu0 0
  %989 = vmatpush1.bf16.msra.mxu0 0
  %990 = vmatprep.subr.bf16.mxu0 0
  %991 = vmatpush1.bf16.msra.mxu0 0
  %992 = vmatprep.subr.bf16.mxu0 0
  %993 = vmatpush1.bf16.msra.mxu0 0
  %994 = vmatprep.subr.bf16.mxu0 0
  %995 = vmatpush1.bf16.msra.mxu0 0
  %996 = vmatprep.subr.bf16.mxu0 0
  %997 = vmatpush1.bf16.msra.mxu0 0
  %998 = vmatprep.subr.bf16.mxu0 0
  %999 = vmatpush1.bf16.msra.mxu0 0
  %1000 = vmatprep.mubr.bf16.mxu0 0
  %1001 = vmatmul.mubr.bf16.gmra.mrb[0].mxu0 %v966
  %v1002 = vpop.f32.mrb[0].mxu0
  %v1003 = vadd.f32 0.0, %v1002
  %v1004 = vpop.f32.mrb[0].mxu0
  %v1005 = vpop.f32.mrb[0].mxu0
  %v1006 = vpop.f32.mrb[0].mxu0
  %1007 = vdwg.mxu0
  %v1008 = vadd.f32 %v842, %v1003
  %v1009 = vld [vmem:[%s5] sm:$0x1]
  %v1011 = vlaneseq
  %v1012 = vshrl.u32 %v1011, 7
  %v1013 = vsub.s32 0, %v1012
  %v1014 = vrot.slane %v1009, %v1013
  %v1016 = vadd.f32 %v1008, %v1014
  %v1017 = vadd.f32 %v30, %v1016
  %1018 = vadd.xlane.f32.xlu0 %v1017
  %v1019 = vpop.xlane.xlu0 %1018
  %v1020 = vrcp.pop 128.0
  %v1021 = vmul.f32 %v1019, %v1020
  %v1022 = vsub.f32 %v1017, %v1021
  %v1023 = vmul.f32 %v1022, %v1022
  %1024 = vadd.xlane.f32.xlu0 %v1023
  %v1025 = vpop.xlane.xlu0 %1024
  %v1026 = vmul.f32 %v1025, %v1020
  %v1027 = vadd.f32 %v1026, 1e-05
  %v1028 = vrsqrt.pop %v1027
  %v1029 = vmul.f32 %v1022, %v1028
  %v1030 = vld [vmem:[%s6] sm:$0x1]
  %v1032 = vlaneseq
  %v1033 = vshrl.u32 %v1032, 7
  %v1034 = vsub.s32 0, %v1033
  %v1035 = vrot.slane %v1030, %v1034
  %v1037 = vmul.f32 %v1029, %v1035
  %v1038 = vld [vmem:[%s7] sm:$0x1]
  %v1040 = vlaneseq
  %v1041 = vshrl.u32 %v1040, 7
  %v1042 = vsub.s32 0, %v1041
  %v1043 = vrot.slane %v1038, %v1042
  %v1045 = vadd.f32 %v1037, %v1043
  %1046 = vst [vmem:[%s8] sm:$0xff] %v1045
  %v1047 = vpack.c.bf16 %v144, %v144
  %1048 = vxpose.xlu0.b32.start [1/16] %v300, 128
  %1049 = vxpose.xlu0.b32.cont [2/16] 0.0, 128
  %1050 = vxpose.xlu0.b32.cont [3/16] 0.0, 128
  %1051 = vxpose.xlu0.b32.cont [4/16] 0.0, 128
  %1052 = vxpose.xlu0.b32.cont [5/16] 0.0, 128
  %1053 = vxpose.xlu0.b32.cont [6/16] 0.0, 128
  %1054 = vxpose.xlu0.b32.cont [7/16] 0.0, 128
  %1055 = vxpose.xlu0.b32.cont [8/16] 0.0, 128
  %1056 = vxpose.xlu0.b32.cont [9/16] 0.0, 128
  %1057 = vxpose.xlu0.b32.cont [10/16] 0.0, 128
  %1058 = vxpose.xlu0.b32.cont [11/16] 0.0, 128
  %1059 = vxpose.xlu0.b32.cont [12/16] 0.0, 128
  %1060 = vxpose.xlu0.b32.cont [13/16] 0.0, 128
  %1061 = vxpose.xlu0.b32.cont [14/16] 0.0, 128
  %1062 = vxpose.xlu0.b32.cont [15/16] 0.0, 128
  %1063 = vxpose.xlu0.b32.end [16/16] 0.0, 128
  %v1064 = vpop.trf.xlu0
  %v1065 = vpop.trf.xlu0
  %v1066 = vpop.trf.xlu0
  %v1067 = vpop.trf.xlu0
  %v1068 = vpop.trf.xlu0
  %v1069 = vpop.trf.xlu0
  %v1070 = vpop.trf.xlu0
  %v1071 = vpop.trf.xlu0
  %v1072 = vpop.trf.xlu0
  %v1073 = vpop.trf.xlu0
  %v1074 = vpop.trf.xlu0
  %v1075 = vpop.trf.xlu0
  %v1076 = vpop.trf.xlu0
  %v1077 = vpop.trf.xlu0
  %v1078 = vpop.trf.xlu0
  %v1079 = vpop.trf.xlu0
  %v1080 = vpack.c.bf16 %v1065, %v1064
  %v1081 = vpack.c.bf16 %v1067, %v1066
  %v1082 = vpack.c.bf16 %v1069, %v1068
  %v1083 = vpack.c.bf16 %v1071, %v1070
  %v1084 = vpack.c.bf16 %v1073, %v1072
  %v1085 = vpack.c.bf16 %v1075, %v1074
  %v1086 = vpack.c.bf16 %v1077, %v1076
  %v1087 = vpack.c.bf16 %v1079, %v1078
  %v1088 = vpack.c.bf16 %v302, %v302
  %v1090 = vsel %vm346, %v1047, 0
  %1092 = vmatprep.subr.bf16.mxu0 0
  %1093 = vmatpush1.bf16.msra.mxu0 %v1080
  %1094 = vmatprep.subr.bf16.mxu0 0
  %1095 = vmatpush1.bf16.msra.mxu0 %v1081
  %1096 = vmatprep.subr.bf16.mxu0 0
  %1097 = vmatpush1.bf16.msra.mxu0 0
  %1098 = vmatprep.subr.bf16.mxu0 0
  %1099 = vmatpush1.bf16.msra.mxu0 0
  %1100 = vmatprep.subr.bf16.mxu0 0
  %1101 = vmatpush1.bf16.msra.mxu0 0
  %1102 = vmatprep.subr.bf16.mxu0 0
  %1103 = vmatpush1.bf16.msra.mxu0 0
  %1104 = vmatprep.subr.bf16.mxu0 0
  %1105 = vmatpush1.bf16.msra.mxu0 0
  %1106 = vmatprep.subr.bf16.mxu0 0
  %1107 = vmatpush1.bf16.msra.mxu0 0
  %1108 = vmatprep.subr.bf16.mxu0 0
  %1109 = vmatpush1.bf16.msra.mxu0 0
  %1110 = vmatprep.subr.bf16.mxu0 0
  %1111 = vmatpush1.bf16.msra.mxu0 0
  %1112 = vmatprep.subr.bf16.mxu0 0
  %1113 = vmatpush1.bf16.msra.mxu0 0
  %1114 = vmatprep.subr.bf16.mxu0 0
  %1115 = vmatpush1.bf16.msra.mxu0 0
  %1116 = vmatprep.subr.bf16.mxu0 0
  %1117 = vmatpush1.bf16.msra.mxu0 0
  %1118 = vmatprep.subr.bf16.mxu0 0
  %1119 = vmatpush1.bf16.msra.mxu0 0
  %1120 = vmatprep.subr.bf16.mxu0 0
  %1121 = vmatpush1.bf16.msra.mxu0 0
  %1122 = vmatprep.subr.bf16.mxu0 0
  %1123 = vmatpush1.bf16.msra.mxu0 0
  %1124 = vmatprep.mubr.bf16.mxu0 0
  %1125 = vmatmul.mubr.bf16.gmra.mrb[0].mxu0 %v1090
  %v1126 = vpop.f32.mrb[0].mxu0
  %v1127 = vadd.f32 0.0, %v1126
  %v1128 = vpop.f32.mrb[0].mxu0
  %v1129 = vpop.f32.mrb[0].mxu0
  %v1130 = vpop.f32.mrb[0].mxu0
  %1131 = vdwg.mxu0
  %v1132 = vsel %vm390, %v1127, -inf
  %1133 = vmax.xlane.f32.xlu0 %v1132
  %v1134 = vpop.xlane.xlu0 %1133
  %v1135 = vsub.f32 %v1127, %v1134
  %v1136 = vmul.f32 %v1135, 1.442695
  %v1137 = vpow.pop %v1136
  %v1138 = vsel %vm390, %v1137, 0.0
  %1139 = vadd.xlane.f32.xlu0 %v1138
  %v1140 = vpop.xlane.xlu0 %1139
  %v1141 = vrcp.pop %v1140
  %v1142 = vmul.f32 %v1137, %v1141
  %v1143 = vpack.c.bf16 %v1142, %v1142
  %v1145 = vsel %vm390, %v1143, 0
  %v1148 = vsel %vm406, %v1088, 0
  %1150 = vmatprep.subr.bf16.mxu0 0
  %1151 = vmatpush1.bf16.msra.mxu0 %v1148
  %1152 = vmatprep.subr.bf16.mxu0 0
  %1153 = vmatpush1.bf16.msra.mxu0 0
  %1154 = vmatprep.subr.bf16.mxu0 0
  %1155 = vmatpush1.bf16.msra.mxu0 0
  %1156 = vmatprep.subr.bf16.mxu0 0
  %1157 = vmatpush1.bf16.msra.mxu0 0
  %1158 = vmatprep.subr.bf16.mxu0 0
  %1159 = vmatpush1.bf16.msra.mxu0 0
  %1160 = vmatprep.subr.bf16.mxu0 0
  %1161 = vmatpush1.bf16.msra.mxu0 0
  %1162 = vmatprep.subr.bf16.mxu0 0
  %1163 = vmatpush1.bf16.msra.mxu0 0
  %1164 = vmatprep.subr.bf16.mxu0 0
  %1165 = vmatpush1.bf16.msra.mxu0 0
  %1166 = vmatprep.subr.bf16.mxu0 0
  %1167 = vmatpush1.bf16.msra.mxu0 0
  %1168 = vmatprep.subr.bf16.mxu0 0
  %1169 = vmatpush1.bf16.msra.mxu0 0
  %1170 = vmatprep.subr.bf16.mxu0 0
  %1171 = vmatpush1.bf16.msra.mxu0 0
  %1172 = vmatprep.subr.bf16.mxu0 0
  %1173 = vmatpush1.bf16.msra.mxu0 0
  %1174 = vmatprep.subr.bf16.mxu0 0
  %1175 = vmatpush1.bf16.msra.mxu0 0
  %1176 = vmatprep.subr.bf16.mxu0 0
  %1177 = vmatpush1.bf16.msra.mxu0 0
  %1178 = vmatprep.subr.bf16.mxu0 0
  %1179 = vmatpush1.bf16.msra.mxu0 0
  %1180 = vmatprep.subr.bf16.mxu0 0
  %1181 = vmatpush1.bf16.msra.mxu0 0
  %1182 = vmatprep.mubr.bf16.mxu0 0
  %1183 = vmatmul.mubr.bf16.gmra.mrb[0].mxu0 %v1145
  %v1184 = vpop.f32.mrb[0].mxu0
  %v1185 = vadd.f32 0.0, %v1184
  %v1186 = vpop.f32.mrb[0].mxu0
  %v1187 = vpop.f32.mrb[0].mxu0
  %v1188 = vpop.f32.mrb[0].mxu0
  %1189 = vdwg.mxu0
  %v1190 = vpack.c.bf16 %v1185, %v1185
  %v1191 = vld [vmem:[%s4] sm:$0xf]
  %v1192 = vld [vmem:[%s4 + $0x4] sm:$0xf]
  %v1193 = vld [vmem:[%s4 + $0x8] sm:$0xf]
  %v1194 = vld [vmem:[%s4 + $0xc] sm:$0xf]
  %1196 = vrot.lane.b32.xlu0 %v1047, 96
  %v1197 = vpop.permute.xlu0 %1196
  %v1199 = vsel %vm346, %v1197, 0
  %1201 = vmatprep.subr.bf16.mxu0 0
  %1202 = vmatpush1.bf16.msra.mxu0 %v1082
  %1203 = vmatprep.subr.bf16.mxu0 0
  %1204 = vmatpush1.bf16.msra.mxu0 %v1083
  %1205 = vmatprep.subr.bf16.mxu0 0
  %1206 = vmatpush1.bf16.msra.mxu0 0
  %1207 = vmatprep.subr.bf16.mxu0 0
  %1208 = vmatpush1.bf16.msra.mxu0 0
  %1209 = vmatprep.subr.bf16.mxu0 0
  %1210 = vmatpush1.bf16.msra.mxu0 0
  %1211 = vmatprep.subr.bf16.mxu0 0
  %1212 = vmatpush1.bf16.msra.mxu0 0
  %1213 = vmatprep.subr.bf16.mxu0 0
  %1214 = vmatpush1.bf16.msra.mxu0 0
  %1215 = vmatprep.subr.bf16.mxu0 0
  %1216 = vmatpush1.bf16.msra.mxu0 0
  %1217 = vmatprep.subr.bf16.mxu0 0
  %1218 = vmatpush1.bf16.msra.mxu0 0
  %1219 = vmatprep.subr.bf16.mxu0 0
  %1220 = vmatpush1.bf16.msra.mxu0 0
  %1221 = vmatprep.subr.bf16.mxu0 0
  %1222 = vmatpush1.bf16.msra.mxu0 0
  %1223 = vmatprep.subr.bf16.mxu0 0
  %1224 = vmatpush1.bf16.msra.mxu0 0
  %1225 = vmatprep.subr.bf16.mxu0 0
  %1226 = vmatpush1.bf16.msra.mxu0 0
  %1227 = vmatprep.subr.bf16.mxu0 0
  %1228 = vmatpush1.bf16.msra.mxu0 0
  %1229 = vmatprep.subr.bf16.mxu0 0
  %1230 = vmatpush1.bf16.msra.mxu0 0
  %1231 = vmatprep.subr.bf16.mxu0 0
  %1232 = vmatpush1.bf16.msra.mxu0 0
  %1233 = vmatprep.mubr.bf16.mxu0 0
  %1234 = vmatmul.mubr.bf16.gmra.mrb[0].mxu0 %v1199
  %v1235 = vpop.f32.mrb[0].mxu0
  %v1236 = vadd.f32 0.0, %v1235
  %v1237 = vpop.f32.mrb[0].mxu0
  %v1238 = vpop.f32.mrb[0].mxu0
  %v1239 = vpop.f32.mrb[0].mxu0
  %1240 = vdwg.mxu0
  %v1241 = vsel %vm390, %v1236, -inf
  %1242 = vmax.xlane.f32.xlu0 %v1241
  %v1243 = vpop.xlane.xlu0 %1242
  %v1244 = vsub.f32 %v1236, %v1243
  %v1245 = vmul.f32 %v1244, 1.442695
  %v1246 = vpow.pop %v1245
  %v1247 = vsel %vm390, %v1246, 0.0
  %1248 = vadd.xlane.f32.xlu0 %v1247
  %v1249 = vpop.xlane.xlu0 %1248
  %v1250 = vrcp.pop %v1249
  %v1251 = vmul.f32 %v1246, %v1250
  %v1252 = vpack.c.bf16 %v1251, %v1251
  %1254 = vrot.lane.b32.xlu0 %v1088, 96
  %v1255 = vpop.permute.xlu0 %1254
  %v1257 = vsel %vm390, %v1252, 0
  %v1260 = vsel %vm406, %v1255, 0
  %1262 = vmatprep.subr.bf16.mxu0 0
  %1263 = vmatpush1.bf16.msra.mxu0 %v1260
  %1264 = vmatprep.subr.bf16.mxu0 0
  %1265 = vmatpush1.bf16.msra.mxu0 0
  %1266 = vmatprep.subr.bf16.mxu0 0
  %1267 = vmatpush1.bf16.msra.mxu0 0
  %1268 = vmatprep.subr.bf16.mxu0 0
  %1269 = vmatpush1.bf16.msra.mxu0 0
  %1270 = vmatprep.subr.bf16.mxu0 0
  %1271 = vmatpush1.bf16.msra.mxu0 0
  %1272 = vmatprep.subr.bf16.mxu0 0
  %1273 = vmatpush1.bf16.msra.mxu0 0
  %1274 = vmatprep.subr.bf16.mxu0 0
  %1275 = vmatpush1.bf16.msra.mxu0 0
  %1276 = vmatprep.subr.bf16.mxu0 0
  %1277 = vmatpush1.bf16.msra.mxu0 0
  %1278 = vmatprep.subr.bf16.mxu0 0
  %1279 = vmatpush1.bf16.msra.mxu0 0
  %1280 = vmatprep.subr.bf16.mxu0 0
  %1281 = vmatpush1.bf16.msra.mxu0 0
  %1282 = vmatprep.subr.bf16.mxu0 0
  %1283 = vmatpush1.bf16.msra.mxu0 0
  %1284 = vmatprep.subr.bf16.mxu0 0
  %1285 = vmatpush1.bf16.msra.mxu0 0
  %1286 = vmatprep.subr.bf16.mxu0 0
  %1287 = vmatpush1.bf16.msra.mxu0 0
  %1288 = vmatprep.subr.bf16.mxu0 0
  %1289 = vmatpush1.bf16.msra.mxu0 0
  %1290 = vmatprep.subr.bf16.mxu0 0
  %1291 = vmatpush1.bf16.msra.mxu0 0
  %1292 = vmatprep.subr.bf16.mxu0 0
  %1293 = vmatpush1.bf16.msra.mxu0 0
  %1294 = vmatprep.mubr.bf16.mxu0 0
  %1295 = vmatmul.mubr.bf16.gmra.mrb[0].mxu0 %v1257
  %v1296 = vpop.f32.mrb[0].mxu0
  %v1297 = vadd.f32 0.0, %v1296
  %v1298 = vpop.f32.mrb[0].mxu0
  %v1299 = vpop.f32.mrb[0].mxu0
  %v1300 = vpop.f32.mrb[0].mxu0
  %1301 = vdwg.mxu0
  %v1302 = vpack.c.bf16 %v1297, %v1297
  %v1303 = vld [vmem:[%s4 + $0x10] sm:$0xf]
  %v1304 = vld [vmem:[%s4 + $0x14] sm:$0xf]
  %v1305 = vld [vmem:[%s4 + $0x18] sm:$0xf]
  %v1306 = vld [vmem:[%s4 + $0x1c] sm:$0xf]
  %v1311 = vunpack.c.l.b16 %v1303
  %v1312 = vunpack.c.l.b16 %v1304
  %v1313 = vunpack.c.l.b16 %v1305
  %v1314 = vunpack.c.l.b16 %v1306
  %v1315 = vpack.c.b16 %v1312, %v1311
  %v1316 = vpack.c.b16 %v1314, %v1313
  %v1320 = vsel %vm346, %v1302, 0
  %1322 = vmatprep.subr.bf16.mxu0 0
  %1323 = vmatpush1.bf16.msra.mxu0 %v1315
  %1324 = vmatprep.subr.bf16.mxu0 0
  %1325 = vmatpush1.bf16.msra.mxu0 %v1316
  %1326 = vmatprep.subr.bf16.mxu0 0
  %1327 = vmatpush1.bf16.msra.mxu0 0
  %1328 = vmatprep.subr.bf16.mxu0 0
  %1329 = vmatpush1.bf16.msra.mxu0 0
  %1330 = vmatprep.subr.bf16.mxu0 0
  %1331 = vmatpush1.bf16.msra.mxu0 0
  %1332 = vmatprep.subr.bf16.mxu0 0
  %1333 = vmatpush1.bf16.msra.mxu0 0
  %1334 = vmatprep.subr.bf16.mxu0 0
  %1335 = vmatpush1.bf16.msra.mxu0 0
  %1336 = vmatprep.subr.bf16.mxu0 0
  %1337 = vmatpush1.bf16.msra.mxu0 0
  %1338 = vmatprep.subr.bf16.mxu0 0
  %1339 = vmatpush1.bf16.msra.mxu0 0
  %1340 = vmatprep.subr.bf16.mxu0 0
  %1341 = vmatpush1.bf16.msra.mxu0 0
  %1342 = vmatprep.subr.bf16.mxu0 0
  %1343 = vmatpush1.bf16.msra.mxu0 0
  %1344 = vmatprep.subr.bf16.mxu0 0
  %1345 = vmatpush1.bf16.msra.mxu0 0
  %1346 = vmatprep.subr.bf16.mxu0 0
  %1347 = vmatpush1.bf16.msra.mxu0 0
  %1348 = vmatprep.subr.bf16.mxu0 0
  %1349 = vmatpush1.bf16.msra.mxu0 0
  %1350 = vmatprep.subr.bf16.mxu0 0
  %1351 = vmatpush1.bf16.msra.mxu0 0
  %1352 = vmatprep.subr.bf16.mxu0 0
  %1353 = vmatpush1.bf16.msra.mxu0 0
  %1354 = vmatprep.mubr.bf16.mxu0 0
  %1355 = vmatmul.mubr.bf16.gmra.mrb[0].mxu0 %v1320
  %v1356 = vpop.f32.mrb[0].mxu0
  %v1357 = vadd.f32 0.0, %v1356
  %v1358 = vpop.f32.mrb[0].mxu0
  %v1359 = vpop.f32.mrb[0].mxu0
  %v1360 = vpop.f32.mrb[0].mxu0
  %1361 = vdwg.mxu0
  %v1366 = vunpack.c.l.b16 %v1191
  %v1367 = vunpack.c.l.b16 %v1192
  %v1368 = vunpack.c.l.b16 %v1193
  %v1369 = vunpack.c.l.b16 %v1194
  %v1370 = vpack.c.b16 %v1367, %v1366
  %v1371 = vpack.c.b16 %v1369, %v1368
  %v1375 = vsel %vm346, %v1190, 0
  %1377 = vmatprep.subr.bf16.mxu0 0
  %1378 = vmatpush1.bf16.msra.mxu0 %v1370
  %1379 = vmatprep.subr.bf16.mxu0 0
  %1380 = vmatpush1.bf16.msra.mxu0 %v1371
  %1381 = vmatprep.subr.bf16.mxu0 0
  %1382 = vmatpush1.bf16.msra.mxu0 0
  %1383 = vmatprep.subr.bf16.mxu0 0
  %1384 = vmatpush1.bf16.msra.mxu0 0
  %1385 = vmatprep.subr.bf16.mxu0 0
  %1386 = vmatpush1.bf16.msra.mxu0 0
  %1387 = vmatprep.subr.bf16.mxu0 0
  %1388 = vmatpush1.bf16.msra.mxu0 0
  %1389 = vmatprep.subr.bf16.mxu0 0
  %1390 = vmatpush1.bf16.msra.mxu0 0
  %1391 = vmatprep.subr.bf16.mxu0 0
  %1392 = vmatpush1.bf16.msra.mxu0 0
  %1393 = vmatprep.subr.bf16.mxu0 0
  %1394 = vmatpush1.bf16.msra.mxu0 0
  %1395 = vmatprep.subr.bf16.mxu0 0
  %1396 = vmatpush1.bf16.msra.mxu0 0
  %1397 = vmatprep.subr.bf16.mxu0 0
  %1398 = vmatpush1.bf16.msra.mxu0 0
  %1399 = vmatprep.subr.bf16.mxu0 0
  %1400 = vmatpush1.bf16.msra.mxu0 0
  %1401 = vmatprep.subr.bf16.mxu0 0
  %1402 = vmatpush1.bf16.msra.mxu0 0
  %1403 = vmatprep.subr.bf16.mxu0 0
  %1404 = vmatpush1.bf16.msra.mxu0 0
  %1405 = vmatprep.subr.bf16.mxu0 0
  %1406 = vmatpush1.bf16.msra.mxu0 0
  %1407 = vmatprep.subr.bf16.mxu0 0
  %1408 = vmatpush1.bf16.msra.mxu0 0
  %1409 = vmatprep.mubr.bf16.mxu0 0
  %1410 = vmatmul.mubr.bf16.gmra.mrb[0].mxu0 %v1375
  %v1411 = vpop.f32.mrb[0].mxu0
  %v1412 = vadd.f32 %v1357, %v1411
  %v1413 = vpop.f32.mrb[0].mxu0
  %v1414 = vpop.f32.mrb[0].mxu0
  %v1415 = vpop.f32.mrb[0].mxu0
  %1416 = vdwg.mxu0
  %1417 = vrot.lane.b32.xlu0 %v1047, 64
  %v1418 = vpop.permute.xlu0 %1417
  %v1420 = vsel %vm346, %v1418, 0
  %1422 = vmatprep.subr.bf16.mxu0 0
  %1423 = vmatpush1.bf16.msra.mxu0 %v1084
  %1424 = vmatprep.subr.bf16.mxu0 0
  %1425 = vmatpush1.bf16.msra.mxu0 %v1085
  %1426 = vmatprep.subr.bf16.mxu0 0
  %1427 = vmatpush1.bf16.msra.mxu0 0
  %1428 = vmatprep.subr.bf16.mxu0 0
  %1429 = vmatpush1.bf16.msra.mxu0 0
  %1430 = vmatprep.subr.bf16.mxu0 0
  %1431 = vmatpush1.bf16.msra.mxu0 0
  %1432 = vmatprep.subr.bf16.mxu0 0
  %1433 = vmatpush1.bf16.msra.mxu0 0
  %1434 = vmatprep.subr.bf16.mxu0 0
  %1435 = vmatpush1.bf16.msra.mxu0 0
  %1436 = vmatprep.subr.bf16.mxu0 0
  %1437 = vmatpush1.bf16.msra.mxu0 0
  %1438 = vmatprep.subr.bf16.mxu0 0
  %1439 = vmatpush1.bf16.msra.mxu0 0
  %1440 = vmatprep.subr.bf16.mxu0 0
  %1441 = vmatpush1.bf16.msra.mxu0 0
  %1442 = vmatprep.subr.bf16.mxu0 0
  %1443 = vmatpush1.bf16.msra.mxu0 0
  %1444 = vmatprep.subr.bf16.mxu0 0
  %1445 = vmatpush1.bf16.msra.mxu0 0
  %1446 = vmatprep.subr.bf16.mxu0 0
  %1447 = vmatpush1.bf16.msra.mxu0 0
  %1448 = vmatprep.subr.bf16.mxu0 0
  %1449 = vmatpush1.bf16.msra.mxu0 0
  %1450 = vmatprep.subr.bf16.mxu0 0
  %1451 = vmatpush1.bf16.msra.mxu0 0
  %1452 = vmatprep.subr.bf16.mxu0 0
  %1453 = vmatpush1.bf16.msra.mxu0 0
  %1454 = vmatprep.mubr.bf16.mxu0 0
  %1455 = vmatmul.mubr.bf16.gmra.mrb[0].mxu0 %v1420
  %v1456 = vpop.f32.mrb[0].mxu0
  %v1457 = vadd.f32 0.0, %v1456
  %v1458 = vpop.f32.mrb[0].mxu0
  %v1459 = vpop.f32.mrb[0].mxu0
  %v1460 = vpop.f32.mrb[0].mxu0
  %1461 = vdwg.mxu0
  %v1462 = vsel %vm390, %v1457, -inf
  %1463 = vmax.xlane.f32.xlu0 %v1462
  %v1464 = vpop.xlane.xlu0 %1463
  %v1465 = vsub.f32 %v1457, %v1464
  %v1466 = vmul.f32 %v1465, 1.442695
  %v1467 = vpow.pop %v1466
  %v1468 = vsel %vm390, %v1467, 0.0
  %1469 = vadd.xlane.f32.xlu0 %v1468
  %v1470 = vpop.xlane.xlu0 %1469
  %v1471 = vrcp.pop %v1470
  %v1472 = vmul.f32 %v1467, %v1471
  %v1473 = vpack.c.bf16 %v1472, %v1472
  %1474 = vrot.lane.b32.xlu0 %v1088, 64
  %v1475 = vpop.permute.xlu0 %1474
  %v1477 = vsel %vm390, %v1473, 0
  %v1480 = vsel %vm406, %v1475, 0
  %1482 = vmatprep.subr.bf16.mxu0 0
  %1483 = vmatpush1.bf16.msra.mxu0 %v1480
  %1484 = vmatprep.subr.bf16.mxu0 0
  %1485 = vmatpush1.bf16.msra.mxu0 0
  %1486 = vmatprep.subr.bf16.mxu0 0
  %1487 = vmatpush1.bf16.msra.mxu0 0
  %1488 = vmatprep.subr.bf16.mxu0 0
  %1489 = vmatpush1.bf16.msra.mxu0 0
  %1490 = vmatprep.subr.bf16.mxu0 0
  %1491 = vmatpush1.bf16.msra.mxu0 0
  %1492 = vmatprep.subr.bf16.mxu0 0
  %1493 = vmatpush1.bf16.msra.mxu0 0
  %1494 = vmatprep.subr.bf16.mxu0 0
  %1495 = vmatpush1.bf16.msra.mxu0 0
  %1496 = vmatprep.subr.bf16.mxu0 0
  %1497 = vmatpush1.bf16.msra.mxu0 0
  %1498 = vmatprep.subr.bf16.mxu0 0
  %1499 = vmatpush1.bf16.msra.mxu0 0
  %1500 = vmatprep.subr.bf16.mxu0 0
  %1501 = vmatpush1.bf16.msra.mxu0 0
  %1502 = vmatprep.subr.bf16.mxu0 0
  %1503 = vmatpush1.bf16.msra.mxu0 0
  %1504 = vmatprep.subr.bf16.mxu0 0
  %1505 = vmatpush1.bf16.msra.mxu0 0
  %1506 = vmatprep.subr.bf16.mxu0 0
  %1507 = vmatpush1.bf16.msra.mxu0 0
  %1508 = vmatprep.subr.bf16.mxu0 0
  %1509 = vmatpush1.bf16.msra.mxu0 0
  %1510 = vmatprep.subr.bf16.mxu0 0
  %1511 = vmatpush1.bf16.msra.mxu0 0
  %1512 = vmatprep.subr.bf16.mxu0 0
  %1513 = vmatpush1.bf16.msra.mxu0 0
  %1514 = vmatprep.mubr.bf16.mxu0 0
  %1515 = vmatmul.mubr.bf16.gmra.mrb[0].mxu0 %v1477
  %v1516 = vpop.f32.mrb[0].mxu0
  %v1517 = vadd.f32 0.0, %v1516
  %v1518 = vpop.f32.mrb[0].mxu0
  %v1519 = vpop.f32.mrb[0].mxu0
  %v1520 = vpop.f32.mrb[0].mxu0
  %1521 = vdwg.mxu0
  %v1522 = vpack.c.bf16 %v1517, %v1517
  %v1523 = vld [vmem:[%s4 + $0x20] sm:$0xf]
  %v1524 = vld [vmem:[%s4 + $0x24] sm:$0xf]
  %v1525 = vld [vmem:[%s4 + $0x28] sm:$0xf]
  %v1526 = vld [vmem:[%s4 + $0x2c] sm:$0xf]
  %v1531 = vunpack.c.l.b16 %v1523
  %v1532 = vunpack.c.l.b16 %v1524
  %v1533 = vunpack.c.l.b16 %v1525
  %v1534 = vunpack.c.l.b16 %v1526
  %v1535 = vpack.c.b16 %v1532, %v1531
  %v1536 = vpack.c.b16 %v1534, %v1533
  %v1540 = vsel %vm346, %v1522, 0
  %1542 = vmatprep.subr.bf16.mxu0 0
  %1543 = vmatpush1.bf16.msra.mxu0 %v1535
  %1544 = vmatprep.subr.bf16.mxu0 0
  %1545 = vmatpush1.bf16.msra.mxu0 %v1536
  %1546 = vmatprep.subr.bf16.mxu0 0
  %1547 = vmatpush1.bf16.msra.mxu0 0
  %1548 = vmatprep.subr.bf16.mxu0 0
  %1549 = vmatpush1.bf16.msra.mxu0 0
  %1550 = vmatprep.subr.bf16.mxu0 0
  %1551 = vmatpush1.bf16.msra.mxu0 0
  %1552 = vmatprep.subr.bf16.mxu0 0
  %1553 = vmatpush1.bf16.msra.mxu0 0
  %1554 = vmatprep.subr.bf16.mxu0 0
  %1555 = vmatpush1.bf16.msra.mxu0 0
  %1556 = vmatprep.subr.bf16.mxu0 0
  %1557 = vmatpush1.bf16.msra.mxu0 0
  %1558 = vmatprep.subr.bf16.mxu0 0
  %1559 = vmatpush1.bf16.msra.mxu0 0
  %1560 = vmatprep.subr.bf16.mxu0 0
  %1561 = vmatpush1.bf16.msra.mxu0 0
  %1562 = vmatprep.subr.bf16.mxu0 0
  %1563 = vmatpush1.bf16.msra.mxu0 0
  %1564 = vmatprep.subr.bf16.mxu0 0
  %1565 = vmatpush1.bf16.msra.mxu0 0
  %1566 = vmatprep.subr.bf16.mxu0 0
  %1567 = vmatpush1.bf16.msra.mxu0 0
  %1568 = vmatprep.subr.bf16.mxu0 0
  %1569 = vmatpush1.bf16.msra.mxu0 0
  %1570 = vmatprep.subr.bf16.mxu0 0
  %1571 = vmatpush1.bf16.msra.mxu0 0
  %1572 = vmatprep.subr.bf16.mxu0 0
  %1573 = vmatpush1.bf16.msra.mxu0 0
  %1574 = vmatprep.mubr.bf16.mxu0 0
  %1575 = vmatmul.mubr.bf16.gmra.mrb[0].mxu0 %v1540
  %v1576 = vpop.f32.mrb[0].mxu0
  %v1577 = vadd.f32 0.0, %v1576
  %v1578 = vpop.f32.mrb[0].mxu0
  %v1579 = vpop.f32.mrb[0].mxu0
  %v1580 = vpop.f32.mrb[0].mxu0
  %1581 = vdwg.mxu0
  %v1582 = vadd.f32 %v1412, %v1577
  %1583 = vrot.lane.b32.xlu0 %v1047, 32
  %v1584 = vpop.permute.xlu0 %1583
  %v1586 = vsel %vm346, %v1584, 0
  %1588 = vmatprep.subr.bf16.mxu0 0
  %1589 = vmatpush1.bf16.msra.mxu0 %v1086
  %1590 = vmatprep.subr.bf16.mxu0 0
  %1591 = vmatpush1.bf16.msra.mxu0 %v1087
  %1592 = vmatprep.subr.bf16.mxu0 0
  %1593 = vmatpush1.bf16.msra.mxu0 0
  %1594 = vmatprep.subr.bf16.mxu0 0
  %1595 = vmatpush1.bf16.msra.mxu0 0
  %1596 = vmatprep.subr.bf16.mxu0 0
  %1597 = vmatpush1.bf16.msra.mxu0 0
  %1598 = vmatprep.subr.bf16.mxu0 0
  %1599 = vmatpush1.bf16.msra.mxu0 0
  %1600 = vmatprep.subr.bf16.mxu0 0
  %1601 = vmatpush1.bf16.msra.mxu0 0
  %1602 = vmatprep.subr.bf16.mxu0 0
  %1603 = vmatpush1.bf16.msra.mxu0 0
  %1604 = vmatprep.subr.bf16.mxu0 0
  %1605 = vmatpush1.bf16.msra.mxu0 0
  %1606 = vmatprep.subr.bf16.mxu0 0
  %1607 = vmatpush1.bf16.msra.mxu0 0
  %1608 = vmatprep.subr.bf16.mxu0 0
  %1609 = vmatpush1.bf16.msra.mxu0 0
  %1610 = vmatprep.subr.bf16.mxu0 0
  %1611 = vmatpush1.bf16.msra.mxu0 0
  %1612 = vmatprep.subr.bf16.mxu0 0
  %1613 = vmatpush1.bf16.msra.mxu0 0
  %1614 = vmatprep.subr.bf16.mxu0 0
  %1615 = vmatpush1.bf16.msra.mxu0 0
  %1616 = vmatprep.subr.bf16.mxu0 0
  %1617 = vmatpush1.bf16.msra.mxu0 0
  %1618 = vmatprep.subr.bf16.mxu0 0
  %1619 = vmatpush1.bf16.msra.mxu0 0
  %1620 = vmatprep.mubr.bf16.mxu0 0
  %1621 = vmatmul.mubr.bf16.gmra.mrb[0].mxu0 %v1586
  %v1622 = vpop.f32.mrb[0].mxu0
  %v1623 = vadd.f32 0.0, %v1622
  %v1624 = vpop.f32.mrb[0].mxu0
  %v1625 = vpop.f32.mrb[0].mxu0
  %v1626 = vpop.f32.mrb[0].mxu0
  %1627 = vdwg.mxu0
  %v1628 = vsel %vm390, %v1623, -inf
  %1629 = vmax.xlane.f32.xlu0 %v1628
  %v1630 = vpop.xlane.xlu0 %1629
  %v1631 = vsub.f32 %v1623, %v1630
  %v1632 = vmul.f32 %v1631, 1.442695
  %v1633 = vpow.pop %v1632
  %v1634 = vsel %vm390, %v1633, 0.0
  %1635 = vadd.xlane.f32.xlu0 %v1634
  %v1636 = vpop.xlane.xlu0 %1635
  %v1637 = vrcp.pop %v1636
  %v1638 = vmul.f32 %v1633, %v1637
  %v1639 = vpack.c.bf16 %v1638, %v1638
  %1640 = vrot.lane.b32.xlu0 %v1088, 32
  %v1641 = vpop.permute.xlu0 %1640
  %v1643 = vsel %vm390, %v1639, 0
  %v1646 = vsel %vm406, %v1641, 0
  %1648 = vmatprep.subr.bf16.mxu0 0
  %1649 = vmatpush1.bf16.msra.mxu0 %v1646
  %1650 = vmatprep.subr.bf16.mxu0 0
  %1651 = vmatpush1.bf16.msra.mxu0 0
  %1652 = vmatprep.subr.bf16.mxu0 0
  %1653 = vmatpush1.bf16.msra.mxu0 0
  %1654 = vmatprep.subr.bf16.mxu0 0
  %1655 = vmatpush1.bf16.msra.mxu0 0
  %1656 = vmatprep.subr.bf16.mxu0 0
  %1657 = vmatpush1.bf16.msra.mxu0 0
  %1658 = vmatprep.subr.bf16.mxu0 0
  %1659 = vmatpush1.bf16.msra.mxu0 0
  %1660 = vmatprep.subr.bf16.mxu0 0
  %1661 = vmatpush1.bf16.msra.mxu0 0
  %1662 = vmatprep.subr.bf16.mxu0 0
  %1663 = vmatpush1.bf16.msra.mxu0 0
  %1664 = vmatprep.subr.bf16.mxu0 0
  %1665 = vmatpush1.bf16.msra.mxu0 0
  %1666 = vmatprep.subr.bf16.mxu0 0
  %1667 = vmatpush1.bf16.msra.mxu0 0
  %1668 = vmatprep.subr.bf16.mxu0 0
  %1669 = vmatpush1.bf16.msra.mxu0 0
  %1670 = vmatprep.subr.bf16.mxu0 0
  %1671 = vmatpush1.bf16.msra.mxu0 0
  %1672 = vmatprep.subr.bf16.mxu0 0
  %1673 = vmatpush1.bf16.msra.mxu0 0
  %1674 = vmatprep.subr.bf16.mxu0 0
  %1675 = vmatpush1.bf16.msra.mxu0 0
  %1676 = vmatprep.subr.bf16.mxu0 0
  %1677 = vmatpush1.bf16.msra.mxu0 0
  %1678 = vmatprep.subr.bf16.mxu0 0
  %1679 = vmatpush1.bf16.msra.mxu0 0
  %1680 = vmatprep.mubr.bf16.mxu0 0
  %1681 = vmatmul.mubr.bf16.gmra.mrb[0].mxu0 %v1643
  %v1682 = vpop.f32.mrb[0].mxu0
  %v1683 = vadd.f32 0.0, %v1682
  %v1684 = vpop.f32.mrb[0].mxu0
  %v1685 = vpop.f32.mrb[0].mxu0
  %v1686 = vpop.f32.mrb[0].mxu0
  %1687 = vdwg.mxu0
  %v1688 = vpack.c.bf16 %v1683, %v1683
  %v1689 = vld [vmem:[%s4 + $0x30] sm:$0xf]
  %v1690 = vld [vmem:[%s4 + $0x34] sm:$0xf]
  %v1691 = vld [vmem:[%s4 + $0x38] sm:$0xf]
  %v1692 = vld [vmem:[%s4 + $0x3c] sm:$0xf]
  %v1697 = vunpack.c.l.b16 %v1689
  %v1698 = vunpack.c.l.b16 %v1690
  %v1699 = vunpack.c.l.b16 %v1691
  %v1700 = vunpack.c.l.b16 %v1692
  %v1701 = vpack.c.b16 %v1698, %v1697
  %v1702 = vpack.c.b16 %v1700, %v1699
  %v1706 = vsel %vm346, %v1688, 0
  %1708 = vmatprep.subr.bf16.mxu0 0
  %1709 = vmatpush1.bf16.msra.mxu0 %v1701
  %1710 = vmatprep.subr.bf16.mxu0 0
  %1711 = vmatpush1.bf16.msra.mxu0 %v1702
  %1712 = vmatprep.subr.bf16.mxu0 0
  %1713 = vmatpush1.bf16.msra.mxu0 0
  %1714 = vmatprep.subr.bf16.mxu0 0
  %1715 = vmatpush1.bf16.msra.mxu0 0
  %1716 = vmatprep.subr.bf16.mxu0 0
  %1717 = vmatpush1.bf16.msra.mxu0 0
  %1718 = vmatprep.subr.bf16.mxu0 0
  %1719 = vmatpush1.bf16.msra.mxu0 0
  %1720 = vmatprep.subr.bf16.mxu0 0
  %1721 = vmatpush1.bf16.msra.mxu0 0
  %1722 = vmatprep.subr.bf16.mxu0 0
  %1723 = vmatpush1.bf16.msra.mxu0 0
  %1724 = vmatprep.subr.bf16.mxu0 0
  %1725 = vmatpush1.bf16.msra.mxu0 0
  %1726 = vmatprep.subr.bf16.mxu0 0
  %1727 = vmatpush1.bf16.msra.mxu0 0
  %1728 = vmatprep.subr.bf16.mxu0 0
  %1729 = vmatpush1.bf16.msra.mxu0 0
  %1730 = vmatprep.subr.bf16.mxu0 0
  %1731 = vmatpush1.bf16.msra.mxu0 0
  %1732 = vmatprep.subr.bf16.mxu0 0
  %1733 = vmatpush1.bf16.msra.mxu0 0
  %1734 = vmatprep.subr.bf16.mxu0 0
  %1735 = vmatpush1.bf16.msra.mxu0 0
  %1736 = vmatprep.subr.bf16.mxu0 0
  %1737 = vmatpush1.bf16.msra.mxu0 0
  %1738 = vmatprep.subr.bf16.mxu0 0
  %1739 = vmatpush1.bf16.msra.mxu0 0
  %1740 = vmatprep.mubr.bf16.mxu0 0
  %1741 = vmatmul.mubr.bf16.gmra.mrb[0].mxu0 %v1706
  %v1742 = vpop.f32.mrb[0].mxu0
  %v1743 = vadd.f32 0.0, %v1742
  %v1744 = vpop.f32.mrb[0].mxu0
  %v1745 = vpop.f32.mrb[0].mxu0
  %v1746 = vpop.f32.mrb[0].mxu0
  %1747 = vdwg.mxu0
  %v1748 = vadd.f32 %v1582, %v1743
  %v1749 = vld [vmem:[%s5] sm:$0x1]
  %v1751 = vlaneseq
  %v1752 = vshrl.u32 %v1751, 7
  %v1753 = vsub.s32 0, %v1752
  %v1754 = vrot.slane %v1749, %v1753
  %v1756 = vadd.f32 %v1748, %v1754
  %v1757 = vadd.f32 %v31, %v1756
  %1758 = vadd.xlane.f32.xlu0 %v1757
  %v1759 = vpop.xlane.xlu0 %1758
  %v1760 = vmul.f32 %v1759, %v1020
  %v1761 = vsub.f32 %v1757, %v1760
  %v1762 = vmul.f32 %v1761, %v1761
  %1763 = vadd.xlane.f32.xlu0 %v1762
  %v1764 = vpop.xlane.xlu0 %1763
  %v1765 = vmul.f32 %v1764, %v1020
  %v1766 = vadd.f32 %v1765, 1e-05
  %v1767 = vrsqrt.pop %v1766
  %v1768 = vmul.f32 %v1761, %v1767
  %v1769 = vld [vmem:[%s6] sm:$0x1]
  %v1771 = vlaneseq
  %v1772 = vshrl.u32 %v1771, 7
  %v1773 = vsub.s32 0, %v1772
  %v1774 = vrot.slane %v1769, %v1773
  %v1776 = vmul.f32 %v1768, %v1774
  %v1777 = vld [vmem:[%s7] sm:$0x1]
  %v1779 = vlaneseq
  %v1780 = vshrl.u32 %v1779, 7
  %v1781 = vsub.s32 0, %v1780
  %v1782 = vrot.slane %v1777, %v1781
  %v1784 = vadd.f32 %v1776, %v1782
  %s1785 = scalar_lea.vmem %s8, 8
  %1786 = vst [vmem:[%s1785] sm:$0xff] %v1784
  // Predicated region
  $region34: #{transformer_forward.19} parent=0 // pred_check
    _
  $region35: #{transformer_forward.19} parent=0 // pred_check_branch
    %1788 = sbr.rel (0) target = $region37
  $region36: #{transformer_forward.19} parent=0 // pred_region
    _
  $region37: #{transformer_forward.19} parent=0 // pred_fallthru
    _
  // Predicated region
  $region38: #{transformer_forward.19} parent=0 // pred_check
    _
  $region39: #{transformer_forward.19} parent=0 // pred_check_branch
    %1790 = sbr.rel (0) target = $region41
  $region40: #{transformer_forward.19} parent=0 // pred_region
    _
  $region41: #{transformer_forward.19} parent=0 // pred_fallthru
    _

</llo_original>
